<compile_context>
chip_gen: v7x
topology: tpu7x:2x2x1
jax: 0.10.0
libtpu: 0.0.40
codegen_flags: <defaults>
</compile_context>

<pallas_src>
import functools
import math

import jax
import jax.numpy as jnp
from jax.experimental import pallas as pl
from jax.experimental.pallas import tpu as pltpu


# Below this many output bytes, a custom call's fixed launch cost + fusion
# barrier dominates: return the plain jnp expression and let XLA fuse it.
_TINY_OUTPUT_BYTES = 256 * 1024
# Per-block output footprint cap: keeps double-buffered blocks + sin/cos
# temporaries comfortably inside every generation's scoped-VMEM budget.
_MAX_BLOCK_OUT_BYTES = 4 * 1024 * 1024
_MAX_TILE_ROWS = 1024


def _time_emb_kernel(t_ref, half_ref, out_ref, *, half, split_store):
    # t_ref:    (tB, 1)        float32
    # half_ref: (1, half)      float32  (same block every step -> VMEM-resident)
    # out_ref:  (tB, 2*half)   out dtype
    t = t_ref[...]                       # (tB, 1)
    h = half_ref[...]                    # (1, half)
    arg = t * h                          # VPU broadcast-multiply -> (tB, half) f32
    if split_store:
        # half % 128 == 0: two lane-aligned, unmasked direct stores.
        # No concat intermediate -> no extra full-tile copy on the vst slot.
        out_ref[:, pl.ds(0, half)] = jnp.sin(arg).astype(out_ref.dtype)
        out_ref[:, pl.ds(half, half)] = jnp.cos(arg).astype(out_ref.dtype)
    else:
        # Fallback for non-lane-aligned halves: single full-width store.
        out_ref[...] = jnp.concatenate(
            [jnp.sin(arg), jnp.cos(arg)], axis=-1
        ).astype(out_ref.dtype)


def _pick_tile_rows(batch, emb_size, out_itemsize):
    # Byte budget first (VMEM safety on v5e/v7x), then row cap, then aim for
    # >= 2 grid blocks (pipelined writeback + 2-TC sharding on v7x).
    rows_by_bytes = _MAX_BLOCK_OUT_BYTES // max(1, emb_size * out_itemsize)
    cap = max(8, (min(_MAX_TILE_ROWS, rows_by_bytes) // 8) * 8)
    if batch <= 8:
        return 8
    target = max(8, (pl.cdiv(batch, 2) // 8) * 8)
    return min(cap, target)


def make_time_embedding(emb_size: int, out_dtype=jnp.float32):
    """Returns (half_emb_buffer, forward_fn) mirroring TimeEmbedding.__init__/forward."""
    assert emb_size % 2 == 0, "emb_size must be even (sin/cos halves)"
    half = emb_size // 2
    # Exact PyTorch buffer formula (precedence: (-log(10000)/half) - 1).
    half_emb = jnp.exp(
        jnp.arange(half, dtype=jnp.float32) * (-1.0 * math.log(10000.0) / half - 1.0)
    )
    half2 = half_emb.reshape(1, half)          # hoisted out of forward()
    out_itemsize = jnp.dtype(out_dtype).itemsize

    kernel = functools.partial(
        _time_emb_kernel, half=half, split_store=(half % 128 == 0)
    )

    def forward(t):
        B = t.shape[0]
        # t.view(B, -1): one scalar timestep per batch element.
        t2 = jnp.reshape(t, (B, 1)).astype(jnp.float32)

        out_bytes = B * emb_size * out_itemsize
        if out_bytes < _TINY_OUTPUT_BYTES:
            # Tiny escape hatch: plain XLA, fuses into the downstream MLP.
            arg = t2 * half2
            return jnp.concatenate(
                [jnp.sin(arg), jnp.cos(arg)], axis=-1
            ).astype(out_dtype)

        tB = _pick_tile_rows(B, emb_size, out_itemsize)
        n_blocks = pl.cdiv(B, tB)  # ragged last block: Pallas masks its stores
        cost = pl.CostEstimate(
            flops=B * half,
            transcendentals=B * emb_size,
            bytes_accessed=(B + half) * 4 + out_bytes,
        )
        return pl.pallas_call(
            kernel,
            out_shape=jax.ShapeDtypeStruct((B, emb_size), out_dtype),
            grid=(n_blocks,),
            in_specs=[
                pl.BlockSpec((tB, 1), lambda i: (i, 0)),
                # Frequency row: same block every step -> stays VMEM-resident.
                pl.BlockSpec((1, half), lambda i: (0, 0)),
            ],
            out_specs=pl.BlockSpec((tB, emb_size), lambda i: (i, 0)),
            compiler_params=pltpu.CompilerParams(
                dimension_semantics=("parallel",),  # shards blocks across TCs on v7x
                vmem_limit_bytes=32 << 20,          # covers v5e's 16 MiB scoped default
            ),
            cost_estimate=cost,
        )(t2, half2)

    return half_emb, forward


def _reference(t, half_emb):
    B = t.shape[0]
    t2 = jnp.reshape(t, (B, -1)).astype(jnp.float32)
    arg = half_emb[None, :] * t2
    return jnp.concatenate([jnp.sin(arg), jnp.cos(arg)], axis=-1)


if __name__ == "__main__":
    # 1) Tiny DiT-demo shape (emb_size=32, batch=8): escape-hatch (pure XLA) path.
    emb_small = 32
    half_small, fwd_small = make_time_embedding(emb_small)
    t_small = jax.random.randint(jax.random.PRNGKey(0), (8,), 0, 1000).astype(
        jnp.float32
    )
    out_small = jax.block_until_ready(fwd_small(t_small))
    assert out_small.shape == (8, emb_small)
    assert jnp.allclose(out_small, _reference(t_small, half_small), atol=1e-5, rtol=1e-5)

    # 2) Lane-aligned Pallas path (half=128), medium batch -> 2 grid blocks.
    emb = 256
    half_emb, fwd = make_time_embedding(emb)
    t_med = jax.random.randint(jax.random.PRNGKey(1), (512,), 0, 1000).astype(
        jnp.float32
    )
    out_med = jax.block_until_ready(fwd(t_med))
    assert out_med.shape == (512, emb)
    assert jnp.allclose(out_med, _reference(t_med, half_emb), atol=1e-5, rtol=1e-5)

    # 3) Tiled Pallas path with ragged last block (no pad, no out[:B] re-copy).
    t_big = jax.random.randint(jax.random.PRNGKey(2), (2080,), 0, 1000).astype(
        jnp.float32
    )
    out_big = jax.block_until_ready(fwd(t_big))
    assert out_big.shape == (2080, emb)
    assert jnp.allclose(out_big, _reference(t_big, half_emb), atol=1e-5, rtol=1e-5)

    print("KERNEL_OK")
</pallas_src>

<mosaic_0001>
module attributes {stable_mosaic.version = 11 : i64} {
  func.func @_time_emb_kernel(%arg0: i32, %arg1: memref<256x1xf32, #tpu.memory_space<vmem>>, %arg2: memref<1x128xf32, #tpu.memory_space<vmem>>, %arg3: memref<256x256xf32, #tpu.memory_space<vmem>>) attributes {dimension_semantics = [#tpu.dimension_semantics<parallel>], iteration_bounds = array<i64: 2>, scalar_prefetch = 0 : i64, scratch_operands = 0 : i64, tpu.core_type = #tpu.core_type<tc>, window_params = [{transform_indices = @transform_0, window_bounds = array<i64: 256, 1>}, {pipeline_mode = #tpu.pipeline_mode<synchronous>, transform_indices = @transform_1, window_bounds = array<i64: 1, 128>}, {transform_indices = @transform_2, window_bounds = array<i64: 256, 256>}]} {
    %c0 = arith.constant 0 : index
    %c0_0 = arith.constant 0 : index
    %0 = vector.load %arg1[%c0, %c0_0] : memref<256x1xf32, #tpu.memory_space<vmem>>, vector<256x1xf32>
    %c0_1 = arith.constant 0 : index
    %c0_2 = arith.constant 0 : index
    %1 = vector.load %arg2[%c0_1, %c0_2] : memref<1x128xf32, #tpu.memory_space<vmem>>, vector<1x128xf32>
    %2 = vector.broadcast %0 : vector<256x1xf32> to vector<256x128xf32>
    %3 = vector.broadcast %1 : vector<1x128xf32> to vector<256x128xf32>
    %4 = arith.mulf %2, %3 : vector<256x128xf32>
    %5 = math.sin %4 : vector<256x128xf32>
    %c0_3 = arith.constant 0 : index
    %c0_4 = arith.constant 0 : index
    %6 = vector.load %arg3[%c0_3, %c0_4] : memref<256x256xf32, #tpu.memory_space<vmem>>, vector<256x128xf32>
    tpu.vector_store %arg3[%c0_3, %c0_4], %5 {strides = array<i32>} : memref<256x256xf32, #tpu.memory_space<vmem>>, vector<256x128xf32>,
    %7 = math.cos %4 : vector<256x128xf32>
    %c0_5 = arith.constant 0 : index
    %c128 = arith.constant 128 : index
    %8 = vector.load %arg3[%c0_5, %c128] : memref<256x256xf32, #tpu.memory_space<vmem>>, vector<256x128xf32>
    tpu.vector_store %arg3[%c0_5, %c128], %7 {strides = array<i32>} : memref<256x256xf32, #tpu.memory_space<vmem>>, vector<256x128xf32>,
    return
  }
  func.func @transform_0(%arg0: i32) -> (i32, i32) {
    %c0_i32 = arith.constant 0 : i32
    %c0_i32_0 = arith.constant 0 : i32
    return %arg0, %c0_i32 : i32, i32
  }
  func.func @transform_1(%arg0: i32) -> (i32, i32) {
    %c0_i32 = arith.constant 0 : i32
    %c0_i32_0 = arith.constant 0 : i32
    %c0_i32_1 = arith.constant 0 : i32
    return %c0_i32, %c0_i32_0 : i32, i32
  }
  func.func @transform_2(%arg0: i32) -> (i32, i32) {
    %c0_i32 = arith.constant 0 : i32
    %c0_i32_0 = arith.constant 0 : i32
    return %arg0, %c0_i32 : i32, i32
  }
}

</mosaic_0001>

<llo_original>
// kernel: tpu_custom_call.1
$region0: #{tpu_custom_call.1}
  #allocation0 [shape = 'u32[]', space=smem, size = 0x4, offset = 0x4, fixed_abs, tag = 'smem constant byte address 0x4 - core index']
  #allocation1 [shape = 'u32[144,128]{1,0:T(1,128)}', space=vmem, size = 0x12000, scoped, tag = 'internal scratch']
  %s0 = inlined_call_operand.vmem [shape: f32[512,1], index: 0, kind: input, shape index: {}]
  %s1 = inlined_call_operand.vmem [shape: f32[1,128], index: 1, kind: input, shape index: {}]
  %s2 = inlined_call_operand.hbm [shape: f32[512,256], index: 2, kind: output, shape index: {}]
  %s3 = sld [smem:[#allocation0]]
  $region41: #{tpu_custom_call.1} parent=0
    _
  %s5 = ssub.s32 1, %s3
  %s6 = scalar_select 0, %s5, %s3
  $region1: #{tpu_custom_call.1} parent=0
    #allocation2 [shape = 'u8[524288]{0}', space=vmem, size = 0x80000, scoped, tag = 'output window, operand 0']
    #allocation3 [shape = 's32[2]{0}', space=sflag, size = 0x8, scoped, tag = 'scoped memory for tpu_custom_call.1']
    %7 = vsyncpa [#allocation3], 0
    %s8 = scalar_lea.sflag [#allocation3], 1
    %9 = vsyncpa %s8, 0
    loop: start=0, step=1, limit=4
    $region2: #{tpu_custom_call.1} parent=1 // loop_pre_header
      _
    $region3: #{tpu_custom_call.1} parent=1 // loop_header
      %s11 = sphi 0, %s15
      %p12 = scmp.ge.s32.totalorder %s11, 4
      %s21 = sphi 0, %s23
      %s24 = sphi 0, %s21
      %s25 = sphi 0, %s24
      %s41 = sphi 0, %s25
      %s45 = sphi 0, %s45
      %s47 = sphi 0, %s45
      %s48 = sphi 0, %s47
      %s62 = sphi 0, %s48
      %s68 = sphi 0, %s70
      %s71 = sphi 0, %s68
      %s72 = sphi 0, %s71
      %s88 = sphi 0, %s72
    $region4: #{tpu_custom_call.1} parent=1 // loop_header_branch
      %14 = sbr.rel (%p12) target = $region8
    $region5: #{tpu_custom_call.1} parent=1 // loop_body
      %s16 = ssub.s32 %s11, 1
      %s17 = ssub.s32 %s11, 2
      %s18 = sadd.s32 %s11, 1
      %s19 = ssub.s32 %s11, %s18
      %p20 = scmp.eq.s32.totalorder %s19, 0
      %s22 = sadd.s32 %s21, 1
      %s23 = scalar_select %p20, %s21, %s22
      %p26 = pneg %p20
      %p27 = scmp.eq.s32.totalorder %s11, 1
      %p28 = por %p26, %p27
      %p29 = scmp.ne.s32.totalorder %s21, %s24
      %p30 = scmp.eq.s32.totalorder %s11, 0
      %p31 = por %p29, %p30
      %p32 = scmp.ne.s32.totalorder %s21, %s24
      %p33 = scmp.eq.s32.totalorder %s16, 1
      %p34 = por %p32, %p33
      %p35 = scmp.ne.s32.totalorder %s24, %s25
      %p36 = scmp.eq.s32.totalorder %s16, 0
      %p37 = por %p35, %p36
      %p38 = scmp.ne.s32.totalorder %s24, %s25
      %p39 = scmp.eq.s32.totalorder %s17, 1
      %p40 = por %p38, %p39
      %p42 = scmp.ne.s32.totalorder %s25, %s41
      %p43 = scmp.eq.s32.totalorder %s17, 0
      %p44 = por %p42, %p43
      %s46 = sadd.s32 %s45, 1
      %p49 = scmp.eq.s32.totalorder %s11, 1
      %p50 = scmp.ne.s32.totalorder %s45, %s47
      %p51 = scmp.eq.s32.totalorder %s11, 0
      %p52 = por %p50, %p51
      %p53 = scmp.ne.s32.totalorder %s45, %s47
      %p54 = scmp.eq.s32.totalorder %s16, 1
      %p55 = por %p53, %p54
      %p56 = scmp.ne.s32.totalorder %s47, %s48
      %p57 = scmp.eq.s32.totalorder %s16, 0
      %p58 = por %p56, %p57
      %p59 = scmp.ne.s32.totalorder %s47, %s48
      %p60 = scmp.eq.s32.totalorder %s17, 1
      %p61 = por %p59, %p60
      %p63 = scmp.ne.s32.totalorder %s48, %s62
      %p64 = scmp.eq.s32.totalorder %s17, 0
      %p65 = por %p63, %p64
      %s66 = ssub.s32 %s11, %s18
      %p67 = scmp.eq.s32.totalorder %s66, 0
      %s69 = sadd.s32 %s68, 1
      %s70 = scalar_select %p67, %s68, %s69
      %p73 = pneg %p67
      %p74 = scmp.eq.s32.totalorder %s11, 1
      %p75 = por %p73, %p74
      %p76 = scmp.ne.s32.totalorder %s68, %s71
      %p77 = scmp.eq.s32.totalorder %s11, 0
      %p78 = por %p76, %p77
      %p79 = scmp.ne.s32.totalorder %s68, %s71
      %p80 = scmp.eq.s32.totalorder %s16, 1
      %p81 = por %p79, %p80
      %p82 = scmp.ne.s32.totalorder %s71, %s72
      %p83 = scmp.eq.s32.totalorder %s16, 0
      %p84 = por %p82, %p83
      %p85 = scmp.ne.s32.totalorder %s71, %s72
      %p86 = scmp.eq.s32.totalorder %s17, 1
      %p87 = por %p85, %p86
      %p89 = scmp.ne.s32.totalorder %s72, %s88
      %p90 = scmp.eq.s32.totalorder %s17, 0
      %p91 = por %p89, %p90
      %p92 = scmp.le.s32.totalorder 1, %s11
      %p93 = scmp.lt.s32.totalorder %s11, 3
      %p94 = pnand %p92, %p93
      %p95 = pneg %p94
      // Predicated region
      $region9: #{tpu_custom_call.1} parent=5 // pred_check
        _
      $region10: #{tpu_custom_call.1} parent=5 // pred_check_branch
        %97 = sbr.rel (%p94) target = $region12
      $region11: #{tpu_custom_call.1} parent=5 // pred_region
        %s98 = ssub.s32 %s11, 1
        // Predicated region
        $region13: #{tpu_custom_call.1} parent=11 // pred_check
          %p99 = pneg %p58
        $region14: #{tpu_custom_call.1} parent=11 // pred_check_branch
          %101 = sbr.rel (%p99) target = $region16
        $region15: #{tpu_custom_call.1} parent=11 // pred_region
          _
        $region16: #{tpu_custom_call.1} parent=11 // pred_fallthru
          _
      $region12: #{tpu_custom_call.1} parent=5 // pred_fallthru
        _
      %p102 = scmp.lt.s32.totalorder %s11, 2
      // Predicated region
      $region17: #{tpu_custom_call.1} parent=5 // pred_check
        %p103 = pneg %p102
      $region18: #{tpu_custom_call.1} parent=5 // pred_check_branch
        %105 = sbr.rel (%p103) target = $region20
      $region19: #{tpu_custom_call.1} parent=5 // pred_region
        // Predicated region
        $region21: #{tpu_custom_call.1} parent=19 // pred_check
          %p106 = pneg %p31
        $region22: #{tpu_custom_call.1} parent=19 // pred_check_branch
          %108 = sbr.rel (%p106) target = $region24
        $region23: #{tpu_custom_call.1} parent=19 // pred_region
          %s109 = smul.u32 32, %s11
          %p110 = scmp.lt.s32.totalorder %s109, 63
          %s111 = scalar_select %p110, %s109, 63
          %s112 = smul.addr %s111, 8
          %s113 = scalar_lea.vmem %s0, %s112
          %s114 = smul.u32 32, %s11
        $region24: #{tpu_custom_call.1} parent=19 // pred_fallthru
          _
      $region20: #{tpu_custom_call.1} parent=5 // pred_fallthru
        _
      %p115 = scmp.le.s32.totalorder 1, %s11
      %p116 = scmp.lt.s32.totalorder %s11, 3
      %p117 = pnand %p115, %p116
      %p118 = pneg %p117
      // Predicated region
      $region25: #{tpu_custom_call.1} parent=5 // pred_check
        _
      $region26: #{tpu_custom_call.1} parent=5 // pred_check_branch
        %120 = sbr.rel (%p117) target = $region28
      $region27: #{tpu_custom_call.1} parent=5 // pred_region
        %s121 = ssub.s32 %s11, 1
        %s122 = smul.u32 32, %s16
        %p123 = scmp.lt.s32.totalorder %s122, 63
        %s124 = scalar_select %p123, %s122, 63
        %s125 = smul.addr %s124, 8
        %s126 = scalar_lea.vmem %s0, %s125
        %p127 = pneg %p37
        %p128 = pneg %p34
        %p129 = pneg %p58
        %p130 = pneg %p55
        %p131 = pneg %p84
        %p132 = pneg %p81
        %s133 = sand.u32 %s71, 1
        %s134 = scalar_lea.sflag [#allocation3], %s133
        %s135 = sand.u32 %s71, 1
        %s136 = smul.addr %s135, 512
        %s137 = scalar_lea.vmem [#allocation2], %s136
        %s138 = smul.u32 32, %s16
        %p139 = scmp.lt.s32.totalorder %s138, 63
        %s140 = scalar_select %p139, %s138, 63
        %s141 = smul.addr %s140, 8
        %s142 = scalar_lea.vmem %s0, %s141
        %s143 = smul.u32 32, %s16
        %s144 = smul.u32 32, %s16
        %v145 = vld [vmem:[%s142] sm:$0xff]
        %v146 = vld [vmem:[%s142 + $0x8] sm:$0xff]
        %v147 = vld [vmem:[%s142 + $0x10] sm:$0xff]
        %v148 = vld [vmem:[%s142 + $0x18] sm:$0xff]
        %v149 = vld [vmem:[%s142 + $0x20] sm:$0xff]
        %v150 = vld [vmem:[%s142 + $0x28] sm:$0xff]
        %v151 = vld [vmem:[%s142 + $0x30] sm:$0xff]
        %v152 = vld [vmem:[%s142 + $0x38] sm:$0xff]
        %v153 = vld [vmem:[%s142 + $0x40] sm:$0xff]
        %v154 = vld [vmem:[%s142 + $0x48] sm:$0xff]
        %v155 = vld [vmem:[%s142 + $0x50] sm:$0xff]
        %v156 = vld [vmem:[%s142 + $0x58] sm:$0xff]
        %v157 = vld [vmem:[%s142 + $0x60] sm:$0xff]
        %v158 = vld [vmem:[%s142 + $0x68] sm:$0xff]
        %v159 = vld [vmem:[%s142 + $0x70] sm:$0xff]
        %v160 = vld [vmem:[%s142 + $0x78] sm:$0xff]
        %v161 = vld [vmem:[%s142 + $0x80] sm:$0xff]
        %v162 = vld [vmem:[%s142 + $0x88] sm:$0xff]
        %v163 = vld [vmem:[%s142 + $0x90] sm:$0xff]
        %v164 = vld [vmem:[%s142 + $0x98] sm:$0xff]
        %v165 = vld [vmem:[%s142 + $0xa0] sm:$0xff]
        %v166 = vld [vmem:[%s142 + $0xa8] sm:$0xff]
        %v167 = vld [vmem:[%s142 + $0xb0] sm:$0xff]
        %v168 = vld [vmem:[%s142 + $0xb8] sm:$0xff]
        %v169 = vld [vmem:[%s142 + $0xc0] sm:$0xff]
        %v170 = vld [vmem:[%s142 + $0xc8] sm:$0xff]
        %v171 = vld [vmem:[%s142 + $0xd0] sm:$0xff]
        %v172 = vld [vmem:[%s142 + $0xd8] sm:$0xff]
        %v173 = vld [vmem:[%s142 + $0xe0] sm:$0xff]
        %v174 = vld [vmem:[%s142 + $0xe8] sm:$0xff]
        %v175 = vld [vmem:[%s142 + $0xf0] sm:$0xff]
        %v176 = vld [vmem:[%s142 + $0xf8] sm:$0xff]
        %v177 = vld [vmem:[%s1] sm:$0x1]
        %179 = vset.pattern.permute.xlu0 0
        %180 = vperm.xlu0 %179, %v145
        %v181 = vpop.permute.xlu0 %180
        %184 = vset.pattern.permute.xlu0 0
        %185 = vperm.xlu0 %184, %v146
        %v186 = vpop.permute.xlu0 %185
        %189 = vset.pattern.permute.xlu0 0
        %190 = vperm.xlu0 %189, %v147
        %v191 = vpop.permute.xlu0 %190
        %194 = vset.pattern.permute.xlu0 0
        %195 = vperm.xlu0 %194, %v148
        %v196 = vpop.permute.xlu0 %195
        %199 = vset.pattern.permute.xlu0 0
        %200 = vperm.xlu0 %199, %v149
        %v201 = vpop.permute.xlu0 %200
        %204 = vset.pattern.permute.xlu0 0
        %205 = vperm.xlu0 %204, %v150
        %v206 = vpop.permute.xlu0 %205
        %209 = vset.pattern.permute.xlu0 0
        %210 = vperm.xlu0 %209, %v151
        %v211 = vpop.permute.xlu0 %210
        %214 = vset.pattern.permute.xlu0 0
        %215 = vperm.xlu0 %214, %v152
        %v216 = vpop.permute.xlu0 %215
        %219 = vset.pattern.permute.xlu0 0
        %220 = vperm.xlu0 %219, %v153
        %v221 = vpop.permute.xlu0 %220
        %224 = vset.pattern.permute.xlu0 0
        %225 = vperm.xlu0 %224, %v154
        %v226 = vpop.permute.xlu0 %225
        %229 = vset.pattern.permute.xlu0 0
        %230 = vperm.xlu0 %229, %v155
        %v231 = vpop.permute.xlu0 %230
        %234 = vset.pattern.permute.xlu0 0
        %235 = vperm.xlu0 %234, %v156
        %v236 = vpop.permute.xlu0 %235
        %239 = vset.pattern.permute.xlu0 0
        %240 = vperm.xlu0 %239, %v157
        %v241 = vpop.permute.xlu0 %240
        %244 = vset.pattern.permute.xlu0 0
        %245 = vperm.xlu0 %244, %v158
        %v246 = vpop.permute.xlu0 %245
        %249 = vset.pattern.permute.xlu0 0
        %250 = vperm.xlu0 %249, %v159
        %v251 = vpop.permute.xlu0 %250
        %254 = vset.pattern.permute.xlu0 0
        %255 = vperm.xlu0 %254, %v160
        %v256 = vpop.permute.xlu0 %255
        %259 = vset.pattern.permute.xlu0 0
        %260 = vperm.xlu0 %259, %v161
        %v261 = vpop.permute.xlu0 %260
        %264 = vset.pattern.permute.xlu0 0
        %265 = vperm.xlu0 %264, %v162
        %v266 = vpop.permute.xlu0 %265
        %269 = vset.pattern.permute.xlu0 0
        %270 = vperm.xlu0 %269, %v163
        %v271 = vpop.permute.xlu0 %270
        %274 = vset.pattern.permute.xlu0 0
        %275 = vperm.xlu0 %274, %v164
        %v276 = vpop.permute.xlu0 %275
        %279 = vset.pattern.permute.xlu0 0
        %280 = vperm.xlu0 %279, %v165
        %v281 = vpop.permute.xlu0 %280
        %284 = vset.pattern.permute.xlu0 0
        %285 = vperm.xlu0 %284, %v166
        %v286 = vpop.permute.xlu0 %285
        %289 = vset.pattern.permute.xlu0 0
        %290 = vperm.xlu0 %289, %v167
        %v291 = vpop.permute.xlu0 %290
        %294 = vset.pattern.permute.xlu0 0
        %295 = vperm.xlu0 %294, %v168
        %v296 = vpop.permute.xlu0 %295
        %299 = vset.pattern.permute.xlu0 0
        %300 = vperm.xlu0 %299, %v169
        %v301 = vpop.permute.xlu0 %300
        %304 = vset.pattern.permute.xlu0 0
        %305 = vperm.xlu0 %304, %v170
        %v306 = vpop.permute.xlu0 %305
        %309 = vset.pattern.permute.xlu0 0
        %310 = vperm.xlu0 %309, %v171
        %v311 = vpop.permute.xlu0 %310
        %314 = vset.pattern.permute.xlu0 0
        %315 = vperm.xlu0 %314, %v172
        %v316 = vpop.permute.xlu0 %315
        %319 = vset.pattern.permute.xlu0 0
        %320 = vperm.xlu0 %319, %v173
        %v321 = vpop.permute.xlu0 %320
        %324 = vset.pattern.permute.xlu0 0
        %325 = vperm.xlu0 %324, %v174
        %v326 = vpop.permute.xlu0 %325
        %329 = vset.pattern.permute.xlu0 0
        %330 = vperm.xlu0 %329, %v175
        %v331 = vpop.permute.xlu0 %330
        %334 = vset.pattern.permute.xlu0 0
        %335 = vperm.xlu0 %334, %v176
        %v336 = vpop.permute.xlu0 %335
        %v339 = vlaneseq
        %v340 = vshrl.u32 %v339, 7
        %v341 = vsub.s32 0, %v340
        %v342 = vrot.slane %v177, %v341
        %v344 = vmul.f32 %v181, %v342
        %v345 = vmul.f32 %v186, %v342
        %v346 = vmul.f32 %v191, %v342
        %v347 = vmul.f32 %v196, %v342
        %v348 = vmul.f32 %v201, %v342
        %v349 = vmul.f32 %v206, %v342
        %v350 = vmul.f32 %v211, %v342
        %v351 = vmul.f32 %v216, %v342
        %v352 = vmul.f32 %v221, %v342
        %v353 = vmul.f32 %v226, %v342
        %v354 = vmul.f32 %v231, %v342
        %v355 = vmul.f32 %v236, %v342
        %v356 = vmul.f32 %v241, %v342
        %v357 = vmul.f32 %v246, %v342
        %v358 = vmul.f32 %v251, %v342
        %v359 = vmul.f32 %v256, %v342
        %v360 = vmul.f32 %v261, %v342
        %v361 = vmul.f32 %v266, %v342
        %v362 = vmul.f32 %v271, %v342
        %v363 = vmul.f32 %v276, %v342
        %v364 = vmul.f32 %v281, %v342
        %v365 = vmul.f32 %v286, %v342
        %v366 = vmul.f32 %v291, %v342
        %v367 = vmul.f32 %v296, %v342
        %v368 = vmul.f32 %v301, %v342
        %v369 = vmul.f32 %v306, %v342
        %v370 = vmul.f32 %v311, %v342
        %v371 = vmul.f32 %v316, %v342
        %v372 = vmul.f32 %v321, %v342
        %v373 = vmul.f32 %v326, %v342
        %v374 = vmul.f32 %v331, %v342
        %v375 = vmul.f32 %v336, %v342
        %v376 = vand.u32 2147483647, %v344
        %vm377 = vcmp.le.f32.partialorder %v376, 0.7853982
        %vm378 = vcmp.lt.s32.totalorder %v344, 0
        %v379 = vand.u32 %v344, 2139095040
        %v380 = vshrl.u32 %v379, 23
        %v381 = vsub.s32 %v380, 127
        %v382 = vand.u32 2147483647, %v344
        %v383 = vand.u32 %v382, 8388607
        %v384 = vor.u32 %v383, 8388608
        %v385 = vsub.s32 0, %v384
        %v386 = vadd.s32 %v381, 1
        %vm387 = vcmp.gt.s32.totalorder %v386, 0
        %v388 = vsel %vm387, %v386, 0
        %v389 = vshrl.u32 %v388, 5
        %v390 = vand.u32 %v388, 31
        %v391 = vsub.s32 32, %v390
        %v392 = vshrl.u32 683565275, %v391
        %v393 = vshll.u32 683565275, %v390
        %v394 = vshrl.u32 2475754826, %v391
        %v395 = vor.u32 %v393, %v394
        %v396 = vshll.u32 2475754826, %v390
        %v397 = vshrl.u32 2131351028, %v391
        %v398 = vor.u32 %v396, %v397
        %v399 = vshll.u32 2131351028, %v390
        %v400 = vshrl.u32 2102212464, %v391
        %v401 = vor.u32 %v399, %v400
        %v402 = vshll.u32 2102212464, %v390
        %v403 = vshrl.u32 920167782, %v391
        %v404 = vor.u32 %v402, %v403
        %v405 = vshll.u32 920167782, %v390
        %v406 = vshrl.u32 1326507024, %v391
        %v407 = vor.u32 %v405, %v406
        %vm408 = vcmp.lt.s32.totalorder %v389, 1
        %vm409 = vcmp.lt.s32.totalorder %v389, 2
        %vm410 = vcmp.lt.s32.totalorder %v389, 3
        %vm411 = vcmp.lt.s32.totalorder %v389, 4
        %v412 = vsel %vm408, %v392, %v395
        %v413 = vsel %vm411, %v401, 2102212464
        %v414 = vsel %vm410, %v398, %v413
        %v415 = vsel %vm409, %v412, %v414
        %v416 = vsel %vm408, %v395, %v398
        %v417 = vsel %vm411, %v404, 920167782
        %v418 = vsel %vm410, %v401, %v417
        %v419 = vsel %vm409, %v416, %v418
        %v420 = vsel %vm408, %v398, %v401
        %v421 = vsel %vm411, %v407, 1326507024
        %v422 = vsel %vm410, %v404, %v421
        %v423 = vsel %vm409, %v420, %v422
        %v424 = vshll.u32 %v384, 8
        %v425 = vmul.u32.u64.compose %v424, %v423
        %v426 = vextract.low.u32 %v425
        %v427 = vextract.high.u32 %v425
        %v428 = vmul.u32.u64.compose %v424, %v419
        %v429 = vextract.low.u32 %v428
        %v430 = vextract.high.u32 %v428
        %v431 = vmul.u32 %v424, %v415
        %v432 = vadd.s32 %v427, %v429
        %vm433 = vc.u32 %v427, %v429
        %v434 = vadd.s32 %v430, 1
        %v435 = vsel %vm433, %v434, %v430
        %v436 = vadd.s32 %v431, %v435
        %v437 = vadd.s32 %v436, 536870912
        %v438 = vshrl.u32 %v437, 30
        %v439 = vshll.u32 %v438, 30
        %v440 = vsub.s32 %v436, %v439
        %vm441 = vcmp.lt.s32.totalorder %v440, 0
        %v442 = vsub.s32 0, %v440
        %v443 = vsel %vm441, %v442, %v440
        %v444 = vclz %v443
        %v445 = vsub.s32 %v444, 2
        %vm446 = vcmp.gt.s32.totalorder 0, %v445
        %v447 = vsel %vm446, 0, %v445
        %v448 = vsub.s32 32, %v447
        %v449 = vshll.u32 %v440, %v447
        %v450 = vshrl.u32 %v432, %v448
        %v451 = vor.u32 %v449, %v450
        %v452 = vsub.s32 4294967266, %v447
        %v453 = vadd.s32 %v452, 127
        %v454 = vshll.u32 %v453, 23
        %v455 = vor.u32 4788187, %v454
        %v456 = vand.u32 2147483647, %v455
        %v458 = vcvt.s32.f32 %v451
        %v459 = vmul.f32 %v458, %v456
        %v460 = vxor.u32 %v459, 2147483648
        %v461 = vsel %vm378, %v460, %v459
        %v462 = vsub.s32 4, %v438
        %v463 = vsel %vm378, %v462, %v438
        %v464 = vsel %vm377, %v344, %v461
        %v465 = vsel %vm377, 0, %v463
        %v466 = vcosq.f32.pop %v464
        %v467 = vsinq.f32.pop %v464
        %vm468 = vweird.f32 %v344
        %v469 = vadd.s32 %v465, 3
        %v470 = vand.u32 %v469, 3
        %vm471 = vcmp.lt.s32.totalorder %v470, 2
        %vm472 = vcmp.eq.s32.totalorder %v470, 0
        %v473 = vxor.u32 %v467, 2147483648
        %v474 = vsel %vm472, %v466, %v473
        %vm475 = vcmp.eq.s32.totalorder %v470, 2
        %v476 = vxor.u32 %v466, 2147483648
        %v477 = vsel %vm475, %v476, %v467
        %v478 = vsel %vm471, %v474, %v477
        %v479 = vsel %vm468, nan, %v478
        %v480 = vand.u32 2147483647, %v345
        %vm481 = vcmp.le.f32.partialorder %v480, 0.7853982
        %vm482 = vcmp.lt.s32.totalorder %v345, 0
        %v483 = vand.u32 %v345, 2139095040
        %v484 = vshrl.u32 %v483, 23
        %v485 = vsub.s32 %v484, 127
        %v486 = vand.u32 2147483647, %v345
        %v487 = vand.u32 %v486, 8388607
        %v488 = vor.u32 %v487, 8388608
        %v489 = vsub.s32 0, %v488
        %v490 = vadd.s32 %v485, 1
        %vm491 = vcmp.gt.s32.totalorder %v490, 0
        %v492 = vsel %vm491, %v490, 0
        %v493 = vshrl.u32 %v492, 5
        %v494 = vand.u32 %v492, 31
        %v495 = vsub.s32 32, %v494
        %v496 = vshrl.u32 683565275, %v495
        %v497 = vshll.u32 683565275, %v494
        %v498 = vshrl.u32 2475754826, %v495
        %v499 = vor.u32 %v497, %v498
        %v500 = vshll.u32 2475754826, %v494
        %v501 = vshrl.u32 2131351028, %v495
        %v502 = vor.u32 %v500, %v501
        %v503 = vshll.u32 2131351028, %v494
        %v504 = vshrl.u32 2102212464, %v495
        %v505 = vor.u32 %v503, %v504
        %v506 = vshll.u32 2102212464, %v494
        %v507 = vshrl.u32 920167782, %v495
        %v508 = vor.u32 %v506, %v507
        %v509 = vshll.u32 920167782, %v494
        %v510 = vshrl.u32 1326507024, %v495
        %v511 = vor.u32 %v509, %v510
        %vm512 = vcmp.lt.s32.totalorder %v493, 1
        %vm513 = vcmp.lt.s32.totalorder %v493, 2
        %vm514 = vcmp.lt.s32.totalorder %v493, 3
        %vm515 = vcmp.lt.s32.totalorder %v493, 4
        %v516 = vsel %vm512, %v496, %v499
        %v517 = vsel %vm515, %v505, 2102212464
        %v518 = vsel %vm514, %v502, %v517
        %v519 = vsel %vm513, %v516, %v518
        %v520 = vsel %vm512, %v499, %v502
        %v521 = vsel %vm515, %v508, 920167782
        %v522 = vsel %vm514, %v505, %v521
        %v523 = vsel %vm513, %v520, %v522
        %v524 = vsel %vm512, %v502, %v505
        %v525 = vsel %vm515, %v511, 1326507024
        %v526 = vsel %vm514, %v508, %v525
        %v527 = vsel %vm513, %v524, %v526
        %v528 = vshll.u32 %v488, 8
        %v529 = vmul.u32.u64.compose %v528, %v527
        %v530 = vextract.low.u32 %v529
        %v531 = vextract.high.u32 %v529
        %v532 = vmul.u32.u64.compose %v528, %v523
        %v533 = vextract.low.u32 %v532
        %v534 = vextract.high.u32 %v532
        %v535 = vmul.u32 %v528, %v519
        %v536 = vadd.s32 %v531, %v533
        %vm537 = vc.u32 %v531, %v533
        %v538 = vadd.s32 %v534, 1
        %v539 = vsel %vm537, %v538, %v534
        %v540 = vadd.s32 %v535, %v539
        %v541 = vadd.s32 %v540, 536870912
        %v542 = vshrl.u32 %v541, 30
        %v543 = vshll.u32 %v542, 30
        %v544 = vsub.s32 %v540, %v543
        %vm545 = vcmp.lt.s32.totalorder %v544, 0
        %v546 = vsub.s32 0, %v544
        %v547 = vsel %vm545, %v546, %v544
        %v548 = vclz %v547
        %v549 = vsub.s32 %v548, 2
        %vm550 = vcmp.gt.s32.totalorder 0, %v549
        %v551 = vsel %vm550, 0, %v549
        %v552 = vsub.s32 32, %v551
        %v553 = vshll.u32 %v544, %v551
        %v554 = vshrl.u32 %v536, %v552
        %v555 = vor.u32 %v553, %v554
        %v556 = vsub.s32 4294967266, %v551
        %v557 = vadd.s32 %v556, 127
        %v558 = vshll.u32 %v557, 23
        %v559 = vor.u32 4788187, %v558
        %v560 = vand.u32 2147483647, %v559
        %v562 = vcvt.s32.f32 %v555
        %v563 = vmul.f32 %v562, %v560
        %v564 = vxor.u32 %v563, 2147483648
        %v565 = vsel %vm482, %v564, %v563
        %v566 = vsub.s32 4, %v542
        %v567 = vsel %vm482, %v566, %v542
        %v568 = vsel %vm481, %v345, %v565
        %v569 = vsel %vm481, 0, %v567
        %v570 = vcosq.f32.pop %v568
        %v571 = vsinq.f32.pop %v568
        %vm572 = vweird.f32 %v345
        %v573 = vadd.s32 %v569, 3
        %v574 = vand.u32 %v573, 3
        %vm575 = vcmp.lt.s32.totalorder %v574, 2
        %vm576 = vcmp.eq.s32.totalorder %v574, 0
        %v577 = vxor.u32 %v571, 2147483648
        %v578 = vsel %vm576, %v570, %v577
        %vm579 = vcmp.eq.s32.totalorder %v574, 2
        %v580 = vxor.u32 %v570, 2147483648
        %v581 = vsel %vm579, %v580, %v571
        %v582 = vsel %vm575, %v578, %v581
        %v583 = vsel %vm572, nan, %v582
        %v584 = vand.u32 2147483647, %v346
        %vm585 = vcmp.le.f32.partialorder %v584, 0.7853982
        %vm586 = vcmp.lt.s32.totalorder %v346, 0
        %v587 = vand.u32 %v346, 2139095040
        %v588 = vshrl.u32 %v587, 23
        %v589 = vsub.s32 %v588, 127
        %v590 = vand.u32 2147483647, %v346
        %v591 = vand.u32 %v590, 8388607
        %v592 = vor.u32 %v591, 8388608
        %v593 = vsub.s32 0, %v592
        %v594 = vadd.s32 %v589, 1
        %vm595 = vcmp.gt.s32.totalorder %v594, 0
        %v596 = vsel %vm595, %v594, 0
        %v597 = vshrl.u32 %v596, 5
        %v598 = vand.u32 %v596, 31
        %v599 = vsub.s32 32, %v598
        %v600 = vshrl.u32 683565275, %v599
        %v601 = vshll.u32 683565275, %v598
        %v602 = vshrl.u32 2475754826, %v599
        %v603 = vor.u32 %v601, %v602
        %v604 = vshll.u32 2475754826, %v598
        %v605 = vshrl.u32 2131351028, %v599
        %v606 = vor.u32 %v604, %v605
        %v607 = vshll.u32 2131351028, %v598
        %v608 = vshrl.u32 2102212464, %v599
        %v609 = vor.u32 %v607, %v608
        %v610 = vshll.u32 2102212464, %v598
        %v611 = vshrl.u32 920167782, %v599
        %v612 = vor.u32 %v610, %v611
        %v613 = vshll.u32 920167782, %v598
        %v614 = vshrl.u32 1326507024, %v599
        %v615 = vor.u32 %v613, %v614
        %vm616 = vcmp.lt.s32.totalorder %v597, 1
        %vm617 = vcmp.lt.s32.totalorder %v597, 2
        %vm618 = vcmp.lt.s32.totalorder %v597, 3
        %vm619 = vcmp.lt.s32.totalorder %v597, 4
        %v620 = vsel %vm616, %v600, %v603
        %v621 = vsel %vm619, %v609, 2102212464
        %v622 = vsel %vm618, %v606, %v621
        %v623 = vsel %vm617, %v620, %v622
        %v624 = vsel %vm616, %v603, %v606
        %v625 = vsel %vm619, %v612, 920167782
        %v626 = vsel %vm618, %v609, %v625
        %v627 = vsel %vm617, %v624, %v626
        %v628 = vsel %vm616, %v606, %v609
        %v629 = vsel %vm619, %v615, 1326507024
        %v630 = vsel %vm618, %v612, %v629
        %v631 = vsel %vm617, %v628, %v630
        %v632 = vshll.u32 %v592, 8
        %v633 = vmul.u32.u64.compose %v632, %v631
        %v634 = vextract.low.u32 %v633
        %v635 = vextract.high.u32 %v633
        %v636 = vmul.u32.u64.compose %v632, %v627
        %v637 = vextract.low.u32 %v636
        %v638 = vextract.high.u32 %v636
        %v639 = vmul.u32 %v632, %v623
        %v640 = vadd.s32 %v635, %v637
        %vm641 = vc.u32 %v635, %v637
        %v642 = vadd.s32 %v638, 1
        %v643 = vsel %vm641, %v642, %v638
        %v644 = vadd.s32 %v639, %v643
        %v645 = vadd.s32 %v644, 536870912
        %v646 = vshrl.u32 %v645, 30
        %v647 = vshll.u32 %v646, 30
        %v648 = vsub.s32 %v644, %v647
        %vm649 = vcmp.lt.s32.totalorder %v648, 0
        %v650 = vsub.s32 0, %v648
        %v651 = vsel %vm649, %v650, %v648
        %v652 = vclz %v651
        %v653 = vsub.s32 %v652, 2
        %vm654 = vcmp.gt.s32.totalorder 0, %v653
        %v655 = vsel %vm654, 0, %v653
        %v656 = vsub.s32 32, %v655
        %v657 = vshll.u32 %v648, %v655
        %v658 = vshrl.u32 %v640, %v656
        %v659 = vor.u32 %v657, %v658
        %v660 = vsub.s32 4294967266, %v655
        %v661 = vadd.s32 %v660, 127
        %v662 = vshll.u32 %v661, 23
        %v663 = vor.u32 4788187, %v662
        %v664 = vand.u32 2147483647, %v663
        %v666 = vcvt.s32.f32 %v659
        %v667 = vmul.f32 %v666, %v664
        %v668 = vxor.u32 %v667, 2147483648
        %v669 = vsel %vm586, %v668, %v667
        %v670 = vsub.s32 4, %v646
        %v671 = vsel %vm586, %v670, %v646
        %v672 = vsel %vm585, %v346, %v669
        %v673 = vsel %vm585, 0, %v671
        %v674 = vcosq.f32.pop %v672
        %v675 = vsinq.f32.pop %v672
        %vm676 = vweird.f32 %v346
        %v677 = vadd.s32 %v673, 3
        %v678 = vand.u32 %v677, 3
        %vm679 = vcmp.lt.s32.totalorder %v678, 2
        %vm680 = vcmp.eq.s32.totalorder %v678, 0
        %v681 = vxor.u32 %v675, 2147483648
        %v682 = vsel %vm680, %v674, %v681
        %vm683 = vcmp.eq.s32.totalorder %v678, 2
        %v684 = vxor.u32 %v674, 2147483648
        %v685 = vsel %vm683, %v684, %v675
        %v686 = vsel %vm679, %v682, %v685
        %v687 = vsel %vm676, nan, %v686
        %v688 = vand.u32 2147483647, %v347
        %vm689 = vcmp.le.f32.partialorder %v688, 0.7853982
        %vm690 = vcmp.lt.s32.totalorder %v347, 0
        %v691 = vand.u32 %v347, 2139095040
        %v692 = vshrl.u32 %v691, 23
        %v693 = vsub.s32 %v692, 127
        %v694 = vand.u32 2147483647, %v347
        %v695 = vand.u32 %v694, 8388607
        %v696 = vor.u32 %v695, 8388608
        %v697 = vsub.s32 0, %v696
        %v698 = vadd.s32 %v693, 1
        %vm699 = vcmp.gt.s32.totalorder %v698, 0
        %v700 = vsel %vm699, %v698, 0
        %v701 = vshrl.u32 %v700, 5
        %v702 = vand.u32 %v700, 31
        %v703 = vsub.s32 32, %v702
        %v704 = vshrl.u32 683565275, %v703
        %v705 = vshll.u32 683565275, %v702
        %v706 = vshrl.u32 2475754826, %v703
        %v707 = vor.u32 %v705, %v706
        %v708 = vshll.u32 2475754826, %v702
        %v709 = vshrl.u32 2131351028, %v703
        %v710 = vor.u32 %v708, %v709
        %v711 = vshll.u32 2131351028, %v702
        %v712 = vshrl.u32 2102212464, %v703
        %v713 = vor.u32 %v711, %v712
        %v714 = vshll.u32 2102212464, %v702
        %v715 = vshrl.u32 920167782, %v703
        %v716 = vor.u32 %v714, %v715
        %v717 = vshll.u32 920167782, %v702
        %v718 = vshrl.u32 1326507024, %v703
        %v719 = vor.u32 %v717, %v718
        %vm720 = vcmp.lt.s32.totalorder %v701, 1
        %vm721 = vcmp.lt.s32.totalorder %v701, 2
        %vm722 = vcmp.lt.s32.totalorder %v701, 3
        %vm723 = vcmp.lt.s32.totalorder %v701, 4
        %v724 = vsel %vm720, %v704, %v707
        %v725 = vsel %vm723, %v713, 2102212464
        %v726 = vsel %vm722, %v710, %v725
        %v727 = vsel %vm721, %v724, %v726
        %v728 = vsel %vm720, %v707, %v710
        %v729 = vsel %vm723, %v716, 920167782
        %v730 = vsel %vm722, %v713, %v729
        %v731 = vsel %vm721, %v728, %v730
        %v732 = vsel %vm720, %v710, %v713
        %v733 = vsel %vm723, %v719, 1326507024
        %v734 = vsel %vm722, %v716, %v733
        %v735 = vsel %vm721, %v732, %v734
        %v736 = vshll.u32 %v696, 8
        %v737 = vmul.u32.u64.compose %v736, %v735
        %v738 = vextract.low.u32 %v737
        %v739 = vextract.high.u32 %v737
        %v740 = vmul.u32.u64.compose %v736, %v731
        %v741 = vextract.low.u32 %v740
        %v742 = vextract.high.u32 %v740
        %v743 = vmul.u32 %v736, %v727
        %v744 = vadd.s32 %v739, %v741
        %vm745 = vc.u32 %v739, %v741
        %v746 = vadd.s32 %v742, 1
        %v747 = vsel %vm745, %v746, %v742
        %v748 = vadd.s32 %v743, %v747
        %v749 = vadd.s32 %v748, 536870912
        %v750 = vshrl.u32 %v749, 30
        %v751 = vshll.u32 %v750, 30
        %v752 = vsub.s32 %v748, %v751
        %vm753 = vcmp.lt.s32.totalorder %v752, 0
        %v754 = vsub.s32 0, %v752
        %v755 = vsel %vm753, %v754, %v752
        %v756 = vclz %v755
        %v757 = vsub.s32 %v756, 2
        %vm758 = vcmp.gt.s32.totalorder 0, %v757
        %v759 = vsel %vm758, 0, %v757
        %v760 = vsub.s32 32, %v759
        %v761 = vshll.u32 %v752, %v759
        %v762 = vshrl.u32 %v744, %v760
        %v763 = vor.u32 %v761, %v762
        %v764 = vsub.s32 4294967266, %v759
        %v765 = vadd.s32 %v764, 127
        %v766 = vshll.u32 %v765, 23
        %v767 = vor.u32 4788187, %v766
        %v768 = vand.u32 2147483647, %v767
        %v770 = vcvt.s32.f32 %v763
        %v771 = vmul.f32 %v770, %v768
        %v772 = vxor.u32 %v771, 2147483648
        %v773 = vsel %vm690, %v772, %v771
        %v774 = vsub.s32 4, %v750
        %v775 = vsel %vm690, %v774, %v750
        %v776 = vsel %vm689, %v347, %v773
        %v777 = vsel %vm689, 0, %v775
        %v778 = vcosq.f32.pop %v776
        %v779 = vsinq.f32.pop %v776
        %vm780 = vweird.f32 %v347
        %v781 = vadd.s32 %v777, 3
        %v782 = vand.u32 %v781, 3
        %vm783 = vcmp.lt.s32.totalorder %v782, 2
        %vm784 = vcmp.eq.s32.totalorder %v782, 0
        %v785 = vxor.u32 %v779, 2147483648
        %v786 = vsel %vm784, %v778, %v785
        %vm787 = vcmp.eq.s32.totalorder %v782, 2
        %v788 = vxor.u32 %v778, 2147483648
        %v789 = vsel %vm787, %v788, %v779
        %v790 = vsel %vm783, %v786, %v789
        %v791 = vsel %vm780, nan, %v790
        %v792 = vand.u32 2147483647, %v348
        %vm793 = vcmp.le.f32.partialorder %v792, 0.7853982
        %vm794 = vcmp.lt.s32.totalorder %v348, 0
        %v795 = vand.u32 %v348, 2139095040
        %v796 = vshrl.u32 %v795, 23
        %v797 = vsub.s32 %v796, 127
        %v798 = vand.u32 2147483647, %v348
        %v799 = vand.u32 %v798, 8388607
        %v800 = vor.u32 %v799, 8388608
        %v801 = vsub.s32 0, %v800
        %v802 = vadd.s32 %v797, 1
        %vm803 = vcmp.gt.s32.totalorder %v802, 0
        %v804 = vsel %vm803, %v802, 0
        %v805 = vshrl.u32 %v804, 5
        %v806 = vand.u32 %v804, 31
        %v807 = vsub.s32 32, %v806
        %v808 = vshrl.u32 683565275, %v807
        %v809 = vshll.u32 683565275, %v806
        %v810 = vshrl.u32 2475754826, %v807
        %v811 = vor.u32 %v809, %v810
        %v812 = vshll.u32 2475754826, %v806
        %v813 = vshrl.u32 2131351028, %v807
        %v814 = vor.u32 %v812, %v813
        %v815 = vshll.u32 2131351028, %v806
        %v816 = vshrl.u32 2102212464, %v807
        %v817 = vor.u32 %v815, %v816
        %v818 = vshll.u32 2102212464, %v806
        %v819 = vshrl.u32 920167782, %v807
        %v820 = vor.u32 %v818, %v819
        %v821 = vshll.u32 920167782, %v806
        %v822 = vshrl.u32 1326507024, %v807
        %v823 = vor.u32 %v821, %v822
        %vm824 = vcmp.lt.s32.totalorder %v805, 1
        %vm825 = vcmp.lt.s32.totalorder %v805, 2
        %vm826 = vcmp.lt.s32.totalorder %v805, 3
        %vm827 = vcmp.lt.s32.totalorder %v805, 4
        %v828 = vsel %vm824, %v808, %v811
        %v829 = vsel %vm827, %v817, 2102212464
        %v830 = vsel %vm826, %v814, %v829
        %v831 = vsel %vm825, %v828, %v830
        %v832 = vsel %vm824, %v811, %v814
        %v833 = vsel %vm827, %v820, 920167782
        %v834 = vsel %vm826, %v817, %v833
        %v835 = vsel %vm825, %v832, %v834
        %v836 = vsel %vm824, %v814, %v817
        %v837 = vsel %vm827, %v823, 1326507024
        %v838 = vsel %vm826, %v820, %v837
        %v839 = vsel %vm825, %v836, %v838
        %v840 = vshll.u32 %v800, 8
        %v841 = vmul.u32.u64.compose %v840, %v839
        %v842 = vextract.low.u32 %v841
        %v843 = vextract.high.u32 %v841
        %v844 = vmul.u32.u64.compose %v840, %v835
        %v845 = vextract.low.u32 %v844
        %v846 = vextract.high.u32 %v844
        %v847 = vmul.u32 %v840, %v831
        %v848 = vadd.s32 %v843, %v845
        %vm849 = vc.u32 %v843, %v845
        %v850 = vadd.s32 %v846, 1
        %v851 = vsel %vm849, %v850, %v846
        %v852 = vadd.s32 %v847, %v851
        %v853 = vadd.s32 %v852, 536870912
        %v854 = vshrl.u32 %v853, 30
        %v855 = vshll.u32 %v854, 30
        %v856 = vsub.s32 %v852, %v855
        %vm857 = vcmp.lt.s32.totalorder %v856, 0
        %v858 = vsub.s32 0, %v856
        %v859 = vsel %vm857, %v858, %v856
        %v860 = vclz %v859
        %v861 = vsub.s32 %v860, 2
        %vm862 = vcmp.gt.s32.totalorder 0, %v861
        %v863 = vsel %vm862, 0, %v861
        %v864 = vsub.s32 32, %v863
        %v865 = vshll.u32 %v856, %v863
        %v866 = vshrl.u32 %v848, %v864
        %v867 = vor.u32 %v865, %v866
        %v868 = vsub.s32 4294967266, %v863
        %v869 = vadd.s32 %v868, 127
        %v870 = vshll.u32 %v869, 23
        %v871 = vor.u32 4788187, %v870
        %v872 = vand.u32 2147483647, %v871
        %v874 = vcvt.s32.f32 %v867
        %v875 = vmul.f32 %v874, %v872
        %v876 = vxor.u32 %v875, 2147483648
        %v877 = vsel %vm794, %v876, %v875
        %v878 = vsub.s32 4, %v854
        %v879 = vsel %vm794, %v878, %v854
        %v880 = vsel %vm793, %v348, %v877
        %v881 = vsel %vm793, 0, %v879
        %v882 = vcosq.f32.pop %v880
        %v883 = vsinq.f32.pop %v880
        %vm884 = vweird.f32 %v348
        %v885 = vadd.s32 %v881, 3
        %v886 = vand.u32 %v885, 3
        %vm887 = vcmp.lt.s32.totalorder %v886, 2
        %vm888 = vcmp.eq.s32.totalorder %v886, 0
        %v889 = vxor.u32 %v883, 2147483648
        %v890 = vsel %vm888, %v882, %v889
        %vm891 = vcmp.eq.s32.totalorder %v886, 2
        %v892 = vxor.u32 %v882, 2147483648
        %v893 = vsel %vm891, %v892, %v883
        %v894 = vsel %vm887, %v890, %v893
        %v895 = vsel %vm884, nan, %v894
        %v896 = vand.u32 2147483647, %v349
        %vm897 = vcmp.le.f32.partialorder %v896, 0.7853982
        %vm898 = vcmp.lt.s32.totalorder %v349, 0
        %v899 = vand.u32 %v349, 2139095040
        %v900 = vshrl.u32 %v899, 23
        %v901 = vsub.s32 %v900, 127
        %v902 = vand.u32 2147483647, %v349
        %v903 = vand.u32 %v902, 8388607
        %v904 = vor.u32 %v903, 8388608
        %v905 = vsub.s32 0, %v904
        %v906 = vadd.s32 %v901, 1
        %vm907 = vcmp.gt.s32.totalorder %v906, 0
        %v908 = vsel %vm907, %v906, 0
        %v909 = vshrl.u32 %v908, 5
        %v910 = vand.u32 %v908, 31
        %v911 = vsub.s32 32, %v910
        %v912 = vshrl.u32 683565275, %v911
        %v913 = vshll.u32 683565275, %v910
        %v914 = vshrl.u32 2475754826, %v911
        %v915 = vor.u32 %v913, %v914
        %v916 = vshll.u32 2475754826, %v910
        %v917 = vshrl.u32 2131351028, %v911
        %v918 = vor.u32 %v916, %v917
        %v919 = vshll.u32 2131351028, %v910
        %v920 = vshrl.u32 2102212464, %v911
        %v921 = vor.u32 %v919, %v920
        %v922 = vshll.u32 2102212464, %v910
        %v923 = vshrl.u32 920167782, %v911
        %v924 = vor.u32 %v922, %v923
        %v925 = vshll.u32 920167782, %v910
        %v926 = vshrl.u32 1326507024, %v911
        %v927 = vor.u32 %v925, %v926
        %vm928 = vcmp.lt.s32.totalorder %v909, 1
        %vm929 = vcmp.lt.s32.totalorder %v909, 2
        %vm930 = vcmp.lt.s32.totalorder %v909, 3
        %vm931 = vcmp.lt.s32.totalorder %v909, 4
        %v932 = vsel %vm928, %v912, %v915
        %v933 = vsel %vm931, %v921, 2102212464
        %v934 = vsel %vm930, %v918, %v933
        %v935 = vsel %vm929, %v932, %v934
        %v936 = vsel %vm928, %v915, %v918
        %v937 = vsel %vm931, %v924, 920167782
        %v938 = vsel %vm930, %v921, %v937
        %v939 = vsel %vm929, %v936, %v938
        %v940 = vsel %vm928, %v918, %v921
        %v941 = vsel %vm931, %v927, 1326507024
        %v942 = vsel %vm930, %v924, %v941
        %v943 = vsel %vm929, %v940, %v942
        %v944 = vshll.u32 %v904, 8
        %v945 = vmul.u32.u64.compose %v944, %v943
        %v946 = vextract.low.u32 %v945
        %v947 = vextract.high.u32 %v945
        %v948 = vmul.u32.u64.compose %v944, %v939
        %v949 = vextract.low.u32 %v948
        %v950 = vextract.high.u32 %v948
        %v951 = vmul.u32 %v944, %v935
        %v952 = vadd.s32 %v947, %v949
        %vm953 = vc.u32 %v947, %v949
        %v954 = vadd.s32 %v950, 1
        %v955 = vsel %vm953, %v954, %v950
        %v956 = vadd.s32 %v951, %v955
        %v957 = vadd.s32 %v956, 536870912
        %v958 = vshrl.u32 %v957, 30
        %v959 = vshll.u32 %v958, 30
        %v960 = vsub.s32 %v956, %v959
        %vm961 = vcmp.lt.s32.totalorder %v960, 0
        %v962 = vsub.s32 0, %v960
        %v963 = vsel %vm961, %v962, %v960
        %v964 = vclz %v963
        %v965 = vsub.s32 %v964, 2
        %vm966 = vcmp.gt.s32.totalorder 0, %v965
        %v967 = vsel %vm966, 0, %v965
        %v968 = vsub.s32 32, %v967
        %v969 = vshll.u32 %v960, %v967
        %v970 = vshrl.u32 %v952, %v968
        %v971 = vor.u32 %v969, %v970
        %v972 = vsub.s32 4294967266, %v967
        %v973 = vadd.s32 %v972, 127
        %v974 = vshll.u32 %v973, 23
        %v975 = vor.u32 4788187, %v974
        %v976 = vand.u32 2147483647, %v975
        %v978 = vcvt.s32.f32 %v971
        %v979 = vmul.f32 %v978, %v976
        %v980 = vxor.u32 %v979, 2147483648
        %v981 = vsel %vm898, %v980, %v979
        %v982 = vsub.s32 4, %v958
        %v983 = vsel %vm898, %v982, %v958
        %v984 = vsel %vm897, %v349, %v981
        %v985 = vsel %vm897, 0, %v983
        %v986 = vcosq.f32.pop %v984
        %v987 = vsinq.f32.pop %v984
        %vm988 = vweird.f32 %v349
        %v989 = vadd.s32 %v985, 3
        %v990 = vand.u32 %v989, 3
        %vm991 = vcmp.lt.s32.totalorder %v990, 2
        %vm992 = vcmp.eq.s32.totalorder %v990, 0
        %v993 = vxor.u32 %v987, 2147483648
        %v994 = vsel %vm992, %v986, %v993
        %vm995 = vcmp.eq.s32.totalorder %v990, 2
        %v996 = vxor.u32 %v986, 2147483648
        %v997 = vsel %vm995, %v996, %v987
        %v998 = vsel %vm991, %v994, %v997
        %v999 = vsel %vm988, nan, %v998
        %v1000 = vand.u32 2147483647, %v350
        %vm1001 = vcmp.le.f32.partialorder %v1000, 0.7853982
        %vm1002 = vcmp.lt.s32.totalorder %v350, 0
        %v1003 = vand.u32 %v350, 2139095040
        %v1004 = vshrl.u32 %v1003, 23
        %v1005 = vsub.s32 %v1004, 127
        %v1006 = vand.u32 2147483647, %v350
        %v1007 = vand.u32 %v1006, 8388607
        %v1008 = vor.u32 %v1007, 8388608
        %v1009 = vsub.s32 0, %v1008
        %v1010 = vadd.s32 %v1005, 1
        %vm1011 = vcmp.gt.s32.totalorder %v1010, 0
        %v1012 = vsel %vm1011, %v1010, 0
        %v1013 = vshrl.u32 %v1012, 5
        %v1014 = vand.u32 %v1012, 31
        %v1015 = vsub.s32 32, %v1014
        %v1016 = vshrl.u32 683565275, %v1015
        %v1017 = vshll.u32 683565275, %v1014
        %v1018 = vshrl.u32 2475754826, %v1015
        %v1019 = vor.u32 %v1017, %v1018
        %v1020 = vshll.u32 2475754826, %v1014
        %v1021 = vshrl.u32 2131351028, %v1015
        %v1022 = vor.u32 %v1020, %v1021
        %v1023 = vshll.u32 2131351028, %v1014
        %v1024 = vshrl.u32 2102212464, %v1015
        %v1025 = vor.u32 %v1023, %v1024
        %v1026 = vshll.u32 2102212464, %v1014
        %v1027 = vshrl.u32 920167782, %v1015
        %v1028 = vor.u32 %v1026, %v1027
        %v1029 = vshll.u32 920167782, %v1014
        %v1030 = vshrl.u32 1326507024, %v1015
        %v1031 = vor.u32 %v1029, %v1030
        %vm1032 = vcmp.lt.s32.totalorder %v1013, 1
        %vm1033 = vcmp.lt.s32.totalorder %v1013, 2
        %vm1034 = vcmp.lt.s32.totalorder %v1013, 3
        %vm1035 = vcmp.lt.s32.totalorder %v1013, 4
        %v1036 = vsel %vm1032, %v1016, %v1019
        %v1037 = vsel %vm1035, %v1025, 2102212464
        %v1038 = vsel %vm1034, %v1022, %v1037
        %v1039 = vsel %vm1033, %v1036, %v1038
        %v1040 = vsel %vm1032, %v1019, %v1022
        %v1041 = vsel %vm1035, %v1028, 920167782
        %v1042 = vsel %vm1034, %v1025, %v1041
        %v1043 = vsel %vm1033, %v1040, %v1042
        %v1044 = vsel %vm1032, %v1022, %v1025
        %v1045 = vsel %vm1035, %v1031, 1326507024
        %v1046 = vsel %vm1034, %v1028, %v1045
        %v1047 = vsel %vm1033, %v1044, %v1046
        %v1048 = vshll.u32 %v1008, 8
        %v1049 = vmul.u32.u64.compose %v1048, %v1047
        %v1050 = vextract.low.u32 %v1049
        %v1051 = vextract.high.u32 %v1049
        %v1052 = vmul.u32.u64.compose %v1048, %v1043
        %v1053 = vextract.low.u32 %v1052
        %v1054 = vextract.high.u32 %v1052
        %v1055 = vmul.u32 %v1048, %v1039
        %v1056 = vadd.s32 %v1051, %v1053
        %vm1057 = vc.u32 %v1051, %v1053
        %v1058 = vadd.s32 %v1054, 1
        %v1059 = vsel %vm1057, %v1058, %v1054
        %v1060 = vadd.s32 %v1055, %v1059
        %v1061 = vadd.s32 %v1060, 536870912
        %v1062 = vshrl.u32 %v1061, 30
        %v1063 = vshll.u32 %v1062, 30
        %v1064 = vsub.s32 %v1060, %v1063
        %vm1065 = vcmp.lt.s32.totalorder %v1064, 0
        %v1066 = vsub.s32 0, %v1064
        %v1067 = vsel %vm1065, %v1066, %v1064
        %v1068 = vclz %v1067
        %v1069 = vsub.s32 %v1068, 2
        %vm1070 = vcmp.gt.s32.totalorder 0, %v1069
        %v1071 = vsel %vm1070, 0, %v1069
        %v1072 = vsub.s32 32, %v1071
        %v1073 = vshll.u32 %v1064, %v1071
        %v1074 = vshrl.u32 %v1056, %v1072
        %v1075 = vor.u32 %v1073, %v1074
        %v1076 = vsub.s32 4294967266, %v1071
        %v1077 = vadd.s32 %v1076, 127
        %v1078 = vshll.u32 %v1077, 23
        %v1079 = vor.u32 4788187, %v1078
        %v1080 = vand.u32 2147483647, %v1079
        %v1082 = vcvt.s32.f32 %v1075
        %v1083 = vmul.f32 %v1082, %v1080
        %v1084 = vxor.u32 %v1083, 2147483648
        %v1085 = vsel %vm1002, %v1084, %v1083
        %v1086 = vsub.s32 4, %v1062
        %v1087 = vsel %vm1002, %v1086, %v1062
        %v1088 = vsel %vm1001, %v350, %v1085
        %v1089 = vsel %vm1001, 0, %v1087
        %v1090 = vcosq.f32.pop %v1088
        %v1091 = vsinq.f32.pop %v1088
        %vm1092 = vweird.f32 %v350
        %v1093 = vadd.s32 %v1089, 3
        %v1094 = vand.u32 %v1093, 3
        %vm1095 = vcmp.lt.s32.totalorder %v1094, 2
        %vm1096 = vcmp.eq.s32.totalorder %v1094, 0
        %v1097 = vxor.u32 %v1091, 2147483648
        %v1098 = vsel %vm1096, %v1090, %v1097
        %vm1099 = vcmp.eq.s32.totalorder %v1094, 2
        %v1100 = vxor.u32 %v1090, 2147483648
        %v1101 = vsel %vm1099, %v1100, %v1091
        %v1102 = vsel %vm1095, %v1098, %v1101
        %v1103 = vsel %vm1092, nan, %v1102
        %v1104 = vand.u32 2147483647, %v351
        %vm1105 = vcmp.le.f32.partialorder %v1104, 0.7853982
        %vm1106 = vcmp.lt.s32.totalorder %v351, 0
        %v1107 = vand.u32 %v351, 2139095040
        %v1108 = vshrl.u32 %v1107, 23
        %v1109 = vsub.s32 %v1108, 127
        %v1110 = vand.u32 2147483647, %v351
        %v1111 = vand.u32 %v1110, 8388607
        %v1112 = vor.u32 %v1111, 8388608
        %v1113 = vsub.s32 0, %v1112
        %v1114 = vadd.s32 %v1109, 1
        %vm1115 = vcmp.gt.s32.totalorder %v1114, 0
        %v1116 = vsel %vm1115, %v1114, 0
        %v1117 = vshrl.u32 %v1116, 5
        %v1118 = vand.u32 %v1116, 31
        %v1119 = vsub.s32 32, %v1118
        %v1120 = vshrl.u32 683565275, %v1119
        %v1121 = vshll.u32 683565275, %v1118
        %v1122 = vshrl.u32 2475754826, %v1119
        %v1123 = vor.u32 %v1121, %v1122
        %v1124 = vshll.u32 2475754826, %v1118
        %v1125 = vshrl.u32 2131351028, %v1119
        %v1126 = vor.u32 %v1124, %v1125
        %v1127 = vshll.u32 2131351028, %v1118
        %v1128 = vshrl.u32 2102212464, %v1119
        %v1129 = vor.u32 %v1127, %v1128
        %v1130 = vshll.u32 2102212464, %v1118
        %v1131 = vshrl.u32 920167782, %v1119
        %v1132 = vor.u32 %v1130, %v1131
        %v1133 = vshll.u32 920167782, %v1118
        %v1134 = vshrl.u32 1326507024, %v1119
        %v1135 = vor.u32 %v1133, %v1134
        %vm1136 = vcmp.lt.s32.totalorder %v1117, 1
        %vm1137 = vcmp.lt.s32.totalorder %v1117, 2
        %vm1138 = vcmp.lt.s32.totalorder %v1117, 3
        %vm1139 = vcmp.lt.s32.totalorder %v1117, 4
        %v1140 = vsel %vm1136, %v1120, %v1123
        %v1141 = vsel %vm1139, %v1129, 2102212464
        %v1142 = vsel %vm1138, %v1126, %v1141
        %v1143 = vsel %vm1137, %v1140, %v1142
        %v1144 = vsel %vm1136, %v1123, %v1126
        %v1145 = vsel %vm1139, %v1132, 920167782
        %v1146 = vsel %vm1138, %v1129, %v1145
        %v1147 = vsel %vm1137, %v1144, %v1146
        %v1148 = vsel %vm1136, %v1126, %v1129
        %v1149 = vsel %vm1139, %v1135, 1326507024
        %v1150 = vsel %vm1138, %v1132, %v1149
        %v1151 = vsel %vm1137, %v1148, %v1150
        %v1152 = vshll.u32 %v1112, 8
        %v1153 = vmul.u32.u64.compose %v1152, %v1151
        %v1154 = vextract.low.u32 %v1153
        %v1155 = vextract.high.u32 %v1153
        %v1156 = vmul.u32.u64.compose %v1152, %v1147
        %v1157 = vextract.low.u32 %v1156
        %v1158 = vextract.high.u32 %v1156
        %v1159 = vmul.u32 %v1152, %v1143
        %v1160 = vadd.s32 %v1155, %v1157
        %vm1161 = vc.u32 %v1155, %v1157
        %v1162 = vadd.s32 %v1158, 1
        %v1163 = vsel %vm1161, %v1162, %v1158
        %v1164 = vadd.s32 %v1159, %v1163
        %v1165 = vadd.s32 %v1164, 536870912
        %v1166 = vshrl.u32 %v1165, 30
        %v1167 = vshll.u32 %v1166, 30
        %v1168 = vsub.s32 %v1164, %v1167
        %vm1169 = vcmp.lt.s32.totalorder %v1168, 0
        %v1170 = vsub.s32 0, %v1168
        %v1171 = vsel %vm1169, %v1170, %v1168
        %v1172 = vclz %v1171
        %v1173 = vsub.s32 %v1172, 2
        %vm1174 = vcmp.gt.s32.totalorder 0, %v1173
        %v1175 = vsel %vm1174, 0, %v1173
        %v1176 = vsub.s32 32, %v1175
        %v1177 = vshll.u32 %v1168, %v1175
        %v1178 = vshrl.u32 %v1160, %v1176
        %v1179 = vor.u32 %v1177, %v1178
        %v1180 = vsub.s32 4294967266, %v1175
        %v1181 = vadd.s32 %v1180, 127
        %v1182 = vshll.u32 %v1181, 23
        %v1183 = vor.u32 4788187, %v1182
        %v1184 = vand.u32 2147483647, %v1183
        %v1186 = vcvt.s32.f32 %v1179
        %v1187 = vmul.f32 %v1186, %v1184
        %v1188 = vxor.u32 %v1187, 2147483648
        %v1189 = vsel %vm1106, %v1188, %v1187
        %v1190 = vsub.s32 4, %v1166
        %v1191 = vsel %vm1106, %v1190, %v1166
        %v1192 = vsel %vm1105, %v351, %v1189
        %v1193 = vsel %vm1105, 0, %v1191
        %v1194 = vcosq.f32.pop %v1192
        %v1195 = vsinq.f32.pop %v1192
        %vm1196 = vweird.f32 %v351
        %v1197 = vadd.s32 %v1193, 3
        %v1198 = vand.u32 %v1197, 3
        %vm1199 = vcmp.lt.s32.totalorder %v1198, 2
        %vm1200 = vcmp.eq.s32.totalorder %v1198, 0
        %v1201 = vxor.u32 %v1195, 2147483648
        %v1202 = vsel %vm1200, %v1194, %v1201
        %vm1203 = vcmp.eq.s32.totalorder %v1198, 2
        %v1204 = vxor.u32 %v1194, 2147483648
        %v1205 = vsel %vm1203, %v1204, %v1195
        %v1206 = vsel %vm1199, %v1202, %v1205
        %v1207 = vsel %vm1196, nan, %v1206
        %v1208 = vand.u32 2147483647, %v352
        %vm1209 = vcmp.le.f32.partialorder %v1208, 0.7853982
        %vm1210 = vcmp.lt.s32.totalorder %v352, 0
        %v1211 = vand.u32 %v352, 2139095040
        %v1212 = vshrl.u32 %v1211, 23
        %v1213 = vsub.s32 %v1212, 127
        %v1214 = vand.u32 2147483647, %v352
        %v1215 = vand.u32 %v1214, 8388607
        %v1216 = vor.u32 %v1215, 8388608
        %v1217 = vsub.s32 0, %v1216
        %v1218 = vadd.s32 %v1213, 1
        %vm1219 = vcmp.gt.s32.totalorder %v1218, 0
        %v1220 = vsel %vm1219, %v1218, 0
        %v1221 = vshrl.u32 %v1220, 5
        %v1222 = vand.u32 %v1220, 31
        %v1223 = vsub.s32 32, %v1222
        %v1224 = vshrl.u32 683565275, %v1223
        %v1225 = vshll.u32 683565275, %v1222
        %v1226 = vshrl.u32 2475754826, %v1223
        %v1227 = vor.u32 %v1225, %v1226
        %v1228 = vshll.u32 2475754826, %v1222
        %v1229 = vshrl.u32 2131351028, %v1223
        %v1230 = vor.u32 %v1228, %v1229
        %v1231 = vshll.u32 2131351028, %v1222
        %v1232 = vshrl.u32 2102212464, %v1223
        %v1233 = vor.u32 %v1231, %v1232
        %v1234 = vshll.u32 2102212464, %v1222
        %v1235 = vshrl.u32 920167782, %v1223
        %v1236 = vor.u32 %v1234, %v1235
        %v1237 = vshll.u32 920167782, %v1222
        %v1238 = vshrl.u32 1326507024, %v1223
        %v1239 = vor.u32 %v1237, %v1238
        %vm1240 = vcmp.lt.s32.totalorder %v1221, 1
        %vm1241 = vcmp.lt.s32.totalorder %v1221, 2
        %vm1242 = vcmp.lt.s32.totalorder %v1221, 3
        %vm1243 = vcmp.lt.s32.totalorder %v1221, 4
        %v1244 = vsel %vm1240, %v1224, %v1227
        %v1245 = vsel %vm1243, %v1233, 2102212464
        %v1246 = vsel %vm1242, %v1230, %v1245
        %v1247 = vsel %vm1241, %v1244, %v1246
        %v1248 = vsel %vm1240, %v1227, %v1230
        %v1249 = vsel %vm1243, %v1236, 920167782
        %v1250 = vsel %vm1242, %v1233, %v1249
        %v1251 = vsel %vm1241, %v1248, %v1250
        %v1252 = vsel %vm1240, %v1230, %v1233
        %v1253 = vsel %vm1243, %v1239, 1326507024
        %v1254 = vsel %vm1242, %v1236, %v1253
        %v1255 = vsel %vm1241, %v1252, %v1254
        %v1256 = vshll.u32 %v1216, 8
        %v1257 = vmul.u32.u64.compose %v1256, %v1255
        %v1258 = vextract.low.u32 %v1257
        %v1259 = vextract.high.u32 %v1257
        %v1260 = vmul.u32.u64.compose %v1256, %v1251
        %v1261 = vextract.low.u32 %v1260
        %v1262 = vextract.high.u32 %v1260
        %v1263 = vmul.u32 %v1256, %v1247
        %v1264 = vadd.s32 %v1259, %v1261
        %vm1265 = vc.u32 %v1259, %v1261
        %v1266 = vadd.s32 %v1262, 1
        %v1267 = vsel %vm1265, %v1266, %v1262
        %v1268 = vadd.s32 %v1263, %v1267
        %v1269 = vadd.s32 %v1268, 536870912
        %v1270 = vshrl.u32 %v1269, 30
        %v1271 = vshll.u32 %v1270, 30
        %v1272 = vsub.s32 %v1268, %v1271
        %vm1273 = vcmp.lt.s32.totalorder %v1272, 0
        %v1274 = vsub.s32 0, %v1272
        %v1275 = vsel %vm1273, %v1274, %v1272
        %v1276 = vclz %v1275
        %v1277 = vsub.s32 %v1276, 2
        %vm1278 = vcmp.gt.s32.totalorder 0, %v1277
        %v1279 = vsel %vm1278, 0, %v1277
        %v1280 = vsub.s32 32, %v1279
        %v1281 = vshll.u32 %v1272, %v1279
        %v1282 = vshrl.u32 %v1264, %v1280
        %v1283 = vor.u32 %v1281, %v1282
        %v1284 = vsub.s32 4294967266, %v1279
        %v1285 = vadd.s32 %v1284, 127
        %v1286 = vshll.u32 %v1285, 23
        %v1287 = vor.u32 4788187, %v1286
        %v1288 = vand.u32 2147483647, %v1287
        %v1290 = vcvt.s32.f32 %v1283
        %v1291 = vmul.f32 %v1290, %v1288
        %v1292 = vxor.u32 %v1291, 2147483648
        %v1293 = vsel %vm1210, %v1292, %v1291
        %v1294 = vsub.s32 4, %v1270
        %v1295 = vsel %vm1210, %v1294, %v1270
        %v1296 = vsel %vm1209, %v352, %v1293
        %v1297 = vsel %vm1209, 0, %v1295
        %v1298 = vcosq.f32.pop %v1296
        %v1299 = vsinq.f32.pop %v1296
        %vm1300 = vweird.f32 %v352
        %v1301 = vadd.s32 %v1297, 3
        %v1302 = vand.u32 %v1301, 3
        %vm1303 = vcmp.lt.s32.totalorder %v1302, 2
        %vm1304 = vcmp.eq.s32.totalorder %v1302, 0
        %v1305 = vxor.u32 %v1299, 2147483648
        %v1306 = vsel %vm1304, %v1298, %v1305
        %vm1307 = vcmp.eq.s32.totalorder %v1302, 2
        %v1308 = vxor.u32 %v1298, 2147483648
        %v1309 = vsel %vm1307, %v1308, %v1299
        %v1310 = vsel %vm1303, %v1306, %v1309
        %v1311 = vsel %vm1300, nan, %v1310
        %v1312 = vand.u32 2147483647, %v353
        %vm1313 = vcmp.le.f32.partialorder %v1312, 0.7853982
        %vm1314 = vcmp.lt.s32.totalorder %v353, 0
        %v1315 = vand.u32 %v353, 2139095040
        %v1316 = vshrl.u32 %v1315, 23
        %v1317 = vsub.s32 %v1316, 127
        %v1318 = vand.u32 2147483647, %v353
        %v1319 = vand.u32 %v1318, 8388607
        %v1320 = vor.u32 %v1319, 8388608
        %v1321 = vsub.s32 0, %v1320
        %v1322 = vadd.s32 %v1317, 1
        %vm1323 = vcmp.gt.s32.totalorder %v1322, 0
        %v1324 = vsel %vm1323, %v1322, 0
        %v1325 = vshrl.u32 %v1324, 5
        %v1326 = vand.u32 %v1324, 31
        %v1327 = vsub.s32 32, %v1326
        %v1328 = vshrl.u32 683565275, %v1327
        %v1329 = vshll.u32 683565275, %v1326
        %v1330 = vshrl.u32 2475754826, %v1327
        %v1331 = vor.u32 %v1329, %v1330
        %v1332 = vshll.u32 2475754826, %v1326
        %v1333 = vshrl.u32 2131351028, %v1327
        %v1334 = vor.u32 %v1332, %v1333
        %v1335 = vshll.u32 2131351028, %v1326
        %v1336 = vshrl.u32 2102212464, %v1327
        %v1337 = vor.u32 %v1335, %v1336
        %v1338 = vshll.u32 2102212464, %v1326
        %v1339 = vshrl.u32 920167782, %v1327
        %v1340 = vor.u32 %v1338, %v1339
        %v1341 = vshll.u32 920167782, %v1326
        %v1342 = vshrl.u32 1326507024, %v1327
        %v1343 = vor.u32 %v1341, %v1342
        %vm1344 = vcmp.lt.s32.totalorder %v1325, 1
        %vm1345 = vcmp.lt.s32.totalorder %v1325, 2
        %vm1346 = vcmp.lt.s32.totalorder %v1325, 3
        %vm1347 = vcmp.lt.s32.totalorder %v1325, 4
        %v1348 = vsel %vm1344, %v1328, %v1331
        %v1349 = vsel %vm1347, %v1337, 2102212464
        %v1350 = vsel %vm1346, %v1334, %v1349
        %v1351 = vsel %vm1345, %v1348, %v1350
        %v1352 = vsel %vm1344, %v1331, %v1334
        %v1353 = vsel %vm1347, %v1340, 920167782
        %v1354 = vsel %vm1346, %v1337, %v1353
        %v1355 = vsel %vm1345, %v1352, %v1354
        %v1356 = vsel %vm1344, %v1334, %v1337
        %v1357 = vsel %vm1347, %v1343, 1326507024
        %v1358 = vsel %vm1346, %v1340, %v1357
        %v1359 = vsel %vm1345, %v1356, %v1358
        %v1360 = vshll.u32 %v1320, 8
        %v1361 = vmul.u32.u64.compose %v1360, %v1359
        %v1362 = vextract.low.u32 %v1361
        %v1363 = vextract.high.u32 %v1361
        %v1364 = vmul.u32.u64.compose %v1360, %v1355
        %v1365 = vextract.low.u32 %v1364
        %v1366 = vextract.high.u32 %v1364
        %v1367 = vmul.u32 %v1360, %v1351
        %v1368 = vadd.s32 %v1363, %v1365
        %vm1369 = vc.u32 %v1363, %v1365
        %v1370 = vadd.s32 %v1366, 1
        %v1371 = vsel %vm1369, %v1370, %v1366
        %v1372 = vadd.s32 %v1367, %v1371
        %v1373 = vadd.s32 %v1372, 536870912
        %v1374 = vshrl.u32 %v1373, 30
        %v1375 = vshll.u32 %v1374, 30
        %v1376 = vsub.s32 %v1372, %v1375
        %vm1377 = vcmp.lt.s32.totalorder %v1376, 0
        %v1378 = vsub.s32 0, %v1376
        %v1379 = vsel %vm1377, %v1378, %v1376
        %v1380 = vclz %v1379
        %v1381 = vsub.s32 %v1380, 2
        %vm1382 = vcmp.gt.s32.totalorder 0, %v1381
        %v1383 = vsel %vm1382, 0, %v1381
        %v1384 = vsub.s32 32, %v1383
        %v1385 = vshll.u32 %v1376, %v1383
        %v1386 = vshrl.u32 %v1368, %v1384
        %v1387 = vor.u32 %v1385, %v1386
        %v1388 = vsub.s32 4294967266, %v1383
        %v1389 = vadd.s32 %v1388, 127
        %v1390 = vshll.u32 %v1389, 23
        %v1391 = vor.u32 4788187, %v1390
        %v1392 = vand.u32 2147483647, %v1391
        %v1394 = vcvt.s32.f32 %v1387
        %v1395 = vmul.f32 %v1394, %v1392
        %v1396 = vxor.u32 %v1395, 2147483648
        %v1397 = vsel %vm1314, %v1396, %v1395
        %v1398 = vsub.s32 4, %v1374
        %v1399 = vsel %vm1314, %v1398, %v1374
        %v1400 = vsel %vm1313, %v353, %v1397
        %v1401 = vsel %vm1313, 0, %v1399
        %v1402 = vcosq.f32.pop %v1400
        %v1403 = vsinq.f32.pop %v1400
        %vm1404 = vweird.f32 %v353
        %v1405 = vadd.s32 %v1401, 3
        %v1406 = vand.u32 %v1405, 3
        %vm1407 = vcmp.lt.s32.totalorder %v1406, 2
        %vm1408 = vcmp.eq.s32.totalorder %v1406, 0
        %v1409 = vxor.u32 %v1403, 2147483648
        %v1410 = vsel %vm1408, %v1402, %v1409
        %vm1411 = vcmp.eq.s32.totalorder %v1406, 2
        %v1412 = vxor.u32 %v1402, 2147483648
        %v1413 = vsel %vm1411, %v1412, %v1403
        %v1414 = vsel %vm1407, %v1410, %v1413
        %v1415 = vsel %vm1404, nan, %v1414
        %v1416 = vand.u32 2147483647, %v354
        %vm1417 = vcmp.le.f32.partialorder %v1416, 0.7853982
        %vm1418 = vcmp.lt.s32.totalorder %v354, 0
        %v1419 = vand.u32 %v354, 2139095040
        %v1420 = vshrl.u32 %v1419, 23
        %v1421 = vsub.s32 %v1420, 127
        %v1422 = vand.u32 2147483647, %v354
        %v1423 = vand.u32 %v1422, 8388607
        %v1424 = vor.u32 %v1423, 8388608
        %v1425 = vsub.s32 0, %v1424
        %v1426 = vadd.s32 %v1421, 1
        %vm1427 = vcmp.gt.s32.totalorder %v1426, 0
        %v1428 = vsel %vm1427, %v1426, 0
        %v1429 = vshrl.u32 %v1428, 5
        %v1430 = vand.u32 %v1428, 31
        %v1431 = vsub.s32 32, %v1430
        %v1432 = vshrl.u32 683565275, %v1431
        %v1433 = vshll.u32 683565275, %v1430
        %v1434 = vshrl.u32 2475754826, %v1431
        %v1435 = vor.u32 %v1433, %v1434
        %v1436 = vshll.u32 2475754826, %v1430
        %v1437 = vshrl.u32 2131351028, %v1431
        %v1438 = vor.u32 %v1436, %v1437
        %v1439 = vshll.u32 2131351028, %v1430
        %v1440 = vshrl.u32 2102212464, %v1431
        %v1441 = vor.u32 %v1439, %v1440
        %v1442 = vshll.u32 2102212464, %v1430
        %v1443 = vshrl.u32 920167782, %v1431
        %v1444 = vor.u32 %v1442, %v1443
        %v1445 = vshll.u32 920167782, %v1430
        %v1446 = vshrl.u32 1326507024, %v1431
        %v1447 = vor.u32 %v1445, %v1446
        %vm1448 = vcmp.lt.s32.totalorder %v1429, 1
        %vm1449 = vcmp.lt.s32.totalorder %v1429, 2
        %vm1450 = vcmp.lt.s32.totalorder %v1429, 3
        %vm1451 = vcmp.lt.s32.totalorder %v1429, 4
        %v1452 = vsel %vm1448, %v1432, %v1435
        %v1453 = vsel %vm1451, %v1441, 2102212464
        %v1454 = vsel %vm1450, %v1438, %v1453
        %v1455 = vsel %vm1449, %v1452, %v1454
        %v1456 = vsel %vm1448, %v1435, %v1438
        %v1457 = vsel %vm1451, %v1444, 920167782
        %v1458 = vsel %vm1450, %v1441, %v1457
        %v1459 = vsel %vm1449, %v1456, %v1458
        %v1460 = vsel %vm1448, %v1438, %v1441
        %v1461 = vsel %vm1451, %v1447, 1326507024
        %v1462 = vsel %vm1450, %v1444, %v1461
        %v1463 = vsel %vm1449, %v1460, %v1462
        %v1464 = vshll.u32 %v1424, 8
        %v1465 = vmul.u32.u64.compose %v1464, %v1463
        %v1466 = vextract.low.u32 %v1465
        %v1467 = vextract.high.u32 %v1465
        %v1468 = vmul.u32.u64.compose %v1464, %v1459
        %v1469 = vextract.low.u32 %v1468
        %v1470 = vextract.high.u32 %v1468
        %v1471 = vmul.u32 %v1464, %v1455
        %v1472 = vadd.s32 %v1467, %v1469
        %vm1473 = vc.u32 %v1467, %v1469
        %v1474 = vadd.s32 %v1470, 1
        %v1475 = vsel %vm1473, %v1474, %v1470
        %v1476 = vadd.s32 %v1471, %v1475
        %v1477 = vadd.s32 %v1476, 536870912
        %v1478 = vshrl.u32 %v1477, 30
        %v1479 = vshll.u32 %v1478, 30
        %v1480 = vsub.s32 %v1476, %v1479
        %vm1481 = vcmp.lt.s32.totalorder %v1480, 0
        %v1482 = vsub.s32 0, %v1480
        %v1483 = vsel %vm1481, %v1482, %v1480
        %v1484 = vclz %v1483
        %v1485 = vsub.s32 %v1484, 2
        %vm1486 = vcmp.gt.s32.totalorder 0, %v1485
        %v1487 = vsel %vm1486, 0, %v1485
        %v1488 = vsub.s32 32, %v1487
        %v1489 = vshll.u32 %v1480, %v1487
        %v1490 = vshrl.u32 %v1472, %v1488
        %v1491 = vor.u32 %v1489, %v1490
        %v1492 = vsub.s32 4294967266, %v1487
        %v1493 = vadd.s32 %v1492, 127
        %v1494 = vshll.u32 %v1493, 23
        %v1495 = vor.u32 4788187, %v1494
        %v1496 = vand.u32 2147483647, %v1495
        %v1498 = vcvt.s32.f32 %v1491
        %v1499 = vmul.f32 %v1498, %v1496
        %v1500 = vxor.u32 %v1499, 2147483648
        %v1501 = vsel %vm1418, %v1500, %v1499
        %v1502 = vsub.s32 4, %v1478
        %v1503 = vsel %vm1418, %v1502, %v1478
        %v1504 = vsel %vm1417, %v354, %v1501
        %v1505 = vsel %vm1417, 0, %v1503
        %v1506 = vcosq.f32.pop %v1504
        %v1507 = vsinq.f32.pop %v1504
        %vm1508 = vweird.f32 %v354
        %v1509 = vadd.s32 %v1505, 3
        %v1510 = vand.u32 %v1509, 3
        %vm1511 = vcmp.lt.s32.totalorder %v1510, 2
        %vm1512 = vcmp.eq.s32.totalorder %v1510, 0
        %v1513 = vxor.u32 %v1507, 2147483648
        %v1514 = vsel %vm1512, %v1506, %v1513
        %vm1515 = vcmp.eq.s32.totalorder %v1510, 2
        %v1516 = vxor.u32 %v1506, 2147483648
        %v1517 = vsel %vm1515, %v1516, %v1507
        %v1518 = vsel %vm1511, %v1514, %v1517
        %v1519 = vsel %vm1508, nan, %v1518
        %v1520 = vand.u32 2147483647, %v355
        %vm1521 = vcmp.le.f32.partialorder %v1520, 0.7853982
        %vm1522 = vcmp.lt.s32.totalorder %v355, 0
        %v1523 = vand.u32 %v355, 2139095040
        %v1524 = vshrl.u32 %v1523, 23
        %v1525 = vsub.s32 %v1524, 127
        %v1526 = vand.u32 2147483647, %v355
        %v1527 = vand.u32 %v1526, 8388607
        %v1528 = vor.u32 %v1527, 8388608
        %v1529 = vsub.s32 0, %v1528
        %v1530 = vadd.s32 %v1525, 1
        %vm1531 = vcmp.gt.s32.totalorder %v1530, 0
        %v1532 = vsel %vm1531, %v1530, 0
        %v1533 = vshrl.u32 %v1532, 5
        %v1534 = vand.u32 %v1532, 31
        %v1535 = vsub.s32 32, %v1534
        %v1536 = vshrl.u32 683565275, %v1535
        %v1537 = vshll.u32 683565275, %v1534
        %v1538 = vshrl.u32 2475754826, %v1535
        %v1539 = vor.u32 %v1537, %v1538
        %v1540 = vshll.u32 2475754826, %v1534
        %v1541 = vshrl.u32 2131351028, %v1535
        %v1542 = vor.u32 %v1540, %v1541
        %v1543 = vshll.u32 2131351028, %v1534
        %v1544 = vshrl.u32 2102212464, %v1535
        %v1545 = vor.u32 %v1543, %v1544
        %v1546 = vshll.u32 2102212464, %v1534
        %v1547 = vshrl.u32 920167782, %v1535
        %v1548 = vor.u32 %v1546, %v1547
        %v1549 = vshll.u32 920167782, %v1534
        %v1550 = vshrl.u32 1326507024, %v1535
        %v1551 = vor.u32 %v1549, %v1550
        %vm1552 = vcmp.lt.s32.totalorder %v1533, 1
        %vm1553 = vcmp.lt.s32.totalorder %v1533, 2
        %vm1554 = vcmp.lt.s32.totalorder %v1533, 3
        %vm1555 = vcmp.lt.s32.totalorder %v1533, 4
        %v1556 = vsel %vm1552, %v1536, %v1539
        %v1557 = vsel %vm1555, %v1545, 2102212464
        %v1558 = vsel %vm1554, %v1542, %v1557
        %v1559 = vsel %vm1553, %v1556, %v1558
        %v1560 = vsel %vm1552, %v1539, %v1542
        %v1561 = vsel %vm1555, %v1548, 920167782
        %v1562 = vsel %vm1554, %v1545, %v1561
        %v1563 = vsel %vm1553, %v1560, %v1562
        %v1564 = vsel %vm1552, %v1542, %v1545
        %v1565 = vsel %vm1555, %v1551, 1326507024
        %v1566 = vsel %vm1554, %v1548, %v1565
        %v1567 = vsel %vm1553, %v1564, %v1566
        %v1568 = vshll.u32 %v1528, 8
        %v1569 = vmul.u32.u64.compose %v1568, %v1567
        %v1570 = vextract.low.u32 %v1569
        %v1571 = vextract.high.u32 %v1569
        %v1572 = vmul.u32.u64.compose %v1568, %v1563
        %v1573 = vextract.low.u32 %v1572
        %v1574 = vextract.high.u32 %v1572
        %v1575 = vmul.u32 %v1568, %v1559
        %v1576 = vadd.s32 %v1571, %v1573
        %vm1577 = vc.u32 %v1571, %v1573
        %v1578 = vadd.s32 %v1574, 1
        %v1579 = vsel %vm1577, %v1578, %v1574
        %v1580 = vadd.s32 %v1575, %v1579
        %v1581 = vadd.s32 %v1580, 536870912
        %v1582 = vshrl.u32 %v1581, 30
        %v1583 = vshll.u32 %v1582, 30
        %v1584 = vsub.s32 %v1580, %v1583
        %vm1585 = vcmp.lt.s32.totalorder %v1584, 0
        %v1586 = vsub.s32 0, %v1584
        %v1587 = vsel %vm1585, %v1586, %v1584
        %v1588 = vclz %v1587
        %v1589 = vsub.s32 %v1588, 2
        %vm1590 = vcmp.gt.s32.totalorder 0, %v1589
        %v1591 = vsel %vm1590, 0, %v1589
        %v1592 = vsub.s32 32, %v1591
        %v1593 = vshll.u32 %v1584, %v1591
        %v1594 = vshrl.u32 %v1576, %v1592
        %v1595 = vor.u32 %v1593, %v1594
        %v1596 = vsub.s32 4294967266, %v1591
        %v1597 = vadd.s32 %v1596, 127
        %v1598 = vshll.u32 %v1597, 23
        %v1599 = vor.u32 4788187, %v1598
        %v1600 = vand.u32 2147483647, %v1599
        %v1602 = vcvt.s32.f32 %v1595
        %v1603 = vmul.f32 %v1602, %v1600
        %v1604 = vxor.u32 %v1603, 2147483648
        %v1605 = vsel %vm1522, %v1604, %v1603
        %v1606 = vsub.s32 4, %v1582
        %v1607 = vsel %vm1522, %v1606, %v1582
        %v1608 = vsel %vm1521, %v355, %v1605
        %v1609 = vsel %vm1521, 0, %v1607
        %v1610 = vcosq.f32.pop %v1608
        %v1611 = vsinq.f32.pop %v1608
        %vm1612 = vweird.f32 %v355
        %v1613 = vadd.s32 %v1609, 3
        %v1614 = vand.u32 %v1613, 3
        %vm1615 = vcmp.lt.s32.totalorder %v1614, 2
        %vm1616 = vcmp.eq.s32.totalorder %v1614, 0
        %v1617 = vxor.u32 %v1611, 2147483648
        %v1618 = vsel %vm1616, %v1610, %v1617
        %vm1619 = vcmp.eq.s32.totalorder %v1614, 2
        %v1620 = vxor.u32 %v1610, 2147483648
        %v1621 = vsel %vm1619, %v1620, %v1611
        %v1622 = vsel %vm1615, %v1618, %v1621
        %v1623 = vsel %vm1612, nan, %v1622
        %v1624 = vand.u32 2147483647, %v356
        %vm1625 = vcmp.le.f32.partialorder %v1624, 0.7853982
        %vm1626 = vcmp.lt.s32.totalorder %v356, 0
        %v1627 = vand.u32 %v356, 2139095040
        %v1628 = vshrl.u32 %v1627, 23
        %v1629 = vsub.s32 %v1628, 127
        %v1630 = vand.u32 2147483647, %v356
        %v1631 = vand.u32 %v1630, 8388607
        %v1632 = vor.u32 %v1631, 8388608
        %v1633 = vsub.s32 0, %v1632
        %v1634 = vadd.s32 %v1629, 1
        %vm1635 = vcmp.gt.s32.totalorder %v1634, 0
        %v1636 = vsel %vm1635, %v1634, 0
        %v1637 = vshrl.u32 %v1636, 5
        %v1638 = vand.u32 %v1636, 31
        %v1639 = vsub.s32 32, %v1638
        %v1640 = vshrl.u32 683565275, %v1639
        %v1641 = vshll.u32 683565275, %v1638
        %v1642 = vshrl.u32 2475754826, %v1639
        %v1643 = vor.u32 %v1641, %v1642
        %v1644 = vshll.u32 2475754826, %v1638
        %v1645 = vshrl.u32 2131351028, %v1639
        %v1646 = vor.u32 %v1644, %v1645
        %v1647 = vshll.u32 2131351028, %v1638
        %v1648 = vshrl.u32 2102212464, %v1639
        %v1649 = vor.u32 %v1647, %v1648
        %v1650 = vshll.u32 2102212464, %v1638
        %v1651 = vshrl.u32 920167782, %v1639
        %v1652 = vor.u32 %v1650, %v1651
        %v1653 = vshll.u32 920167782, %v1638
        %v1654 = vshrl.u32 1326507024, %v1639
        %v1655 = vor.u32 %v1653, %v1654
        %vm1656 = vcmp.lt.s32.totalorder %v1637, 1
        %vm1657 = vcmp.lt.s32.totalorder %v1637, 2
        %vm1658 = vcmp.lt.s32.totalorder %v1637, 3
        %vm1659 = vcmp.lt.s32.totalorder %v1637, 4
        %v1660 = vsel %vm1656, %v1640, %v1643
        %v1661 = vsel %vm1659, %v1649, 2102212464
        %v1662 = vsel %vm1658, %v1646, %v1661
        %v1663 = vsel %vm1657, %v1660, %v1662
        %v1664 = vsel %vm1656, %v1643, %v1646
        %v1665 = vsel %vm1659, %v1652, 920167782
        %v1666 = vsel %vm1658, %v1649, %v1665
        %v1667 = vsel %vm1657, %v1664, %v1666
        %v1668 = vsel %vm1656, %v1646, %v1649
        %v1669 = vsel %vm1659, %v1655, 1326507024
        %v1670 = vsel %vm1658, %v1652, %v1669
        %v1671 = vsel %vm1657, %v1668, %v1670
        %v1672 = vshll.u32 %v1632, 8
        %v1673 = vmul.u32.u64.compose %v1672, %v1671
        %v1674 = vextract.low.u32 %v1673
        %v1675 = vextract.high.u32 %v1673
        %v1676 = vmul.u32.u64.compose %v1672, %v1667
        %v1677 = vextract.low.u32 %v1676
        %v1678 = vextract.high.u32 %v1676
        %v1679 = vmul.u32 %v1672, %v1663
        %v1680 = vadd.s32 %v1675, %v1677
        %vm1681 = vc.u32 %v1675, %v1677
        %v1682 = vadd.s32 %v1678, 1
        %v1683 = vsel %vm1681, %v1682, %v1678
        %v1684 = vadd.s32 %v1679, %v1683
        %v1685 = vadd.s32 %v1684, 536870912
        %v1686 = vshrl.u32 %v1685, 30
        %v1687 = vshll.u32 %v1686, 30
        %v1688 = vsub.s32 %v1684, %v1687
        %vm1689 = vcmp.lt.s32.totalorder %v1688, 0
        %v1690 = vsub.s32 0, %v1688
        %v1691 = vsel %vm1689, %v1690, %v1688
        %v1692 = vclz %v1691
        %v1693 = vsub.s32 %v1692, 2
        %vm1694 = vcmp.gt.s32.totalorder 0, %v1693
        %v1695 = vsel %vm1694, 0, %v1693
        %v1696 = vsub.s32 32, %v1695
        %v1697 = vshll.u32 %v1688, %v1695
        %v1698 = vshrl.u32 %v1680, %v1696
        %v1699 = vor.u32 %v1697, %v1698
        %v1700 = vsub.s32 4294967266, %v1695
        %v1701 = vadd.s32 %v1700, 127
        %v1702 = vshll.u32 %v1701, 23
        %v1703 = vor.u32 4788187, %v1702
        %v1704 = vand.u32 2147483647, %v1703
        %v1706 = vcvt.s32.f32 %v1699
        %v1707 = vmul.f32 %v1706, %v1704
        %v1708 = vxor.u32 %v1707, 2147483648
        %v1709 = vsel %vm1626, %v1708, %v1707
        %v1710 = vsub.s32 4, %v1686
        %v1711 = vsel %vm1626, %v1710, %v1686
        %v1712 = vsel %vm1625, %v356, %v1709
        %v1713 = vsel %vm1625, 0, %v1711
        %v1714 = vcosq.f32.pop %v1712
        %v1715 = vsinq.f32.pop %v1712
        %vm1716 = vweird.f32 %v356
        %v1717 = vadd.s32 %v1713, 3
        %v1718 = vand.u32 %v1717, 3
        %vm1719 = vcmp.lt.s32.totalorder %v1718, 2
        %vm1720 = vcmp.eq.s32.totalorder %v1718, 0
        %v1721 = vxor.u32 %v1715, 2147483648
        %v1722 = vsel %vm1720, %v1714, %v1721
        %vm1723 = vcmp.eq.s32.totalorder %v1718, 2
        %v1724 = vxor.u32 %v1714, 2147483648
        %v1725 = vsel %vm1723, %v1724, %v1715
        %v1726 = vsel %vm1719, %v1722, %v1725
        %v1727 = vsel %vm1716, nan, %v1726
        %v1728 = vand.u32 2147483647, %v357
        %vm1729 = vcmp.le.f32.partialorder %v1728, 0.7853982
        %vm1730 = vcmp.lt.s32.totalorder %v357, 0
        %v1731 = vand.u32 %v357, 2139095040
        %v1732 = vshrl.u32 %v1731, 23
        %v1733 = vsub.s32 %v1732, 127
        %v1734 = vand.u32 2147483647, %v357
        %v1735 = vand.u32 %v1734, 8388607
        %v1736 = vor.u32 %v1735, 8388608
        %v1737 = vsub.s32 0, %v1736
        %v1738 = vadd.s32 %v1733, 1
        %vm1739 = vcmp.gt.s32.totalorder %v1738, 0
        %v1740 = vsel %vm1739, %v1738, 0
        %v1741 = vshrl.u32 %v1740, 5
        %v1742 = vand.u32 %v1740, 31
        %v1743 = vsub.s32 32, %v1742
        %v1744 = vshrl.u32 683565275, %v1743
        %v1745 = vshll.u32 683565275, %v1742
        %v1746 = vshrl.u32 2475754826, %v1743
        %v1747 = vor.u32 %v1745, %v1746
        %v1748 = vshll.u32 2475754826, %v1742
        %v1749 = vshrl.u32 2131351028, %v1743
        %v1750 = vor.u32 %v1748, %v1749
        %v1751 = vshll.u32 2131351028, %v1742
        %v1752 = vshrl.u32 2102212464, %v1743
        %v1753 = vor.u32 %v1751, %v1752
        %v1754 = vshll.u32 2102212464, %v1742
        %v1755 = vshrl.u32 920167782, %v1743
        %v1756 = vor.u32 %v1754, %v1755
        %v1757 = vshll.u32 920167782, %v1742
        %v1758 = vshrl.u32 1326507024, %v1743
        %v1759 = vor.u32 %v1757, %v1758
        %vm1760 = vcmp.lt.s32.totalorder %v1741, 1
        %vm1761 = vcmp.lt.s32.totalorder %v1741, 2
        %vm1762 = vcmp.lt.s32.totalorder %v1741, 3
        %vm1763 = vcmp.lt.s32.totalorder %v1741, 4
        %v1764 = vsel %vm1760, %v1744, %v1747
        %v1765 = vsel %vm1763, %v1753, 2102212464
        %v1766 = vsel %vm1762, %v1750, %v1765
        %v1767 = vsel %vm1761, %v1764, %v1766
        %v1768 = vsel %vm1760, %v1747, %v1750
        %v1769 = vsel %vm1763, %v1756, 920167782
        %v1770 = vsel %vm1762, %v1753, %v1769
        %v1771 = vsel %vm1761, %v1768, %v1770
        %v1772 = vsel %vm1760, %v1750, %v1753
        %v1773 = vsel %vm1763, %v1759, 1326507024
        %v1774 = vsel %vm1762, %v1756, %v1773
        %v1775 = vsel %vm1761, %v1772, %v1774
        %v1776 = vshll.u32 %v1736, 8
        %v1777 = vmul.u32.u64.compose %v1776, %v1775
        %v1778 = vextract.low.u32 %v1777
        %v1779 = vextract.high.u32 %v1777
        %v1780 = vmul.u32.u64.compose %v1776, %v1771
        %v1781 = vextract.low.u32 %v1780
        %v1782 = vextract.high.u32 %v1780
        %v1783 = vmul.u32 %v1776, %v1767
        %v1784 = vadd.s32 %v1779, %v1781
        %vm1785 = vc.u32 %v1779, %v1781
        %v1786 = vadd.s32 %v1782, 1
        %v1787 = vsel %vm1785, %v1786, %v1782
        %v1788 = vadd.s32 %v1783, %v1787
        %v1789 = vadd.s32 %v1788, 536870912
        %v1790 = vshrl.u32 %v1789, 30
        %v1791 = vshll.u32 %v1790, 30
        %v1792 = vsub.s32 %v1788, %v1791
        %vm1793 = vcmp.lt.s32.totalorder %v1792, 0
        %v1794 = vsub.s32 0, %v1792
        %v1795 = vsel %vm1793, %v1794, %v1792
        %v1796 = vclz %v1795
        %v1797 = vsub.s32 %v1796, 2
        %vm1798 = vcmp.gt.s32.totalorder 0, %v1797
        %v1799 = vsel %vm1798, 0, %v1797
        %v1800 = vsub.s32 32, %v1799
        %v1801 = vshll.u32 %v1792, %v1799
        %v1802 = vshrl.u32 %v1784, %v1800
        %v1803 = vor.u32 %v1801, %v1802
        %v1804 = vsub.s32 4294967266, %v1799
        %v1805 = vadd.s32 %v1804, 127
        %v1806 = vshll.u32 %v1805, 23
        %v1807 = vor.u32 4788187, %v1806
        %v1808 = vand.u32 2147483647, %v1807
        %v1810 = vcvt.s32.f32 %v1803
        %v1811 = vmul.f32 %v1810, %v1808
        %v1812 = vxor.u32 %v1811, 2147483648
        %v1813 = vsel %vm1730, %v1812, %v1811
        %v1814 = vsub.s32 4, %v1790
        %v1815 = vsel %vm1730, %v1814, %v1790
        %v1816 = vsel %vm1729, %v357, %v1813
        %v1817 = vsel %vm1729, 0, %v1815
        %v1818 = vcosq.f32.pop %v1816
        %v1819 = vsinq.f32.pop %v1816
        %vm1820 = vweird.f32 %v357
        %v1821 = vadd.s32 %v1817, 3
        %v1822 = vand.u32 %v1821, 3
        %vm1823 = vcmp.lt.s32.totalorder %v1822, 2
        %vm1824 = vcmp.eq.s32.totalorder %v1822, 0
        %v1825 = vxor.u32 %v1819, 2147483648
        %v1826 = vsel %vm1824, %v1818, %v1825
        %vm1827 = vcmp.eq.s32.totalorder %v1822, 2
        %v1828 = vxor.u32 %v1818, 2147483648
        %v1829 = vsel %vm1827, %v1828, %v1819
        %v1830 = vsel %vm1823, %v1826, %v1829
        %v1831 = vsel %vm1820, nan, %v1830
        %v1832 = vand.u32 2147483647, %v358
        %vm1833 = vcmp.le.f32.partialorder %v1832, 0.7853982
        %vm1834 = vcmp.lt.s32.totalorder %v358, 0
        %v1835 = vand.u32 %v358, 2139095040
        %v1836 = vshrl.u32 %v1835, 23
        %v1837 = vsub.s32 %v1836, 127
        %v1838 = vand.u32 2147483647, %v358
        %v1839 = vand.u32 %v1838, 8388607
        %v1840 = vor.u32 %v1839, 8388608
        %v1841 = vsub.s32 0, %v1840
        %v1842 = vadd.s32 %v1837, 1
        %vm1843 = vcmp.gt.s32.totalorder %v1842, 0
        %v1844 = vsel %vm1843, %v1842, 0
        %v1845 = vshrl.u32 %v1844, 5
        %v1846 = vand.u32 %v1844, 31
        %v1847 = vsub.s32 32, %v1846
        %v1848 = vshrl.u32 683565275, %v1847
        %v1849 = vshll.u32 683565275, %v1846
        %v1850 = vshrl.u32 2475754826, %v1847
        %v1851 = vor.u32 %v1849, %v1850
        %v1852 = vshll.u32 2475754826, %v1846
        %v1853 = vshrl.u32 2131351028, %v1847
        %v1854 = vor.u32 %v1852, %v1853
        %v1855 = vshll.u32 2131351028, %v1846
        %v1856 = vshrl.u32 2102212464, %v1847
        %v1857 = vor.u32 %v1855, %v1856
        %v1858 = vshll.u32 2102212464, %v1846
        %v1859 = vshrl.u32 920167782, %v1847
        %v1860 = vor.u32 %v1858, %v1859
        %v1861 = vshll.u32 920167782, %v1846
        %v1862 = vshrl.u32 1326507024, %v1847
        %v1863 = vor.u32 %v1861, %v1862
        %vm1864 = vcmp.lt.s32.totalorder %v1845, 1
        %vm1865 = vcmp.lt.s32.totalorder %v1845, 2
        %vm1866 = vcmp.lt.s32.totalorder %v1845, 3
        %vm1867 = vcmp.lt.s32.totalorder %v1845, 4
        %v1868 = vsel %vm1864, %v1848, %v1851
        %v1869 = vsel %vm1867, %v1857, 2102212464
        %v1870 = vsel %vm1866, %v1854, %v1869
        %v1871 = vsel %vm1865, %v1868, %v1870
        %v1872 = vsel %vm1864, %v1851, %v1854
        %v1873 = vsel %vm1867, %v1860, 920167782
        %v1874 = vsel %vm1866, %v1857, %v1873
        %v1875 = vsel %vm1865, %v1872, %v1874
        %v1876 = vsel %vm1864, %v1854, %v1857
        %v1877 = vsel %vm1867, %v1863, 1326507024
        %v1878 = vsel %vm1866, %v1860, %v1877
        %v1879 = vsel %vm1865, %v1876, %v1878
        %v1880 = vshll.u32 %v1840, 8
        %v1881 = vmul.u32.u64.compose %v1880, %v1879
        %v1882 = vextract.low.u32 %v1881
        %v1883 = vextract.high.u32 %v1881
        %v1884 = vmul.u32.u64.compose %v1880, %v1875
        %v1885 = vextract.low.u32 %v1884
        %v1886 = vextract.high.u32 %v1884
        %v1887 = vmul.u32 %v1880, %v1871
        %v1888 = vadd.s32 %v1883, %v1885
        %vm1889 = vc.u32 %v1883, %v1885
        %v1890 = vadd.s32 %v1886, 1
        %v1891 = vsel %vm1889, %v1890, %v1886
        %v1892 = vadd.s32 %v1887, %v1891
        %v1893 = vadd.s32 %v1892, 536870912
        %v1894 = vshrl.u32 %v1893, 30
        %v1895 = vshll.u32 %v1894, 30
        %v1896 = vsub.s32 %v1892, %v1895
        %vm1897 = vcmp.lt.s32.totalorder %v1896, 0
        %v1898 = vsub.s32 0, %v1896
        %v1899 = vsel %vm1897, %v1898, %v1896
        %v1900 = vclz %v1899
        %v1901 = vsub.s32 %v1900, 2
        %vm1902 = vcmp.gt.s32.totalorder 0, %v1901
        %v1903 = vsel %vm1902, 0, %v1901
        %v1904 = vsub.s32 32, %v1903
        %v1905 = vshll.u32 %v1896, %v1903
        %v1906 = vshrl.u32 %v1888, %v1904
        %v1907 = vor.u32 %v1905, %v1906
        %v1908 = vsub.s32 4294967266, %v1903
        %v1909 = vadd.s32 %v1908, 127
        %v1910 = vshll.u32 %v1909, 23
        %v1911 = vor.u32 4788187, %v1910
        %v1912 = vand.u32 2147483647, %v1911
        %v1914 = vcvt.s32.f32 %v1907
        %v1915 = vmul.f32 %v1914, %v1912
        %v1916 = vxor.u32 %v1915, 2147483648
        %v1917 = vsel %vm1834, %v1916, %v1915
        %v1918 = vsub.s32 4, %v1894
        %v1919 = vsel %vm1834, %v1918, %v1894
        %v1920 = vsel %vm1833, %v358, %v1917
        %v1921 = vsel %vm1833, 0, %v1919
        %v1922 = vcosq.f32.pop %v1920
        %v1923 = vsinq.f32.pop %v1920
        %vm1924 = vweird.f32 %v358
        %v1925 = vadd.s32 %v1921, 3
        %v1926 = vand.u32 %v1925, 3
        %vm1927 = vcmp.lt.s32.totalorder %v1926, 2
        %vm1928 = vcmp.eq.s32.totalorder %v1926, 0
        %v1929 = vxor.u32 %v1923, 2147483648
        %v1930 = vsel %vm1928, %v1922, %v1929
        %vm1931 = vcmp.eq.s32.totalorder %v1926, 2
        %v1932 = vxor.u32 %v1922, 2147483648
        %v1933 = vsel %vm1931, %v1932, %v1923
        %v1934 = vsel %vm1927, %v1930, %v1933
        %v1935 = vsel %vm1924, nan, %v1934
        %v1936 = vand.u32 2147483647, %v359
        %vm1937 = vcmp.le.f32.partialorder %v1936, 0.7853982
        %vm1938 = vcmp.lt.s32.totalorder %v359, 0
        %v1939 = vand.u32 %v359, 2139095040
        %v1940 = vshrl.u32 %v1939, 23
        %v1941 = vsub.s32 %v1940, 127
        %v1942 = vand.u32 2147483647, %v359
        %v1943 = vand.u32 %v1942, 8388607
        %v1944 = vor.u32 %v1943, 8388608
        %v1945 = vsub.s32 0, %v1944
        %v1946 = vadd.s32 %v1941, 1
        %vm1947 = vcmp.gt.s32.totalorder %v1946, 0
        %v1948 = vsel %vm1947, %v1946, 0
        %v1949 = vshrl.u32 %v1948, 5
        %v1950 = vand.u32 %v1948, 31
        %v1951 = vsub.s32 32, %v1950
        %v1952 = vshrl.u32 683565275, %v1951
        %v1953 = vshll.u32 683565275, %v1950
        %v1954 = vshrl.u32 2475754826, %v1951
        %v1955 = vor.u32 %v1953, %v1954
        %v1956 = vshll.u32 2475754826, %v1950
        %v1957 = vshrl.u32 2131351028, %v1951
        %v1958 = vor.u32 %v1956, %v1957
        %v1959 = vshll.u32 2131351028, %v1950
        %v1960 = vshrl.u32 2102212464, %v1951
        %v1961 = vor.u32 %v1959, %v1960
        %v1962 = vshll.u32 2102212464, %v1950
        %v1963 = vshrl.u32 920167782, %v1951
        %v1964 = vor.u32 %v1962, %v1963
        %v1965 = vshll.u32 920167782, %v1950
        %v1966 = vshrl.u32 1326507024, %v1951
        %v1967 = vor.u32 %v1965, %v1966
        %vm1968 = vcmp.lt.s32.totalorder %v1949, 1
        %vm1969 = vcmp.lt.s32.totalorder %v1949, 2
        %vm1970 = vcmp.lt.s32.totalorder %v1949, 3
        %vm1971 = vcmp.lt.s32.totalorder %v1949, 4
        %v1972 = vsel %vm1968, %v1952, %v1955
        %v1973 = vsel %vm1971, %v1961, 2102212464
        %v1974 = vsel %vm1970, %v1958, %v1973
        %v1975 = vsel %vm1969, %v1972, %v1974
        %v1976 = vsel %vm1968, %v1955, %v1958
        %v1977 = vsel %vm1971, %v1964, 920167782
        %v1978 = vsel %vm1970, %v1961, %v1977
        %v1979 = vsel %vm1969, %v1976, %v1978
        %v1980 = vsel %vm1968, %v1958, %v1961
        %v1981 = vsel %vm1971, %v1967, 1326507024
        %v1982 = vsel %vm1970, %v1964, %v1981
        %v1983 = vsel %vm1969, %v1980, %v1982
        %v1984 = vshll.u32 %v1944, 8
        %v1985 = vmul.u32.u64.compose %v1984, %v1983
        %v1986 = vextract.low.u32 %v1985
        %v1987 = vextract.high.u32 %v1985
        %v1988 = vmul.u32.u64.compose %v1984, %v1979
        %v1989 = vextract.low.u32 %v1988
        %v1990 = vextract.high.u32 %v1988
        %v1991 = vmul.u32 %v1984, %v1975
        %v1992 = vadd.s32 %v1987, %v1989
        %vm1993 = vc.u32 %v1987, %v1989
        %v1994 = vadd.s32 %v1990, 1
        %v1995 = vsel %vm1993, %v1994, %v1990
        %v1996 = vadd.s32 %v1991, %v1995
        %v1997 = vadd.s32 %v1996, 536870912
        %v1998 = vshrl.u32 %v1997, 30
        %v1999 = vshll.u32 %v1998, 30
        %v2000 = vsub.s32 %v1996, %v1999
        %vm2001 = vcmp.lt.s32.totalorder %v2000, 0
        %v2002 = vsub.s32 0, %v2000
        %v2003 = vsel %vm2001, %v2002, %v2000
        %v2004 = vclz %v2003
        %v2005 = vsub.s32 %v2004, 2
        %vm2006 = vcmp.gt.s32.totalorder 0, %v2005
        %v2007 = vsel %vm2006, 0, %v2005
        %v2008 = vsub.s32 32, %v2007
        %v2009 = vshll.u32 %v2000, %v2007
        %v2010 = vshrl.u32 %v1992, %v2008
        %v2011 = vor.u32 %v2009, %v2010
        %v2012 = vsub.s32 4294967266, %v2007
        %v2013 = vadd.s32 %v2012, 127
        %v2014 = vshll.u32 %v2013, 23
        %v2015 = vor.u32 4788187, %v2014
        %v2016 = vand.u32 2147483647, %v2015
        %v2018 = vcvt.s32.f32 %v2011
        %v2019 = vmul.f32 %v2018, %v2016
        %v2020 = vxor.u32 %v2019, 2147483648
        %v2021 = vsel %vm1938, %v2020, %v2019
        %v2022 = vsub.s32 4, %v1998
        %v2023 = vsel %vm1938, %v2022, %v1998
        %v2024 = vsel %vm1937, %v359, %v2021
        %v2025 = vsel %vm1937, 0, %v2023
        %v2026 = vcosq.f32.pop %v2024
        %v2027 = vsinq.f32.pop %v2024
        %vm2028 = vweird.f32 %v359
        %v2029 = vadd.s32 %v2025, 3
        %v2030 = vand.u32 %v2029, 3
        %vm2031 = vcmp.lt.s32.totalorder %v2030, 2
        %vm2032 = vcmp.eq.s32.totalorder %v2030, 0
        %v2033 = vxor.u32 %v2027, 2147483648
        %v2034 = vsel %vm2032, %v2026, %v2033
        %vm2035 = vcmp.eq.s32.totalorder %v2030, 2
        %v2036 = vxor.u32 %v2026, 2147483648
        %v2037 = vsel %vm2035, %v2036, %v2027
        %v2038 = vsel %vm2031, %v2034, %v2037
        %v2039 = vsel %vm2028, nan, %v2038
        %v2040 = vand.u32 2147483647, %v360
        %vm2041 = vcmp.le.f32.partialorder %v2040, 0.7853982
        %vm2042 = vcmp.lt.s32.totalorder %v360, 0
        %v2043 = vand.u32 %v360, 2139095040
        %v2044 = vshrl.u32 %v2043, 23
        %v2045 = vsub.s32 %v2044, 127
        %v2046 = vand.u32 2147483647, %v360
        %v2047 = vand.u32 %v2046, 8388607
        %v2048 = vor.u32 %v2047, 8388608
        %v2049 = vsub.s32 0, %v2048
        %v2050 = vadd.s32 %v2045, 1
        %vm2051 = vcmp.gt.s32.totalorder %v2050, 0
        %v2052 = vsel %vm2051, %v2050, 0
        %v2053 = vshrl.u32 %v2052, 5
        %v2054 = vand.u32 %v2052, 31
        %v2055 = vsub.s32 32, %v2054
        %v2056 = vshrl.u32 683565275, %v2055
        %v2057 = vshll.u32 683565275, %v2054
        %v2058 = vshrl.u32 2475754826, %v2055
        %v2059 = vor.u32 %v2057, %v2058
        %v2060 = vshll.u32 2475754826, %v2054
        %v2061 = vshrl.u32 2131351028, %v2055
        %v2062 = vor.u32 %v2060, %v2061
        %v2063 = vshll.u32 2131351028, %v2054
        %v2064 = vshrl.u32 2102212464, %v2055
        %v2065 = vor.u32 %v2063, %v2064
        %v2066 = vshll.u32 2102212464, %v2054
        %v2067 = vshrl.u32 920167782, %v2055
        %v2068 = vor.u32 %v2066, %v2067
        %v2069 = vshll.u32 920167782, %v2054
        %v2070 = vshrl.u32 1326507024, %v2055
        %v2071 = vor.u32 %v2069, %v2070
        %vm2072 = vcmp.lt.s32.totalorder %v2053, 1
        %vm2073 = vcmp.lt.s32.totalorder %v2053, 2
        %vm2074 = vcmp.lt.s32.totalorder %v2053, 3
        %vm2075 = vcmp.lt.s32.totalorder %v2053, 4
        %v2076 = vsel %vm2072, %v2056, %v2059
        %v2077 = vsel %vm2075, %v2065, 2102212464
        %v2078 = vsel %vm2074, %v2062, %v2077
        %v2079 = vsel %vm2073, %v2076, %v2078
        %v2080 = vsel %vm2072, %v2059, %v2062
        %v2081 = vsel %vm2075, %v2068, 920167782
        %v2082 = vsel %vm2074, %v2065, %v2081
        %v2083 = vsel %vm2073, %v2080, %v2082
        %v2084 = vsel %vm2072, %v2062, %v2065
        %v2085 = vsel %vm2075, %v2071, 1326507024
        %v2086 = vsel %vm2074, %v2068, %v2085
        %v2087 = vsel %vm2073, %v2084, %v2086
        %v2088 = vshll.u32 %v2048, 8
        %v2089 = vmul.u32.u64.compose %v2088, %v2087
        %v2090 = vextract.low.u32 %v2089
        %v2091 = vextract.high.u32 %v2089
        %v2092 = vmul.u32.u64.compose %v2088, %v2083
        %v2093 = vextract.low.u32 %v2092
        %v2094 = vextract.high.u32 %v2092
        %v2095 = vmul.u32 %v2088, %v2079
        %v2096 = vadd.s32 %v2091, %v2093
        %vm2097 = vc.u32 %v2091, %v2093
        %v2098 = vadd.s32 %v2094, 1
        %v2099 = vsel %vm2097, %v2098, %v2094
        %v2100 = vadd.s32 %v2095, %v2099
        %v2101 = vadd.s32 %v2100, 536870912
        %v2102 = vshrl.u32 %v2101, 30
        %v2103 = vshll.u32 %v2102, 30
        %v2104 = vsub.s32 %v2100, %v2103
        %vm2105 = vcmp.lt.s32.totalorder %v2104, 0
        %v2106 = vsub.s32 0, %v2104
        %v2107 = vsel %vm2105, %v2106, %v2104
        %v2108 = vclz %v2107
        %v2109 = vsub.s32 %v2108, 2
        %vm2110 = vcmp.gt.s32.totalorder 0, %v2109
        %v2111 = vsel %vm2110, 0, %v2109
        %v2112 = vsub.s32 32, %v2111
        %v2113 = vshll.u32 %v2104, %v2111
        %v2114 = vshrl.u32 %v2096, %v2112
        %v2115 = vor.u32 %v2113, %v2114
        %v2116 = vsub.s32 4294967266, %v2111
        %v2117 = vadd.s32 %v2116, 127
        %v2118 = vshll.u32 %v2117, 23
        %v2119 = vor.u32 4788187, %v2118
        %v2120 = vand.u32 2147483647, %v2119
        %v2122 = vcvt.s32.f32 %v2115
        %v2123 = vmul.f32 %v2122, %v2120
        %v2124 = vxor.u32 %v2123, 2147483648
        %v2125 = vsel %vm2042, %v2124, %v2123
        %v2126 = vsub.s32 4, %v2102
        %v2127 = vsel %vm2042, %v2126, %v2102
        %v2128 = vsel %vm2041, %v360, %v2125
        %v2129 = vsel %vm2041, 0, %v2127
        %v2130 = vcosq.f32.pop %v2128
        %v2131 = vsinq.f32.pop %v2128
        %vm2132 = vweird.f32 %v360
        %v2133 = vadd.s32 %v2129, 3
        %v2134 = vand.u32 %v2133, 3
        %vm2135 = vcmp.lt.s32.totalorder %v2134, 2
        %vm2136 = vcmp.eq.s32.totalorder %v2134, 0
        %v2137 = vxor.u32 %v2131, 2147483648
        %v2138 = vsel %vm2136, %v2130, %v2137
        %vm2139 = vcmp.eq.s32.totalorder %v2134, 2
        %v2140 = vxor.u32 %v2130, 2147483648
        %v2141 = vsel %vm2139, %v2140, %v2131
        %v2142 = vsel %vm2135, %v2138, %v2141
        %v2143 = vsel %vm2132, nan, %v2142
        %v2144 = vand.u32 2147483647, %v361
        %vm2145 = vcmp.le.f32.partialorder %v2144, 0.7853982
        %vm2146 = vcmp.lt.s32.totalorder %v361, 0
        %v2147 = vand.u32 %v361, 2139095040
        %v2148 = vshrl.u32 %v2147, 23
        %v2149 = vsub.s32 %v2148, 127
        %v2150 = vand.u32 2147483647, %v361
        %v2151 = vand.u32 %v2150, 8388607
        %v2152 = vor.u32 %v2151, 8388608
        %v2153 = vsub.s32 0, %v2152
        %v2154 = vadd.s32 %v2149, 1
        %vm2155 = vcmp.gt.s32.totalorder %v2154, 0
        %v2156 = vsel %vm2155, %v2154, 0
        %v2157 = vshrl.u32 %v2156, 5
        %v2158 = vand.u32 %v2156, 31
        %v2159 = vsub.s32 32, %v2158
        %v2160 = vshrl.u32 683565275, %v2159
        %v2161 = vshll.u32 683565275, %v2158
        %v2162 = vshrl.u32 2475754826, %v2159
        %v2163 = vor.u32 %v2161, %v2162
        %v2164 = vshll.u32 2475754826, %v2158
        %v2165 = vshrl.u32 2131351028, %v2159
        %v2166 = vor.u32 %v2164, %v2165
        %v2167 = vshll.u32 2131351028, %v2158
        %v2168 = vshrl.u32 2102212464, %v2159
        %v2169 = vor.u32 %v2167, %v2168
        %v2170 = vshll.u32 2102212464, %v2158
        %v2171 = vshrl.u32 920167782, %v2159
        %v2172 = vor.u32 %v2170, %v2171
        %v2173 = vshll.u32 920167782, %v2158
        %v2174 = vshrl.u32 1326507024, %v2159
        %v2175 = vor.u32 %v2173, %v2174
        %vm2176 = vcmp.lt.s32.totalorder %v2157, 1
        %vm2177 = vcmp.lt.s32.totalorder %v2157, 2
        %vm2178 = vcmp.lt.s32.totalorder %v2157, 3
        %vm2179 = vcmp.lt.s32.totalorder %v2157, 4
        %v2180 = vsel %vm2176, %v2160, %v2163
        %v2181 = vsel %vm2179, %v2169, 2102212464
        %v2182 = vsel %vm2178, %v2166, %v2181
        %v2183 = vsel %vm2177, %v2180, %v2182
        %v2184 = vsel %vm2176, %v2163, %v2166
        %v2185 = vsel %vm2179, %v2172, 920167782
        %v2186 = vsel %vm2178, %v2169, %v2185
        %v2187 = vsel %vm2177, %v2184, %v2186
        %v2188 = vsel %vm2176, %v2166, %v2169
        %v2189 = vsel %vm2179, %v2175, 1326507024
        %v2190 = vsel %vm2178, %v2172, %v2189
        %v2191 = vsel %vm2177, %v2188, %v2190
        %v2192 = vshll.u32 %v2152, 8
        %v2193 = vmul.u32.u64.compose %v2192, %v2191
        %v2194 = vextract.low.u32 %v2193
        %v2195 = vextract.high.u32 %v2193
        %v2196 = vmul.u32.u64.compose %v2192, %v2187
        %v2197 = vextract.low.u32 %v2196
        %v2198 = vextract.high.u32 %v2196
        %v2199 = vmul.u32 %v2192, %v2183
        %v2200 = vadd.s32 %v2195, %v2197
        %vm2201 = vc.u32 %v2195, %v2197
        %v2202 = vadd.s32 %v2198, 1
        %v2203 = vsel %vm2201, %v2202, %v2198
        %v2204 = vadd.s32 %v2199, %v2203
        %v2205 = vadd.s32 %v2204, 536870912
        %v2206 = vshrl.u32 %v2205, 30
        %v2207 = vshll.u32 %v2206, 30
        %v2208 = vsub.s32 %v2204, %v2207
        %vm2209 = vcmp.lt.s32.totalorder %v2208, 0
        %v2210 = vsub.s32 0, %v2208
        %v2211 = vsel %vm2209, %v2210, %v2208
        %v2212 = vclz %v2211
        %v2213 = vsub.s32 %v2212, 2
        %vm2214 = vcmp.gt.s32.totalorder 0, %v2213
        %v2215 = vsel %vm2214, 0, %v2213
        %v2216 = vsub.s32 32, %v2215
        %v2217 = vshll.u32 %v2208, %v2215
        %v2218 = vshrl.u32 %v2200, %v2216
        %v2219 = vor.u32 %v2217, %v2218
        %v2220 = vsub.s32 4294967266, %v2215
        %v2221 = vadd.s32 %v2220, 127
        %v2222 = vshll.u32 %v2221, 23
        %v2223 = vor.u32 4788187, %v2222
        %v2224 = vand.u32 2147483647, %v2223
        %v2226 = vcvt.s32.f32 %v2219
        %v2227 = vmul.f32 %v2226, %v2224
        %v2228 = vxor.u32 %v2227, 2147483648
        %v2229 = vsel %vm2146, %v2228, %v2227
        %v2230 = vsub.s32 4, %v2206
        %v2231 = vsel %vm2146, %v2230, %v2206
        %v2232 = vsel %vm2145, %v361, %v2229
        %v2233 = vsel %vm2145, 0, %v2231
        %v2234 = vcosq.f32.pop %v2232
        %v2235 = vsinq.f32.pop %v2232
        %vm2236 = vweird.f32 %v361
        %v2237 = vadd.s32 %v2233, 3
        %v2238 = vand.u32 %v2237, 3
        %vm2239 = vcmp.lt.s32.totalorder %v2238, 2
        %vm2240 = vcmp.eq.s32.totalorder %v2238, 0
        %v2241 = vxor.u32 %v2235, 2147483648
        %v2242 = vsel %vm2240, %v2234, %v2241
        %vm2243 = vcmp.eq.s32.totalorder %v2238, 2
        %v2244 = vxor.u32 %v2234, 2147483648
        %v2245 = vsel %vm2243, %v2244, %v2235
        %v2246 = vsel %vm2239, %v2242, %v2245
        %v2247 = vsel %vm2236, nan, %v2246
        %v2248 = vand.u32 2147483647, %v362
        %vm2249 = vcmp.le.f32.partialorder %v2248, 0.7853982
        %vm2250 = vcmp.lt.s32.totalorder %v362, 0
        %v2251 = vand.u32 %v362, 2139095040
        %v2252 = vshrl.u32 %v2251, 23
        %v2253 = vsub.s32 %v2252, 127
        %v2254 = vand.u32 2147483647, %v362
        %v2255 = vand.u32 %v2254, 8388607
        %v2256 = vor.u32 %v2255, 8388608
        %v2257 = vsub.s32 0, %v2256
        %v2258 = vadd.s32 %v2253, 1
        %vm2259 = vcmp.gt.s32.totalorder %v2258, 0
        %v2260 = vsel %vm2259, %v2258, 0
        %v2261 = vshrl.u32 %v2260, 5
        %v2262 = vand.u32 %v2260, 31
        %v2263 = vsub.s32 32, %v2262
        %v2264 = vshrl.u32 683565275, %v2263
        %v2265 = vshll.u32 683565275, %v2262
        %v2266 = vshrl.u32 2475754826, %v2263
        %v2267 = vor.u32 %v2265, %v2266
        %v2268 = vshll.u32 2475754826, %v2262
        %v2269 = vshrl.u32 2131351028, %v2263
        %v2270 = vor.u32 %v2268, %v2269
        %v2271 = vshll.u32 2131351028, %v2262
        %v2272 = vshrl.u32 2102212464, %v2263
        %v2273 = vor.u32 %v2271, %v2272
        %v2274 = vshll.u32 2102212464, %v2262
        %v2275 = vshrl.u32 920167782, %v2263
        %v2276 = vor.u32 %v2274, %v2275
        %v2277 = vshll.u32 920167782, %v2262
        %v2278 = vshrl.u32 1326507024, %v2263
        %v2279 = vor.u32 %v2277, %v2278
        %vm2280 = vcmp.lt.s32.totalorder %v2261, 1
        %vm2281 = vcmp.lt.s32.totalorder %v2261, 2
        %vm2282 = vcmp.lt.s32.totalorder %v2261, 3
        %vm2283 = vcmp.lt.s32.totalorder %v2261, 4
        %v2284 = vsel %vm2280, %v2264, %v2267
        %v2285 = vsel %vm2283, %v2273, 2102212464
        %v2286 = vsel %vm2282, %v2270, %v2285
        %v2287 = vsel %vm2281, %v2284, %v2286
        %v2288 = vsel %vm2280, %v2267, %v2270
        %v2289 = vsel %vm2283, %v2276, 920167782
        %v2290 = vsel %vm2282, %v2273, %v2289
        %v2291 = vsel %vm2281, %v2288, %v2290
        %v2292 = vsel %vm2280, %v2270, %v2273
        %v2293 = vsel %vm2283, %v2279, 1326507024
        %v2294 = vsel %vm2282, %v2276, %v2293
        %v2295 = vsel %vm2281, %v2292, %v2294
        %v2296 = vshll.u32 %v2256, 8
        %v2297 = vmul.u32.u64.compose %v2296, %v2295
        %v2298 = vextract.low.u32 %v2297
        %v2299 = vextract.high.u32 %v2297
        %v2300 = vmul.u32.u64.compose %v2296, %v2291
        %v2301 = vextract.low.u32 %v2300
        %v2302 = vextract.high.u32 %v2300
        %v2303 = vmul.u32 %v2296, %v2287
        %v2304 = vadd.s32 %v2299, %v2301
        %vm2305 = vc.u32 %v2299, %v2301
        %v2306 = vadd.s32 %v2302, 1
        %v2307 = vsel %vm2305, %v2306, %v2302
        %v2308 = vadd.s32 %v2303, %v2307
        %v2309 = vadd.s32 %v2308, 536870912
        %v2310 = vshrl.u32 %v2309, 30
        %v2311 = vshll.u32 %v2310, 30
        %v2312 = vsub.s32 %v2308, %v2311
        %vm2313 = vcmp.lt.s32.totalorder %v2312, 0
        %v2314 = vsub.s32 0, %v2312
        %v2315 = vsel %vm2313, %v2314, %v2312
        %v2316 = vclz %v2315
        %v2317 = vsub.s32 %v2316, 2
        %vm2318 = vcmp.gt.s32.totalorder 0, %v2317
        %v2319 = vsel %vm2318, 0, %v2317
        %v2320 = vsub.s32 32, %v2319
        %v2321 = vshll.u32 %v2312, %v2319
        %v2322 = vshrl.u32 %v2304, %v2320
        %v2323 = vor.u32 %v2321, %v2322
        %v2324 = vsub.s32 4294967266, %v2319
        %v2325 = vadd.s32 %v2324, 127
        %v2326 = vshll.u32 %v2325, 23
        %v2327 = vor.u32 4788187, %v2326
        %v2328 = vand.u32 2147483647, %v2327
        %v2330 = vcvt.s32.f32 %v2323
        %v2331 = vmul.f32 %v2330, %v2328
        %v2332 = vxor.u32 %v2331, 2147483648
        %v2333 = vsel %vm2250, %v2332, %v2331
        %v2334 = vsub.s32 4, %v2310
        %v2335 = vsel %vm2250, %v2334, %v2310
        %v2336 = vsel %vm2249, %v362, %v2333
        %v2337 = vsel %vm2249, 0, %v2335
        %v2338 = vcosq.f32.pop %v2336
        %v2339 = vsinq.f32.pop %v2336
        %vm2340 = vweird.f32 %v362
        %v2341 = vadd.s32 %v2337, 3
        %v2342 = vand.u32 %v2341, 3
        %vm2343 = vcmp.lt.s32.totalorder %v2342, 2
        %vm2344 = vcmp.eq.s32.totalorder %v2342, 0
        %v2345 = vxor.u32 %v2339, 2147483648
        %v2346 = vsel %vm2344, %v2338, %v2345
        %vm2347 = vcmp.eq.s32.totalorder %v2342, 2
        %v2348 = vxor.u32 %v2338, 2147483648
        %v2349 = vsel %vm2347, %v2348, %v2339
        %v2350 = vsel %vm2343, %v2346, %v2349
        %v2351 = vsel %vm2340, nan, %v2350
        %v2352 = vand.u32 2147483647, %v363
        %vm2353 = vcmp.le.f32.partialorder %v2352, 0.7853982
        %vm2354 = vcmp.lt.s32.totalorder %v363, 0
        %v2355 = vand.u32 %v363, 2139095040
        %v2356 = vshrl.u32 %v2355, 23
        %v2357 = vsub.s32 %v2356, 127
        %v2358 = vand.u32 2147483647, %v363
        %v2359 = vand.u32 %v2358, 8388607
        %v2360 = vor.u32 %v2359, 8388608
        %v2361 = vsub.s32 0, %v2360
        %v2362 = vadd.s32 %v2357, 1
        %vm2363 = vcmp.gt.s32.totalorder %v2362, 0
        %v2364 = vsel %vm2363, %v2362, 0
        %v2365 = vshrl.u32 %v2364, 5
        %v2366 = vand.u32 %v2364, 31
        %v2367 = vsub.s32 32, %v2366
        %v2368 = vshrl.u32 683565275, %v2367
        %v2369 = vshll.u32 683565275, %v2366
        %v2370 = vshrl.u32 2475754826, %v2367
        %v2371 = vor.u32 %v2369, %v2370
        %v2372 = vshll.u32 2475754826, %v2366
        %v2373 = vshrl.u32 2131351028, %v2367
        %v2374 = vor.u32 %v2372, %v2373
        %v2375 = vshll.u32 2131351028, %v2366
        %v2376 = vshrl.u32 2102212464, %v2367
        %v2377 = vor.u32 %v2375, %v2376
        %v2378 = vshll.u32 2102212464, %v2366
        %v2379 = vshrl.u32 920167782, %v2367
        %v2380 = vor.u32 %v2378, %v2379
        %v2381 = vshll.u32 920167782, %v2366
        %v2382 = vshrl.u32 1326507024, %v2367
        %v2383 = vor.u32 %v2381, %v2382
        %vm2384 = vcmp.lt.s32.totalorder %v2365, 1
        %vm2385 = vcmp.lt.s32.totalorder %v2365, 2
        %vm2386 = vcmp.lt.s32.totalorder %v2365, 3
        %vm2387 = vcmp.lt.s32.totalorder %v2365, 4
        %v2388 = vsel %vm2384, %v2368, %v2371
        %v2389 = vsel %vm2387, %v2377, 2102212464
        %v2390 = vsel %vm2386, %v2374, %v2389
        %v2391 = vsel %vm2385, %v2388, %v2390
        %v2392 = vsel %vm2384, %v2371, %v2374
        %v2393 = vsel %vm2387, %v2380, 920167782
        %v2394 = vsel %vm2386, %v2377, %v2393
        %v2395 = vsel %vm2385, %v2392, %v2394
        %v2396 = vsel %vm2384, %v2374, %v2377
        %v2397 = vsel %vm2387, %v2383, 1326507024
        %v2398 = vsel %vm2386, %v2380, %v2397
        %v2399 = vsel %vm2385, %v2396, %v2398
        %v2400 = vshll.u32 %v2360, 8
        %v2401 = vmul.u32.u64.compose %v2400, %v2399
        %v2402 = vextract.low.u32 %v2401
        %v2403 = vextract.high.u32 %v2401
        %v2404 = vmul.u32.u64.compose %v2400, %v2395
        %v2405 = vextract.low.u32 %v2404
        %v2406 = vextract.high.u32 %v2404
        %v2407 = vmul.u32 %v2400, %v2391
        %v2408 = vadd.s32 %v2403, %v2405
        %vm2409 = vc.u32 %v2403, %v2405
        %v2410 = vadd.s32 %v2406, 1
        %v2411 = vsel %vm2409, %v2410, %v2406
        %v2412 = vadd.s32 %v2407, %v2411
        %v2413 = vadd.s32 %v2412, 536870912
        %v2414 = vshrl.u32 %v2413, 30
        %v2415 = vshll.u32 %v2414, 30
        %v2416 = vsub.s32 %v2412, %v2415
        %vm2417 = vcmp.lt.s32.totalorder %v2416, 0
        %v2418 = vsub.s32 0, %v2416
        %v2419 = vsel %vm2417, %v2418, %v2416
        %v2420 = vclz %v2419
        %v2421 = vsub.s32 %v2420, 2
        %vm2422 = vcmp.gt.s32.totalorder 0, %v2421
        %v2423 = vsel %vm2422, 0, %v2421
        %v2424 = vsub.s32 32, %v2423
        %v2425 = vshll.u32 %v2416, %v2423
        %v2426 = vshrl.u32 %v2408, %v2424
        %v2427 = vor.u32 %v2425, %v2426
        %v2428 = vsub.s32 4294967266, %v2423
        %v2429 = vadd.s32 %v2428, 127
        %v2430 = vshll.u32 %v2429, 23
        %v2431 = vor.u32 4788187, %v2430
        %v2432 = vand.u32 2147483647, %v2431
        %v2434 = vcvt.s32.f32 %v2427
        %v2435 = vmul.f32 %v2434, %v2432
        %v2436 = vxor.u32 %v2435, 2147483648
        %v2437 = vsel %vm2354, %v2436, %v2435
        %v2438 = vsub.s32 4, %v2414
        %v2439 = vsel %vm2354, %v2438, %v2414
        %v2440 = vsel %vm2353, %v363, %v2437
        %v2441 = vsel %vm2353, 0, %v2439
        %v2442 = vcosq.f32.pop %v2440
        %v2443 = vsinq.f32.pop %v2440
        %vm2444 = vweird.f32 %v363
        %v2445 = vadd.s32 %v2441, 3
        %v2446 = vand.u32 %v2445, 3
        %vm2447 = vcmp.lt.s32.totalorder %v2446, 2
        %vm2448 = vcmp.eq.s32.totalorder %v2446, 0
        %v2449 = vxor.u32 %v2443, 2147483648
        %v2450 = vsel %vm2448, %v2442, %v2449
        %vm2451 = vcmp.eq.s32.totalorder %v2446, 2
        %v2452 = vxor.u32 %v2442, 2147483648
        %v2453 = vsel %vm2451, %v2452, %v2443
        %v2454 = vsel %vm2447, %v2450, %v2453
        %v2455 = vsel %vm2444, nan, %v2454
        %v2456 = vand.u32 2147483647, %v364
        %vm2457 = vcmp.le.f32.partialorder %v2456, 0.7853982
        %vm2458 = vcmp.lt.s32.totalorder %v364, 0
        %v2459 = vand.u32 %v364, 2139095040
        %v2460 = vshrl.u32 %v2459, 23
        %v2461 = vsub.s32 %v2460, 127
        %v2462 = vand.u32 2147483647, %v364
        %v2463 = vand.u32 %v2462, 8388607
        %v2464 = vor.u32 %v2463, 8388608
        %v2465 = vsub.s32 0, %v2464
        %v2466 = vadd.s32 %v2461, 1
        %vm2467 = vcmp.gt.s32.totalorder %v2466, 0
        %v2468 = vsel %vm2467, %v2466, 0
        %v2469 = vshrl.u32 %v2468, 5
        %v2470 = vand.u32 %v2468, 31
        %v2471 = vsub.s32 32, %v2470
        %v2472 = vshrl.u32 683565275, %v2471
        %v2473 = vshll.u32 683565275, %v2470
        %v2474 = vshrl.u32 2475754826, %v2471
        %v2475 = vor.u32 %v2473, %v2474
        %v2476 = vshll.u32 2475754826, %v2470
        %v2477 = vshrl.u32 2131351028, %v2471
        %v2478 = vor.u32 %v2476, %v2477
        %v2479 = vshll.u32 2131351028, %v2470
        %v2480 = vshrl.u32 2102212464, %v2471
        %v2481 = vor.u32 %v2479, %v2480
        %v2482 = vshll.u32 2102212464, %v2470
        %v2483 = vshrl.u32 920167782, %v2471
        %v2484 = vor.u32 %v2482, %v2483
        %v2485 = vshll.u32 920167782, %v2470
        %v2486 = vshrl.u32 1326507024, %v2471
        %v2487 = vor.u32 %v2485, %v2486
        %vm2488 = vcmp.lt.s32.totalorder %v2469, 1
        %vm2489 = vcmp.lt.s32.totalorder %v2469, 2
        %vm2490 = vcmp.lt.s32.totalorder %v2469, 3
        %vm2491 = vcmp.lt.s32.totalorder %v2469, 4
        %v2492 = vsel %vm2488, %v2472, %v2475
        %v2493 = vsel %vm2491, %v2481, 2102212464
        %v2494 = vsel %vm2490, %v2478, %v2493
        %v2495 = vsel %vm2489, %v2492, %v2494
        %v2496 = vsel %vm2488, %v2475, %v2478
        %v2497 = vsel %vm2491, %v2484, 920167782
        %v2498 = vsel %vm2490, %v2481, %v2497
        %v2499 = vsel %vm2489, %v2496, %v2498
        %v2500 = vsel %vm2488, %v2478, %v2481
        %v2501 = vsel %vm2491, %v2487, 1326507024
        %v2502 = vsel %vm2490, %v2484, %v2501
        %v2503 = vsel %vm2489, %v2500, %v2502
        %v2504 = vshll.u32 %v2464, 8
        %v2505 = vmul.u32.u64.compose %v2504, %v2503
        %v2506 = vextract.low.u32 %v2505
        %v2507 = vextract.high.u32 %v2505
        %v2508 = vmul.u32.u64.compose %v2504, %v2499
        %v2509 = vextract.low.u32 %v2508
        %v2510 = vextract.high.u32 %v2508
        %v2511 = vmul.u32 %v2504, %v2495
        %v2512 = vadd.s32 %v2507, %v2509
        %vm2513 = vc.u32 %v2507, %v2509
        %v2514 = vadd.s32 %v2510, 1
        %v2515 = vsel %vm2513, %v2514, %v2510
        %v2516 = vadd.s32 %v2511, %v2515
        %v2517 = vadd.s32 %v2516, 536870912
        %v2518 = vshrl.u32 %v2517, 30
        %v2519 = vshll.u32 %v2518, 30
        %v2520 = vsub.s32 %v2516, %v2519
        %vm2521 = vcmp.lt.s32.totalorder %v2520, 0
        %v2522 = vsub.s32 0, %v2520
        %v2523 = vsel %vm2521, %v2522, %v2520
        %v2524 = vclz %v2523
        %v2525 = vsub.s32 %v2524, 2
        %vm2526 = vcmp.gt.s32.totalorder 0, %v2525
        %v2527 = vsel %vm2526, 0, %v2525
        %v2528 = vsub.s32 32, %v2527
        %v2529 = vshll.u32 %v2520, %v2527
        %v2530 = vshrl.u32 %v2512, %v2528
        %v2531 = vor.u32 %v2529, %v2530
        %v2532 = vsub.s32 4294967266, %v2527
        %v2533 = vadd.s32 %v2532, 127
        %v2534 = vshll.u32 %v2533, 23
        %v2535 = vor.u32 4788187, %v2534
        %v2536 = vand.u32 2147483647, %v2535
        %v2538 = vcvt.s32.f32 %v2531
        %v2539 = vmul.f32 %v2538, %v2536
        %v2540 = vxor.u32 %v2539, 2147483648
        %v2541 = vsel %vm2458, %v2540, %v2539
        %v2542 = vsub.s32 4, %v2518
        %v2543 = vsel %vm2458, %v2542, %v2518
        %v2544 = vsel %vm2457, %v364, %v2541
        %v2545 = vsel %vm2457, 0, %v2543
        %v2546 = vcosq.f32.pop %v2544
        %v2547 = vsinq.f32.pop %v2544
        %vm2548 = vweird.f32 %v364
        %v2549 = vadd.s32 %v2545, 3
        %v2550 = vand.u32 %v2549, 3
        %vm2551 = vcmp.lt.s32.totalorder %v2550, 2
        %vm2552 = vcmp.eq.s32.totalorder %v2550, 0
        %v2553 = vxor.u32 %v2547, 2147483648
        %v2554 = vsel %vm2552, %v2546, %v2553
        %vm2555 = vcmp.eq.s32.totalorder %v2550, 2
        %v2556 = vxor.u32 %v2546, 2147483648
        %v2557 = vsel %vm2555, %v2556, %v2547
        %v2558 = vsel %vm2551, %v2554, %v2557
        %v2559 = vsel %vm2548, nan, %v2558
        %v2560 = vand.u32 2147483647, %v365
        %vm2561 = vcmp.le.f32.partialorder %v2560, 0.7853982
        %vm2562 = vcmp.lt.s32.totalorder %v365, 0
        %v2563 = vand.u32 %v365, 2139095040
        %v2564 = vshrl.u32 %v2563, 23
        %v2565 = vsub.s32 %v2564, 127
        %v2566 = vand.u32 2147483647, %v365
        %v2567 = vand.u32 %v2566, 8388607
        %v2568 = vor.u32 %v2567, 8388608
        %v2569 = vsub.s32 0, %v2568
        %v2570 = vadd.s32 %v2565, 1
        %vm2571 = vcmp.gt.s32.totalorder %v2570, 0
        %v2572 = vsel %vm2571, %v2570, 0
        %v2573 = vshrl.u32 %v2572, 5
        %v2574 = vand.u32 %v2572, 31
        %v2575 = vsub.s32 32, %v2574
        %v2576 = vshrl.u32 683565275, %v2575
        %v2577 = vshll.u32 683565275, %v2574
        %v2578 = vshrl.u32 2475754826, %v2575
        %v2579 = vor.u32 %v2577, %v2578
        %v2580 = vshll.u32 2475754826, %v2574
        %v2581 = vshrl.u32 2131351028, %v2575
        %v2582 = vor.u32 %v2580, %v2581
        %v2583 = vshll.u32 2131351028, %v2574
        %v2584 = vshrl.u32 2102212464, %v2575
        %v2585 = vor.u32 %v2583, %v2584
        %v2586 = vshll.u32 2102212464, %v2574
        %v2587 = vshrl.u32 920167782, %v2575
        %v2588 = vor.u32 %v2586, %v2587
        %v2589 = vshll.u32 920167782, %v2574
        %v2590 = vshrl.u32 1326507024, %v2575
        %v2591 = vor.u32 %v2589, %v2590
        %vm2592 = vcmp.lt.s32.totalorder %v2573, 1
        %vm2593 = vcmp.lt.s32.totalorder %v2573, 2
        %vm2594 = vcmp.lt.s32.totalorder %v2573, 3
        %vm2595 = vcmp.lt.s32.totalorder %v2573, 4
        %v2596 = vsel %vm2592, %v2576, %v2579
        %v2597 = vsel %vm2595, %v2585, 2102212464
        %v2598 = vsel %vm2594, %v2582, %v2597
        %v2599 = vsel %vm2593, %v2596, %v2598
        %v2600 = vsel %vm2592, %v2579, %v2582
        %v2601 = vsel %vm2595, %v2588, 920167782
        %v2602 = vsel %vm2594, %v2585, %v2601
        %v2603 = vsel %vm2593, %v2600, %v2602
        %v2604 = vsel %vm2592, %v2582, %v2585
        %v2605 = vsel %vm2595, %v2591, 1326507024
        %v2606 = vsel %vm2594, %v2588, %v2605
        %v2607 = vsel %vm2593, %v2604, %v2606
        %v2608 = vshll.u32 %v2568, 8
        %v2609 = vmul.u32.u64.compose %v2608, %v2607
        %v2610 = vextract.low.u32 %v2609
        %v2611 = vextract.high.u32 %v2609
        %v2612 = vmul.u32.u64.compose %v2608, %v2603
        %v2613 = vextract.low.u32 %v2612
        %v2614 = vextract.high.u32 %v2612
        %v2615 = vmul.u32 %v2608, %v2599
        %v2616 = vadd.s32 %v2611, %v2613
        %vm2617 = vc.u32 %v2611, %v2613
        %v2618 = vadd.s32 %v2614, 1
        %v2619 = vsel %vm2617, %v2618, %v2614
        %v2620 = vadd.s32 %v2615, %v2619
        %v2621 = vadd.s32 %v2620, 536870912
        %v2622 = vshrl.u32 %v2621, 30
        %v2623 = vshll.u32 %v2622, 30
        %v2624 = vsub.s32 %v2620, %v2623
        %vm2625 = vcmp.lt.s32.totalorder %v2624, 0
        %v2626 = vsub.s32 0, %v2624
        %v2627 = vsel %vm2625, %v2626, %v2624
        %v2628 = vclz %v2627
        %v2629 = vsub.s32 %v2628, 2
        %vm2630 = vcmp.gt.s32.totalorder 0, %v2629
        %v2631 = vsel %vm2630, 0, %v2629
        %v2632 = vsub.s32 32, %v2631
        %v2633 = vshll.u32 %v2624, %v2631
        %v2634 = vshrl.u32 %v2616, %v2632
        %v2635 = vor.u32 %v2633, %v2634
        %v2636 = vsub.s32 4294967266, %v2631
        %v2637 = vadd.s32 %v2636, 127
        %v2638 = vshll.u32 %v2637, 23
        %v2639 = vor.u32 4788187, %v2638
        %v2640 = vand.u32 2147483647, %v2639
        %v2642 = vcvt.s32.f32 %v2635
        %v2643 = vmul.f32 %v2642, %v2640
        %v2644 = vxor.u32 %v2643, 2147483648
        %v2645 = vsel %vm2562, %v2644, %v2643
        %v2646 = vsub.s32 4, %v2622
        %v2647 = vsel %vm2562, %v2646, %v2622
        %v2648 = vsel %vm2561, %v365, %v2645
        %v2649 = vsel %vm2561, 0, %v2647
        %v2650 = vcosq.f32.pop %v2648
        %v2651 = vsinq.f32.pop %v2648
        %vm2652 = vweird.f32 %v365
        %v2653 = vadd.s32 %v2649, 3
        %v2654 = vand.u32 %v2653, 3
        %vm2655 = vcmp.lt.s32.totalorder %v2654, 2
        %vm2656 = vcmp.eq.s32.totalorder %v2654, 0
        %v2657 = vxor.u32 %v2651, 2147483648
        %v2658 = vsel %vm2656, %v2650, %v2657
        %vm2659 = vcmp.eq.s32.totalorder %v2654, 2
        %v2660 = vxor.u32 %v2650, 2147483648
        %v2661 = vsel %vm2659, %v2660, %v2651
        %v2662 = vsel %vm2655, %v2658, %v2661
        %v2663 = vsel %vm2652, nan, %v2662
        %v2664 = vand.u32 2147483647, %v366
        %vm2665 = vcmp.le.f32.partialorder %v2664, 0.7853982
        %vm2666 = vcmp.lt.s32.totalorder %v366, 0
        %v2667 = vand.u32 %v366, 2139095040
        %v2668 = vshrl.u32 %v2667, 23
        %v2669 = vsub.s32 %v2668, 127
        %v2670 = vand.u32 2147483647, %v366
        %v2671 = vand.u32 %v2670, 8388607
        %v2672 = vor.u32 %v2671, 8388608
        %v2673 = vsub.s32 0, %v2672
        %v2674 = vadd.s32 %v2669, 1
        %vm2675 = vcmp.gt.s32.totalorder %v2674, 0
        %v2676 = vsel %vm2675, %v2674, 0
        %v2677 = vshrl.u32 %v2676, 5
        %v2678 = vand.u32 %v2676, 31
        %v2679 = vsub.s32 32, %v2678
        %v2680 = vshrl.u32 683565275, %v2679
        %v2681 = vshll.u32 683565275, %v2678
        %v2682 = vshrl.u32 2475754826, %v2679
        %v2683 = vor.u32 %v2681, %v2682
        %v2684 = vshll.u32 2475754826, %v2678
        %v2685 = vshrl.u32 2131351028, %v2679
        %v2686 = vor.u32 %v2684, %v2685
        %v2687 = vshll.u32 2131351028, %v2678
        %v2688 = vshrl.u32 2102212464, %v2679
        %v2689 = vor.u32 %v2687, %v2688
        %v2690 = vshll.u32 2102212464, %v2678
        %v2691 = vshrl.u32 920167782, %v2679
        %v2692 = vor.u32 %v2690, %v2691
        %v2693 = vshll.u32 920167782, %v2678
        %v2694 = vshrl.u32 1326507024, %v2679
        %v2695 = vor.u32 %v2693, %v2694
        %vm2696 = vcmp.lt.s32.totalorder %v2677, 1
        %vm2697 = vcmp.lt.s32.totalorder %v2677, 2
        %vm2698 = vcmp.lt.s32.totalorder %v2677, 3
        %vm2699 = vcmp.lt.s32.totalorder %v2677, 4
        %v2700 = vsel %vm2696, %v2680, %v2683
        %v2701 = vsel %vm2699, %v2689, 2102212464
        %v2702 = vsel %vm2698, %v2686, %v2701
        %v2703 = vsel %vm2697, %v2700, %v2702
        %v2704 = vsel %vm2696, %v2683, %v2686
        %v2705 = vsel %vm2699, %v2692, 920167782
        %v2706 = vsel %vm2698, %v2689, %v2705
        %v2707 = vsel %vm2697, %v2704, %v2706
        %v2708 = vsel %vm2696, %v2686, %v2689
        %v2709 = vsel %vm2699, %v2695, 1326507024
        %v2710 = vsel %vm2698, %v2692, %v2709
        %v2711 = vsel %vm2697, %v2708, %v2710
        %v2712 = vshll.u32 %v2672, 8
        %v2713 = vmul.u32.u64.compose %v2712, %v2711
        %v2714 = vextract.low.u32 %v2713
        %v2715 = vextract.high.u32 %v2713
        %v2716 = vmul.u32.u64.compose %v2712, %v2707
        %v2717 = vextract.low.u32 %v2716
        %v2718 = vextract.high.u32 %v2716
        %v2719 = vmul.u32 %v2712, %v2703
        %v2720 = vadd.s32 %v2715, %v2717
        %vm2721 = vc.u32 %v2715, %v2717
        %v2722 = vadd.s32 %v2718, 1
        %v2723 = vsel %vm2721, %v2722, %v2718
        %v2724 = vadd.s32 %v2719, %v2723
        %v2725 = vadd.s32 %v2724, 536870912
        %v2726 = vshrl.u32 %v2725, 30
        %v2727 = vshll.u32 %v2726, 30
        %v2728 = vsub.s32 %v2724, %v2727
        %vm2729 = vcmp.lt.s32.totalorder %v2728, 0
        %v2730 = vsub.s32 0, %v2728
        %v2731 = vsel %vm2729, %v2730, %v2728
        %v2732 = vclz %v2731
        %v2733 = vsub.s32 %v2732, 2
        %vm2734 = vcmp.gt.s32.totalorder 0, %v2733
        %v2735 = vsel %vm2734, 0, %v2733
        %v2736 = vsub.s32 32, %v2735
        %v2737 = vshll.u32 %v2728, %v2735
        %v2738 = vshrl.u32 %v2720, %v2736
        %v2739 = vor.u32 %v2737, %v2738
        %v2740 = vsub.s32 4294967266, %v2735
        %v2741 = vadd.s32 %v2740, 127
        %v2742 = vshll.u32 %v2741, 23
        %v2743 = vor.u32 4788187, %v2742
        %v2744 = vand.u32 2147483647, %v2743
        %v2746 = vcvt.s32.f32 %v2739
        %v2747 = vmul.f32 %v2746, %v2744
        %v2748 = vxor.u32 %v2747, 2147483648
        %v2749 = vsel %vm2666, %v2748, %v2747
        %v2750 = vsub.s32 4, %v2726
        %v2751 = vsel %vm2666, %v2750, %v2726
        %v2752 = vsel %vm2665, %v366, %v2749
        %v2753 = vsel %vm2665, 0, %v2751
        %v2754 = vcosq.f32.pop %v2752
        %v2755 = vsinq.f32.pop %v2752
        %vm2756 = vweird.f32 %v366
        %v2757 = vadd.s32 %v2753, 3
        %v2758 = vand.u32 %v2757, 3
        %vm2759 = vcmp.lt.s32.totalorder %v2758, 2
        %vm2760 = vcmp.eq.s32.totalorder %v2758, 0
        %v2761 = vxor.u32 %v2755, 2147483648
        %v2762 = vsel %vm2760, %v2754, %v2761
        %vm2763 = vcmp.eq.s32.totalorder %v2758, 2
        %v2764 = vxor.u32 %v2754, 2147483648
        %v2765 = vsel %vm2763, %v2764, %v2755
        %v2766 = vsel %vm2759, %v2762, %v2765
        %v2767 = vsel %vm2756, nan, %v2766
        %v2768 = vand.u32 2147483647, %v367
        %vm2769 = vcmp.le.f32.partialorder %v2768, 0.7853982
        %vm2770 = vcmp.lt.s32.totalorder %v367, 0
        %v2771 = vand.u32 %v367, 2139095040
        %v2772 = vshrl.u32 %v2771, 23
        %v2773 = vsub.s32 %v2772, 127
        %v2774 = vand.u32 2147483647, %v367
        %v2775 = vand.u32 %v2774, 8388607
        %v2776 = vor.u32 %v2775, 8388608
        %v2777 = vsub.s32 0, %v2776
        %v2778 = vadd.s32 %v2773, 1
        %vm2779 = vcmp.gt.s32.totalorder %v2778, 0
        %v2780 = vsel %vm2779, %v2778, 0
        %v2781 = vshrl.u32 %v2780, 5
        %v2782 = vand.u32 %v2780, 31
        %v2783 = vsub.s32 32, %v2782
        %v2784 = vshrl.u32 683565275, %v2783
        %v2785 = vshll.u32 683565275, %v2782
        %v2786 = vshrl.u32 2475754826, %v2783
        %v2787 = vor.u32 %v2785, %v2786
        %v2788 = vshll.u32 2475754826, %v2782
        %v2789 = vshrl.u32 2131351028, %v2783
        %v2790 = vor.u32 %v2788, %v2789
        %v2791 = vshll.u32 2131351028, %v2782
        %v2792 = vshrl.u32 2102212464, %v2783
        %v2793 = vor.u32 %v2791, %v2792
        %v2794 = vshll.u32 2102212464, %v2782
        %v2795 = vshrl.u32 920167782, %v2783
        %v2796 = vor.u32 %v2794, %v2795
        %v2797 = vshll.u32 920167782, %v2782
        %v2798 = vshrl.u32 1326507024, %v2783
        %v2799 = vor.u32 %v2797, %v2798
        %vm2800 = vcmp.lt.s32.totalorder %v2781, 1
        %vm2801 = vcmp.lt.s32.totalorder %v2781, 2
        %vm2802 = vcmp.lt.s32.totalorder %v2781, 3
        %vm2803 = vcmp.lt.s32.totalorder %v2781, 4
        %v2804 = vsel %vm2800, %v2784, %v2787
        %v2805 = vsel %vm2803, %v2793, 2102212464
        %v2806 = vsel %vm2802, %v2790, %v2805
        %v2807 = vsel %vm2801, %v2804, %v2806
        %v2808 = vsel %vm2800, %v2787, %v2790
        %v2809 = vsel %vm2803, %v2796, 920167782
        %v2810 = vsel %vm2802, %v2793, %v2809
        %v2811 = vsel %vm2801, %v2808, %v2810
        %v2812 = vsel %vm2800, %v2790, %v2793
        %v2813 = vsel %vm2803, %v2799, 1326507024
        %v2814 = vsel %vm2802, %v2796, %v2813
        %v2815 = vsel %vm2801, %v2812, %v2814
        %v2816 = vshll.u32 %v2776, 8
        %v2817 = vmul.u32.u64.compose %v2816, %v2815
        %v2818 = vextract.low.u32 %v2817
        %v2819 = vextract.high.u32 %v2817
        %v2820 = vmul.u32.u64.compose %v2816, %v2811
        %v2821 = vextract.low.u32 %v2820
        %v2822 = vextract.high.u32 %v2820
        %v2823 = vmul.u32 %v2816, %v2807
        %v2824 = vadd.s32 %v2819, %v2821
        %vm2825 = vc.u32 %v2819, %v2821
        %v2826 = vadd.s32 %v2822, 1
        %v2827 = vsel %vm2825, %v2826, %v2822
        %v2828 = vadd.s32 %v2823, %v2827
        %v2829 = vadd.s32 %v2828, 536870912
        %v2830 = vshrl.u32 %v2829, 30
        %v2831 = vshll.u32 %v2830, 30
        %v2832 = vsub.s32 %v2828, %v2831
        %vm2833 = vcmp.lt.s32.totalorder %v2832, 0
        %v2834 = vsub.s32 0, %v2832
        %v2835 = vsel %vm2833, %v2834, %v2832
        %v2836 = vclz %v2835
        %v2837 = vsub.s32 %v2836, 2
        %vm2838 = vcmp.gt.s32.totalorder 0, %v2837
        %v2839 = vsel %vm2838, 0, %v2837
        %v2840 = vsub.s32 32, %v2839
        %v2841 = vshll.u32 %v2832, %v2839
        %v2842 = vshrl.u32 %v2824, %v2840
        %v2843 = vor.u32 %v2841, %v2842
        %v2844 = vsub.s32 4294967266, %v2839
        %v2845 = vadd.s32 %v2844, 127
        %v2846 = vshll.u32 %v2845, 23
        %v2847 = vor.u32 4788187, %v2846
        %v2848 = vand.u32 2147483647, %v2847
        %v2850 = vcvt.s32.f32 %v2843
        %v2851 = vmul.f32 %v2850, %v2848
        %v2852 = vxor.u32 %v2851, 2147483648
        %v2853 = vsel %vm2770, %v2852, %v2851
        %v2854 = vsub.s32 4, %v2830
        %v2855 = vsel %vm2770, %v2854, %v2830
        %v2856 = vsel %vm2769, %v367, %v2853
        %v2857 = vsel %vm2769, 0, %v2855
        %v2858 = vcosq.f32.pop %v2856
        %v2859 = vsinq.f32.pop %v2856
        %vm2860 = vweird.f32 %v367
        %v2861 = vadd.s32 %v2857, 3
        %v2862 = vand.u32 %v2861, 3
        %vm2863 = vcmp.lt.s32.totalorder %v2862, 2
        %vm2864 = vcmp.eq.s32.totalorder %v2862, 0
        %v2865 = vxor.u32 %v2859, 2147483648
        %v2866 = vsel %vm2864, %v2858, %v2865
        %vm2867 = vcmp.eq.s32.totalorder %v2862, 2
        %v2868 = vxor.u32 %v2858, 2147483648
        %v2869 = vsel %vm2867, %v2868, %v2859
        %v2870 = vsel %vm2863, %v2866, %v2869
        %v2871 = vsel %vm2860, nan, %v2870
        %v2872 = vand.u32 2147483647, %v368
        %vm2873 = vcmp.le.f32.partialorder %v2872, 0.7853982
        %vm2874 = vcmp.lt.s32.totalorder %v368, 0
        %v2875 = vand.u32 %v368, 2139095040
        %v2876 = vshrl.u32 %v2875, 23
        %v2877 = vsub.s32 %v2876, 127
        %v2878 = vand.u32 2147483647, %v368
        %v2879 = vand.u32 %v2878, 8388607
        %v2880 = vor.u32 %v2879, 8388608
        %v2881 = vsub.s32 0, %v2880
        %v2882 = vadd.s32 %v2877, 1
        %vm2883 = vcmp.gt.s32.totalorder %v2882, 0
        %v2884 = vsel %vm2883, %v2882, 0
        %v2885 = vshrl.u32 %v2884, 5
        %v2886 = vand.u32 %v2884, 31
        %v2887 = vsub.s32 32, %v2886
        %v2888 = vshrl.u32 683565275, %v2887
        %v2889 = vshll.u32 683565275, %v2886
        %v2890 = vshrl.u32 2475754826, %v2887
        %v2891 = vor.u32 %v2889, %v2890
        %v2892 = vshll.u32 2475754826, %v2886
        %v2893 = vshrl.u32 2131351028, %v2887
        %v2894 = vor.u32 %v2892, %v2893
        %v2895 = vshll.u32 2131351028, %v2886
        %v2896 = vshrl.u32 2102212464, %v2887
        %v2897 = vor.u32 %v2895, %v2896
        %v2898 = vshll.u32 2102212464, %v2886
        %v2899 = vshrl.u32 920167782, %v2887
        %v2900 = vor.u32 %v2898, %v2899
        %v2901 = vshll.u32 920167782, %v2886
        %v2902 = vshrl.u32 1326507024, %v2887
        %v2903 = vor.u32 %v2901, %v2902
        %vm2904 = vcmp.lt.s32.totalorder %v2885, 1
        %vm2905 = vcmp.lt.s32.totalorder %v2885, 2
        %vm2906 = vcmp.lt.s32.totalorder %v2885, 3
        %vm2907 = vcmp.lt.s32.totalorder %v2885, 4
        %v2908 = vsel %vm2904, %v2888, %v2891
        %v2909 = vsel %vm2907, %v2897, 2102212464
        %v2910 = vsel %vm2906, %v2894, %v2909
        %v2911 = vsel %vm2905, %v2908, %v2910
        %v2912 = vsel %vm2904, %v2891, %v2894
        %v2913 = vsel %vm2907, %v2900, 920167782
        %v2914 = vsel %vm2906, %v2897, %v2913
        %v2915 = vsel %vm2905, %v2912, %v2914
        %v2916 = vsel %vm2904, %v2894, %v2897
        %v2917 = vsel %vm2907, %v2903, 1326507024
        %v2918 = vsel %vm2906, %v2900, %v2917
        %v2919 = vsel %vm2905, %v2916, %v2918
        %v2920 = vshll.u32 %v2880, 8
        %v2921 = vmul.u32.u64.compose %v2920, %v2919
        %v2922 = vextract.low.u32 %v2921
        %v2923 = vextract.high.u32 %v2921
        %v2924 = vmul.u32.u64.compose %v2920, %v2915
        %v2925 = vextract.low.u32 %v2924
        %v2926 = vextract.high.u32 %v2924
        %v2927 = vmul.u32 %v2920, %v2911
        %v2928 = vadd.s32 %v2923, %v2925
        %vm2929 = vc.u32 %v2923, %v2925
        %v2930 = vadd.s32 %v2926, 1
        %v2931 = vsel %vm2929, %v2930, %v2926
        %v2932 = vadd.s32 %v2927, %v2931
        %v2933 = vadd.s32 %v2932, 536870912
        %v2934 = vshrl.u32 %v2933, 30
        %v2935 = vshll.u32 %v2934, 30
        %v2936 = vsub.s32 %v2932, %v2935
        %vm2937 = vcmp.lt.s32.totalorder %v2936, 0
        %v2938 = vsub.s32 0, %v2936
        %v2939 = vsel %vm2937, %v2938, %v2936
        %v2940 = vclz %v2939
        %v2941 = vsub.s32 %v2940, 2
        %vm2942 = vcmp.gt.s32.totalorder 0, %v2941
        %v2943 = vsel %vm2942, 0, %v2941
        %v2944 = vsub.s32 32, %v2943
        %v2945 = vshll.u32 %v2936, %v2943
        %v2946 = vshrl.u32 %v2928, %v2944
        %v2947 = vor.u32 %v2945, %v2946
        %v2948 = vsub.s32 4294967266, %v2943
        %v2949 = vadd.s32 %v2948, 127
        %v2950 = vshll.u32 %v2949, 23
        %v2951 = vor.u32 4788187, %v2950
        %v2952 = vand.u32 2147483647, %v2951
        %v2954 = vcvt.s32.f32 %v2947
        %v2955 = vmul.f32 %v2954, %v2952
        %v2956 = vxor.u32 %v2955, 2147483648
        %v2957 = vsel %vm2874, %v2956, %v2955
        %v2958 = vsub.s32 4, %v2934
        %v2959 = vsel %vm2874, %v2958, %v2934
        %v2960 = vsel %vm2873, %v368, %v2957
        %v2961 = vsel %vm2873, 0, %v2959
        %v2962 = vcosq.f32.pop %v2960
        %v2963 = vsinq.f32.pop %v2960
        %vm2964 = vweird.f32 %v368
        %v2965 = vadd.s32 %v2961, 3
        %v2966 = vand.u32 %v2965, 3
        %vm2967 = vcmp.lt.s32.totalorder %v2966, 2
        %vm2968 = vcmp.eq.s32.totalorder %v2966, 0
        %v2969 = vxor.u32 %v2963, 2147483648
        %v2970 = vsel %vm2968, %v2962, %v2969
        %vm2971 = vcmp.eq.s32.totalorder %v2966, 2
        %v2972 = vxor.u32 %v2962, 2147483648
        %v2973 = vsel %vm2971, %v2972, %v2963
        %v2974 = vsel %vm2967, %v2970, %v2973
        %v2975 = vsel %vm2964, nan, %v2974
        %v2976 = vand.u32 2147483647, %v369
        %vm2977 = vcmp.le.f32.partialorder %v2976, 0.7853982
        %vm2978 = vcmp.lt.s32.totalorder %v369, 0
        %v2979 = vand.u32 %v369, 2139095040
        %v2980 = vshrl.u32 %v2979, 23
        %v2981 = vsub.s32 %v2980, 127
        %v2982 = vand.u32 2147483647, %v369
        %v2983 = vand.u32 %v2982, 8388607
        %v2984 = vor.u32 %v2983, 8388608
        %v2985 = vsub.s32 0, %v2984
        %v2986 = vadd.s32 %v2981, 1
        %vm2987 = vcmp.gt.s32.totalorder %v2986, 0
        %v2988 = vsel %vm2987, %v2986, 0
        %v2989 = vshrl.u32 %v2988, 5
        %v2990 = vand.u32 %v2988, 31
        %v2991 = vsub.s32 32, %v2990
        %v2992 = vshrl.u32 683565275, %v2991
        %v2993 = vshll.u32 683565275, %v2990
        %v2994 = vshrl.u32 2475754826, %v2991
        %v2995 = vor.u32 %v2993, %v2994
        %v2996 = vshll.u32 2475754826, %v2990
        %v2997 = vshrl.u32 2131351028, %v2991
        %v2998 = vor.u32 %v2996, %v2997
        %v2999 = vshll.u32 2131351028, %v2990
        %v3000 = vshrl.u32 2102212464, %v2991
        %v3001 = vor.u32 %v2999, %v3000
        %v3002 = vshll.u32 2102212464, %v2990
        %v3003 = vshrl.u32 920167782, %v2991
        %v3004 = vor.u32 %v3002, %v3003
        %v3005 = vshll.u32 920167782, %v2990
        %v3006 = vshrl.u32 1326507024, %v2991
        %v3007 = vor.u32 %v3005, %v3006
        %vm3008 = vcmp.lt.s32.totalorder %v2989, 1
        %vm3009 = vcmp.lt.s32.totalorder %v2989, 2
        %vm3010 = vcmp.lt.s32.totalorder %v2989, 3
        %vm3011 = vcmp.lt.s32.totalorder %v2989, 4
        %v3012 = vsel %vm3008, %v2992, %v2995
        %v3013 = vsel %vm3011, %v3001, 2102212464
        %v3014 = vsel %vm3010, %v2998, %v3013
        %v3015 = vsel %vm3009, %v3012, %v3014
        %v3016 = vsel %vm3008, %v2995, %v2998
        %v3017 = vsel %vm3011, %v3004, 920167782
        %v3018 = vsel %vm3010, %v3001, %v3017
        %v3019 = vsel %vm3009, %v3016, %v3018
        %v3020 = vsel %vm3008, %v2998, %v3001
        %v3021 = vsel %vm3011, %v3007, 1326507024
        %v3022 = vsel %vm3010, %v3004, %v3021
        %v3023 = vsel %vm3009, %v3020, %v3022
        %v3024 = vshll.u32 %v2984, 8
        %v3025 = vmul.u32.u64.compose %v3024, %v3023
        %v3026 = vextract.low.u32 %v3025
        %v3027 = vextract.high.u32 %v3025
        %v3028 = vmul.u32.u64.compose %v3024, %v3019
        %v3029 = vextract.low.u32 %v3028
        %v3030 = vextract.high.u32 %v3028
        %v3031 = vmul.u32 %v3024, %v3015
        %v3032 = vadd.s32 %v3027, %v3029
        %vm3033 = vc.u32 %v3027, %v3029
        %v3034 = vadd.s32 %v3030, 1
        %v3035 = vsel %vm3033, %v3034, %v3030
        %v3036 = vadd.s32 %v3031, %v3035
        %v3037 = vadd.s32 %v3036, 536870912
        %v3038 = vshrl.u32 %v3037, 30
        %v3039 = vshll.u32 %v3038, 30
        %v3040 = vsub.s32 %v3036, %v3039
        %vm3041 = vcmp.lt.s32.totalorder %v3040, 0
        %v3042 = vsub.s32 0, %v3040
        %v3043 = vsel %vm3041, %v3042, %v3040
        %v3044 = vclz %v3043
        %v3045 = vsub.s32 %v3044, 2
        %vm3046 = vcmp.gt.s32.totalorder 0, %v3045
        %v3047 = vsel %vm3046, 0, %v3045
        %v3048 = vsub.s32 32, %v3047
        %v3049 = vshll.u32 %v3040, %v3047
        %v3050 = vshrl.u32 %v3032, %v3048
        %v3051 = vor.u32 %v3049, %v3050
        %v3052 = vsub.s32 4294967266, %v3047
        %v3053 = vadd.s32 %v3052, 127
        %v3054 = vshll.u32 %v3053, 23
        %v3055 = vor.u32 4788187, %v3054
        %v3056 = vand.u32 2147483647, %v3055
        %v3058 = vcvt.s32.f32 %v3051
        %v3059 = vmul.f32 %v3058, %v3056
        %v3060 = vxor.u32 %v3059, 2147483648
        %v3061 = vsel %vm2978, %v3060, %v3059
        %v3062 = vsub.s32 4, %v3038
        %v3063 = vsel %vm2978, %v3062, %v3038
        %v3064 = vsel %vm2977, %v369, %v3061
        %v3065 = vsel %vm2977, 0, %v3063
        %v3066 = vcosq.f32.pop %v3064
        %v3067 = vsinq.f32.pop %v3064
        %vm3068 = vweird.f32 %v369
        %v3069 = vadd.s32 %v3065, 3
        %v3070 = vand.u32 %v3069, 3
        %vm3071 = vcmp.lt.s32.totalorder %v3070, 2
        %vm3072 = vcmp.eq.s32.totalorder %v3070, 0
        %v3073 = vxor.u32 %v3067, 2147483648
        %v3074 = vsel %vm3072, %v3066, %v3073
        %vm3075 = vcmp.eq.s32.totalorder %v3070, 2
        %v3076 = vxor.u32 %v3066, 2147483648
        %v3077 = vsel %vm3075, %v3076, %v3067
        %v3078 = vsel %vm3071, %v3074, %v3077
        %v3079 = vsel %vm3068, nan, %v3078
        %v3080 = vand.u32 2147483647, %v370
        %vm3081 = vcmp.le.f32.partialorder %v3080, 0.7853982
        %vm3082 = vcmp.lt.s32.totalorder %v370, 0
        %v3083 = vand.u32 %v370, 2139095040
        %v3084 = vshrl.u32 %v3083, 23
        %v3085 = vsub.s32 %v3084, 127
        %v3086 = vand.u32 2147483647, %v370
        %v3087 = vand.u32 %v3086, 8388607
        %v3088 = vor.u32 %v3087, 8388608
        %v3089 = vsub.s32 0, %v3088
        %v3090 = vadd.s32 %v3085, 1
        %vm3091 = vcmp.gt.s32.totalorder %v3090, 0
        %v3092 = vsel %vm3091, %v3090, 0
        %v3093 = vshrl.u32 %v3092, 5
        %v3094 = vand.u32 %v3092, 31
        %v3095 = vsub.s32 32, %v3094
        %v3096 = vshrl.u32 683565275, %v3095
        %v3097 = vshll.u32 683565275, %v3094
        %v3098 = vshrl.u32 2475754826, %v3095
        %v3099 = vor.u32 %v3097, %v3098
        %v3100 = vshll.u32 2475754826, %v3094
        %v3101 = vshrl.u32 2131351028, %v3095
        %v3102 = vor.u32 %v3100, %v3101
        %v3103 = vshll.u32 2131351028, %v3094
        %v3104 = vshrl.u32 2102212464, %v3095
        %v3105 = vor.u32 %v3103, %v3104
        %v3106 = vshll.u32 2102212464, %v3094
        %v3107 = vshrl.u32 920167782, %v3095
        %v3108 = vor.u32 %v3106, %v3107
        %v3109 = vshll.u32 920167782, %v3094
        %v3110 = vshrl.u32 1326507024, %v3095
        %v3111 = vor.u32 %v3109, %v3110
        %vm3112 = vcmp.lt.s32.totalorder %v3093, 1
        %vm3113 = vcmp.lt.s32.totalorder %v3093, 2
        %vm3114 = vcmp.lt.s32.totalorder %v3093, 3
        %vm3115 = vcmp.lt.s32.totalorder %v3093, 4
        %v3116 = vsel %vm3112, %v3096, %v3099
        %v3117 = vsel %vm3115, %v3105, 2102212464
        %v3118 = vsel %vm3114, %v3102, %v3117
        %v3119 = vsel %vm3113, %v3116, %v3118
        %v3120 = vsel %vm3112, %v3099, %v3102
        %v3121 = vsel %vm3115, %v3108, 920167782
        %v3122 = vsel %vm3114, %v3105, %v3121
        %v3123 = vsel %vm3113, %v3120, %v3122
        %v3124 = vsel %vm3112, %v3102, %v3105
        %v3125 = vsel %vm3115, %v3111, 1326507024
        %v3126 = vsel %vm3114, %v3108, %v3125
        %v3127 = vsel %vm3113, %v3124, %v3126
        %v3128 = vshll.u32 %v3088, 8
        %v3129 = vmul.u32.u64.compose %v3128, %v3127
        %v3130 = vextract.low.u32 %v3129
        %v3131 = vextract.high.u32 %v3129
        %v3132 = vmul.u32.u64.compose %v3128, %v3123
        %v3133 = vextract.low.u32 %v3132
        %v3134 = vextract.high.u32 %v3132
        %v3135 = vmul.u32 %v3128, %v3119
        %v3136 = vadd.s32 %v3131, %v3133
        %vm3137 = vc.u32 %v3131, %v3133
        %v3138 = vadd.s32 %v3134, 1
        %v3139 = vsel %vm3137, %v3138, %v3134
        %v3140 = vadd.s32 %v3135, %v3139
        %v3141 = vadd.s32 %v3140, 536870912
        %v3142 = vshrl.u32 %v3141, 30
        %v3143 = vshll.u32 %v3142, 30
        %v3144 = vsub.s32 %v3140, %v3143
        %vm3145 = vcmp.lt.s32.totalorder %v3144, 0
        %v3146 = vsub.s32 0, %v3144
        %v3147 = vsel %vm3145, %v3146, %v3144
        %v3148 = vclz %v3147
        %v3149 = vsub.s32 %v3148, 2
        %vm3150 = vcmp.gt.s32.totalorder 0, %v3149
        %v3151 = vsel %vm3150, 0, %v3149
        %v3152 = vsub.s32 32, %v3151
        %v3153 = vshll.u32 %v3144, %v3151
        %v3154 = vshrl.u32 %v3136, %v3152
        %v3155 = vor.u32 %v3153, %v3154
        %v3156 = vsub.s32 4294967266, %v3151
        %v3157 = vadd.s32 %v3156, 127
        %v3158 = vshll.u32 %v3157, 23
        %v3159 = vor.u32 4788187, %v3158
        %v3160 = vand.u32 2147483647, %v3159
        %v3162 = vcvt.s32.f32 %v3155
        %v3163 = vmul.f32 %v3162, %v3160
        %v3164 = vxor.u32 %v3163, 2147483648
        %v3165 = vsel %vm3082, %v3164, %v3163
        %v3166 = vsub.s32 4, %v3142
        %v3167 = vsel %vm3082, %v3166, %v3142
        %v3168 = vsel %vm3081, %v370, %v3165
        %v3169 = vsel %vm3081, 0, %v3167
        %v3170 = vcosq.f32.pop %v3168
        %v3171 = vsinq.f32.pop %v3168
        %vm3172 = vweird.f32 %v370
        %v3173 = vadd.s32 %v3169, 3
        %v3174 = vand.u32 %v3173, 3
        %vm3175 = vcmp.lt.s32.totalorder %v3174, 2
        %vm3176 = vcmp.eq.s32.totalorder %v3174, 0
        %v3177 = vxor.u32 %v3171, 2147483648
        %v3178 = vsel %vm3176, %v3170, %v3177
        %vm3179 = vcmp.eq.s32.totalorder %v3174, 2
        %v3180 = vxor.u32 %v3170, 2147483648
        %v3181 = vsel %vm3179, %v3180, %v3171
        %v3182 = vsel %vm3175, %v3178, %v3181
        %v3183 = vsel %vm3172, nan, %v3182
        %v3184 = vand.u32 2147483647, %v371
        %vm3185 = vcmp.le.f32.partialorder %v3184, 0.7853982
        %vm3186 = vcmp.lt.s32.totalorder %v371, 0
        %v3187 = vand.u32 %v371, 2139095040
        %v3188 = vshrl.u32 %v3187, 23
        %v3189 = vsub.s32 %v3188, 127
        %v3190 = vand.u32 2147483647, %v371
        %v3191 = vand.u32 %v3190, 8388607
        %v3192 = vor.u32 %v3191, 8388608
        %v3193 = vsub.s32 0, %v3192
        %v3194 = vadd.s32 %v3189, 1
        %vm3195 = vcmp.gt.s32.totalorder %v3194, 0
        %v3196 = vsel %vm3195, %v3194, 0
        %v3197 = vshrl.u32 %v3196, 5
        %v3198 = vand.u32 %v3196, 31
        %v3199 = vsub.s32 32, %v3198
        %v3200 = vshrl.u32 683565275, %v3199
        %v3201 = vshll.u32 683565275, %v3198
        %v3202 = vshrl.u32 2475754826, %v3199
        %v3203 = vor.u32 %v3201, %v3202
        %v3204 = vshll.u32 2475754826, %v3198
        %v3205 = vshrl.u32 2131351028, %v3199
        %v3206 = vor.u32 %v3204, %v3205
        %v3207 = vshll.u32 2131351028, %v3198
        %v3208 = vshrl.u32 2102212464, %v3199
        %v3209 = vor.u32 %v3207, %v3208
        %v3210 = vshll.u32 2102212464, %v3198
        %v3211 = vshrl.u32 920167782, %v3199
        %v3212 = vor.u32 %v3210, %v3211
        %v3213 = vshll.u32 920167782, %v3198
        %v3214 = vshrl.u32 1326507024, %v3199
        %v3215 = vor.u32 %v3213, %v3214
        %vm3216 = vcmp.lt.s32.totalorder %v3197, 1
        %vm3217 = vcmp.lt.s32.totalorder %v3197, 2
        %vm3218 = vcmp.lt.s32.totalorder %v3197, 3
        %vm3219 = vcmp.lt.s32.totalorder %v3197, 4
        %v3220 = vsel %vm3216, %v3200, %v3203
        %v3221 = vsel %vm3219, %v3209, 2102212464
        %v3222 = vsel %vm3218, %v3206, %v3221
        %v3223 = vsel %vm3217, %v3220, %v3222
        %v3224 = vsel %vm3216, %v3203, %v3206
        %v3225 = vsel %vm3219, %v3212, 920167782
        %v3226 = vsel %vm3218, %v3209, %v3225
        %v3227 = vsel %vm3217, %v3224, %v3226
        %v3228 = vsel %vm3216, %v3206, %v3209
        %v3229 = vsel %vm3219, %v3215, 1326507024
        %v3230 = vsel %vm3218, %v3212, %v3229
        %v3231 = vsel %vm3217, %v3228, %v3230
        %v3232 = vshll.u32 %v3192, 8
        %v3233 = vmul.u32.u64.compose %v3232, %v3231
        %v3234 = vextract.low.u32 %v3233
        %v3235 = vextract.high.u32 %v3233
        %v3236 = vmul.u32.u64.compose %v3232, %v3227
        %v3237 = vextract.low.u32 %v3236
        %v3238 = vextract.high.u32 %v3236
        %v3239 = vmul.u32 %v3232, %v3223
        %v3240 = vadd.s32 %v3235, %v3237
        %vm3241 = vc.u32 %v3235, %v3237
        %v3242 = vadd.s32 %v3238, 1
        %v3243 = vsel %vm3241, %v3242, %v3238
        %v3244 = vadd.s32 %v3239, %v3243
        %v3245 = vadd.s32 %v3244, 536870912
        %v3246 = vshrl.u32 %v3245, 30
        %v3247 = vshll.u32 %v3246, 30
        %v3248 = vsub.s32 %v3244, %v3247
        %vm3249 = vcmp.lt.s32.totalorder %v3248, 0
        %v3250 = vsub.s32 0, %v3248
        %v3251 = vsel %vm3249, %v3250, %v3248
        %v3252 = vclz %v3251
        %v3253 = vsub.s32 %v3252, 2
        %vm3254 = vcmp.gt.s32.totalorder 0, %v3253
        %v3255 = vsel %vm3254, 0, %v3253
        %v3256 = vsub.s32 32, %v3255
        %v3257 = vshll.u32 %v3248, %v3255
        %v3258 = vshrl.u32 %v3240, %v3256
        %v3259 = vor.u32 %v3257, %v3258
        %v3260 = vsub.s32 4294967266, %v3255
        %v3261 = vadd.s32 %v3260, 127
        %v3262 = vshll.u32 %v3261, 23
        %v3263 = vor.u32 4788187, %v3262
        %v3264 = vand.u32 2147483647, %v3263
        %v3266 = vcvt.s32.f32 %v3259
        %v3267 = vmul.f32 %v3266, %v3264
        %v3268 = vxor.u32 %v3267, 2147483648
        %v3269 = vsel %vm3186, %v3268, %v3267
        %v3270 = vsub.s32 4, %v3246
        %v3271 = vsel %vm3186, %v3270, %v3246
        %v3272 = vsel %vm3185, %v371, %v3269
        %v3273 = vsel %vm3185, 0, %v3271
        %v3274 = vcosq.f32.pop %v3272
        %v3275 = vsinq.f32.pop %v3272
        %vm3276 = vweird.f32 %v371
        %v3277 = vadd.s32 %v3273, 3
        %v3278 = vand.u32 %v3277, 3
        %vm3279 = vcmp.lt.s32.totalorder %v3278, 2
        %vm3280 = vcmp.eq.s32.totalorder %v3278, 0
        %v3281 = vxor.u32 %v3275, 2147483648
        %v3282 = vsel %vm3280, %v3274, %v3281
        %vm3283 = vcmp.eq.s32.totalorder %v3278, 2
        %v3284 = vxor.u32 %v3274, 2147483648
        %v3285 = vsel %vm3283, %v3284, %v3275
        %v3286 = vsel %vm3279, %v3282, %v3285
        %v3287 = vsel %vm3276, nan, %v3286
        %v3288 = vand.u32 2147483647, %v372
        %vm3289 = vcmp.le.f32.partialorder %v3288, 0.7853982
        %vm3290 = vcmp.lt.s32.totalorder %v372, 0
        %v3291 = vand.u32 %v372, 2139095040
        %v3292 = vshrl.u32 %v3291, 23
        %v3293 = vsub.s32 %v3292, 127
        %v3294 = vand.u32 2147483647, %v372
        %v3295 = vand.u32 %v3294, 8388607
        %v3296 = vor.u32 %v3295, 8388608
        %v3297 = vsub.s32 0, %v3296
        %v3298 = vadd.s32 %v3293, 1
        %vm3299 = vcmp.gt.s32.totalorder %v3298, 0
        %v3300 = vsel %vm3299, %v3298, 0
        %v3301 = vshrl.u32 %v3300, 5
        %v3302 = vand.u32 %v3300, 31
        %v3303 = vsub.s32 32, %v3302
        %v3304 = vshrl.u32 683565275, %v3303
        %v3305 = vshll.u32 683565275, %v3302
        %v3306 = vshrl.u32 2475754826, %v3303
        %v3307 = vor.u32 %v3305, %v3306
        %v3308 = vshll.u32 2475754826, %v3302
        %v3309 = vshrl.u32 2131351028, %v3303
        %v3310 = vor.u32 %v3308, %v3309
        %v3311 = vshll.u32 2131351028, %v3302
        %v3312 = vshrl.u32 2102212464, %v3303
        %v3313 = vor.u32 %v3311, %v3312
        %v3314 = vshll.u32 2102212464, %v3302
        %v3315 = vshrl.u32 920167782, %v3303
        %v3316 = vor.u32 %v3314, %v3315
        %v3317 = vshll.u32 920167782, %v3302
        %v3318 = vshrl.u32 1326507024, %v3303
        %v3319 = vor.u32 %v3317, %v3318
        %vm3320 = vcmp.lt.s32.totalorder %v3301, 1
        %vm3321 = vcmp.lt.s32.totalorder %v3301, 2
        %vm3322 = vcmp.lt.s32.totalorder %v3301, 3
        %vm3323 = vcmp.lt.s32.totalorder %v3301, 4
        %v3324 = vsel %vm3320, %v3304, %v3307
        %v3325 = vsel %vm3323, %v3313, 2102212464
        %v3326 = vsel %vm3322, %v3310, %v3325
        %v3327 = vsel %vm3321, %v3324, %v3326
        %v3328 = vsel %vm3320, %v3307, %v3310
        %v3329 = vsel %vm3323, %v3316, 920167782
        %v3330 = vsel %vm3322, %v3313, %v3329
        %v3331 = vsel %vm3321, %v3328, %v3330
        %v3332 = vsel %vm3320, %v3310, %v3313
        %v3333 = vsel %vm3323, %v3319, 1326507024
        %v3334 = vsel %vm3322, %v3316, %v3333
        %v3335 = vsel %vm3321, %v3332, %v3334
        %v3336 = vshll.u32 %v3296, 8
        %v3337 = vmul.u32.u64.compose %v3336, %v3335
        %v3338 = vextract.low.u32 %v3337
        %v3339 = vextract.high.u32 %v3337
        %v3340 = vmul.u32.u64.compose %v3336, %v3331
        %v3341 = vextract.low.u32 %v3340
        %v3342 = vextract.high.u32 %v3340
        %v3343 = vmul.u32 %v3336, %v3327
        %v3344 = vadd.s32 %v3339, %v3341
        %vm3345 = vc.u32 %v3339, %v3341
        %v3346 = vadd.s32 %v3342, 1
        %v3347 = vsel %vm3345, %v3346, %v3342
        %v3348 = vadd.s32 %v3343, %v3347
        %v3349 = vadd.s32 %v3348, 536870912
        %v3350 = vshrl.u32 %v3349, 30
        %v3351 = vshll.u32 %v3350, 30
        %v3352 = vsub.s32 %v3348, %v3351
        %vm3353 = vcmp.lt.s32.totalorder %v3352, 0
        %v3354 = vsub.s32 0, %v3352
        %v3355 = vsel %vm3353, %v3354, %v3352
        %v3356 = vclz %v3355
        %v3357 = vsub.s32 %v3356, 2
        %vm3358 = vcmp.gt.s32.totalorder 0, %v3357
        %v3359 = vsel %vm3358, 0, %v3357
        %v3360 = vsub.s32 32, %v3359
        %v3361 = vshll.u32 %v3352, %v3359
        %v3362 = vshrl.u32 %v3344, %v3360
        %v3363 = vor.u32 %v3361, %v3362
        %v3364 = vsub.s32 4294967266, %v3359
        %v3365 = vadd.s32 %v3364, 127
        %v3366 = vshll.u32 %v3365, 23
        %v3367 = vor.u32 4788187, %v3366
        %v3368 = vand.u32 2147483647, %v3367
        %v3370 = vcvt.s32.f32 %v3363
        %v3371 = vmul.f32 %v3370, %v3368
        %v3372 = vxor.u32 %v3371, 2147483648
        %v3373 = vsel %vm3290, %v3372, %v3371
        %v3374 = vsub.s32 4, %v3350
        %v3375 = vsel %vm3290, %v3374, %v3350
        %v3376 = vsel %vm3289, %v372, %v3373
        %v3377 = vsel %vm3289, 0, %v3375
        %v3378 = vcosq.f32.pop %v3376
        %v3379 = vsinq.f32.pop %v3376
        %vm3380 = vweird.f32 %v372
        %v3381 = vadd.s32 %v3377, 3
        %v3382 = vand.u32 %v3381, 3
        %vm3383 = vcmp.lt.s32.totalorder %v3382, 2
        %vm3384 = vcmp.eq.s32.totalorder %v3382, 0
        %v3385 = vxor.u32 %v3379, 2147483648
        %v3386 = vsel %vm3384, %v3378, %v3385
        %vm3387 = vcmp.eq.s32.totalorder %v3382, 2
        %v3388 = vxor.u32 %v3378, 2147483648
        %v3389 = vsel %vm3387, %v3388, %v3379
        %v3390 = vsel %vm3383, %v3386, %v3389
        %v3391 = vsel %vm3380, nan, %v3390
        %v3392 = vand.u32 2147483647, %v373
        %vm3393 = vcmp.le.f32.partialorder %v3392, 0.7853982
        %vm3394 = vcmp.lt.s32.totalorder %v373, 0
        %v3395 = vand.u32 %v373, 2139095040
        %v3396 = vshrl.u32 %v3395, 23
        %v3397 = vsub.s32 %v3396, 127
        %v3398 = vand.u32 2147483647, %v373
        %v3399 = vand.u32 %v3398, 8388607
        %v3400 = vor.u32 %v3399, 8388608
        %v3401 = vsub.s32 0, %v3400
        %v3402 = vadd.s32 %v3397, 1
        %vm3403 = vcmp.gt.s32.totalorder %v3402, 0
        %v3404 = vsel %vm3403, %v3402, 0
        %v3405 = vshrl.u32 %v3404, 5
        %v3406 = vand.u32 %v3404, 31
        %v3407 = vsub.s32 32, %v3406
        %v3408 = vshrl.u32 683565275, %v3407
        %v3409 = vshll.u32 683565275, %v3406
        %v3410 = vshrl.u32 2475754826, %v3407
        %v3411 = vor.u32 %v3409, %v3410
        %v3412 = vshll.u32 2475754826, %v3406
        %v3413 = vshrl.u32 2131351028, %v3407
        %v3414 = vor.u32 %v3412, %v3413
        %v3415 = vshll.u32 2131351028, %v3406
        %v3416 = vshrl.u32 2102212464, %v3407
        %v3417 = vor.u32 %v3415, %v3416
        %v3418 = vshll.u32 2102212464, %v3406
        %v3419 = vshrl.u32 920167782, %v3407
        %v3420 = vor.u32 %v3418, %v3419
        %v3421 = vshll.u32 920167782, %v3406
        %v3422 = vshrl.u32 1326507024, %v3407
        %v3423 = vor.u32 %v3421, %v3422
        %vm3424 = vcmp.lt.s32.totalorder %v3405, 1
        %vm3425 = vcmp.lt.s32.totalorder %v3405, 2
        %vm3426 = vcmp.lt.s32.totalorder %v3405, 3
        %vm3427 = vcmp.lt.s32.totalorder %v3405, 4
        %v3428 = vsel %vm3424, %v3408, %v3411
        %v3429 = vsel %vm3427, %v3417, 2102212464
        %v3430 = vsel %vm3426, %v3414, %v3429
        %v3431 = vsel %vm3425, %v3428, %v3430
        %v3432 = vsel %vm3424, %v3411, %v3414
        %v3433 = vsel %vm3427, %v3420, 920167782
        %v3434 = vsel %vm3426, %v3417, %v3433
        %v3435 = vsel %vm3425, %v3432, %v3434
        %v3436 = vsel %vm3424, %v3414, %v3417
        %v3437 = vsel %vm3427, %v3423, 1326507024
        %v3438 = vsel %vm3426, %v3420, %v3437
        %v3439 = vsel %vm3425, %v3436, %v3438
        %v3440 = vshll.u32 %v3400, 8
        %v3441 = vmul.u32.u64.compose %v3440, %v3439
        %v3442 = vextract.low.u32 %v3441
        %v3443 = vextract.high.u32 %v3441
        %v3444 = vmul.u32.u64.compose %v3440, %v3435
        %v3445 = vextract.low.u32 %v3444
        %v3446 = vextract.high.u32 %v3444
        %v3447 = vmul.u32 %v3440, %v3431
        %v3448 = vadd.s32 %v3443, %v3445
        %vm3449 = vc.u32 %v3443, %v3445
        %v3450 = vadd.s32 %v3446, 1
        %v3451 = vsel %vm3449, %v3450, %v3446
        %v3452 = vadd.s32 %v3447, %v3451
        %v3453 = vadd.s32 %v3452, 536870912
        %v3454 = vshrl.u32 %v3453, 30
        %v3455 = vshll.u32 %v3454, 30
        %v3456 = vsub.s32 %v3452, %v3455
        %vm3457 = vcmp.lt.s32.totalorder %v3456, 0
        %v3458 = vsub.s32 0, %v3456
        %v3459 = vsel %vm3457, %v3458, %v3456
        %v3460 = vclz %v3459
        %v3461 = vsub.s32 %v3460, 2
        %vm3462 = vcmp.gt.s32.totalorder 0, %v3461
        %v3463 = vsel %vm3462, 0, %v3461
        %v3464 = vsub.s32 32, %v3463
        %v3465 = vshll.u32 %v3456, %v3463
        %v3466 = vshrl.u32 %v3448, %v3464
        %v3467 = vor.u32 %v3465, %v3466
        %v3468 = vsub.s32 4294967266, %v3463
        %v3469 = vadd.s32 %v3468, 127
        %v3470 = vshll.u32 %v3469, 23
        %v3471 = vor.u32 4788187, %v3470
        %v3472 = vand.u32 2147483647, %v3471
        %v3474 = vcvt.s32.f32 %v3467
        %v3475 = vmul.f32 %v3474, %v3472
        %v3476 = vxor.u32 %v3475, 2147483648
        %v3477 = vsel %vm3394, %v3476, %v3475
        %v3478 = vsub.s32 4, %v3454
        %v3479 = vsel %vm3394, %v3478, %v3454
        %v3480 = vsel %vm3393, %v373, %v3477
        %v3481 = vsel %vm3393, 0, %v3479
        %v3482 = vcosq.f32.pop %v3480
        %v3483 = vsinq.f32.pop %v3480
        %vm3484 = vweird.f32 %v373
        %v3485 = vadd.s32 %v3481, 3
        %v3486 = vand.u32 %v3485, 3
        %vm3487 = vcmp.lt.s32.totalorder %v3486, 2
        %vm3488 = vcmp.eq.s32.totalorder %v3486, 0
        %v3489 = vxor.u32 %v3483, 2147483648
        %v3490 = vsel %vm3488, %v3482, %v3489
        %vm3491 = vcmp.eq.s32.totalorder %v3486, 2
        %v3492 = vxor.u32 %v3482, 2147483648
        %v3493 = vsel %vm3491, %v3492, %v3483
        %v3494 = vsel %vm3487, %v3490, %v3493
        %v3495 = vsel %vm3484, nan, %v3494
        %v3496 = vand.u32 2147483647, %v374
        %vm3497 = vcmp.le.f32.partialorder %v3496, 0.7853982
        %vm3498 = vcmp.lt.s32.totalorder %v374, 0
        %v3499 = vand.u32 %v374, 2139095040
        %v3500 = vshrl.u32 %v3499, 23
        %v3501 = vsub.s32 %v3500, 127
        %v3502 = vand.u32 2147483647, %v374
        %v3503 = vand.u32 %v3502, 8388607
        %v3504 = vor.u32 %v3503, 8388608
        %v3505 = vsub.s32 0, %v3504
        %v3506 = vadd.s32 %v3501, 1
        %vm3507 = vcmp.gt.s32.totalorder %v3506, 0
        %v3508 = vsel %vm3507, %v3506, 0
        %v3509 = vshrl.u32 %v3508, 5
        %v3510 = vand.u32 %v3508, 31
        %v3511 = vsub.s32 32, %v3510
        %v3512 = vshrl.u32 683565275, %v3511
        %v3513 = vshll.u32 683565275, %v3510
        %v3514 = vshrl.u32 2475754826, %v3511
        %v3515 = vor.u32 %v3513, %v3514
        %v3516 = vshll.u32 2475754826, %v3510
        %v3517 = vshrl.u32 2131351028, %v3511
        %v3518 = vor.u32 %v3516, %v3517
        %v3519 = vshll.u32 2131351028, %v3510
        %v3520 = vshrl.u32 2102212464, %v3511
        %v3521 = vor.u32 %v3519, %v3520
        %v3522 = vshll.u32 2102212464, %v3510
        %v3523 = vshrl.u32 920167782, %v3511
        %v3524 = vor.u32 %v3522, %v3523
        %v3525 = vshll.u32 920167782, %v3510
        %v3526 = vshrl.u32 1326507024, %v3511
        %v3527 = vor.u32 %v3525, %v3526
        %vm3528 = vcmp.lt.s32.totalorder %v3509, 1
        %vm3529 = vcmp.lt.s32.totalorder %v3509, 2
        %vm3530 = vcmp.lt.s32.totalorder %v3509, 3
        %vm3531 = vcmp.lt.s32.totalorder %v3509, 4
        %v3532 = vsel %vm3528, %v3512, %v3515
        %v3533 = vsel %vm3531, %v3521, 2102212464
        %v3534 = vsel %vm3530, %v3518, %v3533
        %v3535 = vsel %vm3529, %v3532, %v3534
        %v3536 = vsel %vm3528, %v3515, %v3518
        %v3537 = vsel %vm3531, %v3524, 920167782
        %v3538 = vsel %vm3530, %v3521, %v3537
        %v3539 = vsel %vm3529, %v3536, %v3538
        %v3540 = vsel %vm3528, %v3518, %v3521
        %v3541 = vsel %vm3531, %v3527, 1326507024
        %v3542 = vsel %vm3530, %v3524, %v3541
        %v3543 = vsel %vm3529, %v3540, %v3542
        %v3544 = vshll.u32 %v3504, 8
        %v3545 = vmul.u32.u64.compose %v3544, %v3543
        %v3546 = vextract.low.u32 %v3545
        %v3547 = vextract.high.u32 %v3545
        %v3548 = vmul.u32.u64.compose %v3544, %v3539
        %v3549 = vextract.low.u32 %v3548
        %v3550 = vextract.high.u32 %v3548
        %v3551 = vmul.u32 %v3544, %v3535
        %v3552 = vadd.s32 %v3547, %v3549
        %vm3553 = vc.u32 %v3547, %v3549
        %v3554 = vadd.s32 %v3550, 1
        %v3555 = vsel %vm3553, %v3554, %v3550
        %v3556 = vadd.s32 %v3551, %v3555
        %v3557 = vadd.s32 %v3556, 536870912
        %v3558 = vshrl.u32 %v3557, 30
        %v3559 = vshll.u32 %v3558, 30
        %v3560 = vsub.s32 %v3556, %v3559
        %vm3561 = vcmp.lt.s32.totalorder %v3560, 0
        %v3562 = vsub.s32 0, %v3560
        %v3563 = vsel %vm3561, %v3562, %v3560
        %v3564 = vclz %v3563
        %v3565 = vsub.s32 %v3564, 2
        %vm3566 = vcmp.gt.s32.totalorder 0, %v3565
        %v3567 = vsel %vm3566, 0, %v3565
        %v3568 = vsub.s32 32, %v3567
        %v3569 = vshll.u32 %v3560, %v3567
        %v3570 = vshrl.u32 %v3552, %v3568
        %v3571 = vor.u32 %v3569, %v3570
        %v3572 = vsub.s32 4294967266, %v3567
        %v3573 = vadd.s32 %v3572, 127
        %v3574 = vshll.u32 %v3573, 23
        %v3575 = vor.u32 4788187, %v3574
        %v3576 = vand.u32 2147483647, %v3575
        %v3578 = vcvt.s32.f32 %v3571
        %v3579 = vmul.f32 %v3578, %v3576
        %v3580 = vxor.u32 %v3579, 2147483648
        %v3581 = vsel %vm3498, %v3580, %v3579
        %v3582 = vsub.s32 4, %v3558
        %v3583 = vsel %vm3498, %v3582, %v3558
        %v3584 = vsel %vm3497, %v374, %v3581
        %v3585 = vsel %vm3497, 0, %v3583
        %v3586 = vcosq.f32.pop %v3584
        %v3587 = vsinq.f32.pop %v3584
        %vm3588 = vweird.f32 %v374
        %v3589 = vadd.s32 %v3585, 3
        %v3590 = vand.u32 %v3589, 3
        %vm3591 = vcmp.lt.s32.totalorder %v3590, 2
        %vm3592 = vcmp.eq.s32.totalorder %v3590, 0
        %v3593 = vxor.u32 %v3587, 2147483648
        %v3594 = vsel %vm3592, %v3586, %v3593
        %vm3595 = vcmp.eq.s32.totalorder %v3590, 2
        %v3596 = vxor.u32 %v3586, 2147483648
        %v3597 = vsel %vm3595, %v3596, %v3587
        %v3598 = vsel %vm3591, %v3594, %v3597
        %v3599 = vsel %vm3588, nan, %v3598
        %v3600 = vand.u32 2147483647, %v375
        %vm3601 = vcmp.le.f32.partialorder %v3600, 0.7853982
        %vm3602 = vcmp.lt.s32.totalorder %v375, 0
        %v3603 = vand.u32 %v375, 2139095040
        %v3604 = vshrl.u32 %v3603, 23
        %v3605 = vsub.s32 %v3604, 127
        %v3606 = vand.u32 2147483647, %v375
        %v3607 = vand.u32 %v3606, 8388607
        %v3608 = vor.u32 %v3607, 8388608
        %v3609 = vsub.s32 0, %v3608
        %v3610 = vadd.s32 %v3605, 1
        %vm3611 = vcmp.gt.s32.totalorder %v3610, 0
        %v3612 = vsel %vm3611, %v3610, 0
        %v3613 = vshrl.u32 %v3612, 5
        %v3614 = vand.u32 %v3612, 31
        %v3615 = vsub.s32 32, %v3614
        %v3616 = vshrl.u32 683565275, %v3615
        %v3617 = vshll.u32 683565275, %v3614
        %v3618 = vshrl.u32 2475754826, %v3615
        %v3619 = vor.u32 %v3617, %v3618
        %v3620 = vshll.u32 2475754826, %v3614
        %v3621 = vshrl.u32 2131351028, %v3615
        %v3622 = vor.u32 %v3620, %v3621
        %v3623 = vshll.u32 2131351028, %v3614
        %v3624 = vshrl.u32 2102212464, %v3615
        %v3625 = vor.u32 %v3623, %v3624
        %v3626 = vshll.u32 2102212464, %v3614
        %v3627 = vshrl.u32 920167782, %v3615
        %v3628 = vor.u32 %v3626, %v3627
        %v3629 = vshll.u32 920167782, %v3614
        %v3630 = vshrl.u32 1326507024, %v3615
        %v3631 = vor.u32 %v3629, %v3630
        %vm3632 = vcmp.lt.s32.totalorder %v3613, 1
        %vm3633 = vcmp.lt.s32.totalorder %v3613, 2
        %vm3634 = vcmp.lt.s32.totalorder %v3613, 3
        %vm3635 = vcmp.lt.s32.totalorder %v3613, 4
        %v3636 = vsel %vm3632, %v3616, %v3619
        %v3637 = vsel %vm3635, %v3625, 2102212464
        %v3638 = vsel %vm3634, %v3622, %v3637
        %v3639 = vsel %vm3633, %v3636, %v3638
        %v3640 = vsel %vm3632, %v3619, %v3622
        %v3641 = vsel %vm3635, %v3628, 920167782
        %v3642 = vsel %vm3634, %v3625, %v3641
        %v3643 = vsel %vm3633, %v3640, %v3642
        %v3644 = vsel %vm3632, %v3622, %v3625
        %v3645 = vsel %vm3635, %v3631, 1326507024
        %v3646 = vsel %vm3634, %v3628, %v3645
        %v3647 = vsel %vm3633, %v3644, %v3646
        %v3648 = vshll.u32 %v3608, 8
        %v3649 = vmul.u32.u64.compose %v3648, %v3647
        %v3650 = vextract.low.u32 %v3649
        %v3651 = vextract.high.u32 %v3649
        %v3652 = vmul.u32.u64.compose %v3648, %v3643
        %v3653 = vextract.low.u32 %v3652
        %v3654 = vextract.high.u32 %v3652
        %v3655 = vmul.u32 %v3648, %v3639
        %v3656 = vadd.s32 %v3651, %v3653
        %vm3657 = vc.u32 %v3651, %v3653
        %v3658 = vadd.s32 %v3654, 1
        %v3659 = vsel %vm3657, %v3658, %v3654
        %v3660 = vadd.s32 %v3655, %v3659
        %v3661 = vadd.s32 %v3660, 536870912
        %v3662 = vshrl.u32 %v3661, 30
        %v3663 = vshll.u32 %v3662, 30
        %v3664 = vsub.s32 %v3660, %v3663
        %vm3665 = vcmp.lt.s32.totalorder %v3664, 0
        %v3666 = vsub.s32 0, %v3664
        %v3667 = vsel %vm3665, %v3666, %v3664
        %v3668 = vclz %v3667
        %v3669 = vsub.s32 %v3668, 2
        %vm3670 = vcmp.gt.s32.totalorder 0, %v3669
        %v3671 = vsel %vm3670, 0, %v3669
        %v3672 = vsub.s32 32, %v3671
        %v3673 = vshll.u32 %v3664, %v3671
        %v3674 = vshrl.u32 %v3656, %v3672
        %v3675 = vor.u32 %v3673, %v3674
        %v3676 = vsub.s32 4294967266, %v3671
        %v3677 = vadd.s32 %v3676, 127
        %v3678 = vshll.u32 %v3677, 23
        %v3679 = vor.u32 4788187, %v3678
        %v3680 = vand.u32 2147483647, %v3679
        %v3682 = vcvt.s32.f32 %v3675
        %v3683 = vmul.f32 %v3682, %v3680
        %v3684 = vxor.u32 %v3683, 2147483648
        %v3685 = vsel %vm3602, %v3684, %v3683
        %v3686 = vsub.s32 4, %v3662
        %v3687 = vsel %vm3602, %v3686, %v3662
        %v3688 = vsel %vm3601, %v375, %v3685
        %v3689 = vsel %vm3601, 0, %v3687
        %v3690 = vcosq.f32.pop %v3688
        %v3691 = vsinq.f32.pop %v3688
        %vm3692 = vweird.f32 %v375
        %v3693 = vadd.s32 %v3689, 3
        %v3694 = vand.u32 %v3693, 3
        %vm3695 = vcmp.lt.s32.totalorder %v3694, 2
        %vm3696 = vcmp.eq.s32.totalorder %v3694, 0
        %v3697 = vxor.u32 %v3691, 2147483648
        %v3698 = vsel %vm3696, %v3690, %v3697
        %vm3699 = vcmp.eq.s32.totalorder %v3694, 2
        %v3700 = vxor.u32 %v3690, 2147483648
        %v3701 = vsel %vm3699, %v3700, %v3691
        %v3702 = vsel %vm3695, %v3698, %v3701
        %v3703 = vsel %vm3692, nan, %v3702
        %3704 = vst [vmem:[%s137] sm:$0xff] %v479
        %3705 = vst [vmem:[%s137 + $0x10] sm:$0xff] %v583
        %3706 = vst [vmem:[%s137 + $0x20] sm:$0xff] %v687
        %3707 = vst [vmem:[%s137 + $0x30] sm:$0xff] %v791
        %3708 = vst [vmem:[%s137 + $0x40] sm:$0xff] %v895
        %3709 = vst [vmem:[%s137 + $0x50] sm:$0xff] %v999
        %3710 = vst [vmem:[%s137 + $0x60] sm:$0xff] %v1103
        %3711 = vst [vmem:[%s137 + $0x70] sm:$0xff] %v1207
        %3712 = vst [vmem:[%s137 + $0x80] sm:$0xff] %v1311
        %3713 = vst [vmem:[%s137 + $0x90] sm:$0xff] %v1415
        %3714 = vst [vmem:[%s137 + $0xa0] sm:$0xff] %v1519
        %3715 = vst [vmem:[%s137 + $0xb0] sm:$0xff] %v1623
        %3716 = vst [vmem:[%s137 + $0xc0] sm:$0xff] %v1727
        %3717 = vst [vmem:[%s137 + $0xd0] sm:$0xff] %v1831
        %3718 = vst [vmem:[%s137 + $0xe0] sm:$0xff] %v1935
        %3719 = vst [vmem:[%s137 + $0xf0] sm:$0xff] %v2039
        %3720 = vst [vmem:[%s137 + $0x100] sm:$0xff] %v2143
        %3721 = vst [vmem:[%s137 + $0x110] sm:$0xff] %v2247
        %3722 = vst [vmem:[%s137 + $0x120] sm:$0xff] %v2351
        %3723 = vst [vmem:[%s137 + $0x130] sm:$0xff] %v2455
        %3724 = vst [vmem:[%s137 + $0x140] sm:$0xff] %v2559
        %3725 = vst [vmem:[%s137 + $0x150] sm:$0xff] %v2663
        %3726 = vst [vmem:[%s137 + $0x160] sm:$0xff] %v2767
        %3727 = vst [vmem:[%s137 + $0x170] sm:$0xff] %v2871
        %3728 = vst [vmem:[%s137 + $0x180] sm:$0xff] %v2975
        %3729 = vst [vmem:[%s137 + $0x190] sm:$0xff] %v3079
        %3730 = vst [vmem:[%s137 + $0x1a0] sm:$0xff] %v3183
        %3731 = vst [vmem:[%s137 + $0x1b0] sm:$0xff] %v3287
        %3732 = vst [vmem:[%s137 + $0x1c0] sm:$0xff] %v3391
        %3733 = vst [vmem:[%s137 + $0x1d0] sm:$0xff] %v3495
        %3734 = vst [vmem:[%s137 + $0x1e0] sm:$0xff] %v3599
        %3735 = vst [vmem:[%s137 + $0x1f0] sm:$0xff] %v3703
        %v3736 = vand.u32 2147483647, %v344
        %vm3737 = vcmp.le.f32.partialorder %v3736, 0.7853982
        %vm3738 = vcmp.lt.s32.totalorder %v344, 0
        %v3739 = vand.u32 %v344, 2139095040
        %v3740 = vshrl.u32 %v3739, 23
        %v3741 = vsub.s32 %v3740, 127
        %v3742 = vand.u32 2147483647, %v344
        %v3743 = vand.u32 %v3742, 8388607
        %v3744 = vor.u32 %v3743, 8388608
        %v3745 = vsub.s32 0, %v3744
        %v3746 = vadd.s32 %v3741, 1
        %vm3747 = vcmp.gt.s32.totalorder %v3746, 0
        %v3748 = vsel %vm3747, %v3746, 0
        %v3749 = vshrl.u32 %v3748, 5
        %v3750 = vand.u32 %v3748, 31
        %v3751 = vsub.s32 32, %v3750
        %v3752 = vshrl.u32 683565275, %v3751
        %v3753 = vshll.u32 683565275, %v3750
        %v3754 = vshrl.u32 2475754826, %v3751
        %v3755 = vor.u32 %v3753, %v3754
        %v3756 = vshll.u32 2475754826, %v3750
        %v3757 = vshrl.u32 2131351028, %v3751
        %v3758 = vor.u32 %v3756, %v3757
        %v3759 = vshll.u32 2131351028, %v3750
        %v3760 = vshrl.u32 2102212464, %v3751
        %v3761 = vor.u32 %v3759, %v3760
        %v3762 = vshll.u32 2102212464, %v3750
        %v3763 = vshrl.u32 920167782, %v3751
        %v3764 = vor.u32 %v3762, %v3763
        %v3765 = vshll.u32 920167782, %v3750
        %v3766 = vshrl.u32 1326507024, %v3751
        %v3767 = vor.u32 %v3765, %v3766
        %vm3768 = vcmp.lt.s32.totalorder %v3749, 1
        %vm3769 = vcmp.lt.s32.totalorder %v3749, 2
        %vm3770 = vcmp.lt.s32.totalorder %v3749, 3
        %vm3771 = vcmp.lt.s32.totalorder %v3749, 4
        %v3772 = vsel %vm3768, %v3752, %v3755
        %v3773 = vsel %vm3771, %v3761, 2102212464
        %v3774 = vsel %vm3770, %v3758, %v3773
        %v3775 = vsel %vm3769, %v3772, %v3774
        %v3776 = vsel %vm3768, %v3755, %v3758
        %v3777 = vsel %vm3771, %v3764, 920167782
        %v3778 = vsel %vm3770, %v3761, %v3777
        %v3779 = vsel %vm3769, %v3776, %v3778
        %v3780 = vsel %vm3768, %v3758, %v3761
        %v3781 = vsel %vm3771, %v3767, 1326507024
        %v3782 = vsel %vm3770, %v3764, %v3781
        %v3783 = vsel %vm3769, %v3780, %v3782
        %v3784 = vshll.u32 %v3744, 8
        %v3785 = vmul.u32.u64.compose %v3784, %v3783
        %v3786 = vextract.low.u32 %v3785
        %v3787 = vextract.high.u32 %v3785
        %v3788 = vmul.u32.u64.compose %v3784, %v3779
        %v3789 = vextract.low.u32 %v3788
        %v3790 = vextract.high.u32 %v3788
        %v3791 = vmul.u32 %v3784, %v3775
        %v3792 = vadd.s32 %v3787, %v3789
        %vm3793 = vc.u32 %v3787, %v3789
        %v3794 = vadd.s32 %v3790, 1
        %v3795 = vsel %vm3793, %v3794, %v3790
        %v3796 = vadd.s32 %v3791, %v3795
        %v3797 = vadd.s32 %v3796, 536870912
        %v3798 = vshrl.u32 %v3797, 30
        %v3799 = vshll.u32 %v3798, 30
        %v3800 = vsub.s32 %v3796, %v3799
        %vm3801 = vcmp.lt.s32.totalorder %v3800, 0
        %v3802 = vsub.s32 0, %v3800
        %v3803 = vsel %vm3801, %v3802, %v3800
        %v3804 = vclz %v3803
        %v3805 = vsub.s32 %v3804, 2
        %vm3806 = vcmp.gt.s32.totalorder 0, %v3805
        %v3807 = vsel %vm3806, 0, %v3805
        %v3808 = vsub.s32 32, %v3807
        %v3809 = vshll.u32 %v3800, %v3807
        %v3810 = vshrl.u32 %v3792, %v3808
        %v3811 = vor.u32 %v3809, %v3810
        %v3812 = vsub.s32 4294967266, %v3807
        %v3813 = vadd.s32 %v3812, 127
        %v3814 = vshll.u32 %v3813, 23
        %v3815 = vor.u32 4788187, %v3814
        %v3816 = vand.u32 2147483647, %v3815
        %v3818 = vcvt.s32.f32 %v3811
        %v3819 = vmul.f32 %v3818, %v3816
        %v3820 = vxor.u32 %v3819, 2147483648
        %v3821 = vsel %vm3738, %v3820, %v3819
        %v3822 = vsub.s32 4, %v3798
        %v3823 = vsel %vm3738, %v3822, %v3798
        %v3824 = vsel %vm3737, %v344, %v3821
        %v3825 = vsel %vm3737, 0, %v3823
        %v3826 = vcosq.f32.pop %v3824
        %v3827 = vsinq.f32.pop %v3824
        %vm3828 = vweird.f32 %v344
        %v3829 = vand.u32 %v3825, 3
        %vm3830 = vcmp.lt.s32.totalorder %v3829, 2
        %vm3831 = vcmp.eq.s32.totalorder %v3829, 0
        %v3832 = vxor.u32 %v3827, 2147483648
        %v3833 = vsel %vm3831, %v3826, %v3832
        %vm3834 = vcmp.eq.s32.totalorder %v3829, 2
        %v3835 = vxor.u32 %v3826, 2147483648
        %v3836 = vsel %vm3834, %v3835, %v3827
        %v3837 = vsel %vm3830, %v3833, %v3836
        %v3838 = vsel %vm3828, nan, %v3837
        %v3839 = vand.u32 2147483647, %v345
        %vm3840 = vcmp.le.f32.partialorder %v3839, 0.7853982
        %vm3841 = vcmp.lt.s32.totalorder %v345, 0
        %v3842 = vand.u32 %v345, 2139095040
        %v3843 = vshrl.u32 %v3842, 23
        %v3844 = vsub.s32 %v3843, 127
        %v3845 = vand.u32 2147483647, %v345
        %v3846 = vand.u32 %v3845, 8388607
        %v3847 = vor.u32 %v3846, 8388608
        %v3848 = vsub.s32 0, %v3847
        %v3849 = vadd.s32 %v3844, 1
        %vm3850 = vcmp.gt.s32.totalorder %v3849, 0
        %v3851 = vsel %vm3850, %v3849, 0
        %v3852 = vshrl.u32 %v3851, 5
        %v3853 = vand.u32 %v3851, 31
        %v3854 = vsub.s32 32, %v3853
        %v3855 = vshrl.u32 683565275, %v3854
        %v3856 = vshll.u32 683565275, %v3853
        %v3857 = vshrl.u32 2475754826, %v3854
        %v3858 = vor.u32 %v3856, %v3857
        %v3859 = vshll.u32 2475754826, %v3853
        %v3860 = vshrl.u32 2131351028, %v3854
        %v3861 = vor.u32 %v3859, %v3860
        %v3862 = vshll.u32 2131351028, %v3853
        %v3863 = vshrl.u32 2102212464, %v3854
        %v3864 = vor.u32 %v3862, %v3863
        %v3865 = vshll.u32 2102212464, %v3853
        %v3866 = vshrl.u32 920167782, %v3854
        %v3867 = vor.u32 %v3865, %v3866
        %v3868 = vshll.u32 920167782, %v3853
        %v3869 = vshrl.u32 1326507024, %v3854
        %v3870 = vor.u32 %v3868, %v3869
        %vm3871 = vcmp.lt.s32.totalorder %v3852, 1
        %vm3872 = vcmp.lt.s32.totalorder %v3852, 2
        %vm3873 = vcmp.lt.s32.totalorder %v3852, 3
        %vm3874 = vcmp.lt.s32.totalorder %v3852, 4
        %v3875 = vsel %vm3871, %v3855, %v3858
        %v3876 = vsel %vm3874, %v3864, 2102212464
        %v3877 = vsel %vm3873, %v3861, %v3876
        %v3878 = vsel %vm3872, %v3875, %v3877
        %v3879 = vsel %vm3871, %v3858, %v3861
        %v3880 = vsel %vm3874, %v3867, 920167782
        %v3881 = vsel %vm3873, %v3864, %v3880
        %v3882 = vsel %vm3872, %v3879, %v3881
        %v3883 = vsel %vm3871, %v3861, %v3864
        %v3884 = vsel %vm3874, %v3870, 1326507024
        %v3885 = vsel %vm3873, %v3867, %v3884
        %v3886 = vsel %vm3872, %v3883, %v3885
        %v3887 = vshll.u32 %v3847, 8
        %v3888 = vmul.u32.u64.compose %v3887, %v3886
        %v3889 = vextract.low.u32 %v3888
        %v3890 = vextract.high.u32 %v3888
        %v3891 = vmul.u32.u64.compose %v3887, %v3882
        %v3892 = vextract.low.u32 %v3891
        %v3893 = vextract.high.u32 %v3891
        %v3894 = vmul.u32 %v3887, %v3878
        %v3895 = vadd.s32 %v3890, %v3892
        %vm3896 = vc.u32 %v3890, %v3892
        %v3897 = vadd.s32 %v3893, 1
        %v3898 = vsel %vm3896, %v3897, %v3893
        %v3899 = vadd.s32 %v3894, %v3898
        %v3900 = vadd.s32 %v3899, 536870912
        %v3901 = vshrl.u32 %v3900, 30
        %v3902 = vshll.u32 %v3901, 30
        %v3903 = vsub.s32 %v3899, %v3902
        %vm3904 = vcmp.lt.s32.totalorder %v3903, 0
        %v3905 = vsub.s32 0, %v3903
        %v3906 = vsel %vm3904, %v3905, %v3903
        %v3907 = vclz %v3906
        %v3908 = vsub.s32 %v3907, 2
        %vm3909 = vcmp.gt.s32.totalorder 0, %v3908
        %v3910 = vsel %vm3909, 0, %v3908
        %v3911 = vsub.s32 32, %v3910
        %v3912 = vshll.u32 %v3903, %v3910
        %v3913 = vshrl.u32 %v3895, %v3911
        %v3914 = vor.u32 %v3912, %v3913
        %v3915 = vsub.s32 4294967266, %v3910
        %v3916 = vadd.s32 %v3915, 127
        %v3917 = vshll.u32 %v3916, 23
        %v3918 = vor.u32 4788187, %v3917
        %v3919 = vand.u32 2147483647, %v3918
        %v3921 = vcvt.s32.f32 %v3914
        %v3922 = vmul.f32 %v3921, %v3919
        %v3923 = vxor.u32 %v3922, 2147483648
        %v3924 = vsel %vm3841, %v3923, %v3922
        %v3925 = vsub.s32 4, %v3901
        %v3926 = vsel %vm3841, %v3925, %v3901
        %v3927 = vsel %vm3840, %v345, %v3924
        %v3928 = vsel %vm3840, 0, %v3926
        %v3929 = vcosq.f32.pop %v3927
        %v3930 = vsinq.f32.pop %v3927
        %vm3931 = vweird.f32 %v345
        %v3932 = vand.u32 %v3928, 3
        %vm3933 = vcmp.lt.s32.totalorder %v3932, 2
        %vm3934 = vcmp.eq.s32.totalorder %v3932, 0
        %v3935 = vxor.u32 %v3930, 2147483648
        %v3936 = vsel %vm3934, %v3929, %v3935
        %vm3937 = vcmp.eq.s32.totalorder %v3932, 2
        %v3938 = vxor.u32 %v3929, 2147483648
        %v3939 = vsel %vm3937, %v3938, %v3930
        %v3940 = vsel %vm3933, %v3936, %v3939
        %v3941 = vsel %vm3931, nan, %v3940
        %v3942 = vand.u32 2147483647, %v346
        %vm3943 = vcmp.le.f32.partialorder %v3942, 0.7853982
        %vm3944 = vcmp.lt.s32.totalorder %v346, 0
        %v3945 = vand.u32 %v346, 2139095040
        %v3946 = vshrl.u32 %v3945, 23
        %v3947 = vsub.s32 %v3946, 127
        %v3948 = vand.u32 2147483647, %v346
        %v3949 = vand.u32 %v3948, 8388607
        %v3950 = vor.u32 %v3949, 8388608
        %v3951 = vsub.s32 0, %v3950
        %v3952 = vadd.s32 %v3947, 1
        %vm3953 = vcmp.gt.s32.totalorder %v3952, 0
        %v3954 = vsel %vm3953, %v3952, 0
        %v3955 = vshrl.u32 %v3954, 5
        %v3956 = vand.u32 %v3954, 31
        %v3957 = vsub.s32 32, %v3956
        %v3958 = vshrl.u32 683565275, %v3957
        %v3959 = vshll.u32 683565275, %v3956
        %v3960 = vshrl.u32 2475754826, %v3957
        %v3961 = vor.u32 %v3959, %v3960
        %v3962 = vshll.u32 2475754826, %v3956
        %v3963 = vshrl.u32 2131351028, %v3957
        %v3964 = vor.u32 %v3962, %v3963
        %v3965 = vshll.u32 2131351028, %v3956
        %v3966 = vshrl.u32 2102212464, %v3957
        %v3967 = vor.u32 %v3965, %v3966
        %v3968 = vshll.u32 2102212464, %v3956
        %v3969 = vshrl.u32 920167782, %v3957
        %v3970 = vor.u32 %v3968, %v3969
        %v3971 = vshll.u32 920167782, %v3956
        %v3972 = vshrl.u32 1326507024, %v3957
        %v3973 = vor.u32 %v3971, %v3972
        %vm3974 = vcmp.lt.s32.totalorder %v3955, 1
        %vm3975 = vcmp.lt.s32.totalorder %v3955, 2
        %vm3976 = vcmp.lt.s32.totalorder %v3955, 3
        %vm3977 = vcmp.lt.s32.totalorder %v3955, 4
        %v3978 = vsel %vm3974, %v3958, %v3961
        %v3979 = vsel %vm3977, %v3967, 2102212464
        %v3980 = vsel %vm3976, %v3964, %v3979
        %v3981 = vsel %vm3975, %v3978, %v3980
        %v3982 = vsel %vm3974, %v3961, %v3964
        %v3983 = vsel %vm3977, %v3970, 920167782
        %v3984 = vsel %vm3976, %v3967, %v3983
        %v3985 = vsel %vm3975, %v3982, %v3984
        %v3986 = vsel %vm3974, %v3964, %v3967
        %v3987 = vsel %vm3977, %v3973, 1326507024
        %v3988 = vsel %vm3976, %v3970, %v3987
        %v3989 = vsel %vm3975, %v3986, %v3988
        %v3990 = vshll.u32 %v3950, 8
        %v3991 = vmul.u32.u64.compose %v3990, %v3989
        %v3992 = vextract.low.u32 %v3991
        %v3993 = vextract.high.u32 %v3991
        %v3994 = vmul.u32.u64.compose %v3990, %v3985
        %v3995 = vextract.low.u32 %v3994
        %v3996 = vextract.high.u32 %v3994
        %v3997 = vmul.u32 %v3990, %v3981
        %v3998 = vadd.s32 %v3993, %v3995
        %vm3999 = vc.u32 %v3993, %v3995
        %v4000 = vadd.s32 %v3996, 1
        %v4001 = vsel %vm3999, %v4000, %v3996
        %v4002 = vadd.s32 %v3997, %v4001
        %v4003 = vadd.s32 %v4002, 536870912
        %v4004 = vshrl.u32 %v4003, 30
        %v4005 = vshll.u32 %v4004, 30
        %v4006 = vsub.s32 %v4002, %v4005
        %vm4007 = vcmp.lt.s32.totalorder %v4006, 0
        %v4008 = vsub.s32 0, %v4006
        %v4009 = vsel %vm4007, %v4008, %v4006
        %v4010 = vclz %v4009
        %v4011 = vsub.s32 %v4010, 2
        %vm4012 = vcmp.gt.s32.totalorder 0, %v4011
        %v4013 = vsel %vm4012, 0, %v4011
        %v4014 = vsub.s32 32, %v4013
        %v4015 = vshll.u32 %v4006, %v4013
        %v4016 = vshrl.u32 %v3998, %v4014
        %v4017 = vor.u32 %v4015, %v4016
        %v4018 = vsub.s32 4294967266, %v4013
        %v4019 = vadd.s32 %v4018, 127
        %v4020 = vshll.u32 %v4019, 23
        %v4021 = vor.u32 4788187, %v4020
        %v4022 = vand.u32 2147483647, %v4021
        %v4024 = vcvt.s32.f32 %v4017
        %v4025 = vmul.f32 %v4024, %v4022
        %v4026 = vxor.u32 %v4025, 2147483648
        %v4027 = vsel %vm3944, %v4026, %v4025
        %v4028 = vsub.s32 4, %v4004
        %v4029 = vsel %vm3944, %v4028, %v4004
        %v4030 = vsel %vm3943, %v346, %v4027
        %v4031 = vsel %vm3943, 0, %v4029
        %v4032 = vcosq.f32.pop %v4030
        %v4033 = vsinq.f32.pop %v4030
        %vm4034 = vweird.f32 %v346
        %v4035 = vand.u32 %v4031, 3
        %vm4036 = vcmp.lt.s32.totalorder %v4035, 2
        %vm4037 = vcmp.eq.s32.totalorder %v4035, 0
        %v4038 = vxor.u32 %v4033, 2147483648
        %v4039 = vsel %vm4037, %v4032, %v4038
        %vm4040 = vcmp.eq.s32.totalorder %v4035, 2
        %v4041 = vxor.u32 %v4032, 2147483648
        %v4042 = vsel %vm4040, %v4041, %v4033
        %v4043 = vsel %vm4036, %v4039, %v4042
        %v4044 = vsel %vm4034, nan, %v4043
        %v4045 = vand.u32 2147483647, %v347
        %vm4046 = vcmp.le.f32.partialorder %v4045, 0.7853982
        %vm4047 = vcmp.lt.s32.totalorder %v347, 0
        %v4048 = vand.u32 %v347, 2139095040
        %v4049 = vshrl.u32 %v4048, 23
        %v4050 = vsub.s32 %v4049, 127
        %v4051 = vand.u32 2147483647, %v347
        %v4052 = vand.u32 %v4051, 8388607
        %v4053 = vor.u32 %v4052, 8388608
        %v4054 = vsub.s32 0, %v4053
        %v4055 = vadd.s32 %v4050, 1
        %vm4056 = vcmp.gt.s32.totalorder %v4055, 0
        %v4057 = vsel %vm4056, %v4055, 0
        %v4058 = vshrl.u32 %v4057, 5
        %v4059 = vand.u32 %v4057, 31
        %v4060 = vsub.s32 32, %v4059
        %v4061 = vshrl.u32 683565275, %v4060
        %v4062 = vshll.u32 683565275, %v4059
        %v4063 = vshrl.u32 2475754826, %v4060
        %v4064 = vor.u32 %v4062, %v4063
        %v4065 = vshll.u32 2475754826, %v4059
        %v4066 = vshrl.u32 2131351028, %v4060
        %v4067 = vor.u32 %v4065, %v4066
        %v4068 = vshll.u32 2131351028, %v4059
        %v4069 = vshrl.u32 2102212464, %v4060
        %v4070 = vor.u32 %v4068, %v4069
        %v4071 = vshll.u32 2102212464, %v4059
        %v4072 = vshrl.u32 920167782, %v4060
        %v4073 = vor.u32 %v4071, %v4072
        %v4074 = vshll.u32 920167782, %v4059
        %v4075 = vshrl.u32 1326507024, %v4060
        %v4076 = vor.u32 %v4074, %v4075
        %vm4077 = vcmp.lt.s32.totalorder %v4058, 1
        %vm4078 = vcmp.lt.s32.totalorder %v4058, 2
        %vm4079 = vcmp.lt.s32.totalorder %v4058, 3
        %vm4080 = vcmp.lt.s32.totalorder %v4058, 4
        %v4081 = vsel %vm4077, %v4061, %v4064
        %v4082 = vsel %vm4080, %v4070, 2102212464
        %v4083 = vsel %vm4079, %v4067, %v4082
        %v4084 = vsel %vm4078, %v4081, %v4083
        %v4085 = vsel %vm4077, %v4064, %v4067
        %v4086 = vsel %vm4080, %v4073, 920167782
        %v4087 = vsel %vm4079, %v4070, %v4086
        %v4088 = vsel %vm4078, %v4085, %v4087
        %v4089 = vsel %vm4077, %v4067, %v4070
        %v4090 = vsel %vm4080, %v4076, 1326507024
        %v4091 = vsel %vm4079, %v4073, %v4090
        %v4092 = vsel %vm4078, %v4089, %v4091
        %v4093 = vshll.u32 %v4053, 8
        %v4094 = vmul.u32.u64.compose %v4093, %v4092
        %v4095 = vextract.low.u32 %v4094
        %v4096 = vextract.high.u32 %v4094
        %v4097 = vmul.u32.u64.compose %v4093, %v4088
        %v4098 = vextract.low.u32 %v4097
        %v4099 = vextract.high.u32 %v4097
        %v4100 = vmul.u32 %v4093, %v4084
        %v4101 = vadd.s32 %v4096, %v4098
        %vm4102 = vc.u32 %v4096, %v4098
        %v4103 = vadd.s32 %v4099, 1
        %v4104 = vsel %vm4102, %v4103, %v4099
        %v4105 = vadd.s32 %v4100, %v4104
        %v4106 = vadd.s32 %v4105, 536870912
        %v4107 = vshrl.u32 %v4106, 30
        %v4108 = vshll.u32 %v4107, 30
        %v4109 = vsub.s32 %v4105, %v4108
        %vm4110 = vcmp.lt.s32.totalorder %v4109, 0
        %v4111 = vsub.s32 0, %v4109
        %v4112 = vsel %vm4110, %v4111, %v4109
        %v4113 = vclz %v4112
        %v4114 = vsub.s32 %v4113, 2
        %vm4115 = vcmp.gt.s32.totalorder 0, %v4114
        %v4116 = vsel %vm4115, 0, %v4114
        %v4117 = vsub.s32 32, %v4116
        %v4118 = vshll.u32 %v4109, %v4116
        %v4119 = vshrl.u32 %v4101, %v4117
        %v4120 = vor.u32 %v4118, %v4119
        %v4121 = vsub.s32 4294967266, %v4116
        %v4122 = vadd.s32 %v4121, 127
        %v4123 = vshll.u32 %v4122, 23
        %v4124 = vor.u32 4788187, %v4123
        %v4125 = vand.u32 2147483647, %v4124
        %v4127 = vcvt.s32.f32 %v4120
        %v4128 = vmul.f32 %v4127, %v4125
        %v4129 = vxor.u32 %v4128, 2147483648
        %v4130 = vsel %vm4047, %v4129, %v4128
        %v4131 = vsub.s32 4, %v4107
        %v4132 = vsel %vm4047, %v4131, %v4107
        %v4133 = vsel %vm4046, %v347, %v4130
        %v4134 = vsel %vm4046, 0, %v4132
        %v4135 = vcosq.f32.pop %v4133
        %v4136 = vsinq.f32.pop %v4133
        %vm4137 = vweird.f32 %v347
        %v4138 = vand.u32 %v4134, 3
        %vm4139 = vcmp.lt.s32.totalorder %v4138, 2
        %vm4140 = vcmp.eq.s32.totalorder %v4138, 0
        %v4141 = vxor.u32 %v4136, 2147483648
        %v4142 = vsel %vm4140, %v4135, %v4141
        %vm4143 = vcmp.eq.s32.totalorder %v4138, 2
        %v4144 = vxor.u32 %v4135, 2147483648
        %v4145 = vsel %vm4143, %v4144, %v4136
        %v4146 = vsel %vm4139, %v4142, %v4145
        %v4147 = vsel %vm4137, nan, %v4146
        %v4148 = vand.u32 2147483647, %v348
        %vm4149 = vcmp.le.f32.partialorder %v4148, 0.7853982
        %vm4150 = vcmp.lt.s32.totalorder %v348, 0
        %v4151 = vand.u32 %v348, 2139095040
        %v4152 = vshrl.u32 %v4151, 23
        %v4153 = vsub.s32 %v4152, 127
        %v4154 = vand.u32 2147483647, %v348
        %v4155 = vand.u32 %v4154, 8388607
        %v4156 = vor.u32 %v4155, 8388608
        %v4157 = vsub.s32 0, %v4156
        %v4158 = vadd.s32 %v4153, 1
        %vm4159 = vcmp.gt.s32.totalorder %v4158, 0
        %v4160 = vsel %vm4159, %v4158, 0
        %v4161 = vshrl.u32 %v4160, 5
        %v4162 = vand.u32 %v4160, 31
        %v4163 = vsub.s32 32, %v4162
        %v4164 = vshrl.u32 683565275, %v4163
        %v4165 = vshll.u32 683565275, %v4162
        %v4166 = vshrl.u32 2475754826, %v4163
        %v4167 = vor.u32 %v4165, %v4166
        %v4168 = vshll.u32 2475754826, %v4162
        %v4169 = vshrl.u32 2131351028, %v4163
        %v4170 = vor.u32 %v4168, %v4169
        %v4171 = vshll.u32 2131351028, %v4162
        %v4172 = vshrl.u32 2102212464, %v4163
        %v4173 = vor.u32 %v4171, %v4172
        %v4174 = vshll.u32 2102212464, %v4162
        %v4175 = vshrl.u32 920167782, %v4163
        %v4176 = vor.u32 %v4174, %v4175
        %v4177 = vshll.u32 920167782, %v4162
        %v4178 = vshrl.u32 1326507024, %v4163
        %v4179 = vor.u32 %v4177, %v4178
        %vm4180 = vcmp.lt.s32.totalorder %v4161, 1
        %vm4181 = vcmp.lt.s32.totalorder %v4161, 2
        %vm4182 = vcmp.lt.s32.totalorder %v4161, 3
        %vm4183 = vcmp.lt.s32.totalorder %v4161, 4
        %v4184 = vsel %vm4180, %v4164, %v4167
        %v4185 = vsel %vm4183, %v4173, 2102212464
        %v4186 = vsel %vm4182, %v4170, %v4185
        %v4187 = vsel %vm4181, %v4184, %v4186
        %v4188 = vsel %vm4180, %v4167, %v4170
        %v4189 = vsel %vm4183, %v4176, 920167782
        %v4190 = vsel %vm4182, %v4173, %v4189
        %v4191 = vsel %vm4181, %v4188, %v4190
        %v4192 = vsel %vm4180, %v4170, %v4173
        %v4193 = vsel %vm4183, %v4179, 1326507024
        %v4194 = vsel %vm4182, %v4176, %v4193
        %v4195 = vsel %vm4181, %v4192, %v4194
        %v4196 = vshll.u32 %v4156, 8
        %v4197 = vmul.u32.u64.compose %v4196, %v4195
        %v4198 = vextract.low.u32 %v4197
        %v4199 = vextract.high.u32 %v4197
        %v4200 = vmul.u32.u64.compose %v4196, %v4191
        %v4201 = vextract.low.u32 %v4200
        %v4202 = vextract.high.u32 %v4200
        %v4203 = vmul.u32 %v4196, %v4187
        %v4204 = vadd.s32 %v4199, %v4201
        %vm4205 = vc.u32 %v4199, %v4201
        %v4206 = vadd.s32 %v4202, 1
        %v4207 = vsel %vm4205, %v4206, %v4202
        %v4208 = vadd.s32 %v4203, %v4207
        %v4209 = vadd.s32 %v4208, 536870912
        %v4210 = vshrl.u32 %v4209, 30
        %v4211 = vshll.u32 %v4210, 30
        %v4212 = vsub.s32 %v4208, %v4211
        %vm4213 = vcmp.lt.s32.totalorder %v4212, 0
        %v4214 = vsub.s32 0, %v4212
        %v4215 = vsel %vm4213, %v4214, %v4212
        %v4216 = vclz %v4215
        %v4217 = vsub.s32 %v4216, 2
        %vm4218 = vcmp.gt.s32.totalorder 0, %v4217
        %v4219 = vsel %vm4218, 0, %v4217
        %v4220 = vsub.s32 32, %v4219
        %v4221 = vshll.u32 %v4212, %v4219
        %v4222 = vshrl.u32 %v4204, %v4220
        %v4223 = vor.u32 %v4221, %v4222
        %v4224 = vsub.s32 4294967266, %v4219
        %v4225 = vadd.s32 %v4224, 127
        %v4226 = vshll.u32 %v4225, 23
        %v4227 = vor.u32 4788187, %v4226
        %v4228 = vand.u32 2147483647, %v4227
        %v4230 = vcvt.s32.f32 %v4223
        %v4231 = vmul.f32 %v4230, %v4228
        %v4232 = vxor.u32 %v4231, 2147483648
        %v4233 = vsel %vm4150, %v4232, %v4231
        %v4234 = vsub.s32 4, %v4210
        %v4235 = vsel %vm4150, %v4234, %v4210
        %v4236 = vsel %vm4149, %v348, %v4233
        %v4237 = vsel %vm4149, 0, %v4235
        %v4238 = vcosq.f32.pop %v4236
        %v4239 = vsinq.f32.pop %v4236
        %vm4240 = vweird.f32 %v348
        %v4241 = vand.u32 %v4237, 3
        %vm4242 = vcmp.lt.s32.totalorder %v4241, 2
        %vm4243 = vcmp.eq.s32.totalorder %v4241, 0
        %v4244 = vxor.u32 %v4239, 2147483648
        %v4245 = vsel %vm4243, %v4238, %v4244
        %vm4246 = vcmp.eq.s32.totalorder %v4241, 2
        %v4247 = vxor.u32 %v4238, 2147483648
        %v4248 = vsel %vm4246, %v4247, %v4239
        %v4249 = vsel %vm4242, %v4245, %v4248
        %v4250 = vsel %vm4240, nan, %v4249
        %v4251 = vand.u32 2147483647, %v349
        %vm4252 = vcmp.le.f32.partialorder %v4251, 0.7853982
        %vm4253 = vcmp.lt.s32.totalorder %v349, 0
        %v4254 = vand.u32 %v349, 2139095040
        %v4255 = vshrl.u32 %v4254, 23
        %v4256 = vsub.s32 %v4255, 127
        %v4257 = vand.u32 2147483647, %v349
        %v4258 = vand.u32 %v4257, 8388607
        %v4259 = vor.u32 %v4258, 8388608
        %v4260 = vsub.s32 0, %v4259
        %v4261 = vadd.s32 %v4256, 1
        %vm4262 = vcmp.gt.s32.totalorder %v4261, 0
        %v4263 = vsel %vm4262, %v4261, 0
        %v4264 = vshrl.u32 %v4263, 5
        %v4265 = vand.u32 %v4263, 31
        %v4266 = vsub.s32 32, %v4265
        %v4267 = vshrl.u32 683565275, %v4266
        %v4268 = vshll.u32 683565275, %v4265
        %v4269 = vshrl.u32 2475754826, %v4266
        %v4270 = vor.u32 %v4268, %v4269
        %v4271 = vshll.u32 2475754826, %v4265
        %v4272 = vshrl.u32 2131351028, %v4266
        %v4273 = vor.u32 %v4271, %v4272
        %v4274 = vshll.u32 2131351028, %v4265
        %v4275 = vshrl.u32 2102212464, %v4266
        %v4276 = vor.u32 %v4274, %v4275
        %v4277 = vshll.u32 2102212464, %v4265
        %v4278 = vshrl.u32 920167782, %v4266
        %v4279 = vor.u32 %v4277, %v4278
        %v4280 = vshll.u32 920167782, %v4265
        %v4281 = vshrl.u32 1326507024, %v4266
        %v4282 = vor.u32 %v4280, %v4281
        %vm4283 = vcmp.lt.s32.totalorder %v4264, 1
        %vm4284 = vcmp.lt.s32.totalorder %v4264, 2
        %vm4285 = vcmp.lt.s32.totalorder %v4264, 3
        %vm4286 = vcmp.lt.s32.totalorder %v4264, 4
        %v4287 = vsel %vm4283, %v4267, %v4270
        %v4288 = vsel %vm4286, %v4276, 2102212464
        %v4289 = vsel %vm4285, %v4273, %v4288
        %v4290 = vsel %vm4284, %v4287, %v4289
        %v4291 = vsel %vm4283, %v4270, %v4273
        %v4292 = vsel %vm4286, %v4279, 920167782
        %v4293 = vsel %vm4285, %v4276, %v4292
        %v4294 = vsel %vm4284, %v4291, %v4293
        %v4295 = vsel %vm4283, %v4273, %v4276
        %v4296 = vsel %vm4286, %v4282, 1326507024
        %v4297 = vsel %vm4285, %v4279, %v4296
        %v4298 = vsel %vm4284, %v4295, %v4297
        %v4299 = vshll.u32 %v4259, 8
        %v4300 = vmul.u32.u64.compose %v4299, %v4298
        %v4301 = vextract.low.u32 %v4300
        %v4302 = vextract.high.u32 %v4300
        %v4303 = vmul.u32.u64.compose %v4299, %v4294
        %v4304 = vextract.low.u32 %v4303
        %v4305 = vextract.high.u32 %v4303
        %v4306 = vmul.u32 %v4299, %v4290
        %v4307 = vadd.s32 %v4302, %v4304
        %vm4308 = vc.u32 %v4302, %v4304
        %v4309 = vadd.s32 %v4305, 1
        %v4310 = vsel %vm4308, %v4309, %v4305
        %v4311 = vadd.s32 %v4306, %v4310
        %v4312 = vadd.s32 %v4311, 536870912
        %v4313 = vshrl.u32 %v4312, 30
        %v4314 = vshll.u32 %v4313, 30
        %v4315 = vsub.s32 %v4311, %v4314
        %vm4316 = vcmp.lt.s32.totalorder %v4315, 0
        %v4317 = vsub.s32 0, %v4315
        %v4318 = vsel %vm4316, %v4317, %v4315
        %v4319 = vclz %v4318
        %v4320 = vsub.s32 %v4319, 2
        %vm4321 = vcmp.gt.s32.totalorder 0, %v4320
        %v4322 = vsel %vm4321, 0, %v4320
        %v4323 = vsub.s32 32, %v4322
        %v4324 = vshll.u32 %v4315, %v4322
        %v4325 = vshrl.u32 %v4307, %v4323
        %v4326 = vor.u32 %v4324, %v4325
        %v4327 = vsub.s32 4294967266, %v4322
        %v4328 = vadd.s32 %v4327, 127
        %v4329 = vshll.u32 %v4328, 23
        %v4330 = vor.u32 4788187, %v4329
        %v4331 = vand.u32 2147483647, %v4330
        %v4333 = vcvt.s32.f32 %v4326
        %v4334 = vmul.f32 %v4333, %v4331
        %v4335 = vxor.u32 %v4334, 2147483648
        %v4336 = vsel %vm4253, %v4335, %v4334
        %v4337 = vsub.s32 4, %v4313
        %v4338 = vsel %vm4253, %v4337, %v4313
        %v4339 = vsel %vm4252, %v349, %v4336
        %v4340 = vsel %vm4252, 0, %v4338
        %v4341 = vcosq.f32.pop %v4339
        %v4342 = vsinq.f32.pop %v4339
        %vm4343 = vweird.f32 %v349
        %v4344 = vand.u32 %v4340, 3
        %vm4345 = vcmp.lt.s32.totalorder %v4344, 2
        %vm4346 = vcmp.eq.s32.totalorder %v4344, 0
        %v4347 = vxor.u32 %v4342, 2147483648
        %v4348 = vsel %vm4346, %v4341, %v4347
        %vm4349 = vcmp.eq.s32.totalorder %v4344, 2
        %v4350 = vxor.u32 %v4341, 2147483648
        %v4351 = vsel %vm4349, %v4350, %v4342
        %v4352 = vsel %vm4345, %v4348, %v4351
        %v4353 = vsel %vm4343, nan, %v4352
        %v4354 = vand.u32 2147483647, %v350
        %vm4355 = vcmp.le.f32.partialorder %v4354, 0.7853982
        %vm4356 = vcmp.lt.s32.totalorder %v350, 0
        %v4357 = vand.u32 %v350, 2139095040
        %v4358 = vshrl.u32 %v4357, 23
        %v4359 = vsub.s32 %v4358, 127
        %v4360 = vand.u32 2147483647, %v350
        %v4361 = vand.u32 %v4360, 8388607
        %v4362 = vor.u32 %v4361, 8388608
        %v4363 = vsub.s32 0, %v4362
        %v4364 = vadd.s32 %v4359, 1
        %vm4365 = vcmp.gt.s32.totalorder %v4364, 0
        %v4366 = vsel %vm4365, %v4364, 0
        %v4367 = vshrl.u32 %v4366, 5
        %v4368 = vand.u32 %v4366, 31
        %v4369 = vsub.s32 32, %v4368
        %v4370 = vshrl.u32 683565275, %v4369
        %v4371 = vshll.u32 683565275, %v4368
        %v4372 = vshrl.u32 2475754826, %v4369
        %v4373 = vor.u32 %v4371, %v4372
        %v4374 = vshll.u32 2475754826, %v4368
        %v4375 = vshrl.u32 2131351028, %v4369
        %v4376 = vor.u32 %v4374, %v4375
        %v4377 = vshll.u32 2131351028, %v4368
        %v4378 = vshrl.u32 2102212464, %v4369
        %v4379 = vor.u32 %v4377, %v4378
        %v4380 = vshll.u32 2102212464, %v4368
        %v4381 = vshrl.u32 920167782, %v4369
        %v4382 = vor.u32 %v4380, %v4381
        %v4383 = vshll.u32 920167782, %v4368
        %v4384 = vshrl.u32 1326507024, %v4369
        %v4385 = vor.u32 %v4383, %v4384
        %vm4386 = vcmp.lt.s32.totalorder %v4367, 1
        %vm4387 = vcmp.lt.s32.totalorder %v4367, 2
        %vm4388 = vcmp.lt.s32.totalorder %v4367, 3
        %vm4389 = vcmp.lt.s32.totalorder %v4367, 4
        %v4390 = vsel %vm4386, %v4370, %v4373
        %v4391 = vsel %vm4389, %v4379, 2102212464
        %v4392 = vsel %vm4388, %v4376, %v4391
        %v4393 = vsel %vm4387, %v4390, %v4392
        %v4394 = vsel %vm4386, %v4373, %v4376
        %v4395 = vsel %vm4389, %v4382, 920167782
        %v4396 = vsel %vm4388, %v4379, %v4395
        %v4397 = vsel %vm4387, %v4394, %v4396
        %v4398 = vsel %vm4386, %v4376, %v4379
        %v4399 = vsel %vm4389, %v4385, 1326507024
        %v4400 = vsel %vm4388, %v4382, %v4399
        %v4401 = vsel %vm4387, %v4398, %v4400
        %v4402 = vshll.u32 %v4362, 8
        %v4403 = vmul.u32.u64.compose %v4402, %v4401
        %v4404 = vextract.low.u32 %v4403
        %v4405 = vextract.high.u32 %v4403
        %v4406 = vmul.u32.u64.compose %v4402, %v4397
        %v4407 = vextract.low.u32 %v4406
        %v4408 = vextract.high.u32 %v4406
        %v4409 = vmul.u32 %v4402, %v4393
        %v4410 = vadd.s32 %v4405, %v4407
        %vm4411 = vc.u32 %v4405, %v4407
        %v4412 = vadd.s32 %v4408, 1
        %v4413 = vsel %vm4411, %v4412, %v4408
        %v4414 = vadd.s32 %v4409, %v4413
        %v4415 = vadd.s32 %v4414, 536870912
        %v4416 = vshrl.u32 %v4415, 30
        %v4417 = vshll.u32 %v4416, 30
        %v4418 = vsub.s32 %v4414, %v4417
        %vm4419 = vcmp.lt.s32.totalorder %v4418, 0
        %v4420 = vsub.s32 0, %v4418
        %v4421 = vsel %vm4419, %v4420, %v4418
        %v4422 = vclz %v4421
        %v4423 = vsub.s32 %v4422, 2
        %vm4424 = vcmp.gt.s32.totalorder 0, %v4423
        %v4425 = vsel %vm4424, 0, %v4423
        %v4426 = vsub.s32 32, %v4425
        %v4427 = vshll.u32 %v4418, %v4425
        %v4428 = vshrl.u32 %v4410, %v4426
        %v4429 = vor.u32 %v4427, %v4428
        %v4430 = vsub.s32 4294967266, %v4425
        %v4431 = vadd.s32 %v4430, 127
        %v4432 = vshll.u32 %v4431, 23
        %v4433 = vor.u32 4788187, %v4432
        %v4434 = vand.u32 2147483647, %v4433
        %v4436 = vcvt.s32.f32 %v4429
        %v4437 = vmul.f32 %v4436, %v4434
        %v4438 = vxor.u32 %v4437, 2147483648
        %v4439 = vsel %vm4356, %v4438, %v4437
        %v4440 = vsub.s32 4, %v4416
        %v4441 = vsel %vm4356, %v4440, %v4416
        %v4442 = vsel %vm4355, %v350, %v4439
        %v4443 = vsel %vm4355, 0, %v4441
        %v4444 = vcosq.f32.pop %v4442
        %v4445 = vsinq.f32.pop %v4442
        %vm4446 = vweird.f32 %v350
        %v4447 = vand.u32 %v4443, 3
        %vm4448 = vcmp.lt.s32.totalorder %v4447, 2
        %vm4449 = vcmp.eq.s32.totalorder %v4447, 0
        %v4450 = vxor.u32 %v4445, 2147483648
        %v4451 = vsel %vm4449, %v4444, %v4450
        %vm4452 = vcmp.eq.s32.totalorder %v4447, 2
        %v4453 = vxor.u32 %v4444, 2147483648
        %v4454 = vsel %vm4452, %v4453, %v4445
        %v4455 = vsel %vm4448, %v4451, %v4454
        %v4456 = vsel %vm4446, nan, %v4455
        %v4457 = vand.u32 2147483647, %v351
        %vm4458 = vcmp.le.f32.partialorder %v4457, 0.7853982
        %vm4459 = vcmp.lt.s32.totalorder %v351, 0
        %v4460 = vand.u32 %v351, 2139095040
        %v4461 = vshrl.u32 %v4460, 23
        %v4462 = vsub.s32 %v4461, 127
        %v4463 = vand.u32 2147483647, %v351
        %v4464 = vand.u32 %v4463, 8388607
        %v4465 = vor.u32 %v4464, 8388608
        %v4466 = vsub.s32 0, %v4465
        %v4467 = vadd.s32 %v4462, 1
        %vm4468 = vcmp.gt.s32.totalorder %v4467, 0
        %v4469 = vsel %vm4468, %v4467, 0
        %v4470 = vshrl.u32 %v4469, 5
        %v4471 = vand.u32 %v4469, 31
        %v4472 = vsub.s32 32, %v4471
        %v4473 = vshrl.u32 683565275, %v4472
        %v4474 = vshll.u32 683565275, %v4471
        %v4475 = vshrl.u32 2475754826, %v4472
        %v4476 = vor.u32 %v4474, %v4475
        %v4477 = vshll.u32 2475754826, %v4471
        %v4478 = vshrl.u32 2131351028, %v4472
        %v4479 = vor.u32 %v4477, %v4478
        %v4480 = vshll.u32 2131351028, %v4471
        %v4481 = vshrl.u32 2102212464, %v4472
        %v4482 = vor.u32 %v4480, %v4481
        %v4483 = vshll.u32 2102212464, %v4471
        %v4484 = vshrl.u32 920167782, %v4472
        %v4485 = vor.u32 %v4483, %v4484
        %v4486 = vshll.u32 920167782, %v4471
        %v4487 = vshrl.u32 1326507024, %v4472
        %v4488 = vor.u32 %v4486, %v4487
        %vm4489 = vcmp.lt.s32.totalorder %v4470, 1
        %vm4490 = vcmp.lt.s32.totalorder %v4470, 2
        %vm4491 = vcmp.lt.s32.totalorder %v4470, 3
        %vm4492 = vcmp.lt.s32.totalorder %v4470, 4
        %v4493 = vsel %vm4489, %v4473, %v4476
        %v4494 = vsel %vm4492, %v4482, 2102212464
        %v4495 = vsel %vm4491, %v4479, %v4494
        %v4496 = vsel %vm4490, %v4493, %v4495
        %v4497 = vsel %vm4489, %v4476, %v4479
        %v4498 = vsel %vm4492, %v4485, 920167782
        %v4499 = vsel %vm4491, %v4482, %v4498
        %v4500 = vsel %vm4490, %v4497, %v4499
        %v4501 = vsel %vm4489, %v4479, %v4482
        %v4502 = vsel %vm4492, %v4488, 1326507024
        %v4503 = vsel %vm4491, %v4485, %v4502
        %v4504 = vsel %vm4490, %v4501, %v4503
        %v4505 = vshll.u32 %v4465, 8
        %v4506 = vmul.u32.u64.compose %v4505, %v4504
        %v4507 = vextract.low.u32 %v4506
        %v4508 = vextract.high.u32 %v4506
        %v4509 = vmul.u32.u64.compose %v4505, %v4500
        %v4510 = vextract.low.u32 %v4509
        %v4511 = vextract.high.u32 %v4509
        %v4512 = vmul.u32 %v4505, %v4496
        %v4513 = vadd.s32 %v4508, %v4510
        %vm4514 = vc.u32 %v4508, %v4510
        %v4515 = vadd.s32 %v4511, 1
        %v4516 = vsel %vm4514, %v4515, %v4511
        %v4517 = vadd.s32 %v4512, %v4516
        %v4518 = vadd.s32 %v4517, 536870912
        %v4519 = vshrl.u32 %v4518, 30
        %v4520 = vshll.u32 %v4519, 30
        %v4521 = vsub.s32 %v4517, %v4520
        %vm4522 = vcmp.lt.s32.totalorder %v4521, 0
        %v4523 = vsub.s32 0, %v4521
        %v4524 = vsel %vm4522, %v4523, %v4521
        %v4525 = vclz %v4524
        %v4526 = vsub.s32 %v4525, 2
        %vm4527 = vcmp.gt.s32.totalorder 0, %v4526
        %v4528 = vsel %vm4527, 0, %v4526
        %v4529 = vsub.s32 32, %v4528
        %v4530 = vshll.u32 %v4521, %v4528
        %v4531 = vshrl.u32 %v4513, %v4529
        %v4532 = vor.u32 %v4530, %v4531
        %v4533 = vsub.s32 4294967266, %v4528
        %v4534 = vadd.s32 %v4533, 127
        %v4535 = vshll.u32 %v4534, 23
        %v4536 = vor.u32 4788187, %v4535
        %v4537 = vand.u32 2147483647, %v4536
        %v4539 = vcvt.s32.f32 %v4532
        %v4540 = vmul.f32 %v4539, %v4537
        %v4541 = vxor.u32 %v4540, 2147483648
        %v4542 = vsel %vm4459, %v4541, %v4540
        %v4543 = vsub.s32 4, %v4519
        %v4544 = vsel %vm4459, %v4543, %v4519
        %v4545 = vsel %vm4458, %v351, %v4542
        %v4546 = vsel %vm4458, 0, %v4544
        %v4547 = vcosq.f32.pop %v4545
        %v4548 = vsinq.f32.pop %v4545
        %vm4549 = vweird.f32 %v351
        %v4550 = vand.u32 %v4546, 3
        %vm4551 = vcmp.lt.s32.totalorder %v4550, 2
        %vm4552 = vcmp.eq.s32.totalorder %v4550, 0
        %v4553 = vxor.u32 %v4548, 2147483648
        %v4554 = vsel %vm4552, %v4547, %v4553
        %vm4555 = vcmp.eq.s32.totalorder %v4550, 2
        %v4556 = vxor.u32 %v4547, 2147483648
        %v4557 = vsel %vm4555, %v4556, %v4548
        %v4558 = vsel %vm4551, %v4554, %v4557
        %v4559 = vsel %vm4549, nan, %v4558
        %v4560 = vand.u32 2147483647, %v352
        %vm4561 = vcmp.le.f32.partialorder %v4560, 0.7853982
        %vm4562 = vcmp.lt.s32.totalorder %v352, 0
        %v4563 = vand.u32 %v352, 2139095040
        %v4564 = vshrl.u32 %v4563, 23
        %v4565 = vsub.s32 %v4564, 127
        %v4566 = vand.u32 2147483647, %v352
        %v4567 = vand.u32 %v4566, 8388607
        %v4568 = vor.u32 %v4567, 8388608
        %v4569 = vsub.s32 0, %v4568
        %v4570 = vadd.s32 %v4565, 1
        %vm4571 = vcmp.gt.s32.totalorder %v4570, 0
        %v4572 = vsel %vm4571, %v4570, 0
        %v4573 = vshrl.u32 %v4572, 5
        %v4574 = vand.u32 %v4572, 31
        %v4575 = vsub.s32 32, %v4574
        %v4576 = vshrl.u32 683565275, %v4575
        %v4577 = vshll.u32 683565275, %v4574
        %v4578 = vshrl.u32 2475754826, %v4575
        %v4579 = vor.u32 %v4577, %v4578
        %v4580 = vshll.u32 2475754826, %v4574
        %v4581 = vshrl.u32 2131351028, %v4575
        %v4582 = vor.u32 %v4580, %v4581
        %v4583 = vshll.u32 2131351028, %v4574
        %v4584 = vshrl.u32 2102212464, %v4575
        %v4585 = vor.u32 %v4583, %v4584
        %v4586 = vshll.u32 2102212464, %v4574
        %v4587 = vshrl.u32 920167782, %v4575
        %v4588 = vor.u32 %v4586, %v4587
        %v4589 = vshll.u32 920167782, %v4574
        %v4590 = vshrl.u32 1326507024, %v4575
        %v4591 = vor.u32 %v4589, %v4590
        %vm4592 = vcmp.lt.s32.totalorder %v4573, 1
        %vm4593 = vcmp.lt.s32.totalorder %v4573, 2
        %vm4594 = vcmp.lt.s32.totalorder %v4573, 3
        %vm4595 = vcmp.lt.s32.totalorder %v4573, 4
        %v4596 = vsel %vm4592, %v4576, %v4579
        %v4597 = vsel %vm4595, %v4585, 2102212464
        %v4598 = vsel %vm4594, %v4582, %v4597
        %v4599 = vsel %vm4593, %v4596, %v4598
        %v4600 = vsel %vm4592, %v4579, %v4582
        %v4601 = vsel %vm4595, %v4588, 920167782
        %v4602 = vsel %vm4594, %v4585, %v4601
        %v4603 = vsel %vm4593, %v4600, %v4602
        %v4604 = vsel %vm4592, %v4582, %v4585
        %v4605 = vsel %vm4595, %v4591, 1326507024
        %v4606 = vsel %vm4594, %v4588, %v4605
        %v4607 = vsel %vm4593, %v4604, %v4606
        %v4608 = vshll.u32 %v4568, 8
        %v4609 = vmul.u32.u64.compose %v4608, %v4607
        %v4610 = vextract.low.u32 %v4609
        %v4611 = vextract.high.u32 %v4609
        %v4612 = vmul.u32.u64.compose %v4608, %v4603
        %v4613 = vextract.low.u32 %v4612
        %v4614 = vextract.high.u32 %v4612
        %v4615 = vmul.u32 %v4608, %v4599
        %v4616 = vadd.s32 %v4611, %v4613
        %vm4617 = vc.u32 %v4611, %v4613
        %v4618 = vadd.s32 %v4614, 1
        %v4619 = vsel %vm4617, %v4618, %v4614
        %v4620 = vadd.s32 %v4615, %v4619
        %v4621 = vadd.s32 %v4620, 536870912
        %v4622 = vshrl.u32 %v4621, 30
        %v4623 = vshll.u32 %v4622, 30
        %v4624 = vsub.s32 %v4620, %v4623
        %vm4625 = vcmp.lt.s32.totalorder %v4624, 0
        %v4626 = vsub.s32 0, %v4624
        %v4627 = vsel %vm4625, %v4626, %v4624
        %v4628 = vclz %v4627
        %v4629 = vsub.s32 %v4628, 2
        %vm4630 = vcmp.gt.s32.totalorder 0, %v4629
        %v4631 = vsel %vm4630, 0, %v4629
        %v4632 = vsub.s32 32, %v4631
        %v4633 = vshll.u32 %v4624, %v4631
        %v4634 = vshrl.u32 %v4616, %v4632
        %v4635 = vor.u32 %v4633, %v4634
        %v4636 = vsub.s32 4294967266, %v4631
        %v4637 = vadd.s32 %v4636, 127
        %v4638 = vshll.u32 %v4637, 23
        %v4639 = vor.u32 4788187, %v4638
        %v4640 = vand.u32 2147483647, %v4639
        %v4642 = vcvt.s32.f32 %v4635
        %v4643 = vmul.f32 %v4642, %v4640
        %v4644 = vxor.u32 %v4643, 2147483648
        %v4645 = vsel %vm4562, %v4644, %v4643
        %v4646 = vsub.s32 4, %v4622
        %v4647 = vsel %vm4562, %v4646, %v4622
        %v4648 = vsel %vm4561, %v352, %v4645
        %v4649 = vsel %vm4561, 0, %v4647
        %v4650 = vcosq.f32.pop %v4648
        %v4651 = vsinq.f32.pop %v4648
        %vm4652 = vweird.f32 %v352
        %v4653 = vand.u32 %v4649, 3
        %vm4654 = vcmp.lt.s32.totalorder %v4653, 2
        %vm4655 = vcmp.eq.s32.totalorder %v4653, 0
        %v4656 = vxor.u32 %v4651, 2147483648
        %v4657 = vsel %vm4655, %v4650, %v4656
        %vm4658 = vcmp.eq.s32.totalorder %v4653, 2
        %v4659 = vxor.u32 %v4650, 2147483648
        %v4660 = vsel %vm4658, %v4659, %v4651
        %v4661 = vsel %vm4654, %v4657, %v4660
        %v4662 = vsel %vm4652, nan, %v4661
        %v4663 = vand.u32 2147483647, %v353
        %vm4664 = vcmp.le.f32.partialorder %v4663, 0.7853982
        %vm4665 = vcmp.lt.s32.totalorder %v353, 0
        %v4666 = vand.u32 %v353, 2139095040
        %v4667 = vshrl.u32 %v4666, 23
        %v4668 = vsub.s32 %v4667, 127
        %v4669 = vand.u32 2147483647, %v353
        %v4670 = vand.u32 %v4669, 8388607
        %v4671 = vor.u32 %v4670, 8388608
        %v4672 = vsub.s32 0, %v4671
        %v4673 = vadd.s32 %v4668, 1
        %vm4674 = vcmp.gt.s32.totalorder %v4673, 0
        %v4675 = vsel %vm4674, %v4673, 0
        %v4676 = vshrl.u32 %v4675, 5
        %v4677 = vand.u32 %v4675, 31
        %v4678 = vsub.s32 32, %v4677
        %v4679 = vshrl.u32 683565275, %v4678
        %v4680 = vshll.u32 683565275, %v4677
        %v4681 = vshrl.u32 2475754826, %v4678
        %v4682 = vor.u32 %v4680, %v4681
        %v4683 = vshll.u32 2475754826, %v4677
        %v4684 = vshrl.u32 2131351028, %v4678
        %v4685 = vor.u32 %v4683, %v4684
        %v4686 = vshll.u32 2131351028, %v4677
        %v4687 = vshrl.u32 2102212464, %v4678
        %v4688 = vor.u32 %v4686, %v4687
        %v4689 = vshll.u32 2102212464, %v4677
        %v4690 = vshrl.u32 920167782, %v4678
        %v4691 = vor.u32 %v4689, %v4690
        %v4692 = vshll.u32 920167782, %v4677
        %v4693 = vshrl.u32 1326507024, %v4678
        %v4694 = vor.u32 %v4692, %v4693
        %vm4695 = vcmp.lt.s32.totalorder %v4676, 1
        %vm4696 = vcmp.lt.s32.totalorder %v4676, 2
        %vm4697 = vcmp.lt.s32.totalorder %v4676, 3
        %vm4698 = vcmp.lt.s32.totalorder %v4676, 4
        %v4699 = vsel %vm4695, %v4679, %v4682
        %v4700 = vsel %vm4698, %v4688, 2102212464
        %v4701 = vsel %vm4697, %v4685, %v4700
        %v4702 = vsel %vm4696, %v4699, %v4701
        %v4703 = vsel %vm4695, %v4682, %v4685
        %v4704 = vsel %vm4698, %v4691, 920167782
        %v4705 = vsel %vm4697, %v4688, %v4704
        %v4706 = vsel %vm4696, %v4703, %v4705
        %v4707 = vsel %vm4695, %v4685, %v4688
        %v4708 = vsel %vm4698, %v4694, 1326507024
        %v4709 = vsel %vm4697, %v4691, %v4708
        %v4710 = vsel %vm4696, %v4707, %v4709
        %v4711 = vshll.u32 %v4671, 8
        %v4712 = vmul.u32.u64.compose %v4711, %v4710
        %v4713 = vextract.low.u32 %v4712
        %v4714 = vextract.high.u32 %v4712
        %v4715 = vmul.u32.u64.compose %v4711, %v4706
        %v4716 = vextract.low.u32 %v4715
        %v4717 = vextract.high.u32 %v4715
        %v4718 = vmul.u32 %v4711, %v4702
        %v4719 = vadd.s32 %v4714, %v4716
        %vm4720 = vc.u32 %v4714, %v4716
        %v4721 = vadd.s32 %v4717, 1
        %v4722 = vsel %vm4720, %v4721, %v4717
        %v4723 = vadd.s32 %v4718, %v4722
        %v4724 = vadd.s32 %v4723, 536870912
        %v4725 = vshrl.u32 %v4724, 30
        %v4726 = vshll.u32 %v4725, 30
        %v4727 = vsub.s32 %v4723, %v4726
        %vm4728 = vcmp.lt.s32.totalorder %v4727, 0
        %v4729 = vsub.s32 0, %v4727
        %v4730 = vsel %vm4728, %v4729, %v4727
        %v4731 = vclz %v4730
        %v4732 = vsub.s32 %v4731, 2
        %vm4733 = vcmp.gt.s32.totalorder 0, %v4732
        %v4734 = vsel %vm4733, 0, %v4732
        %v4735 = vsub.s32 32, %v4734
        %v4736 = vshll.u32 %v4727, %v4734
        %v4737 = vshrl.u32 %v4719, %v4735
        %v4738 = vor.u32 %v4736, %v4737
        %v4739 = vsub.s32 4294967266, %v4734
        %v4740 = vadd.s32 %v4739, 127
        %v4741 = vshll.u32 %v4740, 23
        %v4742 = vor.u32 4788187, %v4741
        %v4743 = vand.u32 2147483647, %v4742
        %v4745 = vcvt.s32.f32 %v4738
        %v4746 = vmul.f32 %v4745, %v4743
        %v4747 = vxor.u32 %v4746, 2147483648
        %v4748 = vsel %vm4665, %v4747, %v4746
        %v4749 = vsub.s32 4, %v4725
        %v4750 = vsel %vm4665, %v4749, %v4725
        %v4751 = vsel %vm4664, %v353, %v4748
        %v4752 = vsel %vm4664, 0, %v4750
        %v4753 = vcosq.f32.pop %v4751
        %v4754 = vsinq.f32.pop %v4751
        %vm4755 = vweird.f32 %v353
        %v4756 = vand.u32 %v4752, 3
        %vm4757 = vcmp.lt.s32.totalorder %v4756, 2
        %vm4758 = vcmp.eq.s32.totalorder %v4756, 0
        %v4759 = vxor.u32 %v4754, 2147483648
        %v4760 = vsel %vm4758, %v4753, %v4759
        %vm4761 = vcmp.eq.s32.totalorder %v4756, 2
        %v4762 = vxor.u32 %v4753, 2147483648
        %v4763 = vsel %vm4761, %v4762, %v4754
        %v4764 = vsel %vm4757, %v4760, %v4763
        %v4765 = vsel %vm4755, nan, %v4764
        %v4766 = vand.u32 2147483647, %v354
        %vm4767 = vcmp.le.f32.partialorder %v4766, 0.7853982
        %vm4768 = vcmp.lt.s32.totalorder %v354, 0
        %v4769 = vand.u32 %v354, 2139095040
        %v4770 = vshrl.u32 %v4769, 23
        %v4771 = vsub.s32 %v4770, 127
        %v4772 = vand.u32 2147483647, %v354
        %v4773 = vand.u32 %v4772, 8388607
        %v4774 = vor.u32 %v4773, 8388608
        %v4775 = vsub.s32 0, %v4774
        %v4776 = vadd.s32 %v4771, 1
        %vm4777 = vcmp.gt.s32.totalorder %v4776, 0
        %v4778 = vsel %vm4777, %v4776, 0
        %v4779 = vshrl.u32 %v4778, 5
        %v4780 = vand.u32 %v4778, 31
        %v4781 = vsub.s32 32, %v4780
        %v4782 = vshrl.u32 683565275, %v4781
        %v4783 = vshll.u32 683565275, %v4780
        %v4784 = vshrl.u32 2475754826, %v4781
        %v4785 = vor.u32 %v4783, %v4784
        %v4786 = vshll.u32 2475754826, %v4780
        %v4787 = vshrl.u32 2131351028, %v4781
        %v4788 = vor.u32 %v4786, %v4787
        %v4789 = vshll.u32 2131351028, %v4780
        %v4790 = vshrl.u32 2102212464, %v4781
        %v4791 = vor.u32 %v4789, %v4790
        %v4792 = vshll.u32 2102212464, %v4780
        %v4793 = vshrl.u32 920167782, %v4781
        %v4794 = vor.u32 %v4792, %v4793
        %v4795 = vshll.u32 920167782, %v4780
        %v4796 = vshrl.u32 1326507024, %v4781
        %v4797 = vor.u32 %v4795, %v4796
        %vm4798 = vcmp.lt.s32.totalorder %v4779, 1
        %vm4799 = vcmp.lt.s32.totalorder %v4779, 2
        %vm4800 = vcmp.lt.s32.totalorder %v4779, 3
        %vm4801 = vcmp.lt.s32.totalorder %v4779, 4
        %v4802 = vsel %vm4798, %v4782, %v4785
        %v4803 = vsel %vm4801, %v4791, 2102212464
        %v4804 = vsel %vm4800, %v4788, %v4803
        %v4805 = vsel %vm4799, %v4802, %v4804
        %v4806 = vsel %vm4798, %v4785, %v4788
        %v4807 = vsel %vm4801, %v4794, 920167782
        %v4808 = vsel %vm4800, %v4791, %v4807
        %v4809 = vsel %vm4799, %v4806, %v4808
        %v4810 = vsel %vm4798, %v4788, %v4791
        %v4811 = vsel %vm4801, %v4797, 1326507024
        %v4812 = vsel %vm4800, %v4794, %v4811
        %v4813 = vsel %vm4799, %v4810, %v4812
        %v4814 = vshll.u32 %v4774, 8
        %v4815 = vmul.u32.u64.compose %v4814, %v4813
        %v4816 = vextract.low.u32 %v4815
        %v4817 = vextract.high.u32 %v4815
        %v4818 = vmul.u32.u64.compose %v4814, %v4809
        %v4819 = vextract.low.u32 %v4818
        %v4820 = vextract.high.u32 %v4818
        %v4821 = vmul.u32 %v4814, %v4805
        %v4822 = vadd.s32 %v4817, %v4819
        %vm4823 = vc.u32 %v4817, %v4819
        %v4824 = vadd.s32 %v4820, 1
        %v4825 = vsel %vm4823, %v4824, %v4820
        %v4826 = vadd.s32 %v4821, %v4825
        %v4827 = vadd.s32 %v4826, 536870912
        %v4828 = vshrl.u32 %v4827, 30
        %v4829 = vshll.u32 %v4828, 30
        %v4830 = vsub.s32 %v4826, %v4829
        %vm4831 = vcmp.lt.s32.totalorder %v4830, 0
        %v4832 = vsub.s32 0, %v4830
        %v4833 = vsel %vm4831, %v4832, %v4830
        %v4834 = vclz %v4833
        %v4835 = vsub.s32 %v4834, 2
        %vm4836 = vcmp.gt.s32.totalorder 0, %v4835
        %v4837 = vsel %vm4836, 0, %v4835
        %v4838 = vsub.s32 32, %v4837
        %v4839 = vshll.u32 %v4830, %v4837
        %v4840 = vshrl.u32 %v4822, %v4838
        %v4841 = vor.u32 %v4839, %v4840
        %v4842 = vsub.s32 4294967266, %v4837
        %v4843 = vadd.s32 %v4842, 127
        %v4844 = vshll.u32 %v4843, 23
        %v4845 = vor.u32 4788187, %v4844
        %v4846 = vand.u32 2147483647, %v4845
        %v4848 = vcvt.s32.f32 %v4841
        %v4849 = vmul.f32 %v4848, %v4846
        %v4850 = vxor.u32 %v4849, 2147483648
        %v4851 = vsel %vm4768, %v4850, %v4849
        %v4852 = vsub.s32 4, %v4828
        %v4853 = vsel %vm4768, %v4852, %v4828
        %v4854 = vsel %vm4767, %v354, %v4851
        %v4855 = vsel %vm4767, 0, %v4853
        %v4856 = vcosq.f32.pop %v4854
        %v4857 = vsinq.f32.pop %v4854
        %vm4858 = vweird.f32 %v354
        %v4859 = vand.u32 %v4855, 3
        %vm4860 = vcmp.lt.s32.totalorder %v4859, 2
        %vm4861 = vcmp.eq.s32.totalorder %v4859, 0
        %v4862 = vxor.u32 %v4857, 2147483648
        %v4863 = vsel %vm4861, %v4856, %v4862
        %vm4864 = vcmp.eq.s32.totalorder %v4859, 2
        %v4865 = vxor.u32 %v4856, 2147483648
        %v4866 = vsel %vm4864, %v4865, %v4857
        %v4867 = vsel %vm4860, %v4863, %v4866
        %v4868 = vsel %vm4858, nan, %v4867
        %v4869 = vand.u32 2147483647, %v355
        %vm4870 = vcmp.le.f32.partialorder %v4869, 0.7853982
        %vm4871 = vcmp.lt.s32.totalorder %v355, 0
        %v4872 = vand.u32 %v355, 2139095040
        %v4873 = vshrl.u32 %v4872, 23
        %v4874 = vsub.s32 %v4873, 127
        %v4875 = vand.u32 2147483647, %v355
        %v4876 = vand.u32 %v4875, 8388607
        %v4877 = vor.u32 %v4876, 8388608
        %v4878 = vsub.s32 0, %v4877
        %v4879 = vadd.s32 %v4874, 1
        %vm4880 = vcmp.gt.s32.totalorder %v4879, 0
        %v4881 = vsel %vm4880, %v4879, 0
        %v4882 = vshrl.u32 %v4881, 5
        %v4883 = vand.u32 %v4881, 31
        %v4884 = vsub.s32 32, %v4883
        %v4885 = vshrl.u32 683565275, %v4884
        %v4886 = vshll.u32 683565275, %v4883
        %v4887 = vshrl.u32 2475754826, %v4884
        %v4888 = vor.u32 %v4886, %v4887
        %v4889 = vshll.u32 2475754826, %v4883
        %v4890 = vshrl.u32 2131351028, %v4884
        %v4891 = vor.u32 %v4889, %v4890
        %v4892 = vshll.u32 2131351028, %v4883
        %v4893 = vshrl.u32 2102212464, %v4884
        %v4894 = vor.u32 %v4892, %v4893
        %v4895 = vshll.u32 2102212464, %v4883
        %v4896 = vshrl.u32 920167782, %v4884
        %v4897 = vor.u32 %v4895, %v4896
        %v4898 = vshll.u32 920167782, %v4883
        %v4899 = vshrl.u32 1326507024, %v4884
        %v4900 = vor.u32 %v4898, %v4899
        %vm4901 = vcmp.lt.s32.totalorder %v4882, 1
        %vm4902 = vcmp.lt.s32.totalorder %v4882, 2
        %vm4903 = vcmp.lt.s32.totalorder %v4882, 3
        %vm4904 = vcmp.lt.s32.totalorder %v4882, 4
        %v4905 = vsel %vm4901, %v4885, %v4888
        %v4906 = vsel %vm4904, %v4894, 2102212464
        %v4907 = vsel %vm4903, %v4891, %v4906
        %v4908 = vsel %vm4902, %v4905, %v4907
        %v4909 = vsel %vm4901, %v4888, %v4891
        %v4910 = vsel %vm4904, %v4897, 920167782
        %v4911 = vsel %vm4903, %v4894, %v4910
        %v4912 = vsel %vm4902, %v4909, %v4911
        %v4913 = vsel %vm4901, %v4891, %v4894
        %v4914 = vsel %vm4904, %v4900, 1326507024
        %v4915 = vsel %vm4903, %v4897, %v4914
        %v4916 = vsel %vm4902, %v4913, %v4915
        %v4917 = vshll.u32 %v4877, 8
        %v4918 = vmul.u32.u64.compose %v4917, %v4916
        %v4919 = vextract.low.u32 %v4918
        %v4920 = vextract.high.u32 %v4918
        %v4921 = vmul.u32.u64.compose %v4917, %v4912
        %v4922 = vextract.low.u32 %v4921
        %v4923 = vextract.high.u32 %v4921
        %v4924 = vmul.u32 %v4917, %v4908
        %v4925 = vadd.s32 %v4920, %v4922
        %vm4926 = vc.u32 %v4920, %v4922
        %v4927 = vadd.s32 %v4923, 1
        %v4928 = vsel %vm4926, %v4927, %v4923
        %v4929 = vadd.s32 %v4924, %v4928
        %v4930 = vadd.s32 %v4929, 536870912
        %v4931 = vshrl.u32 %v4930, 30
        %v4932 = vshll.u32 %v4931, 30
        %v4933 = vsub.s32 %v4929, %v4932
        %vm4934 = vcmp.lt.s32.totalorder %v4933, 0
        %v4935 = vsub.s32 0, %v4933
        %v4936 = vsel %vm4934, %v4935, %v4933
        %v4937 = vclz %v4936
        %v4938 = vsub.s32 %v4937, 2
        %vm4939 = vcmp.gt.s32.totalorder 0, %v4938
        %v4940 = vsel %vm4939, 0, %v4938
        %v4941 = vsub.s32 32, %v4940
        %v4942 = vshll.u32 %v4933, %v4940
        %v4943 = vshrl.u32 %v4925, %v4941
        %v4944 = vor.u32 %v4942, %v4943
        %v4945 = vsub.s32 4294967266, %v4940
        %v4946 = vadd.s32 %v4945, 127
        %v4947 = vshll.u32 %v4946, 23
        %v4948 = vor.u32 4788187, %v4947
        %v4949 = vand.u32 2147483647, %v4948
        %v4951 = vcvt.s32.f32 %v4944
        %v4952 = vmul.f32 %v4951, %v4949
        %v4953 = vxor.u32 %v4952, 2147483648
        %v4954 = vsel %vm4871, %v4953, %v4952
        %v4955 = vsub.s32 4, %v4931
        %v4956 = vsel %vm4871, %v4955, %v4931
        %v4957 = vsel %vm4870, %v355, %v4954
        %v4958 = vsel %vm4870, 0, %v4956
        %v4959 = vcosq.f32.pop %v4957
        %v4960 = vsinq.f32.pop %v4957
        %vm4961 = vweird.f32 %v355
        %v4962 = vand.u32 %v4958, 3
        %vm4963 = vcmp.lt.s32.totalorder %v4962, 2
        %vm4964 = vcmp.eq.s32.totalorder %v4962, 0
        %v4965 = vxor.u32 %v4960, 2147483648
        %v4966 = vsel %vm4964, %v4959, %v4965
        %vm4967 = vcmp.eq.s32.totalorder %v4962, 2
        %v4968 = vxor.u32 %v4959, 2147483648
        %v4969 = vsel %vm4967, %v4968, %v4960
        %v4970 = vsel %vm4963, %v4966, %v4969
        %v4971 = vsel %vm4961, nan, %v4970
        %v4972 = vand.u32 2147483647, %v356
        %vm4973 = vcmp.le.f32.partialorder %v4972, 0.7853982
        %vm4974 = vcmp.lt.s32.totalorder %v356, 0
        %v4975 = vand.u32 %v356, 2139095040
        %v4976 = vshrl.u32 %v4975, 23
        %v4977 = vsub.s32 %v4976, 127
        %v4978 = vand.u32 2147483647, %v356
        %v4979 = vand.u32 %v4978, 8388607
        %v4980 = vor.u32 %v4979, 8388608
        %v4981 = vsub.s32 0, %v4980
        %v4982 = vadd.s32 %v4977, 1
        %vm4983 = vcmp.gt.s32.totalorder %v4982, 0
        %v4984 = vsel %vm4983, %v4982, 0
        %v4985 = vshrl.u32 %v4984, 5
        %v4986 = vand.u32 %v4984, 31
        %v4987 = vsub.s32 32, %v4986
        %v4988 = vshrl.u32 683565275, %v4987
        %v4989 = vshll.u32 683565275, %v4986
        %v4990 = vshrl.u32 2475754826, %v4987
        %v4991 = vor.u32 %v4989, %v4990
        %v4992 = vshll.u32 2475754826, %v4986
        %v4993 = vshrl.u32 2131351028, %v4987
        %v4994 = vor.u32 %v4992, %v4993
        %v4995 = vshll.u32 2131351028, %v4986
        %v4996 = vshrl.u32 2102212464, %v4987
        %v4997 = vor.u32 %v4995, %v4996
        %v4998 = vshll.u32 2102212464, %v4986
        %v4999 = vshrl.u32 920167782, %v4987
        %v5000 = vor.u32 %v4998, %v4999
        %v5001 = vshll.u32 920167782, %v4986
        %v5002 = vshrl.u32 1326507024, %v4987
        %v5003 = vor.u32 %v5001, %v5002
        %vm5004 = vcmp.lt.s32.totalorder %v4985, 1
        %vm5005 = vcmp.lt.s32.totalorder %v4985, 2
        %vm5006 = vcmp.lt.s32.totalorder %v4985, 3
        %vm5007 = vcmp.lt.s32.totalorder %v4985, 4
        %v5008 = vsel %vm5004, %v4988, %v4991
        %v5009 = vsel %vm5007, %v4997, 2102212464
        %v5010 = vsel %vm5006, %v4994, %v5009
        %v5011 = vsel %vm5005, %v5008, %v5010
        %v5012 = vsel %vm5004, %v4991, %v4994
        %v5013 = vsel %vm5007, %v5000, 920167782
        %v5014 = vsel %vm5006, %v4997, %v5013
        %v5015 = vsel %vm5005, %v5012, %v5014
        %v5016 = vsel %vm5004, %v4994, %v4997
        %v5017 = vsel %vm5007, %v5003, 1326507024
        %v5018 = vsel %vm5006, %v5000, %v5017
        %v5019 = vsel %vm5005, %v5016, %v5018
        %v5020 = vshll.u32 %v4980, 8
        %v5021 = vmul.u32.u64.compose %v5020, %v5019
        %v5022 = vextract.low.u32 %v5021
        %v5023 = vextract.high.u32 %v5021
        %v5024 = vmul.u32.u64.compose %v5020, %v5015
        %v5025 = vextract.low.u32 %v5024
        %v5026 = vextract.high.u32 %v5024
        %v5027 = vmul.u32 %v5020, %v5011
        %v5028 = vadd.s32 %v5023, %v5025
        %vm5029 = vc.u32 %v5023, %v5025
        %v5030 = vadd.s32 %v5026, 1
        %v5031 = vsel %vm5029, %v5030, %v5026
        %v5032 = vadd.s32 %v5027, %v5031
        %v5033 = vadd.s32 %v5032, 536870912
        %v5034 = vshrl.u32 %v5033, 30
        %v5035 = vshll.u32 %v5034, 30
        %v5036 = vsub.s32 %v5032, %v5035
        %vm5037 = vcmp.lt.s32.totalorder %v5036, 0
        %v5038 = vsub.s32 0, %v5036
        %v5039 = vsel %vm5037, %v5038, %v5036
        %v5040 = vclz %v5039
        %v5041 = vsub.s32 %v5040, 2
        %vm5042 = vcmp.gt.s32.totalorder 0, %v5041
        %v5043 = vsel %vm5042, 0, %v5041
        %v5044 = vsub.s32 32, %v5043
        %v5045 = vshll.u32 %v5036, %v5043
        %v5046 = vshrl.u32 %v5028, %v5044
        %v5047 = vor.u32 %v5045, %v5046
        %v5048 = vsub.s32 4294967266, %v5043
        %v5049 = vadd.s32 %v5048, 127
        %v5050 = vshll.u32 %v5049, 23
        %v5051 = vor.u32 4788187, %v5050
        %v5052 = vand.u32 2147483647, %v5051
        %v5054 = vcvt.s32.f32 %v5047
        %v5055 = vmul.f32 %v5054, %v5052
        %v5056 = vxor.u32 %v5055, 2147483648
        %v5057 = vsel %vm4974, %v5056, %v5055
        %v5058 = vsub.s32 4, %v5034
        %v5059 = vsel %vm4974, %v5058, %v5034
        %v5060 = vsel %vm4973, %v356, %v5057
        %v5061 = vsel %vm4973, 0, %v5059
        %v5062 = vcosq.f32.pop %v5060
        %v5063 = vsinq.f32.pop %v5060
        %vm5064 = vweird.f32 %v356
        %v5065 = vand.u32 %v5061, 3
        %vm5066 = vcmp.lt.s32.totalorder %v5065, 2
        %vm5067 = vcmp.eq.s32.totalorder %v5065, 0
        %v5068 = vxor.u32 %v5063, 2147483648
        %v5069 = vsel %vm5067, %v5062, %v5068
        %vm5070 = vcmp.eq.s32.totalorder %v5065, 2
        %v5071 = vxor.u32 %v5062, 2147483648
        %v5072 = vsel %vm5070, %v5071, %v5063
        %v5073 = vsel %vm5066, %v5069, %v5072
        %v5074 = vsel %vm5064, nan, %v5073
        %v5075 = vand.u32 2147483647, %v357
        %vm5076 = vcmp.le.f32.partialorder %v5075, 0.7853982
        %vm5077 = vcmp.lt.s32.totalorder %v357, 0
        %v5078 = vand.u32 %v357, 2139095040
        %v5079 = vshrl.u32 %v5078, 23
        %v5080 = vsub.s32 %v5079, 127
        %v5081 = vand.u32 2147483647, %v357
        %v5082 = vand.u32 %v5081, 8388607
        %v5083 = vor.u32 %v5082, 8388608
        %v5084 = vsub.s32 0, %v5083
        %v5085 = vadd.s32 %v5080, 1
        %vm5086 = vcmp.gt.s32.totalorder %v5085, 0
        %v5087 = vsel %vm5086, %v5085, 0
        %v5088 = vshrl.u32 %v5087, 5
        %v5089 = vand.u32 %v5087, 31
        %v5090 = vsub.s32 32, %v5089
        %v5091 = vshrl.u32 683565275, %v5090
        %v5092 = vshll.u32 683565275, %v5089
        %v5093 = vshrl.u32 2475754826, %v5090
        %v5094 = vor.u32 %v5092, %v5093
        %v5095 = vshll.u32 2475754826, %v5089
        %v5096 = vshrl.u32 2131351028, %v5090
        %v5097 = vor.u32 %v5095, %v5096
        %v5098 = vshll.u32 2131351028, %v5089
        %v5099 = vshrl.u32 2102212464, %v5090
        %v5100 = vor.u32 %v5098, %v5099
        %v5101 = vshll.u32 2102212464, %v5089
        %v5102 = vshrl.u32 920167782, %v5090
        %v5103 = vor.u32 %v5101, %v5102
        %v5104 = vshll.u32 920167782, %v5089
        %v5105 = vshrl.u32 1326507024, %v5090
        %v5106 = vor.u32 %v5104, %v5105
        %vm5107 = vcmp.lt.s32.totalorder %v5088, 1
        %vm5108 = vcmp.lt.s32.totalorder %v5088, 2
        %vm5109 = vcmp.lt.s32.totalorder %v5088, 3
        %vm5110 = vcmp.lt.s32.totalorder %v5088, 4
        %v5111 = vsel %vm5107, %v5091, %v5094
        %v5112 = vsel %vm5110, %v5100, 2102212464
        %v5113 = vsel %vm5109, %v5097, %v5112
        %v5114 = vsel %vm5108, %v5111, %v5113
        %v5115 = vsel %vm5107, %v5094, %v5097
        %v5116 = vsel %vm5110, %v5103, 920167782
        %v5117 = vsel %vm5109, %v5100, %v5116
        %v5118 = vsel %vm5108, %v5115, %v5117
        %v5119 = vsel %vm5107, %v5097, %v5100
        %v5120 = vsel %vm5110, %v5106, 1326507024
        %v5121 = vsel %vm5109, %v5103, %v5120
        %v5122 = vsel %vm5108, %v5119, %v5121
        %v5123 = vshll.u32 %v5083, 8
        %v5124 = vmul.u32.u64.compose %v5123, %v5122
        %v5125 = vextract.low.u32 %v5124
        %v5126 = vextract.high.u32 %v5124
        %v5127 = vmul.u32.u64.compose %v5123, %v5118
        %v5128 = vextract.low.u32 %v5127
        %v5129 = vextract.high.u32 %v5127
        %v5130 = vmul.u32 %v5123, %v5114
        %v5131 = vadd.s32 %v5126, %v5128
        %vm5132 = vc.u32 %v5126, %v5128
        %v5133 = vadd.s32 %v5129, 1
        %v5134 = vsel %vm5132, %v5133, %v5129
        %v5135 = vadd.s32 %v5130, %v5134
        %v5136 = vadd.s32 %v5135, 536870912
        %v5137 = vshrl.u32 %v5136, 30
        %v5138 = vshll.u32 %v5137, 30
        %v5139 = vsub.s32 %v5135, %v5138
        %vm5140 = vcmp.lt.s32.totalorder %v5139, 0
        %v5141 = vsub.s32 0, %v5139
        %v5142 = vsel %vm5140, %v5141, %v5139
        %v5143 = vclz %v5142
        %v5144 = vsub.s32 %v5143, 2
        %vm5145 = vcmp.gt.s32.totalorder 0, %v5144
        %v5146 = vsel %vm5145, 0, %v5144
        %v5147 = vsub.s32 32, %v5146
        %v5148 = vshll.u32 %v5139, %v5146
        %v5149 = vshrl.u32 %v5131, %v5147
        %v5150 = vor.u32 %v5148, %v5149
        %v5151 = vsub.s32 4294967266, %v5146
        %v5152 = vadd.s32 %v5151, 127
        %v5153 = vshll.u32 %v5152, 23
        %v5154 = vor.u32 4788187, %v5153
        %v5155 = vand.u32 2147483647, %v5154
        %v5157 = vcvt.s32.f32 %v5150
        %v5158 = vmul.f32 %v5157, %v5155
        %v5159 = vxor.u32 %v5158, 2147483648
        %v5160 = vsel %vm5077, %v5159, %v5158
        %v5161 = vsub.s32 4, %v5137
        %v5162 = vsel %vm5077, %v5161, %v5137
        %v5163 = vsel %vm5076, %v357, %v5160
        %v5164 = vsel %vm5076, 0, %v5162
        %v5165 = vcosq.f32.pop %v5163
        %v5166 = vsinq.f32.pop %v5163
        %vm5167 = vweird.f32 %v357
        %v5168 = vand.u32 %v5164, 3
        %vm5169 = vcmp.lt.s32.totalorder %v5168, 2
        %vm5170 = vcmp.eq.s32.totalorder %v5168, 0
        %v5171 = vxor.u32 %v5166, 2147483648
        %v5172 = vsel %vm5170, %v5165, %v5171
        %vm5173 = vcmp.eq.s32.totalorder %v5168, 2
        %v5174 = vxor.u32 %v5165, 2147483648
        %v5175 = vsel %vm5173, %v5174, %v5166
        %v5176 = vsel %vm5169, %v5172, %v5175
        %v5177 = vsel %vm5167, nan, %v5176
        %v5178 = vand.u32 2147483647, %v358
        %vm5179 = vcmp.le.f32.partialorder %v5178, 0.7853982
        %vm5180 = vcmp.lt.s32.totalorder %v358, 0
        %v5181 = vand.u32 %v358, 2139095040
        %v5182 = vshrl.u32 %v5181, 23
        %v5183 = vsub.s32 %v5182, 127
        %v5184 = vand.u32 2147483647, %v358
        %v5185 = vand.u32 %v5184, 8388607
        %v5186 = vor.u32 %v5185, 8388608
        %v5187 = vsub.s32 0, %v5186
        %v5188 = vadd.s32 %v5183, 1
        %vm5189 = vcmp.gt.s32.totalorder %v5188, 0
        %v5190 = vsel %vm5189, %v5188, 0
        %v5191 = vshrl.u32 %v5190, 5
        %v5192 = vand.u32 %v5190, 31
        %v5193 = vsub.s32 32, %v5192
        %v5194 = vshrl.u32 683565275, %v5193
        %v5195 = vshll.u32 683565275, %v5192
        %v5196 = vshrl.u32 2475754826, %v5193
        %v5197 = vor.u32 %v5195, %v5196
        %v5198 = vshll.u32 2475754826, %v5192
        %v5199 = vshrl.u32 2131351028, %v5193
        %v5200 = vor.u32 %v5198, %v5199
        %v5201 = vshll.u32 2131351028, %v5192
        %v5202 = vshrl.u32 2102212464, %v5193
        %v5203 = vor.u32 %v5201, %v5202
        %v5204 = vshll.u32 2102212464, %v5192
        %v5205 = vshrl.u32 920167782, %v5193
        %v5206 = vor.u32 %v5204, %v5205
        %v5207 = vshll.u32 920167782, %v5192
        %v5208 = vshrl.u32 1326507024, %v5193
        %v5209 = vor.u32 %v5207, %v5208
        %vm5210 = vcmp.lt.s32.totalorder %v5191, 1
        %vm5211 = vcmp.lt.s32.totalorder %v5191, 2
        %vm5212 = vcmp.lt.s32.totalorder %v5191, 3
        %vm5213 = vcmp.lt.s32.totalorder %v5191, 4
        %v5214 = vsel %vm5210, %v5194, %v5197
        %v5215 = vsel %vm5213, %v5203, 2102212464
        %v5216 = vsel %vm5212, %v5200, %v5215
        %v5217 = vsel %vm5211, %v5214, %v5216
        %v5218 = vsel %vm5210, %v5197, %v5200
        %v5219 = vsel %vm5213, %v5206, 920167782
        %v5220 = vsel %vm5212, %v5203, %v5219
        %v5221 = vsel %vm5211, %v5218, %v5220
        %v5222 = vsel %vm5210, %v5200, %v5203
        %v5223 = vsel %vm5213, %v5209, 1326507024
        %v5224 = vsel %vm5212, %v5206, %v5223
        %v5225 = vsel %vm5211, %v5222, %v5224
        %v5226 = vshll.u32 %v5186, 8
        %v5227 = vmul.u32.u64.compose %v5226, %v5225
        %v5228 = vextract.low.u32 %v5227
        %v5229 = vextract.high.u32 %v5227
        %v5230 = vmul.u32.u64.compose %v5226, %v5221
        %v5231 = vextract.low.u32 %v5230
        %v5232 = vextract.high.u32 %v5230
        %v5233 = vmul.u32 %v5226, %v5217
        %v5234 = vadd.s32 %v5229, %v5231
        %vm5235 = vc.u32 %v5229, %v5231
        %v5236 = vadd.s32 %v5232, 1
        %v5237 = vsel %vm5235, %v5236, %v5232
        %v5238 = vadd.s32 %v5233, %v5237
        %v5239 = vadd.s32 %v5238, 536870912
        %v5240 = vshrl.u32 %v5239, 30
        %v5241 = vshll.u32 %v5240, 30
        %v5242 = vsub.s32 %v5238, %v5241
        %vm5243 = vcmp.lt.s32.totalorder %v5242, 0
        %v5244 = vsub.s32 0, %v5242
        %v5245 = vsel %vm5243, %v5244, %v5242
        %v5246 = vclz %v5245
        %v5247 = vsub.s32 %v5246, 2
        %vm5248 = vcmp.gt.s32.totalorder 0, %v5247
        %v5249 = vsel %vm5248, 0, %v5247
        %v5250 = vsub.s32 32, %v5249
        %v5251 = vshll.u32 %v5242, %v5249
        %v5252 = vshrl.u32 %v5234, %v5250
        %v5253 = vor.u32 %v5251, %v5252
        %v5254 = vsub.s32 4294967266, %v5249
        %v5255 = vadd.s32 %v5254, 127
        %v5256 = vshll.u32 %v5255, 23
        %v5257 = vor.u32 4788187, %v5256
        %v5258 = vand.u32 2147483647, %v5257
        %v5260 = vcvt.s32.f32 %v5253
        %v5261 = vmul.f32 %v5260, %v5258
        %v5262 = vxor.u32 %v5261, 2147483648
        %v5263 = vsel %vm5180, %v5262, %v5261
        %v5264 = vsub.s32 4, %v5240
        %v5265 = vsel %vm5180, %v5264, %v5240
        %v5266 = vsel %vm5179, %v358, %v5263
        %v5267 = vsel %vm5179, 0, %v5265
        %v5268 = vcosq.f32.pop %v5266
        %v5269 = vsinq.f32.pop %v5266
        %vm5270 = vweird.f32 %v358
        %v5271 = vand.u32 %v5267, 3
        %vm5272 = vcmp.lt.s32.totalorder %v5271, 2
        %vm5273 = vcmp.eq.s32.totalorder %v5271, 0
        %v5274 = vxor.u32 %v5269, 2147483648
        %v5275 = vsel %vm5273, %v5268, %v5274
        %vm5276 = vcmp.eq.s32.totalorder %v5271, 2
        %v5277 = vxor.u32 %v5268, 2147483648
        %v5278 = vsel %vm5276, %v5277, %v5269
        %v5279 = vsel %vm5272, %v5275, %v5278
        %v5280 = vsel %vm5270, nan, %v5279
        %v5281 = vand.u32 2147483647, %v359
        %vm5282 = vcmp.le.f32.partialorder %v5281, 0.7853982
        %vm5283 = vcmp.lt.s32.totalorder %v359, 0
        %v5284 = vand.u32 %v359, 2139095040
        %v5285 = vshrl.u32 %v5284, 23
        %v5286 = vsub.s32 %v5285, 127
        %v5287 = vand.u32 2147483647, %v359
        %v5288 = vand.u32 %v5287, 8388607
        %v5289 = vor.u32 %v5288, 8388608
        %v5290 = vsub.s32 0, %v5289
        %v5291 = vadd.s32 %v5286, 1
        %vm5292 = vcmp.gt.s32.totalorder %v5291, 0
        %v5293 = vsel %vm5292, %v5291, 0
        %v5294 = vshrl.u32 %v5293, 5
        %v5295 = vand.u32 %v5293, 31
        %v5296 = vsub.s32 32, %v5295
        %v5297 = vshrl.u32 683565275, %v5296
        %v5298 = vshll.u32 683565275, %v5295
        %v5299 = vshrl.u32 2475754826, %v5296
        %v5300 = vor.u32 %v5298, %v5299
        %v5301 = vshll.u32 2475754826, %v5295
        %v5302 = vshrl.u32 2131351028, %v5296
        %v5303 = vor.u32 %v5301, %v5302
        %v5304 = vshll.u32 2131351028, %v5295
        %v5305 = vshrl.u32 2102212464, %v5296
        %v5306 = vor.u32 %v5304, %v5305
        %v5307 = vshll.u32 2102212464, %v5295
        %v5308 = vshrl.u32 920167782, %v5296
        %v5309 = vor.u32 %v5307, %v5308
        %v5310 = vshll.u32 920167782, %v5295
        %v5311 = vshrl.u32 1326507024, %v5296
        %v5312 = vor.u32 %v5310, %v5311
        %vm5313 = vcmp.lt.s32.totalorder %v5294, 1
        %vm5314 = vcmp.lt.s32.totalorder %v5294, 2
        %vm5315 = vcmp.lt.s32.totalorder %v5294, 3
        %vm5316 = vcmp.lt.s32.totalorder %v5294, 4
        %v5317 = vsel %vm5313, %v5297, %v5300
        %v5318 = vsel %vm5316, %v5306, 2102212464
        %v5319 = vsel %vm5315, %v5303, %v5318
        %v5320 = vsel %vm5314, %v5317, %v5319
        %v5321 = vsel %vm5313, %v5300, %v5303
        %v5322 = vsel %vm5316, %v5309, 920167782
        %v5323 = vsel %vm5315, %v5306, %v5322
        %v5324 = vsel %vm5314, %v5321, %v5323
        %v5325 = vsel %vm5313, %v5303, %v5306
        %v5326 = vsel %vm5316, %v5312, 1326507024
        %v5327 = vsel %vm5315, %v5309, %v5326
        %v5328 = vsel %vm5314, %v5325, %v5327
        %v5329 = vshll.u32 %v5289, 8
        %v5330 = vmul.u32.u64.compose %v5329, %v5328
        %v5331 = vextract.low.u32 %v5330
        %v5332 = vextract.high.u32 %v5330
        %v5333 = vmul.u32.u64.compose %v5329, %v5324
        %v5334 = vextract.low.u32 %v5333
        %v5335 = vextract.high.u32 %v5333
        %v5336 = vmul.u32 %v5329, %v5320
        %v5337 = vadd.s32 %v5332, %v5334
        %vm5338 = vc.u32 %v5332, %v5334
        %v5339 = vadd.s32 %v5335, 1
        %v5340 = vsel %vm5338, %v5339, %v5335
        %v5341 = vadd.s32 %v5336, %v5340
        %v5342 = vadd.s32 %v5341, 536870912
        %v5343 = vshrl.u32 %v5342, 30
        %v5344 = vshll.u32 %v5343, 30
        %v5345 = vsub.s32 %v5341, %v5344
        %vm5346 = vcmp.lt.s32.totalorder %v5345, 0
        %v5347 = vsub.s32 0, %v5345
        %v5348 = vsel %vm5346, %v5347, %v5345
        %v5349 = vclz %v5348
        %v5350 = vsub.s32 %v5349, 2
        %vm5351 = vcmp.gt.s32.totalorder 0, %v5350
        %v5352 = vsel %vm5351, 0, %v5350
        %v5353 = vsub.s32 32, %v5352
        %v5354 = vshll.u32 %v5345, %v5352
        %v5355 = vshrl.u32 %v5337, %v5353
        %v5356 = vor.u32 %v5354, %v5355
        %v5357 = vsub.s32 4294967266, %v5352
        %v5358 = vadd.s32 %v5357, 127
        %v5359 = vshll.u32 %v5358, 23
        %v5360 = vor.u32 4788187, %v5359
        %v5361 = vand.u32 2147483647, %v5360
        %v5363 = vcvt.s32.f32 %v5356
        %v5364 = vmul.f32 %v5363, %v5361
        %v5365 = vxor.u32 %v5364, 2147483648
        %v5366 = vsel %vm5283, %v5365, %v5364
        %v5367 = vsub.s32 4, %v5343
        %v5368 = vsel %vm5283, %v5367, %v5343
        %v5369 = vsel %vm5282, %v359, %v5366
        %v5370 = vsel %vm5282, 0, %v5368
        %v5371 = vcosq.f32.pop %v5369
        %v5372 = vsinq.f32.pop %v5369
        %vm5373 = vweird.f32 %v359
        %v5374 = vand.u32 %v5370, 3
        %vm5375 = vcmp.lt.s32.totalorder %v5374, 2
        %vm5376 = vcmp.eq.s32.totalorder %v5374, 0
        %v5377 = vxor.u32 %v5372, 2147483648
        %v5378 = vsel %vm5376, %v5371, %v5377
        %vm5379 = vcmp.eq.s32.totalorder %v5374, 2
        %v5380 = vxor.u32 %v5371, 2147483648
        %v5381 = vsel %vm5379, %v5380, %v5372
        %v5382 = vsel %vm5375, %v5378, %v5381
        %v5383 = vsel %vm5373, nan, %v5382
        %v5384 = vand.u32 2147483647, %v360
        %vm5385 = vcmp.le.f32.partialorder %v5384, 0.7853982
        %vm5386 = vcmp.lt.s32.totalorder %v360, 0
        %v5387 = vand.u32 %v360, 2139095040
        %v5388 = vshrl.u32 %v5387, 23
        %v5389 = vsub.s32 %v5388, 127
        %v5390 = vand.u32 2147483647, %v360
        %v5391 = vand.u32 %v5390, 8388607
        %v5392 = vor.u32 %v5391, 8388608
        %v5393 = vsub.s32 0, %v5392
        %v5394 = vadd.s32 %v5389, 1
        %vm5395 = vcmp.gt.s32.totalorder %v5394, 0
        %v5396 = vsel %vm5395, %v5394, 0
        %v5397 = vshrl.u32 %v5396, 5
        %v5398 = vand.u32 %v5396, 31
        %v5399 = vsub.s32 32, %v5398
        %v5400 = vshrl.u32 683565275, %v5399
        %v5401 = vshll.u32 683565275, %v5398
        %v5402 = vshrl.u32 2475754826, %v5399
        %v5403 = vor.u32 %v5401, %v5402
        %v5404 = vshll.u32 2475754826, %v5398
        %v5405 = vshrl.u32 2131351028, %v5399
        %v5406 = vor.u32 %v5404, %v5405
        %v5407 = vshll.u32 2131351028, %v5398
        %v5408 = vshrl.u32 2102212464, %v5399
        %v5409 = vor.u32 %v5407, %v5408
        %v5410 = vshll.u32 2102212464, %v5398
        %v5411 = vshrl.u32 920167782, %v5399
        %v5412 = vor.u32 %v5410, %v5411
        %v5413 = vshll.u32 920167782, %v5398
        %v5414 = vshrl.u32 1326507024, %v5399
        %v5415 = vor.u32 %v5413, %v5414
        %vm5416 = vcmp.lt.s32.totalorder %v5397, 1
        %vm5417 = vcmp.lt.s32.totalorder %v5397, 2
        %vm5418 = vcmp.lt.s32.totalorder %v5397, 3
        %vm5419 = vcmp.lt.s32.totalorder %v5397, 4
        %v5420 = vsel %vm5416, %v5400, %v5403
        %v5421 = vsel %vm5419, %v5409, 2102212464
        %v5422 = vsel %vm5418, %v5406, %v5421
        %v5423 = vsel %vm5417, %v5420, %v5422
        %v5424 = vsel %vm5416, %v5403, %v5406
        %v5425 = vsel %vm5419, %v5412, 920167782
        %v5426 = vsel %vm5418, %v5409, %v5425
        %v5427 = vsel %vm5417, %v5424, %v5426
        %v5428 = vsel %vm5416, %v5406, %v5409
        %v5429 = vsel %vm5419, %v5415, 1326507024
        %v5430 = vsel %vm5418, %v5412, %v5429
        %v5431 = vsel %vm5417, %v5428, %v5430
        %v5432 = vshll.u32 %v5392, 8
        %v5433 = vmul.u32.u64.compose %v5432, %v5431
        %v5434 = vextract.low.u32 %v5433
        %v5435 = vextract.high.u32 %v5433
        %v5436 = vmul.u32.u64.compose %v5432, %v5427
        %v5437 = vextract.low.u32 %v5436
        %v5438 = vextract.high.u32 %v5436
        %v5439 = vmul.u32 %v5432, %v5423
        %v5440 = vadd.s32 %v5435, %v5437
        %vm5441 = vc.u32 %v5435, %v5437
        %v5442 = vadd.s32 %v5438, 1
        %v5443 = vsel %vm5441, %v5442, %v5438
        %v5444 = vadd.s32 %v5439, %v5443
        %v5445 = vadd.s32 %v5444, 536870912
        %v5446 = vshrl.u32 %v5445, 30
        %v5447 = vshll.u32 %v5446, 30
        %v5448 = vsub.s32 %v5444, %v5447
        %vm5449 = vcmp.lt.s32.totalorder %v5448, 0
        %v5450 = vsub.s32 0, %v5448
        %v5451 = vsel %vm5449, %v5450, %v5448
        %v5452 = vclz %v5451
        %v5453 = vsub.s32 %v5452, 2
        %vm5454 = vcmp.gt.s32.totalorder 0, %v5453
        %v5455 = vsel %vm5454, 0, %v5453
        %v5456 = vsub.s32 32, %v5455
        %v5457 = vshll.u32 %v5448, %v5455
        %v5458 = vshrl.u32 %v5440, %v5456
        %v5459 = vor.u32 %v5457, %v5458
        %v5460 = vsub.s32 4294967266, %v5455
        %v5461 = vadd.s32 %v5460, 127
        %v5462 = vshll.u32 %v5461, 23
        %v5463 = vor.u32 4788187, %v5462
        %v5464 = vand.u32 2147483647, %v5463
        %v5466 = vcvt.s32.f32 %v5459
        %v5467 = vmul.f32 %v5466, %v5464
        %v5468 = vxor.u32 %v5467, 2147483648
        %v5469 = vsel %vm5386, %v5468, %v5467
        %v5470 = vsub.s32 4, %v5446
        %v5471 = vsel %vm5386, %v5470, %v5446
        %v5472 = vsel %vm5385, %v360, %v5469
        %v5473 = vsel %vm5385, 0, %v5471
        %v5474 = vcosq.f32.pop %v5472
        %v5475 = vsinq.f32.pop %v5472
        %vm5476 = vweird.f32 %v360
        %v5477 = vand.u32 %v5473, 3
        %vm5478 = vcmp.lt.s32.totalorder %v5477, 2
        %vm5479 = vcmp.eq.s32.totalorder %v5477, 0
        %v5480 = vxor.u32 %v5475, 2147483648
        %v5481 = vsel %vm5479, %v5474, %v5480
        %vm5482 = vcmp.eq.s32.totalorder %v5477, 2
        %v5483 = vxor.u32 %v5474, 2147483648
        %v5484 = vsel %vm5482, %v5483, %v5475
        %v5485 = vsel %vm5478, %v5481, %v5484
        %v5486 = vsel %vm5476, nan, %v5485
        %v5487 = vand.u32 2147483647, %v361
        %vm5488 = vcmp.le.f32.partialorder %v5487, 0.7853982
        %vm5489 = vcmp.lt.s32.totalorder %v361, 0
        %v5490 = vand.u32 %v361, 2139095040
        %v5491 = vshrl.u32 %v5490, 23
        %v5492 = vsub.s32 %v5491, 127
        %v5493 = vand.u32 2147483647, %v361
        %v5494 = vand.u32 %v5493, 8388607
        %v5495 = vor.u32 %v5494, 8388608
        %v5496 = vsub.s32 0, %v5495
        %v5497 = vadd.s32 %v5492, 1
        %vm5498 = vcmp.gt.s32.totalorder %v5497, 0
        %v5499 = vsel %vm5498, %v5497, 0
        %v5500 = vshrl.u32 %v5499, 5
        %v5501 = vand.u32 %v5499, 31
        %v5502 = vsub.s32 32, %v5501
        %v5503 = vshrl.u32 683565275, %v5502
        %v5504 = vshll.u32 683565275, %v5501
        %v5505 = vshrl.u32 2475754826, %v5502
        %v5506 = vor.u32 %v5504, %v5505
        %v5507 = vshll.u32 2475754826, %v5501
        %v5508 = vshrl.u32 2131351028, %v5502
        %v5509 = vor.u32 %v5507, %v5508
        %v5510 = vshll.u32 2131351028, %v5501
        %v5511 = vshrl.u32 2102212464, %v5502
        %v5512 = vor.u32 %v5510, %v5511
        %v5513 = vshll.u32 2102212464, %v5501
        %v5514 = vshrl.u32 920167782, %v5502
        %v5515 = vor.u32 %v5513, %v5514
        %v5516 = vshll.u32 920167782, %v5501
        %v5517 = vshrl.u32 1326507024, %v5502
        %v5518 = vor.u32 %v5516, %v5517
        %vm5519 = vcmp.lt.s32.totalorder %v5500, 1
        %vm5520 = vcmp.lt.s32.totalorder %v5500, 2
        %vm5521 = vcmp.lt.s32.totalorder %v5500, 3
        %vm5522 = vcmp.lt.s32.totalorder %v5500, 4
        %v5523 = vsel %vm5519, %v5503, %v5506
        %v5524 = vsel %vm5522, %v5512, 2102212464
        %v5525 = vsel %vm5521, %v5509, %v5524
        %v5526 = vsel %vm5520, %v5523, %v5525
        %v5527 = vsel %vm5519, %v5506, %v5509
        %v5528 = vsel %vm5522, %v5515, 920167782
        %v5529 = vsel %vm5521, %v5512, %v5528
        %v5530 = vsel %vm5520, %v5527, %v5529
        %v5531 = vsel %vm5519, %v5509, %v5512
        %v5532 = vsel %vm5522, %v5518, 1326507024
        %v5533 = vsel %vm5521, %v5515, %v5532
        %v5534 = vsel %vm5520, %v5531, %v5533
        %v5535 = vshll.u32 %v5495, 8
        %v5536 = vmul.u32.u64.compose %v5535, %v5534
        %v5537 = vextract.low.u32 %v5536
        %v5538 = vextract.high.u32 %v5536
        %v5539 = vmul.u32.u64.compose %v5535, %v5530
        %v5540 = vextract.low.u32 %v5539
        %v5541 = vextract.high.u32 %v5539
        %v5542 = vmul.u32 %v5535, %v5526
        %v5543 = vadd.s32 %v5538, %v5540
        %vm5544 = vc.u32 %v5538, %v5540
        %v5545 = vadd.s32 %v5541, 1
        %v5546 = vsel %vm5544, %v5545, %v5541
        %v5547 = vadd.s32 %v5542, %v5546
        %v5548 = vadd.s32 %v5547, 536870912
        %v5549 = vshrl.u32 %v5548, 30
        %v5550 = vshll.u32 %v5549, 30
        %v5551 = vsub.s32 %v5547, %v5550
        %vm5552 = vcmp.lt.s32.totalorder %v5551, 0
        %v5553 = vsub.s32 0, %v5551
        %v5554 = vsel %vm5552, %v5553, %v5551
        %v5555 = vclz %v5554
        %v5556 = vsub.s32 %v5555, 2
        %vm5557 = vcmp.gt.s32.totalorder 0, %v5556
        %v5558 = vsel %vm5557, 0, %v5556
        %v5559 = vsub.s32 32, %v5558
        %v5560 = vshll.u32 %v5551, %v5558
        %v5561 = vshrl.u32 %v5543, %v5559
        %v5562 = vor.u32 %v5560, %v5561
        %v5563 = vsub.s32 4294967266, %v5558
        %v5564 = vadd.s32 %v5563, 127
        %v5565 = vshll.u32 %v5564, 23
        %v5566 = vor.u32 4788187, %v5565
        %v5567 = vand.u32 2147483647, %v5566
        %v5569 = vcvt.s32.f32 %v5562
        %v5570 = vmul.f32 %v5569, %v5567
        %v5571 = vxor.u32 %v5570, 2147483648
        %v5572 = vsel %vm5489, %v5571, %v5570
        %v5573 = vsub.s32 4, %v5549
        %v5574 = vsel %vm5489, %v5573, %v5549
        %v5575 = vsel %vm5488, %v361, %v5572
        %v5576 = vsel %vm5488, 0, %v5574
        %v5577 = vcosq.f32.pop %v5575
        %v5578 = vsinq.f32.pop %v5575
        %vm5579 = vweird.f32 %v361
        %v5580 = vand.u32 %v5576, 3
        %vm5581 = vcmp.lt.s32.totalorder %v5580, 2
        %vm5582 = vcmp.eq.s32.totalorder %v5580, 0
        %v5583 = vxor.u32 %v5578, 2147483648
        %v5584 = vsel %vm5582, %v5577, %v5583
        %vm5585 = vcmp.eq.s32.totalorder %v5580, 2
        %v5586 = vxor.u32 %v5577, 2147483648
        %v5587 = vsel %vm5585, %v5586, %v5578
        %v5588 = vsel %vm5581, %v5584, %v5587
        %v5589 = vsel %vm5579, nan, %v5588
        %v5590 = vand.u32 2147483647, %v362
        %vm5591 = vcmp.le.f32.partialorder %v5590, 0.7853982
        %vm5592 = vcmp.lt.s32.totalorder %v362, 0
        %v5593 = vand.u32 %v362, 2139095040
        %v5594 = vshrl.u32 %v5593, 23
        %v5595 = vsub.s32 %v5594, 127
        %v5596 = vand.u32 2147483647, %v362
        %v5597 = vand.u32 %v5596, 8388607
        %v5598 = vor.u32 %v5597, 8388608
        %v5599 = vsub.s32 0, %v5598
        %v5600 = vadd.s32 %v5595, 1
        %vm5601 = vcmp.gt.s32.totalorder %v5600, 0
        %v5602 = vsel %vm5601, %v5600, 0
        %v5603 = vshrl.u32 %v5602, 5
        %v5604 = vand.u32 %v5602, 31
        %v5605 = vsub.s32 32, %v5604
        %v5606 = vshrl.u32 683565275, %v5605
        %v5607 = vshll.u32 683565275, %v5604
        %v5608 = vshrl.u32 2475754826, %v5605
        %v5609 = vor.u32 %v5607, %v5608
        %v5610 = vshll.u32 2475754826, %v5604
        %v5611 = vshrl.u32 2131351028, %v5605
        %v5612 = vor.u32 %v5610, %v5611
        %v5613 = vshll.u32 2131351028, %v5604
        %v5614 = vshrl.u32 2102212464, %v5605
        %v5615 = vor.u32 %v5613, %v5614
        %v5616 = vshll.u32 2102212464, %v5604
        %v5617 = vshrl.u32 920167782, %v5605
        %v5618 = vor.u32 %v5616, %v5617
        %v5619 = vshll.u32 920167782, %v5604
        %v5620 = vshrl.u32 1326507024, %v5605
        %v5621 = vor.u32 %v5619, %v5620
        %vm5622 = vcmp.lt.s32.totalorder %v5603, 1
        %vm5623 = vcmp.lt.s32.totalorder %v5603, 2
        %vm5624 = vcmp.lt.s32.totalorder %v5603, 3
        %vm5625 = vcmp.lt.s32.totalorder %v5603, 4
        %v5626 = vsel %vm5622, %v5606, %v5609
        %v5627 = vsel %vm5625, %v5615, 2102212464
        %v5628 = vsel %vm5624, %v5612, %v5627
        %v5629 = vsel %vm5623, %v5626, %v5628
        %v5630 = vsel %vm5622, %v5609, %v5612
        %v5631 = vsel %vm5625, %v5618, 920167782
        %v5632 = vsel %vm5624, %v5615, %v5631
        %v5633 = vsel %vm5623, %v5630, %v5632
        %v5634 = vsel %vm5622, %v5612, %v5615
        %v5635 = vsel %vm5625, %v5621, 1326507024
        %v5636 = vsel %vm5624, %v5618, %v5635
        %v5637 = vsel %vm5623, %v5634, %v5636
        %v5638 = vshll.u32 %v5598, 8
        %v5639 = vmul.u32.u64.compose %v5638, %v5637
        %v5640 = vextract.low.u32 %v5639
        %v5641 = vextract.high.u32 %v5639
        %v5642 = vmul.u32.u64.compose %v5638, %v5633
        %v5643 = vextract.low.u32 %v5642
        %v5644 = vextract.high.u32 %v5642
        %v5645 = vmul.u32 %v5638, %v5629
        %v5646 = vadd.s32 %v5641, %v5643
        %vm5647 = vc.u32 %v5641, %v5643
        %v5648 = vadd.s32 %v5644, 1
        %v5649 = vsel %vm5647, %v5648, %v5644
        %v5650 = vadd.s32 %v5645, %v5649
        %v5651 = vadd.s32 %v5650, 536870912
        %v5652 = vshrl.u32 %v5651, 30
        %v5653 = vshll.u32 %v5652, 30
        %v5654 = vsub.s32 %v5650, %v5653
        %vm5655 = vcmp.lt.s32.totalorder %v5654, 0
        %v5656 = vsub.s32 0, %v5654
        %v5657 = vsel %vm5655, %v5656, %v5654
        %v5658 = vclz %v5657
        %v5659 = vsub.s32 %v5658, 2
        %vm5660 = vcmp.gt.s32.totalorder 0, %v5659
        %v5661 = vsel %vm5660, 0, %v5659
        %v5662 = vsub.s32 32, %v5661
        %v5663 = vshll.u32 %v5654, %v5661
        %v5664 = vshrl.u32 %v5646, %v5662
        %v5665 = vor.u32 %v5663, %v5664
        %v5666 = vsub.s32 4294967266, %v5661
        %v5667 = vadd.s32 %v5666, 127
        %v5668 = vshll.u32 %v5667, 23
        %v5669 = vor.u32 4788187, %v5668
        %v5670 = vand.u32 2147483647, %v5669
        %v5672 = vcvt.s32.f32 %v5665
        %v5673 = vmul.f32 %v5672, %v5670
        %v5674 = vxor.u32 %v5673, 2147483648
        %v5675 = vsel %vm5592, %v5674, %v5673
        %v5676 = vsub.s32 4, %v5652
        %v5677 = vsel %vm5592, %v5676, %v5652
        %v5678 = vsel %vm5591, %v362, %v5675
        %v5679 = vsel %vm5591, 0, %v5677
        %v5680 = vcosq.f32.pop %v5678
        %v5681 = vsinq.f32.pop %v5678
        %vm5682 = vweird.f32 %v362
        %v5683 = vand.u32 %v5679, 3
        %vm5684 = vcmp.lt.s32.totalorder %v5683, 2
        %vm5685 = vcmp.eq.s32.totalorder %v5683, 0
        %v5686 = vxor.u32 %v5681, 2147483648
        %v5687 = vsel %vm5685, %v5680, %v5686
        %vm5688 = vcmp.eq.s32.totalorder %v5683, 2
        %v5689 = vxor.u32 %v5680, 2147483648
        %v5690 = vsel %vm5688, %v5689, %v5681
        %v5691 = vsel %vm5684, %v5687, %v5690
        %v5692 = vsel %vm5682, nan, %v5691
        %v5693 = vand.u32 2147483647, %v363
        %vm5694 = vcmp.le.f32.partialorder %v5693, 0.7853982
        %vm5695 = vcmp.lt.s32.totalorder %v363, 0
        %v5696 = vand.u32 %v363, 2139095040
        %v5697 = vshrl.u32 %v5696, 23
        %v5698 = vsub.s32 %v5697, 127
        %v5699 = vand.u32 2147483647, %v363
        %v5700 = vand.u32 %v5699, 8388607
        %v5701 = vor.u32 %v5700, 8388608
        %v5702 = vsub.s32 0, %v5701
        %v5703 = vadd.s32 %v5698, 1
        %vm5704 = vcmp.gt.s32.totalorder %v5703, 0
        %v5705 = vsel %vm5704, %v5703, 0
        %v5706 = vshrl.u32 %v5705, 5
        %v5707 = vand.u32 %v5705, 31
        %v5708 = vsub.s32 32, %v5707
        %v5709 = vshrl.u32 683565275, %v5708
        %v5710 = vshll.u32 683565275, %v5707
        %v5711 = vshrl.u32 2475754826, %v5708
        %v5712 = vor.u32 %v5710, %v5711
        %v5713 = vshll.u32 2475754826, %v5707
        %v5714 = vshrl.u32 2131351028, %v5708
        %v5715 = vor.u32 %v5713, %v5714
        %v5716 = vshll.u32 2131351028, %v5707
        %v5717 = vshrl.u32 2102212464, %v5708
        %v5718 = vor.u32 %v5716, %v5717
        %v5719 = vshll.u32 2102212464, %v5707
        %v5720 = vshrl.u32 920167782, %v5708
        %v5721 = vor.u32 %v5719, %v5720
        %v5722 = vshll.u32 920167782, %v5707
        %v5723 = vshrl.u32 1326507024, %v5708
        %v5724 = vor.u32 %v5722, %v5723
        %vm5725 = vcmp.lt.s32.totalorder %v5706, 1
        %vm5726 = vcmp.lt.s32.totalorder %v5706, 2
        %vm5727 = vcmp.lt.s32.totalorder %v5706, 3
        %vm5728 = vcmp.lt.s32.totalorder %v5706, 4
        %v5729 = vsel %vm5725, %v5709, %v5712
        %v5730 = vsel %vm5728, %v5718, 2102212464
        %v5731 = vsel %vm5727, %v5715, %v5730
        %v5732 = vsel %vm5726, %v5729, %v5731
        %v5733 = vsel %vm5725, %v5712, %v5715
        %v5734 = vsel %vm5728, %v5721, 920167782
        %v5735 = vsel %vm5727, %v5718, %v5734
        %v5736 = vsel %vm5726, %v5733, %v5735
        %v5737 = vsel %vm5725, %v5715, %v5718
        %v5738 = vsel %vm5728, %v5724, 1326507024
        %v5739 = vsel %vm5727, %v5721, %v5738
        %v5740 = vsel %vm5726, %v5737, %v5739
        %v5741 = vshll.u32 %v5701, 8
        %v5742 = vmul.u32.u64.compose %v5741, %v5740
        %v5743 = vextract.low.u32 %v5742
        %v5744 = vextract.high.u32 %v5742
        %v5745 = vmul.u32.u64.compose %v5741, %v5736
        %v5746 = vextract.low.u32 %v5745
        %v5747 = vextract.high.u32 %v5745
        %v5748 = vmul.u32 %v5741, %v5732
        %v5749 = vadd.s32 %v5744, %v5746
        %vm5750 = vc.u32 %v5744, %v5746
        %v5751 = vadd.s32 %v5747, 1
        %v5752 = vsel %vm5750, %v5751, %v5747
        %v5753 = vadd.s32 %v5748, %v5752
        %v5754 = vadd.s32 %v5753, 536870912
        %v5755 = vshrl.u32 %v5754, 30
        %v5756 = vshll.u32 %v5755, 30
        %v5757 = vsub.s32 %v5753, %v5756
        %vm5758 = vcmp.lt.s32.totalorder %v5757, 0
        %v5759 = vsub.s32 0, %v5757
        %v5760 = vsel %vm5758, %v5759, %v5757
        %v5761 = vclz %v5760
        %v5762 = vsub.s32 %v5761, 2
        %vm5763 = vcmp.gt.s32.totalorder 0, %v5762
        %v5764 = vsel %vm5763, 0, %v5762
        %v5765 = vsub.s32 32, %v5764
        %v5766 = vshll.u32 %v5757, %v5764
        %v5767 = vshrl.u32 %v5749, %v5765
        %v5768 = vor.u32 %v5766, %v5767
        %v5769 = vsub.s32 4294967266, %v5764
        %v5770 = vadd.s32 %v5769, 127
        %v5771 = vshll.u32 %v5770, 23
        %v5772 = vor.u32 4788187, %v5771
        %v5773 = vand.u32 2147483647, %v5772
        %v5775 = vcvt.s32.f32 %v5768
        %v5776 = vmul.f32 %v5775, %v5773
        %v5777 = vxor.u32 %v5776, 2147483648
        %v5778 = vsel %vm5695, %v5777, %v5776
        %v5779 = vsub.s32 4, %v5755
        %v5780 = vsel %vm5695, %v5779, %v5755
        %v5781 = vsel %vm5694, %v363, %v5778
        %v5782 = vsel %vm5694, 0, %v5780
        %v5783 = vcosq.f32.pop %v5781
        %v5784 = vsinq.f32.pop %v5781
        %vm5785 = vweird.f32 %v363
        %v5786 = vand.u32 %v5782, 3
        %vm5787 = vcmp.lt.s32.totalorder %v5786, 2
        %vm5788 = vcmp.eq.s32.totalorder %v5786, 0
        %v5789 = vxor.u32 %v5784, 2147483648
        %v5790 = vsel %vm5788, %v5783, %v5789
        %vm5791 = vcmp.eq.s32.totalorder %v5786, 2
        %v5792 = vxor.u32 %v5783, 2147483648
        %v5793 = vsel %vm5791, %v5792, %v5784
        %v5794 = vsel %vm5787, %v5790, %v5793
        %v5795 = vsel %vm5785, nan, %v5794
        %v5796 = vand.u32 2147483647, %v364
        %vm5797 = vcmp.le.f32.partialorder %v5796, 0.7853982
        %vm5798 = vcmp.lt.s32.totalorder %v364, 0
        %v5799 = vand.u32 %v364, 2139095040
        %v5800 = vshrl.u32 %v5799, 23
        %v5801 = vsub.s32 %v5800, 127
        %v5802 = vand.u32 2147483647, %v364
        %v5803 = vand.u32 %v5802, 8388607
        %v5804 = vor.u32 %v5803, 8388608
        %v5805 = vsub.s32 0, %v5804
        %v5806 = vadd.s32 %v5801, 1
        %vm5807 = vcmp.gt.s32.totalorder %v5806, 0
        %v5808 = vsel %vm5807, %v5806, 0
        %v5809 = vshrl.u32 %v5808, 5
        %v5810 = vand.u32 %v5808, 31
        %v5811 = vsub.s32 32, %v5810
        %v5812 = vshrl.u32 683565275, %v5811
        %v5813 = vshll.u32 683565275, %v5810
        %v5814 = vshrl.u32 2475754826, %v5811
        %v5815 = vor.u32 %v5813, %v5814
        %v5816 = vshll.u32 2475754826, %v5810
        %v5817 = vshrl.u32 2131351028, %v5811
        %v5818 = vor.u32 %v5816, %v5817
        %v5819 = vshll.u32 2131351028, %v5810
        %v5820 = vshrl.u32 2102212464, %v5811
        %v5821 = vor.u32 %v5819, %v5820
        %v5822 = vshll.u32 2102212464, %v5810
        %v5823 = vshrl.u32 920167782, %v5811
        %v5824 = vor.u32 %v5822, %v5823
        %v5825 = vshll.u32 920167782, %v5810
        %v5826 = vshrl.u32 1326507024, %v5811
        %v5827 = vor.u32 %v5825, %v5826
        %vm5828 = vcmp.lt.s32.totalorder %v5809, 1
        %vm5829 = vcmp.lt.s32.totalorder %v5809, 2
        %vm5830 = vcmp.lt.s32.totalorder %v5809, 3
        %vm5831 = vcmp.lt.s32.totalorder %v5809, 4
        %v5832 = vsel %vm5828, %v5812, %v5815
        %v5833 = vsel %vm5831, %v5821, 2102212464
        %v5834 = vsel %vm5830, %v5818, %v5833
        %v5835 = vsel %vm5829, %v5832, %v5834
        %v5836 = vsel %vm5828, %v5815, %v5818
        %v5837 = vsel %vm5831, %v5824, 920167782
        %v5838 = vsel %vm5830, %v5821, %v5837
        %v5839 = vsel %vm5829, %v5836, %v5838
        %v5840 = vsel %vm5828, %v5818, %v5821
        %v5841 = vsel %vm5831, %v5827, 1326507024
        %v5842 = vsel %vm5830, %v5824, %v5841
        %v5843 = vsel %vm5829, %v5840, %v5842
        %v5844 = vshll.u32 %v5804, 8
        %v5845 = vmul.u32.u64.compose %v5844, %v5843
        %v5846 = vextract.low.u32 %v5845
        %v5847 = vextract.high.u32 %v5845
        %v5848 = vmul.u32.u64.compose %v5844, %v5839
        %v5849 = vextract.low.u32 %v5848
        %v5850 = vextract.high.u32 %v5848
        %v5851 = vmul.u32 %v5844, %v5835
        %v5852 = vadd.s32 %v5847, %v5849
        %vm5853 = vc.u32 %v5847, %v5849
        %v5854 = vadd.s32 %v5850, 1
        %v5855 = vsel %vm5853, %v5854, %v5850
        %v5856 = vadd.s32 %v5851, %v5855
        %v5857 = vadd.s32 %v5856, 536870912
        %v5858 = vshrl.u32 %v5857, 30
        %v5859 = vshll.u32 %v5858, 30
        %v5860 = vsub.s32 %v5856, %v5859
        %vm5861 = vcmp.lt.s32.totalorder %v5860, 0
        %v5862 = vsub.s32 0, %v5860
        %v5863 = vsel %vm5861, %v5862, %v5860
        %v5864 = vclz %v5863
        %v5865 = vsub.s32 %v5864, 2
        %vm5866 = vcmp.gt.s32.totalorder 0, %v5865
        %v5867 = vsel %vm5866, 0, %v5865
        %v5868 = vsub.s32 32, %v5867
        %v5869 = vshll.u32 %v5860, %v5867
        %v5870 = vshrl.u32 %v5852, %v5868
        %v5871 = vor.u32 %v5869, %v5870
        %v5872 = vsub.s32 4294967266, %v5867
        %v5873 = vadd.s32 %v5872, 127
        %v5874 = vshll.u32 %v5873, 23
        %v5875 = vor.u32 4788187, %v5874
        %v5876 = vand.u32 2147483647, %v5875
        %v5878 = vcvt.s32.f32 %v5871
        %v5879 = vmul.f32 %v5878, %v5876
        %v5880 = vxor.u32 %v5879, 2147483648
        %v5881 = vsel %vm5798, %v5880, %v5879
        %v5882 = vsub.s32 4, %v5858
        %v5883 = vsel %vm5798, %v5882, %v5858
        %v5884 = vsel %vm5797, %v364, %v5881
        %v5885 = vsel %vm5797, 0, %v5883
        %v5886 = vcosq.f32.pop %v5884
        %v5887 = vsinq.f32.pop %v5884
        %vm5888 = vweird.f32 %v364
        %v5889 = vand.u32 %v5885, 3
        %vm5890 = vcmp.lt.s32.totalorder %v5889, 2
        %vm5891 = vcmp.eq.s32.totalorder %v5889, 0
        %v5892 = vxor.u32 %v5887, 2147483648
        %v5893 = vsel %vm5891, %v5886, %v5892
        %vm5894 = vcmp.eq.s32.totalorder %v5889, 2
        %v5895 = vxor.u32 %v5886, 2147483648
        %v5896 = vsel %vm5894, %v5895, %v5887
        %v5897 = vsel %vm5890, %v5893, %v5896
        %v5898 = vsel %vm5888, nan, %v5897
        %v5899 = vand.u32 2147483647, %v365
        %vm5900 = vcmp.le.f32.partialorder %v5899, 0.7853982
        %vm5901 = vcmp.lt.s32.totalorder %v365, 0
        %v5902 = vand.u32 %v365, 2139095040
        %v5903 = vshrl.u32 %v5902, 23
        %v5904 = vsub.s32 %v5903, 127
        %v5905 = vand.u32 2147483647, %v365
        %v5906 = vand.u32 %v5905, 8388607
        %v5907 = vor.u32 %v5906, 8388608
        %v5908 = vsub.s32 0, %v5907
        %v5909 = vadd.s32 %v5904, 1
        %vm5910 = vcmp.gt.s32.totalorder %v5909, 0
        %v5911 = vsel %vm5910, %v5909, 0
        %v5912 = vshrl.u32 %v5911, 5
        %v5913 = vand.u32 %v5911, 31
        %v5914 = vsub.s32 32, %v5913
        %v5915 = vshrl.u32 683565275, %v5914
        %v5916 = vshll.u32 683565275, %v5913
        %v5917 = vshrl.u32 2475754826, %v5914
        %v5918 = vor.u32 %v5916, %v5917
        %v5919 = vshll.u32 2475754826, %v5913
        %v5920 = vshrl.u32 2131351028, %v5914
        %v5921 = vor.u32 %v5919, %v5920
        %v5922 = vshll.u32 2131351028, %v5913
        %v5923 = vshrl.u32 2102212464, %v5914
        %v5924 = vor.u32 %v5922, %v5923
        %v5925 = vshll.u32 2102212464, %v5913
        %v5926 = vshrl.u32 920167782, %v5914
        %v5927 = vor.u32 %v5925, %v5926
        %v5928 = vshll.u32 920167782, %v5913
        %v5929 = vshrl.u32 1326507024, %v5914
        %v5930 = vor.u32 %v5928, %v5929
        %vm5931 = vcmp.lt.s32.totalorder %v5912, 1
        %vm5932 = vcmp.lt.s32.totalorder %v5912, 2
        %vm5933 = vcmp.lt.s32.totalorder %v5912, 3
        %vm5934 = vcmp.lt.s32.totalorder %v5912, 4
        %v5935 = vsel %vm5931, %v5915, %v5918
        %v5936 = vsel %vm5934, %v5924, 2102212464
        %v5937 = vsel %vm5933, %v5921, %v5936
        %v5938 = vsel %vm5932, %v5935, %v5937
        %v5939 = vsel %vm5931, %v5918, %v5921
        %v5940 = vsel %vm5934, %v5927, 920167782
        %v5941 = vsel %vm5933, %v5924, %v5940
        %v5942 = vsel %vm5932, %v5939, %v5941
        %v5943 = vsel %vm5931, %v5921, %v5924
        %v5944 = vsel %vm5934, %v5930, 1326507024
        %v5945 = vsel %vm5933, %v5927, %v5944
        %v5946 = vsel %vm5932, %v5943, %v5945
        %v5947 = vshll.u32 %v5907, 8
        %v5948 = vmul.u32.u64.compose %v5947, %v5946
        %v5949 = vextract.low.u32 %v5948
        %v5950 = vextract.high.u32 %v5948
        %v5951 = vmul.u32.u64.compose %v5947, %v5942
        %v5952 = vextract.low.u32 %v5951
        %v5953 = vextract.high.u32 %v5951
        %v5954 = vmul.u32 %v5947, %v5938
        %v5955 = vadd.s32 %v5950, %v5952
        %vm5956 = vc.u32 %v5950, %v5952
        %v5957 = vadd.s32 %v5953, 1
        %v5958 = vsel %vm5956, %v5957, %v5953
        %v5959 = vadd.s32 %v5954, %v5958
        %v5960 = vadd.s32 %v5959, 536870912
        %v5961 = vshrl.u32 %v5960, 30
        %v5962 = vshll.u32 %v5961, 30
        %v5963 = vsub.s32 %v5959, %v5962
        %vm5964 = vcmp.lt.s32.totalorder %v5963, 0
        %v5965 = vsub.s32 0, %v5963
        %v5966 = vsel %vm5964, %v5965, %v5963
        %v5967 = vclz %v5966
        %v5968 = vsub.s32 %v5967, 2
        %vm5969 = vcmp.gt.s32.totalorder 0, %v5968
        %v5970 = vsel %vm5969, 0, %v5968
        %v5971 = vsub.s32 32, %v5970
        %v5972 = vshll.u32 %v5963, %v5970
        %v5973 = vshrl.u32 %v5955, %v5971
        %v5974 = vor.u32 %v5972, %v5973
        %v5975 = vsub.s32 4294967266, %v5970
        %v5976 = vadd.s32 %v5975, 127
        %v5977 = vshll.u32 %v5976, 23
        %v5978 = vor.u32 4788187, %v5977
        %v5979 = vand.u32 2147483647, %v5978
        %v5981 = vcvt.s32.f32 %v5974
        %v5982 = vmul.f32 %v5981, %v5979
        %v5983 = vxor.u32 %v5982, 2147483648
        %v5984 = vsel %vm5901, %v5983, %v5982
        %v5985 = vsub.s32 4, %v5961
        %v5986 = vsel %vm5901, %v5985, %v5961
        %v5987 = vsel %vm5900, %v365, %v5984
        %v5988 = vsel %vm5900, 0, %v5986
        %v5989 = vcosq.f32.pop %v5987
        %v5990 = vsinq.f32.pop %v5987
        %vm5991 = vweird.f32 %v365
        %v5992 = vand.u32 %v5988, 3
        %vm5993 = vcmp.lt.s32.totalorder %v5992, 2
        %vm5994 = vcmp.eq.s32.totalorder %v5992, 0
        %v5995 = vxor.u32 %v5990, 2147483648
        %v5996 = vsel %vm5994, %v5989, %v5995
        %vm5997 = vcmp.eq.s32.totalorder %v5992, 2
        %v5998 = vxor.u32 %v5989, 2147483648
        %v5999 = vsel %vm5997, %v5998, %v5990
        %v6000 = vsel %vm5993, %v5996, %v5999
        %v6001 = vsel %vm5991, nan, %v6000
        %v6002 = vand.u32 2147483647, %v366
        %vm6003 = vcmp.le.f32.partialorder %v6002, 0.7853982
        %vm6004 = vcmp.lt.s32.totalorder %v366, 0
        %v6005 = vand.u32 %v366, 2139095040
        %v6006 = vshrl.u32 %v6005, 23
        %v6007 = vsub.s32 %v6006, 127
        %v6008 = vand.u32 2147483647, %v366
        %v6009 = vand.u32 %v6008, 8388607
        %v6010 = vor.u32 %v6009, 8388608
        %v6011 = vsub.s32 0, %v6010
        %v6012 = vadd.s32 %v6007, 1
        %vm6013 = vcmp.gt.s32.totalorder %v6012, 0
        %v6014 = vsel %vm6013, %v6012, 0
        %v6015 = vshrl.u32 %v6014, 5
        %v6016 = vand.u32 %v6014, 31
        %v6017 = vsub.s32 32, %v6016
        %v6018 = vshrl.u32 683565275, %v6017
        %v6019 = vshll.u32 683565275, %v6016
        %v6020 = vshrl.u32 2475754826, %v6017
        %v6021 = vor.u32 %v6019, %v6020
        %v6022 = vshll.u32 2475754826, %v6016
        %v6023 = vshrl.u32 2131351028, %v6017
        %v6024 = vor.u32 %v6022, %v6023
        %v6025 = vshll.u32 2131351028, %v6016
        %v6026 = vshrl.u32 2102212464, %v6017
        %v6027 = vor.u32 %v6025, %v6026
        %v6028 = vshll.u32 2102212464, %v6016
        %v6029 = vshrl.u32 920167782, %v6017
        %v6030 = vor.u32 %v6028, %v6029
        %v6031 = vshll.u32 920167782, %v6016
        %v6032 = vshrl.u32 1326507024, %v6017
        %v6033 = vor.u32 %v6031, %v6032
        %vm6034 = vcmp.lt.s32.totalorder %v6015, 1
        %vm6035 = vcmp.lt.s32.totalorder %v6015, 2
        %vm6036 = vcmp.lt.s32.totalorder %v6015, 3
        %vm6037 = vcmp.lt.s32.totalorder %v6015, 4
        %v6038 = vsel %vm6034, %v6018, %v6021
        %v6039 = vsel %vm6037, %v6027, 2102212464
        %v6040 = vsel %vm6036, %v6024, %v6039
        %v6041 = vsel %vm6035, %v6038, %v6040
        %v6042 = vsel %vm6034, %v6021, %v6024
        %v6043 = vsel %vm6037, %v6030, 920167782
        %v6044 = vsel %vm6036, %v6027, %v6043
        %v6045 = vsel %vm6035, %v6042, %v6044
        %v6046 = vsel %vm6034, %v6024, %v6027
        %v6047 = vsel %vm6037, %v6033, 1326507024
        %v6048 = vsel %vm6036, %v6030, %v6047
        %v6049 = vsel %vm6035, %v6046, %v6048
        %v6050 = vshll.u32 %v6010, 8
        %v6051 = vmul.u32.u64.compose %v6050, %v6049
        %v6052 = vextract.low.u32 %v6051
        %v6053 = vextract.high.u32 %v6051
        %v6054 = vmul.u32.u64.compose %v6050, %v6045
        %v6055 = vextract.low.u32 %v6054
        %v6056 = vextract.high.u32 %v6054
        %v6057 = vmul.u32 %v6050, %v6041
        %v6058 = vadd.s32 %v6053, %v6055
        %vm6059 = vc.u32 %v6053, %v6055
        %v6060 = vadd.s32 %v6056, 1
        %v6061 = vsel %vm6059, %v6060, %v6056
        %v6062 = vadd.s32 %v6057, %v6061
        %v6063 = vadd.s32 %v6062, 536870912
        %v6064 = vshrl.u32 %v6063, 30
        %v6065 = vshll.u32 %v6064, 30
        %v6066 = vsub.s32 %v6062, %v6065
        %vm6067 = vcmp.lt.s32.totalorder %v6066, 0
        %v6068 = vsub.s32 0, %v6066
        %v6069 = vsel %vm6067, %v6068, %v6066
        %v6070 = vclz %v6069
        %v6071 = vsub.s32 %v6070, 2
        %vm6072 = vcmp.gt.s32.totalorder 0, %v6071
        %v6073 = vsel %vm6072, 0, %v6071
        %v6074 = vsub.s32 32, %v6073
        %v6075 = vshll.u32 %v6066, %v6073
        %v6076 = vshrl.u32 %v6058, %v6074
        %v6077 = vor.u32 %v6075, %v6076
        %v6078 = vsub.s32 4294967266, %v6073
        %v6079 = vadd.s32 %v6078, 127
        %v6080 = vshll.u32 %v6079, 23
        %v6081 = vor.u32 4788187, %v6080
        %v6082 = vand.u32 2147483647, %v6081
        %v6084 = vcvt.s32.f32 %v6077
        %v6085 = vmul.f32 %v6084, %v6082
        %v6086 = vxor.u32 %v6085, 2147483648
        %v6087 = vsel %vm6004, %v6086, %v6085
        %v6088 = vsub.s32 4, %v6064
        %v6089 = vsel %vm6004, %v6088, %v6064
        %v6090 = vsel %vm6003, %v366, %v6087
        %v6091 = vsel %vm6003, 0, %v6089
        %v6092 = vcosq.f32.pop %v6090
        %v6093 = vsinq.f32.pop %v6090
        %vm6094 = vweird.f32 %v366
        %v6095 = vand.u32 %v6091, 3
        %vm6096 = vcmp.lt.s32.totalorder %v6095, 2
        %vm6097 = vcmp.eq.s32.totalorder %v6095, 0
        %v6098 = vxor.u32 %v6093, 2147483648
        %v6099 = vsel %vm6097, %v6092, %v6098
        %vm6100 = vcmp.eq.s32.totalorder %v6095, 2
        %v6101 = vxor.u32 %v6092, 2147483648
        %v6102 = vsel %vm6100, %v6101, %v6093
        %v6103 = vsel %vm6096, %v6099, %v6102
        %v6104 = vsel %vm6094, nan, %v6103
        %v6105 = vand.u32 2147483647, %v367
        %vm6106 = vcmp.le.f32.partialorder %v6105, 0.7853982
        %vm6107 = vcmp.lt.s32.totalorder %v367, 0
        %v6108 = vand.u32 %v367, 2139095040
        %v6109 = vshrl.u32 %v6108, 23
        %v6110 = vsub.s32 %v6109, 127
        %v6111 = vand.u32 2147483647, %v367
        %v6112 = vand.u32 %v6111, 8388607
        %v6113 = vor.u32 %v6112, 8388608
        %v6114 = vsub.s32 0, %v6113
        %v6115 = vadd.s32 %v6110, 1
        %vm6116 = vcmp.gt.s32.totalorder %v6115, 0
        %v6117 = vsel %vm6116, %v6115, 0
        %v6118 = vshrl.u32 %v6117, 5
        %v6119 = vand.u32 %v6117, 31
        %v6120 = vsub.s32 32, %v6119
        %v6121 = vshrl.u32 683565275, %v6120
        %v6122 = vshll.u32 683565275, %v6119
        %v6123 = vshrl.u32 2475754826, %v6120
        %v6124 = vor.u32 %v6122, %v6123
        %v6125 = vshll.u32 2475754826, %v6119
        %v6126 = vshrl.u32 2131351028, %v6120
        %v6127 = vor.u32 %v6125, %v6126
        %v6128 = vshll.u32 2131351028, %v6119
        %v6129 = vshrl.u32 2102212464, %v6120
        %v6130 = vor.u32 %v6128, %v6129
        %v6131 = vshll.u32 2102212464, %v6119
        %v6132 = vshrl.u32 920167782, %v6120
        %v6133 = vor.u32 %v6131, %v6132
        %v6134 = vshll.u32 920167782, %v6119
        %v6135 = vshrl.u32 1326507024, %v6120
        %v6136 = vor.u32 %v6134, %v6135
        %vm6137 = vcmp.lt.s32.totalorder %v6118, 1
        %vm6138 = vcmp.lt.s32.totalorder %v6118, 2
        %vm6139 = vcmp.lt.s32.totalorder %v6118, 3
        %vm6140 = vcmp.lt.s32.totalorder %v6118, 4
        %v6141 = vsel %vm6137, %v6121, %v6124
        %v6142 = vsel %vm6140, %v6130, 2102212464
        %v6143 = vsel %vm6139, %v6127, %v6142
        %v6144 = vsel %vm6138, %v6141, %v6143
        %v6145 = vsel %vm6137, %v6124, %v6127
        %v6146 = vsel %vm6140, %v6133, 920167782
        %v6147 = vsel %vm6139, %v6130, %v6146
        %v6148 = vsel %vm6138, %v6145, %v6147
        %v6149 = vsel %vm6137, %v6127, %v6130
        %v6150 = vsel %vm6140, %v6136, 1326507024
        %v6151 = vsel %vm6139, %v6133, %v6150
        %v6152 = vsel %vm6138, %v6149, %v6151
        %v6153 = vshll.u32 %v6113, 8
        %v6154 = vmul.u32.u64.compose %v6153, %v6152
        %v6155 = vextract.low.u32 %v6154
        %v6156 = vextract.high.u32 %v6154
        %v6157 = vmul.u32.u64.compose %v6153, %v6148
        %v6158 = vextract.low.u32 %v6157
        %v6159 = vextract.high.u32 %v6157
        %v6160 = vmul.u32 %v6153, %v6144
        %v6161 = vadd.s32 %v6156, %v6158
        %vm6162 = vc.u32 %v6156, %v6158
        %v6163 = vadd.s32 %v6159, 1
        %v6164 = vsel %vm6162, %v6163, %v6159
        %v6165 = vadd.s32 %v6160, %v6164
        %v6166 = vadd.s32 %v6165, 536870912
        %v6167 = vshrl.u32 %v6166, 30
        %v6168 = vshll.u32 %v6167, 30
        %v6169 = vsub.s32 %v6165, %v6168
        %vm6170 = vcmp.lt.s32.totalorder %v6169, 0
        %v6171 = vsub.s32 0, %v6169
        %v6172 = vsel %vm6170, %v6171, %v6169
        %v6173 = vclz %v6172
        %v6174 = vsub.s32 %v6173, 2
        %vm6175 = vcmp.gt.s32.totalorder 0, %v6174
        %v6176 = vsel %vm6175, 0, %v6174
        %v6177 = vsub.s32 32, %v6176
        %v6178 = vshll.u32 %v6169, %v6176
        %v6179 = vshrl.u32 %v6161, %v6177
        %v6180 = vor.u32 %v6178, %v6179
        %v6181 = vsub.s32 4294967266, %v6176
        %v6182 = vadd.s32 %v6181, 127
        %v6183 = vshll.u32 %v6182, 23
        %v6184 = vor.u32 4788187, %v6183
        %v6185 = vand.u32 2147483647, %v6184
        %v6187 = vcvt.s32.f32 %v6180
        %v6188 = vmul.f32 %v6187, %v6185
        %v6189 = vxor.u32 %v6188, 2147483648
        %v6190 = vsel %vm6107, %v6189, %v6188
        %v6191 = vsub.s32 4, %v6167
        %v6192 = vsel %vm6107, %v6191, %v6167
        %v6193 = vsel %vm6106, %v367, %v6190
        %v6194 = vsel %vm6106, 0, %v6192
        %v6195 = vcosq.f32.pop %v6193
        %v6196 = vsinq.f32.pop %v6193
        %vm6197 = vweird.f32 %v367
        %v6198 = vand.u32 %v6194, 3
        %vm6199 = vcmp.lt.s32.totalorder %v6198, 2
        %vm6200 = vcmp.eq.s32.totalorder %v6198, 0
        %v6201 = vxor.u32 %v6196, 2147483648
        %v6202 = vsel %vm6200, %v6195, %v6201
        %vm6203 = vcmp.eq.s32.totalorder %v6198, 2
        %v6204 = vxor.u32 %v6195, 2147483648
        %v6205 = vsel %vm6203, %v6204, %v6196
        %v6206 = vsel %vm6199, %v6202, %v6205
        %v6207 = vsel %vm6197, nan, %v6206
        %v6208 = vand.u32 2147483647, %v368
        %vm6209 = vcmp.le.f32.partialorder %v6208, 0.7853982
        %vm6210 = vcmp.lt.s32.totalorder %v368, 0
        %v6211 = vand.u32 %v368, 2139095040
        %v6212 = vshrl.u32 %v6211, 23
        %v6213 = vsub.s32 %v6212, 127
        %v6214 = vand.u32 2147483647, %v368
        %v6215 = vand.u32 %v6214, 8388607
        %v6216 = vor.u32 %v6215, 8388608
        %v6217 = vsub.s32 0, %v6216
        %v6218 = vadd.s32 %v6213, 1
        %vm6219 = vcmp.gt.s32.totalorder %v6218, 0
        %v6220 = vsel %vm6219, %v6218, 0
        %v6221 = vshrl.u32 %v6220, 5
        %v6222 = vand.u32 %v6220, 31
        %v6223 = vsub.s32 32, %v6222
        %v6224 = vshrl.u32 683565275, %v6223
        %v6225 = vshll.u32 683565275, %v6222
        %v6226 = vshrl.u32 2475754826, %v6223
        %v6227 = vor.u32 %v6225, %v6226
        %v6228 = vshll.u32 2475754826, %v6222
        %v6229 = vshrl.u32 2131351028, %v6223
        %v6230 = vor.u32 %v6228, %v6229
        %v6231 = vshll.u32 2131351028, %v6222
        %v6232 = vshrl.u32 2102212464, %v6223
        %v6233 = vor.u32 %v6231, %v6232
        %v6234 = vshll.u32 2102212464, %v6222
        %v6235 = vshrl.u32 920167782, %v6223
        %v6236 = vor.u32 %v6234, %v6235
        %v6237 = vshll.u32 920167782, %v6222
        %v6238 = vshrl.u32 1326507024, %v6223
        %v6239 = vor.u32 %v6237, %v6238
        %vm6240 = vcmp.lt.s32.totalorder %v6221, 1
        %vm6241 = vcmp.lt.s32.totalorder %v6221, 2
        %vm6242 = vcmp.lt.s32.totalorder %v6221, 3
        %vm6243 = vcmp.lt.s32.totalorder %v6221, 4
        %v6244 = vsel %vm6240, %v6224, %v6227
        %v6245 = vsel %vm6243, %v6233, 2102212464
        %v6246 = vsel %vm6242, %v6230, %v6245
        %v6247 = vsel %vm6241, %v6244, %v6246
        %v6248 = vsel %vm6240, %v6227, %v6230
        %v6249 = vsel %vm6243, %v6236, 920167782
        %v6250 = vsel %vm6242, %v6233, %v6249
        %v6251 = vsel %vm6241, %v6248, %v6250
        %v6252 = vsel %vm6240, %v6230, %v6233
        %v6253 = vsel %vm6243, %v6239, 1326507024
        %v6254 = vsel %vm6242, %v6236, %v6253
        %v6255 = vsel %vm6241, %v6252, %v6254
        %v6256 = vshll.u32 %v6216, 8
        %v6257 = vmul.u32.u64.compose %v6256, %v6255
        %v6258 = vextract.low.u32 %v6257
        %v6259 = vextract.high.u32 %v6257
        %v6260 = vmul.u32.u64.compose %v6256, %v6251
        %v6261 = vextract.low.u32 %v6260
        %v6262 = vextract.high.u32 %v6260
        %v6263 = vmul.u32 %v6256, %v6247
        %v6264 = vadd.s32 %v6259, %v6261
        %vm6265 = vc.u32 %v6259, %v6261
        %v6266 = vadd.s32 %v6262, 1
        %v6267 = vsel %vm6265, %v6266, %v6262
        %v6268 = vadd.s32 %v6263, %v6267
        %v6269 = vadd.s32 %v6268, 536870912
        %v6270 = vshrl.u32 %v6269, 30
        %v6271 = vshll.u32 %v6270, 30
        %v6272 = vsub.s32 %v6268, %v6271
        %vm6273 = vcmp.lt.s32.totalorder %v6272, 0
        %v6274 = vsub.s32 0, %v6272
        %v6275 = vsel %vm6273, %v6274, %v6272
        %v6276 = vclz %v6275
        %v6277 = vsub.s32 %v6276, 2
        %vm6278 = vcmp.gt.s32.totalorder 0, %v6277
        %v6279 = vsel %vm6278, 0, %v6277
        %v6280 = vsub.s32 32, %v6279
        %v6281 = vshll.u32 %v6272, %v6279
        %v6282 = vshrl.u32 %v6264, %v6280
        %v6283 = vor.u32 %v6281, %v6282
        %v6284 = vsub.s32 4294967266, %v6279
        %v6285 = vadd.s32 %v6284, 127
        %v6286 = vshll.u32 %v6285, 23
        %v6287 = vor.u32 4788187, %v6286
        %v6288 = vand.u32 2147483647, %v6287
        %v6290 = vcvt.s32.f32 %v6283
        %v6291 = vmul.f32 %v6290, %v6288
        %v6292 = vxor.u32 %v6291, 2147483648
        %v6293 = vsel %vm6210, %v6292, %v6291
        %v6294 = vsub.s32 4, %v6270
        %v6295 = vsel %vm6210, %v6294, %v6270
        %v6296 = vsel %vm6209, %v368, %v6293
        %v6297 = vsel %vm6209, 0, %v6295
        %v6298 = vcosq.f32.pop %v6296
        %v6299 = vsinq.f32.pop %v6296
        %vm6300 = vweird.f32 %v368
        %v6301 = vand.u32 %v6297, 3
        %vm6302 = vcmp.lt.s32.totalorder %v6301, 2
        %vm6303 = vcmp.eq.s32.totalorder %v6301, 0
        %v6304 = vxor.u32 %v6299, 2147483648
        %v6305 = vsel %vm6303, %v6298, %v6304
        %vm6306 = vcmp.eq.s32.totalorder %v6301, 2
        %v6307 = vxor.u32 %v6298, 2147483648
        %v6308 = vsel %vm6306, %v6307, %v6299
        %v6309 = vsel %vm6302, %v6305, %v6308
        %v6310 = vsel %vm6300, nan, %v6309
        %v6311 = vand.u32 2147483647, %v369
        %vm6312 = vcmp.le.f32.partialorder %v6311, 0.7853982
        %vm6313 = vcmp.lt.s32.totalorder %v369, 0
        %v6314 = vand.u32 %v369, 2139095040
        %v6315 = vshrl.u32 %v6314, 23
        %v6316 = vsub.s32 %v6315, 127
        %v6317 = vand.u32 2147483647, %v369
        %v6318 = vand.u32 %v6317, 8388607
        %v6319 = vor.u32 %v6318, 8388608
        %v6320 = vsub.s32 0, %v6319
        %v6321 = vadd.s32 %v6316, 1
        %vm6322 = vcmp.gt.s32.totalorder %v6321, 0
        %v6323 = vsel %vm6322, %v6321, 0
        %v6324 = vshrl.u32 %v6323, 5
        %v6325 = vand.u32 %v6323, 31
        %v6326 = vsub.s32 32, %v6325
        %v6327 = vshrl.u32 683565275, %v6326
        %v6328 = vshll.u32 683565275, %v6325
        %v6329 = vshrl.u32 2475754826, %v6326
        %v6330 = vor.u32 %v6328, %v6329
        %v6331 = vshll.u32 2475754826, %v6325
        %v6332 = vshrl.u32 2131351028, %v6326
        %v6333 = vor.u32 %v6331, %v6332
        %v6334 = vshll.u32 2131351028, %v6325
        %v6335 = vshrl.u32 2102212464, %v6326
        %v6336 = vor.u32 %v6334, %v6335
        %v6337 = vshll.u32 2102212464, %v6325
        %v6338 = vshrl.u32 920167782, %v6326
        %v6339 = vor.u32 %v6337, %v6338
        %v6340 = vshll.u32 920167782, %v6325
        %v6341 = vshrl.u32 1326507024, %v6326
        %v6342 = vor.u32 %v6340, %v6341
        %vm6343 = vcmp.lt.s32.totalorder %v6324, 1
        %vm6344 = vcmp.lt.s32.totalorder %v6324, 2
        %vm6345 = vcmp.lt.s32.totalorder %v6324, 3
        %vm6346 = vcmp.lt.s32.totalorder %v6324, 4
        %v6347 = vsel %vm6343, %v6327, %v6330
        %v6348 = vsel %vm6346, %v6336, 2102212464
        %v6349 = vsel %vm6345, %v6333, %v6348
        %v6350 = vsel %vm6344, %v6347, %v6349
        %v6351 = vsel %vm6343, %v6330, %v6333
        %v6352 = vsel %vm6346, %v6339, 920167782
        %v6353 = vsel %vm6345, %v6336, %v6352
        %v6354 = vsel %vm6344, %v6351, %v6353
        %v6355 = vsel %vm6343, %v6333, %v6336
        %v6356 = vsel %vm6346, %v6342, 1326507024
        %v6357 = vsel %vm6345, %v6339, %v6356
        %v6358 = vsel %vm6344, %v6355, %v6357
        %v6359 = vshll.u32 %v6319, 8
        %v6360 = vmul.u32.u64.compose %v6359, %v6358
        %v6361 = vextract.low.u32 %v6360
        %v6362 = vextract.high.u32 %v6360
        %v6363 = vmul.u32.u64.compose %v6359, %v6354
        %v6364 = vextract.low.u32 %v6363
        %v6365 = vextract.high.u32 %v6363
        %v6366 = vmul.u32 %v6359, %v6350
        %v6367 = vadd.s32 %v6362, %v6364
        %vm6368 = vc.u32 %v6362, %v6364
        %v6369 = vadd.s32 %v6365, 1
        %v6370 = vsel %vm6368, %v6369, %v6365
        %v6371 = vadd.s32 %v6366, %v6370
        %v6372 = vadd.s32 %v6371, 536870912
        %v6373 = vshrl.u32 %v6372, 30
        %v6374 = vshll.u32 %v6373, 30
        %v6375 = vsub.s32 %v6371, %v6374
        %vm6376 = vcmp.lt.s32.totalorder %v6375, 0
        %v6377 = vsub.s32 0, %v6375
        %v6378 = vsel %vm6376, %v6377, %v6375
        %v6379 = vclz %v6378
        %v6380 = vsub.s32 %v6379, 2
        %vm6381 = vcmp.gt.s32.totalorder 0, %v6380
        %v6382 = vsel %vm6381, 0, %v6380
        %v6383 = vsub.s32 32, %v6382
        %v6384 = vshll.u32 %v6375, %v6382
        %v6385 = vshrl.u32 %v6367, %v6383
        %v6386 = vor.u32 %v6384, %v6385
        %v6387 = vsub.s32 4294967266, %v6382
        %v6388 = vadd.s32 %v6387, 127
        %v6389 = vshll.u32 %v6388, 23
        %v6390 = vor.u32 4788187, %v6389
        %v6391 = vand.u32 2147483647, %v6390
        %v6393 = vcvt.s32.f32 %v6386
        %v6394 = vmul.f32 %v6393, %v6391
        %v6395 = vxor.u32 %v6394, 2147483648
        %v6396 = vsel %vm6313, %v6395, %v6394
        %v6397 = vsub.s32 4, %v6373
        %v6398 = vsel %vm6313, %v6397, %v6373
        %v6399 = vsel %vm6312, %v369, %v6396
        %v6400 = vsel %vm6312, 0, %v6398
        %v6401 = vcosq.f32.pop %v6399
        %v6402 = vsinq.f32.pop %v6399
        %vm6403 = vweird.f32 %v369
        %v6404 = vand.u32 %v6400, 3
        %vm6405 = vcmp.lt.s32.totalorder %v6404, 2
        %vm6406 = vcmp.eq.s32.totalorder %v6404, 0
        %v6407 = vxor.u32 %v6402, 2147483648
        %v6408 = vsel %vm6406, %v6401, %v6407
        %vm6409 = vcmp.eq.s32.totalorder %v6404, 2
        %v6410 = vxor.u32 %v6401, 2147483648
        %v6411 = vsel %vm6409, %v6410, %v6402
        %v6412 = vsel %vm6405, %v6408, %v6411
        %v6413 = vsel %vm6403, nan, %v6412
        %v6414 = vand.u32 2147483647, %v370
        %vm6415 = vcmp.le.f32.partialorder %v6414, 0.7853982
        %vm6416 = vcmp.lt.s32.totalorder %v370, 0
        %v6417 = vand.u32 %v370, 2139095040
        %v6418 = vshrl.u32 %v6417, 23
        %v6419 = vsub.s32 %v6418, 127
        %v6420 = vand.u32 2147483647, %v370
        %v6421 = vand.u32 %v6420, 8388607
        %v6422 = vor.u32 %v6421, 8388608
        %v6423 = vsub.s32 0, %v6422
        %v6424 = vadd.s32 %v6419, 1
        %vm6425 = vcmp.gt.s32.totalorder %v6424, 0
        %v6426 = vsel %vm6425, %v6424, 0
        %v6427 = vshrl.u32 %v6426, 5
        %v6428 = vand.u32 %v6426, 31
        %v6429 = vsub.s32 32, %v6428
        %v6430 = vshrl.u32 683565275, %v6429
        %v6431 = vshll.u32 683565275, %v6428
        %v6432 = vshrl.u32 2475754826, %v6429
        %v6433 = vor.u32 %v6431, %v6432
        %v6434 = vshll.u32 2475754826, %v6428
        %v6435 = vshrl.u32 2131351028, %v6429
        %v6436 = vor.u32 %v6434, %v6435
        %v6437 = vshll.u32 2131351028, %v6428
        %v6438 = vshrl.u32 2102212464, %v6429
        %v6439 = vor.u32 %v6437, %v6438
        %v6440 = vshll.u32 2102212464, %v6428
        %v6441 = vshrl.u32 920167782, %v6429
        %v6442 = vor.u32 %v6440, %v6441
        %v6443 = vshll.u32 920167782, %v6428
        %v6444 = vshrl.u32 1326507024, %v6429
        %v6445 = vor.u32 %v6443, %v6444
        %vm6446 = vcmp.lt.s32.totalorder %v6427, 1
        %vm6447 = vcmp.lt.s32.totalorder %v6427, 2
        %vm6448 = vcmp.lt.s32.totalorder %v6427, 3
        %vm6449 = vcmp.lt.s32.totalorder %v6427, 4
        %v6450 = vsel %vm6446, %v6430, %v6433
        %v6451 = vsel %vm6449, %v6439, 2102212464
        %v6452 = vsel %vm6448, %v6436, %v6451
        %v6453 = vsel %vm6447, %v6450, %v6452
        %v6454 = vsel %vm6446, %v6433, %v6436
        %v6455 = vsel %vm6449, %v6442, 920167782
        %v6456 = vsel %vm6448, %v6439, %v6455
        %v6457 = vsel %vm6447, %v6454, %v6456
        %v6458 = vsel %vm6446, %v6436, %v6439
        %v6459 = vsel %vm6449, %v6445, 1326507024
        %v6460 = vsel %vm6448, %v6442, %v6459
        %v6461 = vsel %vm6447, %v6458, %v6460
        %v6462 = vshll.u32 %v6422, 8
        %v6463 = vmul.u32.u64.compose %v6462, %v6461
        %v6464 = vextract.low.u32 %v6463
        %v6465 = vextract.high.u32 %v6463
        %v6466 = vmul.u32.u64.compose %v6462, %v6457
        %v6467 = vextract.low.u32 %v6466
        %v6468 = vextract.high.u32 %v6466
        %v6469 = vmul.u32 %v6462, %v6453
        %v6470 = vadd.s32 %v6465, %v6467
        %vm6471 = vc.u32 %v6465, %v6467
        %v6472 = vadd.s32 %v6468, 1
        %v6473 = vsel %vm6471, %v6472, %v6468
        %v6474 = vadd.s32 %v6469, %v6473
        %v6475 = vadd.s32 %v6474, 536870912
        %v6476 = vshrl.u32 %v6475, 30
        %v6477 = vshll.u32 %v6476, 30
        %v6478 = vsub.s32 %v6474, %v6477
        %vm6479 = vcmp.lt.s32.totalorder %v6478, 0
        %v6480 = vsub.s32 0, %v6478
        %v6481 = vsel %vm6479, %v6480, %v6478
        %v6482 = vclz %v6481
        %v6483 = vsub.s32 %v6482, 2
        %vm6484 = vcmp.gt.s32.totalorder 0, %v6483
        %v6485 = vsel %vm6484, 0, %v6483
        %v6486 = vsub.s32 32, %v6485
        %v6487 = vshll.u32 %v6478, %v6485
        %v6488 = vshrl.u32 %v6470, %v6486
        %v6489 = vor.u32 %v6487, %v6488
        %v6490 = vsub.s32 4294967266, %v6485
        %v6491 = vadd.s32 %v6490, 127
        %v6492 = vshll.u32 %v6491, 23
        %v6493 = vor.u32 4788187, %v6492
        %v6494 = vand.u32 2147483647, %v6493
        %v6496 = vcvt.s32.f32 %v6489
        %v6497 = vmul.f32 %v6496, %v6494
        %v6498 = vxor.u32 %v6497, 2147483648
        %v6499 = vsel %vm6416, %v6498, %v6497
        %v6500 = vsub.s32 4, %v6476
        %v6501 = vsel %vm6416, %v6500, %v6476
        %v6502 = vsel %vm6415, %v370, %v6499
        %v6503 = vsel %vm6415, 0, %v6501
        %v6504 = vcosq.f32.pop %v6502
        %v6505 = vsinq.f32.pop %v6502
        %vm6506 = vweird.f32 %v370
        %v6507 = vand.u32 %v6503, 3
        %vm6508 = vcmp.lt.s32.totalorder %v6507, 2
        %vm6509 = vcmp.eq.s32.totalorder %v6507, 0
        %v6510 = vxor.u32 %v6505, 2147483648
        %v6511 = vsel %vm6509, %v6504, %v6510
        %vm6512 = vcmp.eq.s32.totalorder %v6507, 2
        %v6513 = vxor.u32 %v6504, 2147483648
        %v6514 = vsel %vm6512, %v6513, %v6505
        %v6515 = vsel %vm6508, %v6511, %v6514
        %v6516 = vsel %vm6506, nan, %v6515
        %v6517 = vand.u32 2147483647, %v371
        %vm6518 = vcmp.le.f32.partialorder %v6517, 0.7853982
        %vm6519 = vcmp.lt.s32.totalorder %v371, 0
        %v6520 = vand.u32 %v371, 2139095040
        %v6521 = vshrl.u32 %v6520, 23
        %v6522 = vsub.s32 %v6521, 127
        %v6523 = vand.u32 2147483647, %v371
        %v6524 = vand.u32 %v6523, 8388607
        %v6525 = vor.u32 %v6524, 8388608
        %v6526 = vsub.s32 0, %v6525
        %v6527 = vadd.s32 %v6522, 1
        %vm6528 = vcmp.gt.s32.totalorder %v6527, 0
        %v6529 = vsel %vm6528, %v6527, 0
        %v6530 = vshrl.u32 %v6529, 5
        %v6531 = vand.u32 %v6529, 31
        %v6532 = vsub.s32 32, %v6531
        %v6533 = vshrl.u32 683565275, %v6532
        %v6534 = vshll.u32 683565275, %v6531
        %v6535 = vshrl.u32 2475754826, %v6532
        %v6536 = vor.u32 %v6534, %v6535
        %v6537 = vshll.u32 2475754826, %v6531
        %v6538 = vshrl.u32 2131351028, %v6532
        %v6539 = vor.u32 %v6537, %v6538
        %v6540 = vshll.u32 2131351028, %v6531
        %v6541 = vshrl.u32 2102212464, %v6532
        %v6542 = vor.u32 %v6540, %v6541
        %v6543 = vshll.u32 2102212464, %v6531
        %v6544 = vshrl.u32 920167782, %v6532
        %v6545 = vor.u32 %v6543, %v6544
        %v6546 = vshll.u32 920167782, %v6531
        %v6547 = vshrl.u32 1326507024, %v6532
        %v6548 = vor.u32 %v6546, %v6547
        %vm6549 = vcmp.lt.s32.totalorder %v6530, 1
        %vm6550 = vcmp.lt.s32.totalorder %v6530, 2
        %vm6551 = vcmp.lt.s32.totalorder %v6530, 3
        %vm6552 = vcmp.lt.s32.totalorder %v6530, 4
        %v6553 = vsel %vm6549, %v6533, %v6536
        %v6554 = vsel %vm6552, %v6542, 2102212464
        %v6555 = vsel %vm6551, %v6539, %v6554
        %v6556 = vsel %vm6550, %v6553, %v6555
        %v6557 = vsel %vm6549, %v6536, %v6539
        %v6558 = vsel %vm6552, %v6545, 920167782
        %v6559 = vsel %vm6551, %v6542, %v6558
        %v6560 = vsel %vm6550, %v6557, %v6559
        %v6561 = vsel %vm6549, %v6539, %v6542
        %v6562 = vsel %vm6552, %v6548, 1326507024
        %v6563 = vsel %vm6551, %v6545, %v6562
        %v6564 = vsel %vm6550, %v6561, %v6563
        %v6565 = vshll.u32 %v6525, 8
        %v6566 = vmul.u32.u64.compose %v6565, %v6564
        %v6567 = vextract.low.u32 %v6566
        %v6568 = vextract.high.u32 %v6566
        %v6569 = vmul.u32.u64.compose %v6565, %v6560
        %v6570 = vextract.low.u32 %v6569
        %v6571 = vextract.high.u32 %v6569
        %v6572 = vmul.u32 %v6565, %v6556
        %v6573 = vadd.s32 %v6568, %v6570
        %vm6574 = vc.u32 %v6568, %v6570
        %v6575 = vadd.s32 %v6571, 1
        %v6576 = vsel %vm6574, %v6575, %v6571
        %v6577 = vadd.s32 %v6572, %v6576
        %v6578 = vadd.s32 %v6577, 536870912
        %v6579 = vshrl.u32 %v6578, 30
        %v6580 = vshll.u32 %v6579, 30
        %v6581 = vsub.s32 %v6577, %v6580
        %vm6582 = vcmp.lt.s32.totalorder %v6581, 0
        %v6583 = vsub.s32 0, %v6581
        %v6584 = vsel %vm6582, %v6583, %v6581
        %v6585 = vclz %v6584
        %v6586 = vsub.s32 %v6585, 2
        %vm6587 = vcmp.gt.s32.totalorder 0, %v6586
        %v6588 = vsel %vm6587, 0, %v6586
        %v6589 = vsub.s32 32, %v6588
        %v6590 = vshll.u32 %v6581, %v6588
        %v6591 = vshrl.u32 %v6573, %v6589
        %v6592 = vor.u32 %v6590, %v6591
        %v6593 = vsub.s32 4294967266, %v6588
        %v6594 = vadd.s32 %v6593, 127
        %v6595 = vshll.u32 %v6594, 23
        %v6596 = vor.u32 4788187, %v6595
        %v6597 = vand.u32 2147483647, %v6596
        %v6599 = vcvt.s32.f32 %v6592
        %v6600 = vmul.f32 %v6599, %v6597
        %v6601 = vxor.u32 %v6600, 2147483648
        %v6602 = vsel %vm6519, %v6601, %v6600
        %v6603 = vsub.s32 4, %v6579
        %v6604 = vsel %vm6519, %v6603, %v6579
        %v6605 = vsel %vm6518, %v371, %v6602
        %v6606 = vsel %vm6518, 0, %v6604
        %v6607 = vcosq.f32.pop %v6605
        %v6608 = vsinq.f32.pop %v6605
        %vm6609 = vweird.f32 %v371
        %v6610 = vand.u32 %v6606, 3
        %vm6611 = vcmp.lt.s32.totalorder %v6610, 2
        %vm6612 = vcmp.eq.s32.totalorder %v6610, 0
        %v6613 = vxor.u32 %v6608, 2147483648
        %v6614 = vsel %vm6612, %v6607, %v6613
        %vm6615 = vcmp.eq.s32.totalorder %v6610, 2
        %v6616 = vxor.u32 %v6607, 2147483648
        %v6617 = vsel %vm6615, %v6616, %v6608
        %v6618 = vsel %vm6611, %v6614, %v6617
        %v6619 = vsel %vm6609, nan, %v6618
        %v6620 = vand.u32 2147483647, %v372
        %vm6621 = vcmp.le.f32.partialorder %v6620, 0.7853982
        %vm6622 = vcmp.lt.s32.totalorder %v372, 0
        %v6623 = vand.u32 %v372, 2139095040
        %v6624 = vshrl.u32 %v6623, 23
        %v6625 = vsub.s32 %v6624, 127
        %v6626 = vand.u32 2147483647, %v372
        %v6627 = vand.u32 %v6626, 8388607
        %v6628 = vor.u32 %v6627, 8388608
        %v6629 = vsub.s32 0, %v6628
        %v6630 = vadd.s32 %v6625, 1
        %vm6631 = vcmp.gt.s32.totalorder %v6630, 0
        %v6632 = vsel %vm6631, %v6630, 0
        %v6633 = vshrl.u32 %v6632, 5
        %v6634 = vand.u32 %v6632, 31
        %v6635 = vsub.s32 32, %v6634
        %v6636 = vshrl.u32 683565275, %v6635
        %v6637 = vshll.u32 683565275, %v6634
        %v6638 = vshrl.u32 2475754826, %v6635
        %v6639 = vor.u32 %v6637, %v6638
        %v6640 = vshll.u32 2475754826, %v6634
        %v6641 = vshrl.u32 2131351028, %v6635
        %v6642 = vor.u32 %v6640, %v6641
        %v6643 = vshll.u32 2131351028, %v6634
        %v6644 = vshrl.u32 2102212464, %v6635
        %v6645 = vor.u32 %v6643, %v6644
        %v6646 = vshll.u32 2102212464, %v6634
        %v6647 = vshrl.u32 920167782, %v6635
        %v6648 = vor.u32 %v6646, %v6647
        %v6649 = vshll.u32 920167782, %v6634
        %v6650 = vshrl.u32 1326507024, %v6635
        %v6651 = vor.u32 %v6649, %v6650
        %vm6652 = vcmp.lt.s32.totalorder %v6633, 1
        %vm6653 = vcmp.lt.s32.totalorder %v6633, 2
        %vm6654 = vcmp.lt.s32.totalorder %v6633, 3
        %vm6655 = vcmp.lt.s32.totalorder %v6633, 4
        %v6656 = vsel %vm6652, %v6636, %v6639
        %v6657 = vsel %vm6655, %v6645, 2102212464
        %v6658 = vsel %vm6654, %v6642, %v6657
        %v6659 = vsel %vm6653, %v6656, %v6658
        %v6660 = vsel %vm6652, %v6639, %v6642
        %v6661 = vsel %vm6655, %v6648, 920167782
        %v6662 = vsel %vm6654, %v6645, %v6661
        %v6663 = vsel %vm6653, %v6660, %v6662
        %v6664 = vsel %vm6652, %v6642, %v6645
        %v6665 = vsel %vm6655, %v6651, 1326507024
        %v6666 = vsel %vm6654, %v6648, %v6665
        %v6667 = vsel %vm6653, %v6664, %v6666
        %v6668 = vshll.u32 %v6628, 8
        %v6669 = vmul.u32.u64.compose %v6668, %v6667
        %v6670 = vextract.low.u32 %v6669
        %v6671 = vextract.high.u32 %v6669
        %v6672 = vmul.u32.u64.compose %v6668, %v6663
        %v6673 = vextract.low.u32 %v6672
        %v6674 = vextract.high.u32 %v6672
        %v6675 = vmul.u32 %v6668, %v6659
        %v6676 = vadd.s32 %v6671, %v6673
        %vm6677 = vc.u32 %v6671, %v6673
        %v6678 = vadd.s32 %v6674, 1
        %v6679 = vsel %vm6677, %v6678, %v6674
        %v6680 = vadd.s32 %v6675, %v6679
        %v6681 = vadd.s32 %v6680, 536870912
        %v6682 = vshrl.u32 %v6681, 30
        %v6683 = vshll.u32 %v6682, 30
        %v6684 = vsub.s32 %v6680, %v6683
        %vm6685 = vcmp.lt.s32.totalorder %v6684, 0
        %v6686 = vsub.s32 0, %v6684
        %v6687 = vsel %vm6685, %v6686, %v6684
        %v6688 = vclz %v6687
        %v6689 = vsub.s32 %v6688, 2
        %vm6690 = vcmp.gt.s32.totalorder 0, %v6689
        %v6691 = vsel %vm6690, 0, %v6689
        %v6692 = vsub.s32 32, %v6691
        %v6693 = vshll.u32 %v6684, %v6691
        %v6694 = vshrl.u32 %v6676, %v6692
        %v6695 = vor.u32 %v6693, %v6694
        %v6696 = vsub.s32 4294967266, %v6691
        %v6697 = vadd.s32 %v6696, 127
        %v6698 = vshll.u32 %v6697, 23
        %v6699 = vor.u32 4788187, %v6698
        %v6700 = vand.u32 2147483647, %v6699
        %v6702 = vcvt.s32.f32 %v6695
        %v6703 = vmul.f32 %v6702, %v6700
        %v6704 = vxor.u32 %v6703, 2147483648
        %v6705 = vsel %vm6622, %v6704, %v6703
        %v6706 = vsub.s32 4, %v6682
        %v6707 = vsel %vm6622, %v6706, %v6682
        %v6708 = vsel %vm6621, %v372, %v6705
        %v6709 = vsel %vm6621, 0, %v6707
        %v6710 = vcosq.f32.pop %v6708
        %v6711 = vsinq.f32.pop %v6708
        %vm6712 = vweird.f32 %v372
        %v6713 = vand.u32 %v6709, 3
        %vm6714 = vcmp.lt.s32.totalorder %v6713, 2
        %vm6715 = vcmp.eq.s32.totalorder %v6713, 0
        %v6716 = vxor.u32 %v6711, 2147483648
        %v6717 = vsel %vm6715, %v6710, %v6716
        %vm6718 = vcmp.eq.s32.totalorder %v6713, 2
        %v6719 = vxor.u32 %v6710, 2147483648
        %v6720 = vsel %vm6718, %v6719, %v6711
        %v6721 = vsel %vm6714, %v6717, %v6720
        %v6722 = vsel %vm6712, nan, %v6721
        %v6723 = vand.u32 2147483647, %v373
        %vm6724 = vcmp.le.f32.partialorder %v6723, 0.7853982
        %vm6725 = vcmp.lt.s32.totalorder %v373, 0
        %v6726 = vand.u32 %v373, 2139095040
        %v6727 = vshrl.u32 %v6726, 23
        %v6728 = vsub.s32 %v6727, 127
        %v6729 = vand.u32 2147483647, %v373
        %v6730 = vand.u32 %v6729, 8388607
        %v6731 = vor.u32 %v6730, 8388608
        %v6732 = vsub.s32 0, %v6731
        %v6733 = vadd.s32 %v6728, 1
        %vm6734 = vcmp.gt.s32.totalorder %v6733, 0
        %v6735 = vsel %vm6734, %v6733, 0
        %v6736 = vshrl.u32 %v6735, 5
        %v6737 = vand.u32 %v6735, 31
        %v6738 = vsub.s32 32, %v6737
        %v6739 = vshrl.u32 683565275, %v6738
        %v6740 = vshll.u32 683565275, %v6737
        %v6741 = vshrl.u32 2475754826, %v6738
        %v6742 = vor.u32 %v6740, %v6741
        %v6743 = vshll.u32 2475754826, %v6737
        %v6744 = vshrl.u32 2131351028, %v6738
        %v6745 = vor.u32 %v6743, %v6744
        %v6746 = vshll.u32 2131351028, %v6737
        %v6747 = vshrl.u32 2102212464, %v6738
        %v6748 = vor.u32 %v6746, %v6747
        %v6749 = vshll.u32 2102212464, %v6737
        %v6750 = vshrl.u32 920167782, %v6738
        %v6751 = vor.u32 %v6749, %v6750
        %v6752 = vshll.u32 920167782, %v6737
        %v6753 = vshrl.u32 1326507024, %v6738
        %v6754 = vor.u32 %v6752, %v6753
        %vm6755 = vcmp.lt.s32.totalorder %v6736, 1
        %vm6756 = vcmp.lt.s32.totalorder %v6736, 2
        %vm6757 = vcmp.lt.s32.totalorder %v6736, 3
        %vm6758 = vcmp.lt.s32.totalorder %v6736, 4
        %v6759 = vsel %vm6755, %v6739, %v6742
        %v6760 = vsel %vm6758, %v6748, 2102212464
        %v6761 = vsel %vm6757, %v6745, %v6760
        %v6762 = vsel %vm6756, %v6759, %v6761
        %v6763 = vsel %vm6755, %v6742, %v6745
        %v6764 = vsel %vm6758, %v6751, 920167782
        %v6765 = vsel %vm6757, %v6748, %v6764
        %v6766 = vsel %vm6756, %v6763, %v6765
        %v6767 = vsel %vm6755, %v6745, %v6748
        %v6768 = vsel %vm6758, %v6754, 1326507024
        %v6769 = vsel %vm6757, %v6751, %v6768
        %v6770 = vsel %vm6756, %v6767, %v6769
        %v6771 = vshll.u32 %v6731, 8
        %v6772 = vmul.u32.u64.compose %v6771, %v6770
        %v6773 = vextract.low.u32 %v6772
        %v6774 = vextract.high.u32 %v6772
        %v6775 = vmul.u32.u64.compose %v6771, %v6766
        %v6776 = vextract.low.u32 %v6775
        %v6777 = vextract.high.u32 %v6775
        %v6778 = vmul.u32 %v6771, %v6762
        %v6779 = vadd.s32 %v6774, %v6776
        %vm6780 = vc.u32 %v6774, %v6776
        %v6781 = vadd.s32 %v6777, 1
        %v6782 = vsel %vm6780, %v6781, %v6777
        %v6783 = vadd.s32 %v6778, %v6782
        %v6784 = vadd.s32 %v6783, 536870912
        %v6785 = vshrl.u32 %v6784, 30
        %v6786 = vshll.u32 %v6785, 30
        %v6787 = vsub.s32 %v6783, %v6786
        %vm6788 = vcmp.lt.s32.totalorder %v6787, 0
        %v6789 = vsub.s32 0, %v6787
        %v6790 = vsel %vm6788, %v6789, %v6787
        %v6791 = vclz %v6790
        %v6792 = vsub.s32 %v6791, 2
        %vm6793 = vcmp.gt.s32.totalorder 0, %v6792
        %v6794 = vsel %vm6793, 0, %v6792
        %v6795 = vsub.s32 32, %v6794
        %v6796 = vshll.u32 %v6787, %v6794
        %v6797 = vshrl.u32 %v6779, %v6795
        %v6798 = vor.u32 %v6796, %v6797
        %v6799 = vsub.s32 4294967266, %v6794
        %v6800 = vadd.s32 %v6799, 127
        %v6801 = vshll.u32 %v6800, 23
        %v6802 = vor.u32 4788187, %v6801
        %v6803 = vand.u32 2147483647, %v6802
        %v6805 = vcvt.s32.f32 %v6798
        %v6806 = vmul.f32 %v6805, %v6803
        %v6807 = vxor.u32 %v6806, 2147483648
        %v6808 = vsel %vm6725, %v6807, %v6806
        %v6809 = vsub.s32 4, %v6785
        %v6810 = vsel %vm6725, %v6809, %v6785
        %v6811 = vsel %vm6724, %v373, %v6808
        %v6812 = vsel %vm6724, 0, %v6810
        %v6813 = vcosq.f32.pop %v6811
        %v6814 = vsinq.f32.pop %v6811
        %vm6815 = vweird.f32 %v373
        %v6816 = vand.u32 %v6812, 3
        %vm6817 = vcmp.lt.s32.totalorder %v6816, 2
        %vm6818 = vcmp.eq.s32.totalorder %v6816, 0
        %v6819 = vxor.u32 %v6814, 2147483648
        %v6820 = vsel %vm6818, %v6813, %v6819
        %vm6821 = vcmp.eq.s32.totalorder %v6816, 2
        %v6822 = vxor.u32 %v6813, 2147483648
        %v6823 = vsel %vm6821, %v6822, %v6814
        %v6824 = vsel %vm6817, %v6820, %v6823
        %v6825 = vsel %vm6815, nan, %v6824
        %v6826 = vand.u32 2147483647, %v374
        %vm6827 = vcmp.le.f32.partialorder %v6826, 0.7853982
        %vm6828 = vcmp.lt.s32.totalorder %v374, 0
        %v6829 = vand.u32 %v374, 2139095040
        %v6830 = vshrl.u32 %v6829, 23
        %v6831 = vsub.s32 %v6830, 127
        %v6832 = vand.u32 2147483647, %v374
        %v6833 = vand.u32 %v6832, 8388607
        %v6834 = vor.u32 %v6833, 8388608
        %v6835 = vsub.s32 0, %v6834
        %v6836 = vadd.s32 %v6831, 1
        %vm6837 = vcmp.gt.s32.totalorder %v6836, 0
        %v6838 = vsel %vm6837, %v6836, 0
        %v6839 = vshrl.u32 %v6838, 5
        %v6840 = vand.u32 %v6838, 31
        %v6841 = vsub.s32 32, %v6840
        %v6842 = vshrl.u32 683565275, %v6841
        %v6843 = vshll.u32 683565275, %v6840
        %v6844 = vshrl.u32 2475754826, %v6841
        %v6845 = vor.u32 %v6843, %v6844
        %v6846 = vshll.u32 2475754826, %v6840
        %v6847 = vshrl.u32 2131351028, %v6841
        %v6848 = vor.u32 %v6846, %v6847
        %v6849 = vshll.u32 2131351028, %v6840
        %v6850 = vshrl.u32 2102212464, %v6841
        %v6851 = vor.u32 %v6849, %v6850
        %v6852 = vshll.u32 2102212464, %v6840
        %v6853 = vshrl.u32 920167782, %v6841
        %v6854 = vor.u32 %v6852, %v6853
        %v6855 = vshll.u32 920167782, %v6840
        %v6856 = vshrl.u32 1326507024, %v6841
        %v6857 = vor.u32 %v6855, %v6856
        %vm6858 = vcmp.lt.s32.totalorder %v6839, 1
        %vm6859 = vcmp.lt.s32.totalorder %v6839, 2
        %vm6860 = vcmp.lt.s32.totalorder %v6839, 3
        %vm6861 = vcmp.lt.s32.totalorder %v6839, 4
        %v6862 = vsel %vm6858, %v6842, %v6845
        %v6863 = vsel %vm6861, %v6851, 2102212464
        %v6864 = vsel %vm6860, %v6848, %v6863
        %v6865 = vsel %vm6859, %v6862, %v6864
        %v6866 = vsel %vm6858, %v6845, %v6848
        %v6867 = vsel %vm6861, %v6854, 920167782
        %v6868 = vsel %vm6860, %v6851, %v6867
        %v6869 = vsel %vm6859, %v6866, %v6868
        %v6870 = vsel %vm6858, %v6848, %v6851
        %v6871 = vsel %vm6861, %v6857, 1326507024
        %v6872 = vsel %vm6860, %v6854, %v6871
        %v6873 = vsel %vm6859, %v6870, %v6872
        %v6874 = vshll.u32 %v6834, 8
        %v6875 = vmul.u32.u64.compose %v6874, %v6873
        %v6876 = vextract.low.u32 %v6875
        %v6877 = vextract.high.u32 %v6875
        %v6878 = vmul.u32.u64.compose %v6874, %v6869
        %v6879 = vextract.low.u32 %v6878
        %v6880 = vextract.high.u32 %v6878
        %v6881 = vmul.u32 %v6874, %v6865
        %v6882 = vadd.s32 %v6877, %v6879
        %vm6883 = vc.u32 %v6877, %v6879
        %v6884 = vadd.s32 %v6880, 1
        %v6885 = vsel %vm6883, %v6884, %v6880
        %v6886 = vadd.s32 %v6881, %v6885
        %v6887 = vadd.s32 %v6886, 536870912
        %v6888 = vshrl.u32 %v6887, 30
        %v6889 = vshll.u32 %v6888, 30
        %v6890 = vsub.s32 %v6886, %v6889
        %vm6891 = vcmp.lt.s32.totalorder %v6890, 0
        %v6892 = vsub.s32 0, %v6890
        %v6893 = vsel %vm6891, %v6892, %v6890
        %v6894 = vclz %v6893
        %v6895 = vsub.s32 %v6894, 2
        %vm6896 = vcmp.gt.s32.totalorder 0, %v6895
        %v6897 = vsel %vm6896, 0, %v6895
        %v6898 = vsub.s32 32, %v6897
        %v6899 = vshll.u32 %v6890, %v6897
        %v6900 = vshrl.u32 %v6882, %v6898
        %v6901 = vor.u32 %v6899, %v6900
        %v6902 = vsub.s32 4294967266, %v6897
        %v6903 = vadd.s32 %v6902, 127
        %v6904 = vshll.u32 %v6903, 23
        %v6905 = vor.u32 4788187, %v6904
        %v6906 = vand.u32 2147483647, %v6905
        %v6908 = vcvt.s32.f32 %v6901
        %v6909 = vmul.f32 %v6908, %v6906
        %v6910 = vxor.u32 %v6909, 2147483648
        %v6911 = vsel %vm6828, %v6910, %v6909
        %v6912 = vsub.s32 4, %v6888
        %v6913 = vsel %vm6828, %v6912, %v6888
        %v6914 = vsel %vm6827, %v374, %v6911
        %v6915 = vsel %vm6827, 0, %v6913
        %v6916 = vcosq.f32.pop %v6914
        %v6917 = vsinq.f32.pop %v6914
        %vm6918 = vweird.f32 %v374
        %v6919 = vand.u32 %v6915, 3
        %vm6920 = vcmp.lt.s32.totalorder %v6919, 2
        %vm6921 = vcmp.eq.s32.totalorder %v6919, 0
        %v6922 = vxor.u32 %v6917, 2147483648
        %v6923 = vsel %vm6921, %v6916, %v6922
        %vm6924 = vcmp.eq.s32.totalorder %v6919, 2
        %v6925 = vxor.u32 %v6916, 2147483648
        %v6926 = vsel %vm6924, %v6925, %v6917
        %v6927 = vsel %vm6920, %v6923, %v6926
        %v6928 = vsel %vm6918, nan, %v6927
        %v6929 = vand.u32 2147483647, %v375
        %vm6930 = vcmp.le.f32.partialorder %v6929, 0.7853982
        %vm6931 = vcmp.lt.s32.totalorder %v375, 0
        %v6932 = vand.u32 %v375, 2139095040
        %v6933 = vshrl.u32 %v6932, 23
        %v6934 = vsub.s32 %v6933, 127
        %v6935 = vand.u32 2147483647, %v375
        %v6936 = vand.u32 %v6935, 8388607
        %v6937 = vor.u32 %v6936, 8388608
        %v6938 = vsub.s32 0, %v6937
        %v6939 = vadd.s32 %v6934, 1
        %vm6940 = vcmp.gt.s32.totalorder %v6939, 0
        %v6941 = vsel %vm6940, %v6939, 0
        %v6942 = vshrl.u32 %v6941, 5
        %v6943 = vand.u32 %v6941, 31
        %v6944 = vsub.s32 32, %v6943
        %v6945 = vshrl.u32 683565275, %v6944
        %v6946 = vshll.u32 683565275, %v6943
        %v6947 = vshrl.u32 2475754826, %v6944
        %v6948 = vor.u32 %v6946, %v6947
        %v6949 = vshll.u32 2475754826, %v6943
        %v6950 = vshrl.u32 2131351028, %v6944
        %v6951 = vor.u32 %v6949, %v6950
        %v6952 = vshll.u32 2131351028, %v6943
        %v6953 = vshrl.u32 2102212464, %v6944
        %v6954 = vor.u32 %v6952, %v6953
        %v6955 = vshll.u32 2102212464, %v6943
        %v6956 = vshrl.u32 920167782, %v6944
        %v6957 = vor.u32 %v6955, %v6956
        %v6958 = vshll.u32 920167782, %v6943
        %v6959 = vshrl.u32 1326507024, %v6944
        %v6960 = vor.u32 %v6958, %v6959
        %vm6961 = vcmp.lt.s32.totalorder %v6942, 1
        %vm6962 = vcmp.lt.s32.totalorder %v6942, 2
        %vm6963 = vcmp.lt.s32.totalorder %v6942, 3
        %vm6964 = vcmp.lt.s32.totalorder %v6942, 4
        %v6965 = vsel %vm6961, %v6945, %v6948
        %v6966 = vsel %vm6964, %v6954, 2102212464
        %v6967 = vsel %vm6963, %v6951, %v6966
        %v6968 = vsel %vm6962, %v6965, %v6967
        %v6969 = vsel %vm6961, %v6948, %v6951
        %v6970 = vsel %vm6964, %v6957, 920167782
        %v6971 = vsel %vm6963, %v6954, %v6970
        %v6972 = vsel %vm6962, %v6969, %v6971
        %v6973 = vsel %vm6961, %v6951, %v6954
        %v6974 = vsel %vm6964, %v6960, 1326507024
        %v6975 = vsel %vm6963, %v6957, %v6974
        %v6976 = vsel %vm6962, %v6973, %v6975
        %v6977 = vshll.u32 %v6937, 8
        %v6978 = vmul.u32.u64.compose %v6977, %v6976
        %v6979 = vextract.low.u32 %v6978
        %v6980 = vextract.high.u32 %v6978
        %v6981 = vmul.u32.u64.compose %v6977, %v6972
        %v6982 = vextract.low.u32 %v6981
        %v6983 = vextract.high.u32 %v6981
        %v6984 = vmul.u32 %v6977, %v6968
        %v6985 = vadd.s32 %v6980, %v6982
        %vm6986 = vc.u32 %v6980, %v6982
        %v6987 = vadd.s32 %v6983, 1
        %v6988 = vsel %vm6986, %v6987, %v6983
        %v6989 = vadd.s32 %v6984, %v6988
        %v6990 = vadd.s32 %v6989, 536870912
        %v6991 = vshrl.u32 %v6990, 30
        %v6992 = vshll.u32 %v6991, 30
        %v6993 = vsub.s32 %v6989, %v6992
        %vm6994 = vcmp.lt.s32.totalorder %v6993, 0
        %v6995 = vsub.s32 0, %v6993
        %v6996 = vsel %vm6994, %v6995, %v6993
        %v6997 = vclz %v6996
        %v6998 = vsub.s32 %v6997, 2
        %vm6999 = vcmp.gt.s32.totalorder 0, %v6998
        %v7000 = vsel %vm6999, 0, %v6998
        %v7001 = vsub.s32 32, %v7000
        %v7002 = vshll.u32 %v6993, %v7000
        %v7003 = vshrl.u32 %v6985, %v7001
        %v7004 = vor.u32 %v7002, %v7003
        %v7005 = vsub.s32 4294967266, %v7000
        %v7006 = vadd.s32 %v7005, 127
        %v7007 = vshll.u32 %v7006, 23
        %v7008 = vor.u32 4788187, %v7007
        %v7009 = vand.u32 2147483647, %v7008
        %v7011 = vcvt.s32.f32 %v7004
        %v7012 = vmul.f32 %v7011, %v7009
        %v7013 = vxor.u32 %v7012, 2147483648
        %v7014 = vsel %vm6931, %v7013, %v7012
        %v7015 = vsub.s32 4, %v6991
        %v7016 = vsel %vm6931, %v7015, %v6991
        %v7017 = vsel %vm6930, %v375, %v7014
        %v7018 = vsel %vm6930, 0, %v7016
        %v7019 = vcosq.f32.pop %v7017
        %v7020 = vsinq.f32.pop %v7017
        %vm7021 = vweird.f32 %v375
        %v7022 = vand.u32 %v7018, 3
        %vm7023 = vcmp.lt.s32.totalorder %v7022, 2
        %vm7024 = vcmp.eq.s32.totalorder %v7022, 0
        %v7025 = vxor.u32 %v7020, 2147483648
        %v7026 = vsel %vm7024, %v7019, %v7025
        %vm7027 = vcmp.eq.s32.totalorder %v7022, 2
        %v7028 = vxor.u32 %v7019, 2147483648
        %v7029 = vsel %vm7027, %v7028, %v7020
        %v7030 = vsel %vm7023, %v7026, %v7029
        %v7031 = vsel %vm7021, nan, %v7030
        %7032 = vst [vmem:[%s137 + $0x8] sm:$0xff] %v3838
        %7033 = vst [vmem:[%s137 + $0x18] sm:$0xff] %v3941
        %7034 = vst [vmem:[%s137 + $0x28] sm:$0xff] %v4044
        %7035 = vst [vmem:[%s137 + $0x38] sm:$0xff] %v4147
        %7036 = vst [vmem:[%s137 + $0x48] sm:$0xff] %v4250
        %7037 = vst [vmem:[%s137 + $0x58] sm:$0xff] %v4353
        %7038 = vst [vmem:[%s137 + $0x68] sm:$0xff] %v4456
        %7039 = vst [vmem:[%s137 + $0x78] sm:$0xff] %v4559
        %7040 = vst [vmem:[%s137 + $0x88] sm:$0xff] %v4662
        %7041 = vst [vmem:[%s137 + $0x98] sm:$0xff] %v4765
        %7042 = vst [vmem:[%s137 + $0xa8] sm:$0xff] %v4868
        %7043 = vst [vmem:[%s137 + $0xb8] sm:$0xff] %v4971
        %7044 = vst [vmem:[%s137 + $0xc8] sm:$0xff] %v5074
        %7045 = vst [vmem:[%s137 + $0xd8] sm:$0xff] %v5177
        %7046 = vst [vmem:[%s137 + $0xe8] sm:$0xff] %v5280
        %7047 = vst [vmem:[%s137 + $0xf8] sm:$0xff] %v5383
        %7048 = vst [vmem:[%s137 + $0x108] sm:$0xff] %v5486
        %7049 = vst [vmem:[%s137 + $0x118] sm:$0xff] %v5589
        %7050 = vst [vmem:[%s137 + $0x128] sm:$0xff] %v5692
        %7051 = vst [vmem:[%s137 + $0x138] sm:$0xff] %v5795
        %7052 = vst [vmem:[%s137 + $0x148] sm:$0xff] %v5898
        %7053 = vst [vmem:[%s137 + $0x158] sm:$0xff] %v6001
        %7054 = vst [vmem:[%s137 + $0x168] sm:$0xff] %v6104
        %7055 = vst [vmem:[%s137 + $0x178] sm:$0xff] %v6207
        %7056 = vst [vmem:[%s137 + $0x188] sm:$0xff] %v6310
        %7057 = vst [vmem:[%s137 + $0x198] sm:$0xff] %v6413
        %7058 = vst [vmem:[%s137 + $0x1a8] sm:$0xff] %v6516
        %7059 = vst [vmem:[%s137 + $0x1b8] sm:$0xff] %v6619
        %7060 = vst [vmem:[%s137 + $0x1c8] sm:$0xff] %v6722
        %7061 = vst [vmem:[%s137 + $0x1d8] sm:$0xff] %v6825
        %7062 = vst [vmem:[%s137 + $0x1e8] sm:$0xff] %v6928
        %7063 = vst [vmem:[%s137 + $0x1f8] sm:$0xff] %v7031
        %s7064 = sand.u32 %s71, 1
        %s7065 = scalar_lea.sflag [#allocation3], %s7064
        %s7066 = sand.u32 %s71, 1
        %s7067 = smul.addr %s7066, 512
        %s7068 = scalar_lea.vmem [#allocation2], %s7067
        // Predicated region
        $region29: #{tpu_custom_call.1} parent=27 // pred_check
          %p7069 = pneg %p81
        $region30: #{tpu_custom_call.1} parent=27 // pred_check_branch
          %7071 = sbr.rel (%p7069) target = $region32
        $region31: #{tpu_custom_call.1} parent=27 // pred_region
          %s7072 = smul.u32 32, %s16
          %s7074 = ssub.s32 8192, 8192
          %7075 = vsyncadd %s7065, %s7074
          %s7076 = smul.addr %s7072, 2
          %s7077 = smul.addr %s7076, 128
          %s7078 = scalar_lea.hbm %s2, %s7077
          %s7079 = sshll.u32 %s7068, 4
          %s7080 = int_to_ptr.vmem [resolvable:$true] %s7079
          %7085 = dma.vmem_to_hbm [thread:$0]  %s7080, 8192, %s7078, %s7065, 256, 256, 16
        $region32: #{tpu_custom_call.1} parent=27 // pred_fallthru
          _
      $region28: #{tpu_custom_call.1} parent=5 // pred_fallthru
        _
      %p7086 = scmp.le.s32.totalorder 2, %s11
      // Predicated region
      $region33: #{tpu_custom_call.1} parent=5 // pred_check
        %p7087 = pneg %p7086
      $region34: #{tpu_custom_call.1} parent=5 // pred_check_branch
        %7089 = sbr.rel (%p7087) target = $region36
      $region35: #{tpu_custom_call.1} parent=5 // pred_region
        %s7090 = ssub.s32 %s11, 2
        // Predicated region
        $region37: #{tpu_custom_call.1} parent=35 // pred_check
          %p7091 = pneg %p87
        $region38: #{tpu_custom_call.1} parent=35 // pred_check_branch
          %7093 = sbr.rel (%p7091) target = $region40
        $region39: #{tpu_custom_call.1} parent=35 // pred_region
          %s7094 = sand.u32 %s72, 1
          %s7095 = scalar_lea.sflag [#allocation3], %s7094
          %s7096 = sand.u32 %s72, 1
          %s7097 = smul.addr %s7096, 512
          %s7098 = scalar_lea.vmem [#allocation2], %s7097
          %7099 = dma.done %s7095, 8192
        $region40: #{tpu_custom_call.1} parent=35 // pred_fallthru
          _
      $region36: #{tpu_custom_call.1} parent=5 // pred_fallthru
        _
    $region6: #{tpu_custom_call.1} parent=1 // loop_footer
      %s15 = sadd.s32 1, %s11
    $region7: #{tpu_custom_call.1} parent=1 // loop_footer_branch
      %10 = sbr.rel target = $region3
    $region8: #{tpu_custom_call.1} parent=1 // loop_exit
      _
    %7100 = vsyncpa [#allocation3], 1
    %s7101 = scalar_lea.sflag [#allocation3], 1
    %7102 = vsyncpa %s7101, 1

</llo_original>
